<compile_context>
chip_gen: v6e
topology: v6e:2x2x1
jax: 0.10.0
libtpu: 0.0.40
codegen_flags: <defaults>
</compile_context>

<pallas_src>
import math
import functools

import jax
import jax.numpy as jnp
from jax import lax
from jax.experimental import pallas as pl
from jax.experimental.pallas import tpu as pltpu

EPS = 1e-5  # nn.LayerNorm default eps


# ----------------------------------------------------------------------------
# In-kernel math helpers (pure jnp/lax, traced inside the kernel, f32)
# ----------------------------------------------------------------------------
def _gelu(x):
    # TODO(synk): tanh-approximate GELU (EUP-friendly). PyTorch nn.GELU()
    # default uses exact erf; max abs deviation of this approx is ~3e-4.
    c = math.sqrt(2.0 / math.pi)
    return 0.5 * x * (1.0 + jnp.tanh(c * (x + 0.044715 * x * x * x)))


def _layernorm(x, g, b):
    mean = jnp.mean(x, axis=-1, keepdims=True)
    var = jnp.mean(jnp.square(x - mean), axis=-1, keepdims=True)
    return (x - mean) * lax.rsqrt(var + EPS) * g + b


# ----------------------------------------------------------------------------
# Fused forward kernel: one grid step == one batch TILE, end to end.
# ----------------------------------------------------------------------------
def fused_vit_kernel(patches_ref,        # (BT*N, K)   bf16
                     patch_w_ref,        # (K, D)      bf16
                     pos_base_ref,       # (SP, D)     f32  (cls+pos0 | pos+patch_b | 0)
                     wqkvo_ref,          # (L, D, 4D)  bf16 ([Q*scale | K | V | O])
                     lvec_ref,           # (L, 8, W)   f32  (LN params + biases)
                     w1_ref,             # (L, D, M)   bf16
                     w2_ref,             # (L, M, D)   bf16
                     head_w_ref,         # (D, C)      bf16
                     gvec_ref,           # (3, D)      f32  (cls LN g/b, head_b)
                     o_ref,              # (BT, C)     f32
                     x_scr,              # (BT*SP, D)  f32 VMEM scratch
                     *, num_layers, num_heads, head_dim, seq_len, seq_pad,
                     num_patches, batch_tile, mlp_size, num_classes):
    H, dh = num_heads, head_dim
    D = H * dh
    S, SP, N, BT = seq_len, seq_pad, num_patches, batch_tile
    M, C = mlp_size, num_classes
    R = BT * SP

    # ---- patch embedding: one (BT*N, K) @ (K, D) bf16 matmul, f32 acc -------
    emb = jnp.dot(patches_ref[...], patch_w_ref[...],
                  preferred_element_type=jnp.float32)            # (BT*N, D)

    # ---- token assembly via slice-writes into VMEM scratch ------------------
    # pos_base row 0 already holds cls + pos[0]; rows 1..S-1 hold pos + patch_b;
    # rows S..SP-1 are zero (padded keys are masked below).
    pos = pos_base_ref[...]                                      # (SP, D) f32
    tail = jnp.zeros((SP - 1 - N, D), jnp.float32)
    for bt in range(BT):
        r = bt * SP
        x_scr[r:r + 1, :] = pos[0:1, :]
        x_scr[r + 1:r + 1 + N, :] = emb[bt * N:(bt + 1) * N, :] + pos[1:1 + N, :]
        x_scr[r + 1 + N:r + SP, :] = tail
    x = x_scr[...]                                               # (R, D) f32

    # additive key-padding mask (hoisted outside the layer loop)
    col = lax.broadcasted_iota(jnp.int32, (SP, SP), 1)
    kmask = jnp.where(col < S, 0.0, -1e30).astype(jnp.float32)   # (SP, SP)

    for l in range(num_layers):
        wqkvo = wqkvo_ref[l]                                     # (D, 4D) bf16
        lv = lvec_ref[l]                                         # (8, W)  f32
        ln1g, ln1b = lv[0:1, :D], lv[1:2, :D]
        ln2g, ln2b = lv[2:3, :D], lv[3:4, :D]
        bo, b2 = lv[4:5, :D], lv[5:6, :D]
        b1 = lv[6:7, :M]
        bqkv = lv[7:8, :3 * D]

        # ------------------------- MSA block ---------------------------------
        xn = _layernorm(x, ln1g, ln1b)                           # (R, D) f32
        qkv = jnp.dot(xn.astype(jnp.bfloat16), wqkvo[:, :3 * D],
                      preferred_element_type=jnp.float32) + bqkv  # (R, 3D) f32
        q, k, v = qkv[:, :D], qkv[:, D:2 * D], qkv[:, 2 * D:]

        ctx_parts = []
        for h in range(H):
            sl = slice(h * dh, (h + 1) * dh)
            qh = q[:, sl].reshape(BT, SP, dh).astype(jnp.bfloat16)
            kh = k[:, sl].reshape(BT, SP, dh).astype(jnp.bfloat16)
            vh = v[:, sl].reshape(BT, SP, dh).astype(jnp.bfloat16)
            # 1/sqrt(dh) already folded into the Q weights/bias at init.
            s = jnp.einsum('bqe,bke->bqk', qh, kh,
                           preferred_element_type=jnp.float32) + kmask[None]
            m = jnp.max(s, axis=-1, keepdims=True)
            p = jnp.exp(s - m)
            p = p * pl.reciprocal(jnp.sum(p, axis=-1, keepdims=True), approx=True)
            ctxh = jnp.einsum('bqk,bke->bqe', p.astype(jnp.bfloat16), vh,
                              preferred_element_type=jnp.float32)  # (BT,SP,dh)
            ctx_parts.append(ctxh.reshape(R, dh))
        # single lane concat of head contexts, then one full-width out-proj
        ctx = jnp.concatenate(ctx_parts, axis=-1).astype(jnp.bfloat16)  # (R, D)
        attn = jnp.dot(ctx, wqkvo[:, 3 * D:],
                       preferred_element_type=jnp.float32) + bo
        x = x + attn

        # ------------------------- MLP block ----------------------------------
        xn2 = _layernorm(x, ln2g, ln2b)
        h1 = jnp.dot(xn2.astype(jnp.bfloat16), w1_ref[l],
                     preferred_element_type=jnp.float32) + b1    # (R, M) f32
        h1 = _gelu(h1)
        h2 = jnp.dot(h1.astype(jnp.bfloat16), w2_ref[l],
                     preferred_element_type=jnp.float32) + b2    # (R, D) f32
        x = x + h2

    # ---- classifier head on each sequence's class token (row bt*SP) ---------
    cls_rows = jnp.concatenate([x[bt * SP:bt * SP + 1, :] for bt in range(BT)],
                               axis=0)                           # (BT, D)
    gv = gvec_ref[...]                                           # (3, D) f32
    cn = _layernorm(cls_rows, gv[0:1, :], gv[1:2, :])
    o_ref[...] = jnp.dot(cn.astype(jnp.bfloat16), head_w_ref[...],
                         preferred_element_type=jnp.float32) + gv[2:3, :C]


# ----------------------------------------------------------------------------
# JAX glue: patch extraction, packed parameter init, pallas_call wrapper
# ----------------------------------------------------------------------------
def extract_patches(x, patch_size):
    # NCHW [B, C, H, W] -> [B, N, C*p*p] (same element ordering as a flattened
    # Conv2d weight [E, C, p, p]).
    B, C, H, W = x.shape
    p = patch_size
    gh, gw = H // p, W // p
    x = x.reshape(B, C, gh, p, gw, p)
    x = x.transpose(0, 2, 4, 1, 3, 5)          # B, gh, gw, C, p, p
    return x.reshape(B, gh * gw, C * p * p)


def init_params(key, *, in_channels, patch_size, embedding_dim, mlp_size,
                num_heads, num_layers, num_classes, num_patches, seq_pad):
    D, M, NH, L, C = embedding_dim, mlp_size, num_heads, num_layers, num_classes
    dh = D // NH
    K = in_channels * patch_size * patch_size
    S = num_patches + 1
    W = max(3 * D, M, D)                        # width of the per-layer vec slab
    assert C <= D

    counter = [0]

    def nk():
        counter[0] += 1
        return jax.random.fold_in(key, counter[0])

    def nrm(shape, scale=0.02):
        return scale * jax.random.normal(nk(), shape, jnp.float32)

    # ---- globals -------------------------------------------------------------
    patch_w = nrm((K, D))
    patch_b = nrm((1, D))
    cls = jax.random.normal(nk(), (1, D), jnp.float32)
    pos = jax.random.normal(nk(), (S, D), jnp.float32)
    # pos_base: row 0 = cls + pos[0]; rows 1..S-1 = pos + patch_b; tail = 0
    pos_base = jnp.zeros((seq_pad, D), jnp.float32)
    pos_base = pos_base.at[0:1].set(pos[0:1] + cls)
    pos_base = pos_base.at[1:S].set(pos[1:S] + patch_b)

    head_w = nrm((D, C))
    head_b = nrm((1, C))
    gvec = jnp.zeros((3, D), jnp.float32)
    gvec = gvec.at[0].set(1.0)                  # classifier LN gamma
    gvec = gvec.at[2, :C].set(head_b[0])        # head bias (lane-padded)

    # ---- per-layer (packed slabs) --------------------------------------------
    scale = 1.0 / math.sqrt(dh)
    wqkvo_list, lvec_list, w1_list, w2_list = [], [], [], []
    for _ in range(L):
        wq = nrm((D, D)) * scale                # fold 1/sqrt(dh) into Wq
        wk, wv, wo = nrm((D, D)), nrm((D, D)), nrm((D, D))
        wqkvo_list.append(jnp.concatenate([wq, wk, wv, wo], axis=1))   # (D, 4D)

        bq = nrm((D,)) * scale                  # fold scale into Q bias too
        bk, bv = nrm((D,)), nrm((D,))
        bo, b1, b2 = nrm((D,)), nrm((M,)), nrm((D,))
        lv = jnp.zeros((8, W), jnp.float32)
        lv = lv.at[0, :D].set(1.0)              # ln1 gamma (beta row 1 = 0)
        lv = lv.at[2, :D].set(1.0)              # ln2 gamma (beta row 3 = 0)
        lv = lv.at[4, :D].set(bo)
        lv = lv.at[5, :D].set(b2)
        lv = lv.at[6, :M].set(b1)
        lv = lv.at[7, :3 * D].set(jnp.concatenate([bq, bk, bv]))
        lvec_list.append(lv)

        w1_list.append(nrm((D, M)))
        w2_list.append(nrm((M, D)))

    return {
        'patch_w': patch_w.astype(jnp.bfloat16),
        'pos_base': pos_base,                                   # f32
        'wqkvo': jnp.stack(wqkvo_list).astype(jnp.bfloat16),    # (L, D, 4D)
        'lvec': jnp.stack(lvec_list),                           # (L, 8, W) f32
        'w1': jnp.stack(w1_list).astype(jnp.bfloat16),          # (L, D, M)
        'w2': jnp.stack(w2_list).astype(jnp.bfloat16),          # (L, M, D)
        'head_w': head_w.astype(jnp.bfloat16),                  # (D, C)
        'gvec': gvec,                                           # (3, D) f32
    }


def _zero_map(nd):
    return lambda g: (0,) * nd


def lilvit_forward(x, params, *, patch_size, num_heads, num_layers,
                   seq_len, seq_pad, batch_tile):
    B = x.shape[0]
    BT = batch_tile
    assert B % BT == 0
    G = B // BT

    patches = extract_patches(x, patch_size)                     # (B, N, K) f32
    _, N, K = patches.shape
    patches = patches.reshape(B * N, K).astype(jnp.bfloat16)     # fold batch rows

    D = params['patch_w'].shape[1]
    C = params['head_w'].shape[1]
    M = params['w1'].shape[2]

    args = [patches, params['patch_w'], params['pos_base'], params['wqkvo'],
            params['lvec'], params['w1'], params['w2'],
            params['head_w'], params['gvec']]

    in_specs = [pl.BlockSpec((BT * N, K), lambda g: (g, 0))]
    for a in args[1:]:
        in_specs.append(pl.BlockSpec(a.shape, _zero_map(a.ndim)))

    kernel = functools.partial(
        fused_vit_kernel,
        num_layers=num_layers, num_heads=num_heads, head_dim=D // num_heads,
        seq_len=seq_len, seq_pad=seq_pad, num_patches=N,
        batch_tile=BT, mlp_size=M, num_classes=C)

    out = pl.pallas_call(
        kernel,
        out_shape=jax.ShapeDtypeStruct((G, BT, C), jnp.float32),
        grid=(G,),
        in_specs=in_specs,
        out_specs=pl.BlockSpec((None, BT, C), lambda g: (g, 0, 0)),
        scratch_shapes=[pltpu.VMEM((BT * seq_pad, D), jnp.float32)],
        compiler_params=pltpu.CompilerParams(
            dimension_semantics=("parallel",)),
    )(*args)
    return out.reshape(B, C)


# ----------------------------------------------------------------------------
if __name__ == "__main__":
    # Small, ViT-consistent, lane-friendly shapes
    B, CIN, IMG = 8, 3, 32
    PATCH = 8
    D, MLP, HEADS, LAYERS, CLASSES = 128, 256, 4, 2, 16
    NUM_PATCHES = (IMG // PATCH) ** 2                      # 16
    SEQ = NUM_PATCHES + 1                                  # 17
    SEQ_PAD = ((SEQ + 7) // 8) * 8                         # 24 (sublane multiple)
    B_TILE = 4                                             # grid=(2,): one fat tile per v7x TC

    key = jax.random.PRNGKey(0)
    kx, kp = jax.random.split(key)
    x = jax.random.normal(kx, (B, CIN, IMG, IMG), jnp.float32)

    params = init_params(kp, in_channels=CIN, patch_size=PATCH,
                         embedding_dim=D, mlp_size=MLP, num_heads=HEADS,
                         num_layers=LAYERS, num_classes=CLASSES,
                         num_patches=NUM_PATCHES, seq_pad=SEQ_PAD)

    logits = lilvit_forward(x, params, patch_size=PATCH, num_heads=HEADS,
                            num_layers=LAYERS, seq_len=SEQ, seq_pad=SEQ_PAD,
                            batch_tile=B_TILE)
    jax.block_until_ready(logits)
    assert logits.shape == (B, CLASSES), logits.shape
    assert bool(jnp.all(jnp.isfinite(logits)))
    print("KERNEL_OK")
</pallas_src>

<mosaic_0001>
module attributes {stable_mosaic.version = 11 : i64} {
  func.func @fused_vit_kernel(%arg0: i32, %arg1: memref<64x192xbf16, #tpu.memory_space<vmem>>, %arg2: memref<192x128xbf16, #tpu.memory_space<vmem>>, %arg3: memref<24x128xf32, #tpu.memory_space<vmem>>, %arg4: memref<2x128x512xbf16, #tpu.memory_space<vmem>>, %arg5: memref<2x8x384xf32, #tpu.memory_space<vmem>>, %arg6: memref<2x128x256xbf16, #tpu.memory_space<vmem>>, %arg7: memref<2x256x128xbf16, #tpu.memory_space<vmem>>, %arg8: memref<128x16xbf16, #tpu.memory_space<vmem>>, %arg9: memref<3x128xf32, #tpu.memory_space<vmem>>, %arg10: memref<1x4x16xf32, #tpu.memory_space<vmem>>, %arg11: memref<96x128xf32, #tpu.memory_space<vmem>>) attributes {dimension_semantics = [#tpu.dimension_semantics<parallel>], iteration_bounds = array<i64: 2>, scalar_prefetch = 0 : i64, scratch_operands = 1 : i64, tpu.core_type = #tpu.core_type<tc>, window_params = [{transform_indices = @transform_0, window_bounds = array<i64: 64, 192>}, {pipeline_mode = #tpu.pipeline_mode<synchronous>, transform_indices = @transform_1, window_bounds = array<i64: 192, 128>}, {pipeline_mode = #tpu.pipeline_mode<synchronous>, transform_indices = @transform_2, window_bounds = array<i64: 24, 128>}, {pipeline_mode = #tpu.pipeline_mode<synchronous>, transform_indices = @transform_3, window_bounds = array<i64: 2, 128, 512>}, {pipeline_mode = #tpu.pipeline_mode<synchronous>, transform_indices = @transform_4, window_bounds = array<i64: 2, 8, 384>}, {pipeline_mode = #tpu.pipeline_mode<synchronous>, transform_indices = @transform_5, window_bounds = array<i64: 2, 128, 256>}, {pipeline_mode = #tpu.pipeline_mode<synchronous>, transform_indices = @transform_6, window_bounds = array<i64: 2, 256, 128>}, {pipeline_mode = #tpu.pipeline_mode<synchronous>, transform_indices = @transform_7, window_bounds = array<i64: 128, 16>}, {pipeline_mode = #tpu.pipeline_mode<synchronous>, transform_indices = @transform_8, window_bounds = array<i64: 3, 128>}, {transform_indices = @transform_9, window_bounds = array<i64: 1, 4, 16>}]} {
    %c0 = arith.constant 0 : index
    %c0_0 = arith.constant 0 : index
    %0 = vector.load %arg1[%c0, %c0_0] : memref<64x192xbf16, #tpu.memory_space<vmem>>, vector<64x192xbf16>
    %c0_1 = arith.constant 0 : index
    %c0_2 = arith.constant 0 : index
    %1 = vector.load %arg2[%c0_1, %c0_2] : memref<192x128xbf16, #tpu.memory_space<vmem>>, vector<192x128xbf16>
    %cst = arith.constant dense<0.000000e+00> : vector<64x128xf32>
    %2 = tpu.matmul %0, %1, %cst {dimension_numbers = #tpu.dot_dimension_numbers<[1], [0], [0], [1], [0, 0, 1, 1], [], []>} : vector<64x192xbf16>, vector<192x128xbf16>, vector<64x128xf32> -> vector<64x128xf32>
    %c0_3 = arith.constant 0 : index
    %c0_4 = arith.constant 0 : index
    %3 = vector.load %arg3[%c0_3, %c0_4] : memref<24x128xf32, #tpu.memory_space<vmem>>, vector<24x128xf32>
    %cst_5 = arith.constant 0.000000e+00 : f32
    %4 = vector.broadcast %cst_5 : f32 to vector<7x128xf32>
    %5 = vector.extract_strided_slice %3 {offsets = [0, 0], sizes = [1, 128], strides = [1, 1]} : vector<24x128xf32> to vector<1x128xf32>
    %c0_6 = arith.constant 0 : index
    %c0_7 = arith.constant 0 : index
    %6 = vector.load %arg11[%c0_6, %c0_7] : memref<96x128xf32, #tpu.memory_space<vmem>>, vector<1x128xf32>
    tpu.vector_store %arg11[%c0_6, %c0_7], %5 {strides = array<i32>} : memref<96x128xf32, #tpu.memory_space<vmem>>, vector<1x128xf32>,
    %7 = vector.extract_strided_slice %2 {offsets = [0, 0], sizes = [16, 128], strides = [1, 1]} : vector<64x128xf32> to vector<16x128xf32>
    %8 = vector.extract_strided_slice %3 {offsets = [1, 0], sizes = [16, 128], strides = [1, 1]} : vector<24x128xf32> to vector<16x128xf32>
    %9 = arith.addf %7, %8 : vector<16x128xf32>
    %c1 = arith.constant 1 : index
    %c0_8 = arith.constant 0 : index
    %10 = vector.load %arg11[%c1, %c0_8] : memref<96x128xf32, #tpu.memory_space<vmem>>, vector<16x128xf32>
    tpu.vector_store %arg11[%c1, %c0_8], %9 {strides = array<i32>} : memref<96x128xf32, #tpu.memory_space<vmem>>, vector<16x128xf32>,
    %c17 = arith.constant 17 : index
    %c0_9 = arith.constant 0 : index
    %11 = vector.load %arg11[%c17, %c0_9] : memref<96x128xf32, #tpu.memory_space<vmem>>, vector<7x128xf32>
    tpu.vector_store %arg11[%c17, %c0_9], %4 {strides = array<i32>} : memref<96x128xf32, #tpu.memory_space<vmem>>, vector<7x128xf32>,
    %12 = vector.extract_strided_slice %3 {offsets = [0, 0], sizes = [1, 128], strides = [1, 1]} : vector<24x128xf32> to vector<1x128xf32>
    %c24 = arith.constant 24 : index
    %c0_10 = arith.constant 0 : index
    %13 = vector.load %arg11[%c24, %c0_10] : memref<96x128xf32, #tpu.memory_space<vmem>>, vector<1x128xf32>
    tpu.vector_store %arg11[%c24, %c0_10], %12 {strides = array<i32>} : memref<96x128xf32, #tpu.memory_space<vmem>>, vector<1x128xf32>,
    %14 = vector.extract_strided_slice %2 {offsets = [16, 0], sizes = [16, 128], strides = [1, 1]} : vector<64x128xf32> to vector<16x128xf32>
    %15 = vector.extract_strided_slice %3 {offsets = [1, 0], sizes = [16, 128], strides = [1, 1]} : vector<24x128xf32> to vector<16x128xf32>
    %16 = arith.addf %14, %15 : vector<16x128xf32>
    %c25 = arith.constant 25 : index
    %c0_11 = arith.constant 0 : index
    %17 = vector.load %arg11[%c25, %c0_11] : memref<96x128xf32, #tpu.memory_space<vmem>>, vector<16x128xf32>
    tpu.vector_store %arg11[%c25, %c0_11], %16 {strides = array<i32>} : memref<96x128xf32, #tpu.memory_space<vmem>>, vector<16x128xf32>,
    %c41 = arith.constant 41 : index
    %c0_12 = arith.constant 0 : index
    %18 = vector.load %arg11[%c41, %c0_12] : memref<96x128xf32, #tpu.memory_space<vmem>>, vector<7x128xf32>
    tpu.vector_store %arg11[%c41, %c0_12], %4 {strides = array<i32>} : memref<96x128xf32, #tpu.memory_space<vmem>>, vector<7x128xf32>,
    %19 = vector.extract_strided_slice %3 {offsets = [0, 0], sizes = [1, 128], strides = [1, 1]} : vector<24x128xf32> to vector<1x128xf32>
    %c48 = arith.constant 48 : index
    %c0_13 = arith.constant 0 : index
    %20 = vector.load %arg11[%c48, %c0_13] : memref<96x128xf32, #tpu.memory_space<vmem>>, vector<1x128xf32>
    tpu.vector_store %arg11[%c48, %c0_13], %19 {strides = array<i32>} : memref<96x128xf32, #tpu.memory_space<vmem>>, vector<1x128xf32>,
    %21 = vector.extract_strided_slice %2 {offsets = [32, 0], sizes = [16, 128], strides = [1, 1]} : vector<64x128xf32> to vector<16x128xf32>
    %22 = vector.extract_strided_slice %3 {offsets = [1, 0], sizes = [16, 128], strides = [1, 1]} : vector<24x128xf32> to vector<16x128xf32>
    %23 = arith.addf %21, %22 : vector<16x128xf32>
    %c49 = arith.constant 49 : index
    %c0_14 = arith.constant 0 : index
    %24 = vector.load %arg11[%c49, %c0_14] : memref<96x128xf32, #tpu.memory_space<vmem>>, vector<16x128xf32>
    tpu.vector_store %arg11[%c49, %c0_14], %23 {strides = array<i32>} : memref<96x128xf32, #tpu.memory_space<vmem>>, vector<16x128xf32>,
    %c65 = arith.constant 65 : index
    %c0_15 = arith.constant 0 : index
    %25 = vector.load %arg11[%c65, %c0_15] : memref<96x128xf32, #tpu.memory_space<vmem>>, vector<7x128xf32>
    tpu.vector_store %arg11[%c65, %c0_15], %4 {strides = array<i32>} : memref<96x128xf32, #tpu.memory_space<vmem>>, vector<7x128xf32>,
    %26 = vector.extract_strided_slice %3 {offsets = [0, 0], sizes = [1, 128], strides = [1, 1]} : vector<24x128xf32> to vector<1x128xf32>
    %c72 = arith.constant 72 : index
    %c0_16 = arith.constant 0 : index
    %27 = vector.load %arg11[%c72, %c0_16] : memref<96x128xf32, #tpu.memory_space<vmem>>, vector<1x128xf32>
    tpu.vector_store %arg11[%c72, %c0_16], %26 {strides = array<i32>} : memref<96x128xf32, #tpu.memory_space<vmem>>, vector<1x128xf32>,
    %28 = vector.extract_strided_slice %2 {offsets = [48, 0], sizes = [16, 128], strides = [1, 1]} : vector<64x128xf32> to vector<16x128xf32>
    %29 = vector.extract_strided_slice %3 {offsets = [1, 0], sizes = [16, 128], strides = [1, 1]} : vector<24x128xf32> to vector<16x128xf32>
    %30 = arith.addf %28, %29 : vector<16x128xf32>
    %c73 = arith.constant 73 : index
    %c0_17 = arith.constant 0 : index
    %31 = vector.load %arg11[%c73, %c0_17] : memref<96x128xf32, #tpu.memory_space<vmem>>, vector<16x128xf32>
    tpu.vector_store %arg11[%c73, %c0_17], %30 {strides = array<i32>} : memref<96x128xf32, #tpu.memory_space<vmem>>, vector<16x128xf32>,
    %c89 = arith.constant 89 : index
    %c0_18 = arith.constant 0 : index
    %32 = vector.load %arg11[%c89, %c0_18] : memref<96x128xf32, #tpu.memory_space<vmem>>, vector<7x128xf32>
    tpu.vector_store %arg11[%c89, %c0_18], %4 {strides = array<i32>} : memref<96x128xf32, #tpu.memory_space<vmem>>, vector<7x128xf32>,
    %c0_19 = arith.constant 0 : index
    %c0_20 = arith.constant 0 : index
    %33 = vector.load %arg11[%c0_19, %c0_20] : memref<96x128xf32, #tpu.memory_space<vmem>>, vector<96x128xf32>
    %34 = tpu.iota {dimensions = array<i32: 1>} : vector<24x24xi32>
    %c17_i32 = arith.constant 17 : i32
    %35 = vector.broadcast %c17_i32 : i32 to vector<24x24xi32>
    %36 = arith.cmpi slt, %34, %35 : vector<24x24xi32>
    %cst_21 = arith.constant 0.000000e+00 : f32
    %cst_22 = arith.constant -1.000000e+30 : f32
    %37 = vector.broadcast %cst_21 : f32 to vector<24x24xf32>
    %38 = vector.broadcast %cst_22 : f32 to vector<24x24xf32>
    %39 = arith.select %36, %37, %38 : vector<24x24xi1>, vector<24x24xf32>
    %c0_23 = arith.constant 0 : index
    %c0_24 = arith.constant 0 : index
    %c0_25 = arith.constant 0 : index
    %40 = vector.load %arg4[%c0_23, %c0_24, %c0_25] : memref<2x128x512xbf16, #tpu.memory_space<vmem>>, vector<1x128x512xbf16>
    %41 = vector.shape_cast %40 : vector<1x128x512xbf16> to vector<128x512xbf16>
    %c0_26 = arith.constant 0 : index
    %c0_27 = arith.constant 0 : index
    %c0_28 = arith.constant 0 : index
    %42 = vector.load %arg5[%c0_26, %c0_27, %c0_28] : memref<2x8x384xf32, #tpu.memory_space<vmem>>, vector<1x8x384xf32>
    %43 = vector.shape_cast %42 : vector<1x8x384xf32> to vector<8x384xf32>
    %44 = vector.extract_strided_slice %43 {offsets = [0, 0], sizes = [1, 128], strides = [1, 1]} : vector<8x384xf32> to vector<1x128xf32>
    %45 = vector.extract_strided_slice %43 {offsets = [1, 0], sizes = [1, 128], strides = [1, 1]} : vector<8x384xf32> to vector<1x128xf32>
    %46 = vector.extract_strided_slice %43 {offsets = [2, 0], sizes = [1, 128], strides = [1, 1]} : vector<8x384xf32> to vector<1x128xf32>
    %47 = vector.extract_strided_slice %43 {offsets = [3, 0], sizes = [1, 128], strides = [1, 1]} : vector<8x384xf32> to vector<1x128xf32>
    %48 = vector.extract_strided_slice %43 {offsets = [4, 0], sizes = [1, 128], strides = [1, 1]} : vector<8x384xf32> to vector<1x128xf32>
    %49 = vector.extract_strided_slice %43 {offsets = [5, 0], sizes = [1, 128], strides = [1, 1]} : vector<8x384xf32> to vector<1x128xf32>
    %50 = vector.extract_strided_slice %43 {offsets = [6, 0], sizes = [1, 256], strides = [1, 1]} : vector<8x384xf32> to vector<1x256xf32>
    %51 = vector.extract_strided_slice %43 {offsets = [7, 0], sizes = [1, 384], strides = [1, 1]} : vector<8x384xf32> to vector<1x384xf32>
    %cst_29 = arith.constant dense<0.000000e+00> : vector<96xf32>
    %52 = vector.multi_reduction <add>, %33, %cst_29 [1] : vector<96x128xf32> to vector<96xf32>
    %53 = vector.shape_cast %52 : vector<96xf32> to vector<96x1xf32>
    %cst_30 = arith.constant 1.280000e+02 : f32
    %54 = vector.broadcast %cst_30 : f32 to vector<96x1xf32>
    %55 = arith.divf %53, %54 : vector<96x1xf32>
    %56 = vector.broadcast %55 : vector<96x1xf32> to vector<96x128xf32>
    %57 = arith.subf %33, %56 : vector<96x128xf32>
    %58 = arith.mulf %57, %57 : vector<96x128xf32>
    %cst_31 = arith.constant dense<0.000000e+00> : vector<96xf32>
    %59 = vector.multi_reduction <add>, %58, %cst_31 [1] : vector<96x128xf32> to vector<96xf32>
    %60 = vector.shape_cast %59 : vector<96xf32> to vector<96x1xf32>
    %cst_32 = arith.constant 1.280000e+02 : f32
    %61 = vector.broadcast %cst_32 : f32 to vector<96x1xf32>
    %62 = arith.divf %60, %61 : vector<96x1xf32>
    %63 = vector.broadcast %55 : vector<96x1xf32> to vector<96x128xf32>
    %64 = arith.subf %33, %63 : vector<96x128xf32>
    %cst_33 = arith.constant 9.99999974E-6 : f32
    %65 = vector.broadcast %cst_33 : f32 to vector<96x1xf32>
    %66 = arith.addf %62, %65 : vector<96x1xf32>
    %67 = math.rsqrt %66 : vector<96x1xf32>
    %68 = vector.broadcast %67 : vector<96x1xf32> to vector<96x128xf32>
    %69 = arith.mulf %64, %68 : vector<96x128xf32>
    %70 = vector.broadcast %44 : vector<1x128xf32> to vector<96x128xf32>
    %71 = arith.mulf %69, %70 : vector<96x128xf32>
    %72 = vector.broadcast %45 : vector<1x128xf32> to vector<96x128xf32>
    %73 = arith.addf %71, %72 : vector<96x128xf32>
    %74 = arith.truncf %73 : vector<96x128xf32> to vector<96x128xbf16>
    %75 = vector.extract_strided_slice %41 {offsets = [0, 0], sizes = [128, 384], strides = [1, 1]} : vector<128x512xbf16> to vector<128x384xbf16>
    %cst_34 = arith.constant dense<0.000000e+00> : vector<96x384xf32>
    %76 = tpu.matmul %74, %75, %cst_34 {dimension_numbers = #tpu.dot_dimension_numbers<[1], [0], [0], [1], [0, 0, 1, 1], [], []>} : vector<96x128xbf16>, vector<128x384xbf16>, vector<96x384xf32> -> vector<96x384xf32>
    %77 = vector.broadcast %51 : vector<1x384xf32> to vector<96x384xf32>
    %78 = arith.addf %76, %77 : vector<96x384xf32>
    %79 = vector.extract_strided_slice %78 {offsets = [0, 0], sizes = [96, 128], strides = [1, 1]} : vector<96x384xf32> to vector<96x128xf32>
    %80 = vector.extract_strided_slice %78 {offsets = [0, 128], sizes = [96, 128], strides = [1, 1]} : vector<96x384xf32> to vector<96x128xf32>
    %81 = vector.extract_strided_slice %78 {offsets = [0, 256], sizes = [96, 128], strides = [1, 1]} : vector<96x384xf32> to vector<96x128xf32>
    %82 = vector.extract_strided_slice %79 {offsets = [0, 0], sizes = [96, 32], strides = [1, 1]} : vector<96x128xf32> to vector<96x32xf32>
    %83 = vector.shape_cast %82 : vector<96x32xf32> to vector<4x24x32xf32>
    %84 = arith.truncf %83 : vector<4x24x32xf32> to vector<4x24x32xbf16>
    %85 = vector.extract_strided_slice %80 {offsets = [0, 0], sizes = [96, 32], strides = [1, 1]} : vector<96x128xf32> to vector<96x32xf32>
    %86 = vector.shape_cast %85 : vector<96x32xf32> to vector<4x24x32xf32>
    %87 = arith.truncf %86 : vector<4x24x32xf32> to vector<4x24x32xbf16>
    %88 = vector.extract_strided_slice %81 {offsets = [0, 0], sizes = [96, 32], strides = [1, 1]} : vector<96x128xf32> to vector<96x32xf32>
    %89 = vector.shape_cast %88 : vector<96x32xf32> to vector<4x24x32xf32>
    %90 = arith.truncf %89 : vector<4x24x32xf32> to vector<4x24x32xbf16>
    "tpu.trace_start"() <{level = 10 : i32, message = "bqe,bke->bqk"}> : () -> ()
    %cst_35 = arith.constant dense<0.000000e+00> : vector<4x24x24xf32>
    %91 = tpu.matmul %84, %87, %cst_35 {dimension_numbers = #tpu.dot_dimension_numbers<[2], [2], [1], [1], [0, 0, 0, 1, 1, 1], [0], [0]>} : vector<4x24x32xbf16>, vector<4x24x32xbf16>, vector<4x24x24xf32> -> vector<4x24x24xf32>
    "tpu.trace_stop"() : () -> ()
    %92 = vector.shape_cast %39 : vector<24x24xf32> to vector<1x24x24xf32>
    %93 = vector.broadcast %92 : vector<1x24x24xf32> to vector<4x24x24xf32>
    %94 = arith.addf %91, %93 : vector<4x24x24xf32>
    %cst_36 = arith.constant dense<0xFF800000> : vector<4x24xf32>
    %95 = vector.multi_reduction <maximumf>, %94, %cst_36 [2] : vector<4x24x24xf32> to vector<4x24xf32>
    %96 = vector.shape_cast %95 : vector<4x24xf32> to vector<4x24x1xf32>
    %97 = vector.broadcast %96 : vector<4x24x1xf32> to vector<4x24x24xf32>
    %98 = arith.subf %94, %97 : vector<4x24x24xf32>
    %99 = math.exp %98 : vector<4x24x24xf32>
    %cst_37 = arith.constant dense<0.000000e+00> : vector<4x24xf32>
    %100 = vector.multi_reduction <add>, %99, %cst_37 [2] : vector<4x24x24xf32> to vector<4x24xf32>
    %101 = vector.shape_cast %100 : vector<4x24xf32> to vector<4x24x1xf32>
    %102 = tpu.reciprocal %101 {approx = true} : vector<4x24x1xf32> -> vector<4x24x1xf32>
    %103 = vector.broadcast %102 : vector<4x24x1xf32> to vector<4x24x24xf32>
    %104 = arith.mulf %99, %103 : vector<4x24x24xf32>
    %105 = arith.truncf %104 : vector<4x24x24xf32> to vector<4x24x24xbf16>
    "tpu.trace_start"() <{level = 10 : i32, message = "bqk,bke->bqe"}> : () -> ()
    %cst_38 = arith.constant dense<0.000000e+00> : vector<4x24x32xf32>
    %106 = tpu.matmul %105, %90, %cst_38 {dimension_numbers = #tpu.dot_dimension_numbers<[2], [1], [1], [2], [0, 0, 0, 1, 1, 2], [0], [0]>} : vector<4x24x24xbf16>, vector<4x24x32xbf16>, vector<4x24x32xf32> -> vector<4x24x32xf32>
    "tpu.trace_stop"() : () -> ()
    %107 = vector.shape_cast %106 : vector<4x24x32xf32> to vector<96x32xf32>
    %108 = vector.extract_strided_slice %79 {offsets = [0, 32], sizes = [96, 32], strides = [1, 1]} : vector<96x128xf32> to vector<96x32xf32>
    %109 = vector.shape_cast %108 : vector<96x32xf32> to vector<4x24x32xf32>
    %110 = arith.truncf %109 : vector<4x24x32xf32> to vector<4x24x32xbf16>
    %111 = vector.extract_strided_slice %80 {offsets = [0, 32], sizes = [96, 32], strides = [1, 1]} : vector<96x128xf32> to vector<96x32xf32>
    %112 = vector.shape_cast %111 : vector<96x32xf32> to vector<4x24x32xf32>
    %113 = arith.truncf %112 : vector<4x24x32xf32> to vector<4x24x32xbf16>
    %114 = vector.extract_strided_slice %81 {offsets = [0, 32], sizes = [96, 32], strides = [1, 1]} : vector<96x128xf32> to vector<96x32xf32>
    %115 = vector.shape_cast %114 : vector<96x32xf32> to vector<4x24x32xf32>
    %116 = arith.truncf %115 : vector<4x24x32xf32> to vector<4x24x32xbf16>
    "tpu.trace_start"() <{level = 10 : i32, message = "bqe,bke->bqk"}> : () -> ()
    %cst_39 = arith.constant dense<0.000000e+00> : vector<4x24x24xf32>
    %117 = tpu.matmul %110, %113, %cst_39 {dimension_numbers = #tpu.dot_dimension_numbers<[2], [2], [1], [1], [0, 0, 0, 1, 1, 1], [0], [0]>} : vector<4x24x32xbf16>, vector<4x24x32xbf16>, vector<4x24x24xf32> -> vector<4x24x24xf32>
    "tpu.trace_stop"() : () -> ()
    %118 = vector.shape_cast %39 : vector<24x24xf32> to vector<1x24x24xf32>
    %119 = vector.broadcast %118 : vector<1x24x24xf32> to vector<4x24x24xf32>
    %120 = arith.addf %117, %119 : vector<4x24x24xf32>
    %cst_40 = arith.constant dense<0xFF800000> : vector<4x24xf32>
    %121 = vector.multi_reduction <maximumf>, %120, %cst_40 [2] : vector<4x24x24xf32> to vector<4x24xf32>
    %122 = vector.shape_cast %121 : vector<4x24xf32> to vector<4x24x1xf32>
    %123 = vector.broadcast %122 : vector<4x24x1xf32> to vector<4x24x24xf32>
    %124 = arith.subf %120, %123 : vector<4x24x24xf32>
    %125 = math.exp %124 : vector<4x24x24xf32>
    %cst_41 = arith.constant dense<0.000000e+00> : vector<4x24xf32>
    %126 = vector.multi_reduction <add>, %125, %cst_41 [2] : vector<4x24x24xf32> to vector<4x24xf32>
    %127 = vector.shape_cast %126 : vector<4x24xf32> to vector<4x24x1xf32>
    %128 = tpu.reciprocal %127 {approx = true} : vector<4x24x1xf32> -> vector<4x24x1xf32>
    %129 = vector.broadcast %128 : vector<4x24x1xf32> to vector<4x24x24xf32>
    %130 = arith.mulf %125, %129 : vector<4x24x24xf32>
    %131 = arith.truncf %130 : vector<4x24x24xf32> to vector<4x24x24xbf16>
    "tpu.trace_start"() <{level = 10 : i32, message = "bqk,bke->bqe"}> : () -> ()
    %cst_42 = arith.constant dense<0.000000e+00> : vector<4x24x32xf32>
    %132 = tpu.matmul %131, %116, %cst_42 {dimension_numbers = #tpu.dot_dimension_numbers<[2], [1], [1], [2], [0, 0, 0, 1, 1, 2], [0], [0]>} : vector<4x24x24xbf16>, vector<4x24x32xbf16>, vector<4x24x32xf32> -> vector<4x24x32xf32>
    "tpu.trace_stop"() : () -> ()
    %133 = vector.shape_cast %132 : vector<4x24x32xf32> to vector<96x32xf32>
    %134 = vector.extract_strided_slice %79 {offsets = [0, 64], sizes = [96, 32], strides = [1, 1]} : vector<96x128xf32> to vector<96x32xf32>
    %135 = vector.shape_cast %134 : vector<96x32xf32> to vector<4x24x32xf32>
    %136 = arith.truncf %135 : vector<4x24x32xf32> to vector<4x24x32xbf16>
    %137 = vector.extract_strided_slice %80 {offsets = [0, 64], sizes = [96, 32], strides = [1, 1]} : vector<96x128xf32> to vector<96x32xf32>
    %138 = vector.shape_cast %137 : vector<96x32xf32> to vector<4x24x32xf32>
    %139 = arith.truncf %138 : vector<4x24x32xf32> to vector<4x24x32xbf16>
    %140 = vector.extract_strided_slice %81 {offsets = [0, 64], sizes = [96, 32], strides = [1, 1]} : vector<96x128xf32> to vector<96x32xf32>
    %141 = vector.shape_cast %140 : vector<96x32xf32> to vector<4x24x32xf32>
    %142 = arith.truncf %141 : vector<4x24x32xf32> to vector<4x24x32xbf16>
    "tpu.trace_start"() <{level = 10 : i32, message = "bqe,bke->bqk"}> : () -> ()
    %cst_43 = arith.constant dense<0.000000e+00> : vector<4x24x24xf32>
    %143 = tpu.matmul %136, %139, %cst_43 {dimension_numbers = #tpu.dot_dimension_numbers<[2], [2], [1], [1], [0, 0, 0, 1, 1, 1], [0], [0]>} : vector<4x24x32xbf16>, vector<4x24x32xbf16>, vector<4x24x24xf32> -> vector<4x24x24xf32>
    "tpu.trace_stop"() : () -> ()
    %144 = vector.shape_cast %39 : vector<24x24xf32> to vector<1x24x24xf32>
    %145 = vector.broadcast %144 : vector<1x24x24xf32> to vector<4x24x24xf32>
    %146 = arith.addf %143, %145 : vector<4x24x24xf32>
    %cst_44 = arith.constant dense<0xFF800000> : vector<4x24xf32>
    %147 = vector.multi_reduction <maximumf>, %146, %cst_44 [2] : vector<4x24x24xf32> to vector<4x24xf32>
    %148 = vector.shape_cast %147 : vector<4x24xf32> to vector<4x24x1xf32>
    %149 = vector.broadcast %148 : vector<4x24x1xf32> to vector<4x24x24xf32>
    %150 = arith.subf %146, %149 : vector<4x24x24xf32>
    %151 = math.exp %150 : vector<4x24x24xf32>
    %cst_45 = arith.constant dense<0.000000e+00> : vector<4x24xf32>
    %152 = vector.multi_reduction <add>, %151, %cst_45 [2] : vector<4x24x24xf32> to vector<4x24xf32>
    %153 = vector.shape_cast %152 : vector<4x24xf32> to vector<4x24x1xf32>
    %154 = tpu.reciprocal %153 {approx = true} : vector<4x24x1xf32> -> vector<4x24x1xf32>
    %155 = vector.broadcast %154 : vector<4x24x1xf32> to vector<4x24x24xf32>
    %156 = arith.mulf %151, %155 : vector<4x24x24xf32>
    %157 = arith.truncf %156 : vector<4x24x24xf32> to vector<4x24x24xbf16>
    "tpu.trace_start"() <{level = 10 : i32, message = "bqk,bke->bqe"}> : () -> ()
    %cst_46 = arith.constant dense<0.000000e+00> : vector<4x24x32xf32>
    %158 = tpu.matmul %157, %142, %cst_46 {dimension_numbers = #tpu.dot_dimension_numbers<[2], [1], [1], [2], [0, 0, 0, 1, 1, 2], [0], [0]>} : vector<4x24x24xbf16>, vector<4x24x32xbf16>, vector<4x24x32xf32> -> vector<4x24x32xf32>
    "tpu.trace_stop"() : () -> ()
    %159 = vector.shape_cast %158 : vector<4x24x32xf32> to vector<96x32xf32>
    %160 = vector.extract_strided_slice %79 {offsets = [0, 96], sizes = [96, 32], strides = [1, 1]} : vector<96x128xf32> to vector<96x32xf32>
    %161 = vector.shape_cast %160 : vector<96x32xf32> to vector<4x24x32xf32>
    %162 = arith.truncf %161 : vector<4x24x32xf32> to vector<4x24x32xbf16>
    %163 = vector.extract_strided_slice %80 {offsets = [0, 96], sizes = [96, 32], strides = [1, 1]} : vector<96x128xf32> to vector<96x32xf32>
    %164 = vector.shape_cast %163 : vector<96x32xf32> to vector<4x24x32xf32>
    %165 = arith.truncf %164 : vector<4x24x32xf32> to vector<4x24x32xbf16>
    %166 = vector.extract_strided_slice %81 {offsets = [0, 96], sizes = [96, 32], strides = [1, 1]} : vector<96x128xf32> to vector<96x32xf32>
    %167 = vector.shape_cast %166 : vector<96x32xf32> to vector<4x24x32xf32>
    %168 = arith.truncf %167 : vector<4x24x32xf32> to vector<4x24x32xbf16>
    "tpu.trace_start"() <{level = 10 : i32, message = "bqe,bke->bqk"}> : () -> ()
    %cst_47 = arith.constant dense<0.000000e+00> : vector<4x24x24xf32>
    %169 = tpu.matmul %162, %165, %cst_47 {dimension_numbers = #tpu.dot_dimension_numbers<[2], [2], [1], [1], [0, 0, 0, 1, 1, 1], [0], [0]>} : vector<4x24x32xbf16>, vector<4x24x32xbf16>, vector<4x24x24xf32> -> vector<4x24x24xf32>
    "tpu.trace_stop"() : () -> ()
    %170 = vector.shape_cast %39 : vector<24x24xf32> to vector<1x24x24xf32>
    %171 = vector.broadcast %170 : vector<1x24x24xf32> to vector<4x24x24xf32>
    %172 = arith.addf %169, %171 : vector<4x24x24xf32>
    %cst_48 = arith.constant dense<0xFF800000> : vector<4x24xf32>
    %173 = vector.multi_reduction <maximumf>, %172, %cst_48 [2] : vector<4x24x24xf32> to vector<4x24xf32>
    %174 = vector.shape_cast %173 : vector<4x24xf32> to vector<4x24x1xf32>
    %175 = vector.broadcast %174 : vector<4x24x1xf32> to vector<4x24x24xf32>
    %176 = arith.subf %172, %175 : vector<4x24x24xf32>
    %177 = math.exp %176 : vector<4x24x24xf32>
    %cst_49 = arith.constant dense<0.000000e+00> : vector<4x24xf32>
    %178 = vector.multi_reduction <add>, %177, %cst_49 [2] : vector<4x24x24xf32> to vector<4x24xf32>
    %179 = vector.shape_cast %178 : vector<4x24xf32> to vector<4x24x1xf32>
    %180 = tpu.reciprocal %179 {approx = true} : vector<4x24x1xf32> -> vector<4x24x1xf32>
    %181 = vector.broadcast %180 : vector<4x24x1xf32> to vector<4x24x24xf32>
    %182 = arith.mulf %177, %181 : vector<4x24x24xf32>
    %183 = arith.truncf %182 : vector<4x24x24xf32> to vector<4x24x24xbf16>
    "tpu.trace_start"() <{level = 10 : i32, message = "bqk,bke->bqe"}> : () -> ()
    %cst_50 = arith.constant dense<0.000000e+00> : vector<4x24x32xf32>
    %184 = tpu.matmul %183, %168, %cst_50 {dimension_numbers = #tpu.dot_dimension_numbers<[2], [1], [1], [2], [0, 0, 0, 1, 1, 2], [0], [0]>} : vector<4x24x24xbf16>, vector<4x24x32xbf16>, vector<4x24x32xf32> -> vector<4x24x32xf32>
    "tpu.trace_stop"() : () -> ()
    %185 = vector.shape_cast %184 : vector<4x24x32xf32> to vector<96x32xf32>
    %186 = tpu.concatenate %107, %133, %159, %185 in 1 : vector<96x32xf32>, vector<96x32xf32>, vector<96x32xf32>, vector<96x32xf32> -> vector<96x128xf32>
    %187 = arith.truncf %186 : vector<96x128xf32> to vector<96x128xbf16>
    %188 = vector.extract_strided_slice %41 {offsets = [0, 384], sizes = [128, 128], strides = [1, 1]} : vector<128x512xbf16> to vector<128x128xbf16>
    %cst_51 = arith.constant dense<0.000000e+00> : vector<96x128xf32>
    %189 = tpu.matmul %187, %188, %cst_51 {dimension_numbers = #tpu.dot_dimension_numbers<[1], [0], [0], [1], [0, 0, 1, 1], [], []>} : vector<96x128xbf16>, vector<128x128xbf16>, vector<96x128xf32> -> vector<96x128xf32>
    %190 = vector.broadcast %48 : vector<1x128xf32> to vector<96x128xf32>
    %191 = arith.addf %189, %190 : vector<96x128xf32>
    %192 = arith.addf %33, %191 : vector<96x128xf32>
    %cst_52 = arith.constant dense<0.000000e+00> : vector<96xf32>
    %193 = vector.multi_reduction <add>, %192, %cst_52 [1] : vector<96x128xf32> to vector<96xf32>
    %194 = vector.shape_cast %193 : vector<96xf32> to vector<96x1xf32>
    %cst_53 = arith.constant 1.280000e+02 : f32
    %195 = vector.broadcast %cst_53 : f32 to vector<96x1xf32>
    %196 = arith.divf %194, %195 : vector<96x1xf32>
    %197 = vector.broadcast %196 : vector<96x1xf32> to vector<96x128xf32>
    %198 = arith.subf %192, %197 : vector<96x128xf32>
    %199 = arith.mulf %198, %198 : vector<96x128xf32>
    %cst_54 = arith.constant dense<0.000000e+00> : vector<96xf32>
    %200 = vector.multi_reduction <add>, %199, %cst_54 [1] : vector<96x128xf32> to vector<96xf32>
    %201 = vector.shape_cast %200 : vector<96xf32> to vector<96x1xf32>
    %cst_55 = arith.constant 1.280000e+02 : f32
    %202 = vector.broadcast %cst_55 : f32 to vector<96x1xf32>
    %203 = arith.divf %201, %202 : vector<96x1xf32>
    %204 = vector.broadcast %196 : vector<96x1xf32> to vector<96x128xf32>
    %205 = arith.subf %192, %204 : vector<96x128xf32>
    %cst_56 = arith.constant 9.99999974E-6 : f32
    %206 = vector.broadcast %cst_56 : f32 to vector<96x1xf32>
    %207 = arith.addf %203, %206 : vector<96x1xf32>
    %208 = math.rsqrt %207 : vector<96x1xf32>
    %209 = vector.broadcast %208 : vector<96x1xf32> to vector<96x128xf32>
    %210 = arith.mulf %205, %209 : vector<96x128xf32>
    %211 = vector.broadcast %46 : vector<1x128xf32> to vector<96x128xf32>
    %212 = arith.mulf %210, %211 : vector<96x128xf32>
    %213 = vector.broadcast %47 : vector<1x128xf32> to vector<96x128xf32>
    %214 = arith.addf %212, %213 : vector<96x128xf32>
    %215 = arith.truncf %214 : vector<96x128xf32> to vector<96x128xbf16>
    %c0_57 = arith.constant 0 : index
    %c0_58 = arith.constant 0 : index
    %c0_59 = arith.constant 0 : index
    %216 = vector.load %arg6[%c0_57, %c0_58, %c0_59] : memref<2x128x256xbf16, #tpu.memory_space<vmem>>, vector<1x128x256xbf16>
    %217 = vector.shape_cast %216 : vector<1x128x256xbf16> to vector<128x256xbf16>
    %cst_60 = arith.constant dense<0.000000e+00> : vector<96x256xf32>
    %218 = tpu.matmul %215, %217, %cst_60 {dimension_numbers = #tpu.dot_dimension_numbers<[1], [0], [0], [1], [0, 0, 1, 1], [], []>} : vector<96x128xbf16>, vector<128x256xbf16>, vector<96x256xf32> -> vector<96x256xf32>
    %219 = vector.broadcast %50 : vector<1x256xf32> to vector<96x256xf32>
    %220 = arith.addf %218, %219 : vector<96x256xf32>
    %cst_61 = arith.constant 5.000000e-01 : f32
    %221 = vector.broadcast %cst_61 : f32 to vector<96x256xf32>
    %222 = arith.mulf %221, %220 : vector<96x256xf32>
    %cst_62 = arith.constant 4.471500e-02 : f32
    %223 = vector.broadcast %cst_62 : f32 to vector<96x256xf32>
    %224 = arith.mulf %223, %220 : vector<96x256xf32>
    %225 = arith.mulf %224, %220 : vector<96x256xf32>
    %226 = arith.mulf %225, %220 : vector<96x256xf32>
    %227 = arith.addf %220, %226 : vector<96x256xf32>
    %cst_63 = arith.constant 0.797884583 : f32
    %228 = vector.broadcast %cst_63 : f32 to vector<96x256xf32>
    %229 = arith.mulf %228, %227 : vector<96x256xf32>
    %230 = math.tanh %229 : vector<96x256xf32>
    %cst_64 = arith.constant 1.000000e+00 : f32
    %231 = vector.broadcast %cst_64 : f32 to vector<96x256xf32>
    %232 = arith.addf %231, %230 : vector<96x256xf32>
    %233 = arith.mulf %222, %232 : vector<96x256xf32>
    %234 = arith.truncf %233 : vector<96x256xf32> to vector<96x256xbf16>
    %c0_65 = arith.constant 0 : index
    %c0_66 = arith.constant 0 : index
    %c0_67 = arith.constant 0 : index
    %235 = vector.load %arg7[%c0_65, %c0_66, %c0_67] : memref<2x256x128xbf16, #tpu.memory_space<vmem>>, vector<1x256x128xbf16>
    %236 = vector.shape_cast %235 : vector<1x256x128xbf16> to vector<256x128xbf16>
    %cst_68 = arith.constant dense<0.000000e+00> : vector<96x128xf32>
    %237 = tpu.matmul %234, %236, %cst_68 {dimension_numbers = #tpu.dot_dimension_numbers<[1], [0], [0], [1], [0, 0, 1, 1], [], []>} : vector<96x256xbf16>, vector<256x128xbf16>, vector<96x128xf32> -> vector<96x128xf32>
    %238 = vector.broadcast %49 : vector<1x128xf32> to vector<96x128xf32>
    %239 = arith.addf %237, %238 : vector<96x128xf32>
    %240 = arith.addf %192, %239 : vector<96x128xf32>
    %c1_69 = arith.constant 1 : index
    %c0_70 = arith.constant 0 : index
    %c0_71 = arith.constant 0 : index
    %241 = vector.load %arg4[%c1_69, %c0_70, %c0_71] : memref<2x128x512xbf16, #tpu.memory_space<vmem>>, vector<1x128x512xbf16>
    %242 = vector.shape_cast %241 : vector<1x128x512xbf16> to vector<128x512xbf16>
    %c1_72 = arith.constant 1 : index
    %c0_73 = arith.constant 0 : index
    %c0_74 = arith.constant 0 : index
    %243 = vector.load %arg5[%c1_72, %c0_73, %c0_74] : memref<2x8x384xf32, #tpu.memory_space<vmem>>, vector<1x8x384xf32>
    %244 = vector.shape_cast %243 : vector<1x8x384xf32> to vector<8x384xf32>
    %245 = vector.extract_strided_slice %244 {offsets = [0, 0], sizes = [1, 128], strides = [1, 1]} : vector<8x384xf32> to vector<1x128xf32>
    %246 = vector.extract_strided_slice %244 {offsets = [1, 0], sizes = [1, 128], strides = [1, 1]} : vector<8x384xf32> to vector<1x128xf32>
    %247 = vector.extract_strided_slice %244 {offsets = [2, 0], sizes = [1, 128], strides = [1, 1]} : vector<8x384xf32> to vector<1x128xf32>
    %248 = vector.extract_strided_slice %244 {offsets = [3, 0], sizes = [1, 128], strides = [1, 1]} : vector<8x384xf32> to vector<1x128xf32>
    %249 = vector.extract_strided_slice %244 {offsets = [4, 0], sizes = [1, 128], strides = [1, 1]} : vector<8x384xf32> to vector<1x128xf32>
    %250 = vector.extract_strided_slice %244 {offsets = [5, 0], sizes = [1, 128], strides = [1, 1]} : vector<8x384xf32> to vector<1x128xf32>
    %251 = vector.extract_strided_slice %244 {offsets = [6, 0], sizes = [1, 256], strides = [1, 1]} : vector<8x384xf32> to vector<1x256xf32>
    %252 = vector.extract_strided_slice %244 {offsets = [7, 0], sizes = [1, 384], strides = [1, 1]} : vector<8x384xf32> to vector<1x384xf32>
    %cst_75 = arith.constant dense<0.000000e+00> : vector<96xf32>
    %253 = vector.multi_reduction <add>, %240, %cst_75 [1] : vector<96x128xf32> to vector<96xf32>
    %254 = vector.shape_cast %253 : vector<96xf32> to vector<96x1xf32>
    %cst_76 = arith.constant 1.280000e+02 : f32
    %255 = vector.broadcast %cst_76 : f32 to vector<96x1xf32>
    %256 = arith.divf %254, %255 : vector<96x1xf32>
    %257 = vector.broadcast %256 : vector<96x1xf32> to vector<96x128xf32>
    %258 = arith.subf %240, %257 : vector<96x128xf32>
    %259 = arith.mulf %258, %258 : vector<96x128xf32>
    %cst_77 = arith.constant dense<0.000000e+00> : vector<96xf32>
    %260 = vector.multi_reduction <add>, %259, %cst_77 [1] : vector<96x128xf32> to vector<96xf32>
    %261 = vector.shape_cast %260 : vector<96xf32> to vector<96x1xf32>
    %cst_78 = arith.constant 1.280000e+02 : f32
    %262 = vector.broadcast %cst_78 : f32 to vector<96x1xf32>
    %263 = arith.divf %261, %262 : vector<96x1xf32>
    %264 = vector.broadcast %256 : vector<96x1xf32> to vector<96x128xf32>
    %265 = arith.subf %240, %264 : vector<96x128xf32>
    %cst_79 = arith.constant 9.99999974E-6 : f32
    %266 = vector.broadcast %cst_79 : f32 to vector<96x1xf32>
    %267 = arith.addf %263, %266 : vector<96x1xf32>
    %268 = math.rsqrt %267 : vector<96x1xf32>
    %269 = vector.broadcast %268 : vector<96x1xf32> to vector<96x128xf32>
    %270 = arith.mulf %265, %269 : vector<96x128xf32>
    %271 = vector.broadcast %245 : vector<1x128xf32> to vector<96x128xf32>
    %272 = arith.mulf %270, %271 : vector<96x128xf32>
    %273 = vector.broadcast %246 : vector<1x128xf32> to vector<96x128xf32>
    %274 = arith.addf %272, %273 : vector<96x128xf32>
    %275 = arith.truncf %274 : vector<96x128xf32> to vector<96x128xbf16>
    %276 = vector.extract_strided_slice %242 {offsets = [0, 0], sizes = [128, 384], strides = [1, 1]} : vector<128x512xbf16> to vector<128x384xbf16>
    %cst_80 = arith.constant dense<0.000000e+00> : vector<96x384xf32>
    %277 = tpu.matmul %275, %276, %cst_80 {dimension_numbers = #tpu.dot_dimension_numbers<[1], [0], [0], [1], [0, 0, 1, 1], [], []>} : vector<96x128xbf16>, vector<128x384xbf16>, vector<96x384xf32> -> vector<96x384xf32>
    %278 = vector.broadcast %252 : vector<1x384xf32> to vector<96x384xf32>
    %279 = arith.addf %277, %278 : vector<96x384xf32>
    %280 = vector.extract_strided_slice %279 {offsets = [0, 0], sizes = [96, 128], strides = [1, 1]} : vector<96x384xf32> to vector<96x128xf32>
    %281 = vector.extract_strided_slice %279 {offsets = [0, 128], sizes = [96, 128], strides = [1, 1]} : vector<96x384xf32> to vector<96x128xf32>
    %282 = vector.extract_strided_slice %279 {offsets = [0, 256], sizes = [96, 128], strides = [1, 1]} : vector<96x384xf32> to vector<96x128xf32>
    %283 = vector.extract_strided_slice %280 {offsets = [0, 0], sizes = [96, 32], strides = [1, 1]} : vector<96x128xf32> to vector<96x32xf32>
    %284 = vector.shape_cast %283 : vector<96x32xf32> to vector<4x24x32xf32>
    %285 = arith.truncf %284 : vector<4x24x32xf32> to vector<4x24x32xbf16>
    %286 = vector.extract_strided_slice %281 {offsets = [0, 0], sizes = [96, 32], strides = [1, 1]} : vector<96x128xf32> to vector<96x32xf32>
    %287 = vector.shape_cast %286 : vector<96x32xf32> to vector<4x24x32xf32>
    %288 = arith.truncf %287 : vector<4x24x32xf32> to vector<4x24x32xbf16>
    %289 = vector.extract_strided_slice %282 {offsets = [0, 0], sizes = [96, 32], strides = [1, 1]} : vector<96x128xf32> to vector<96x32xf32>
    %290 = vector.shape_cast %289 : vector<96x32xf32> to vector<4x24x32xf32>
    %291 = arith.truncf %290 : vector<4x24x32xf32> to vector<4x24x32xbf16>
    "tpu.trace_start"() <{level = 10 : i32, message = "bqe,bke->bqk"}> : () -> ()
    %cst_81 = arith.constant dense<0.000000e+00> : vector<4x24x24xf32>
    %292 = tpu.matmul %285, %288, %cst_81 {dimension_numbers = #tpu.dot_dimension_numbers<[2], [2], [1], [1], [0, 0, 0, 1, 1, 1], [0], [0]>} : vector<4x24x32xbf16>, vector<4x24x32xbf16>, vector<4x24x24xf32> -> vector<4x24x24xf32>
    "tpu.trace_stop"() : () -> ()
    %293 = vector.shape_cast %39 : vector<24x24xf32> to vector<1x24x24xf32>
    %294 = vector.broadcast %293 : vector<1x24x24xf32> to vector<4x24x24xf32>
    %295 = arith.addf %292, %294 : vector<4x24x24xf32>
    %cst_82 = arith.constant dense<0xFF800000> : vector<4x24xf32>
    %296 = vector.multi_reduction <maximumf>, %295, %cst_82 [2] : vector<4x24x24xf32> to vector<4x24xf32>
    %297 = vector.shape_cast %296 : vector<4x24xf32> to vector<4x24x1xf32>
    %298 = vector.broadcast %297 : vector<4x24x1xf32> to vector<4x24x24xf32>
    %299 = arith.subf %295, %298 : vector<4x24x24xf32>
    %300 = math.exp %299 : vector<4x24x24xf32>
    %cst_83 = arith.constant dense<0.000000e+00> : vector<4x24xf32>
    %301 = vector.multi_reduction <add>, %300, %cst_83 [2] : vector<4x24x24xf32> to vector<4x24xf32>
    %302 = vector.shape_cast %301 : vector<4x24xf32> to vector<4x24x1xf32>
    %303 = tpu.reciprocal %302 {approx = true} : vector<4x24x1xf32> -> vector<4x24x1xf32>
    %304 = vector.broadcast %303 : vector<4x24x1xf32> to vector<4x24x24xf32>
    %305 = arith.mulf %300, %304 : vector<4x24x24xf32>
    %306 = arith.truncf %305 : vector<4x24x24xf32> to vector<4x24x24xbf16>
    "tpu.trace_start"() <{level = 10 : i32, message = "bqk,bke->bqe"}> : () -> ()
    %cst_84 = arith.constant dense<0.000000e+00> : vector<4x24x32xf32>
    %307 = tpu.matmul %306, %291, %cst_84 {dimension_numbers = #tpu.dot_dimension_numbers<[2], [1], [1], [2], [0, 0, 0, 1, 1, 2], [0], [0]>} : vector<4x24x24xbf16>, vector<4x24x32xbf16>, vector<4x24x32xf32> -> vector<4x24x32xf32>
    "tpu.trace_stop"() : () -> ()
    %308 = vector.shape_cast %307 : vector<4x24x32xf32> to vector<96x32xf32>
    %309 = vector.extract_strided_slice %280 {offsets = [0, 32], sizes = [96, 32], strides = [1, 1]} : vector<96x128xf32> to vector<96x32xf32>
    %310 = vector.shape_cast %309 : vector<96x32xf32> to vector<4x24x32xf32>
    %311 = arith.truncf %310 : vector<4x24x32xf32> to vector<4x24x32xbf16>
    %312 = vector.extract_strided_slice %281 {offsets = [0, 32], sizes = [96, 32], strides = [1, 1]} : vector<96x128xf32> to vector<96x32xf32>
    %313 = vector.shape_cast %312 : vector<96x32xf32> to vector<4x24x32xf32>
    %314 = arith.truncf %313 : vector<4x24x32xf32> to vector<4x24x32xbf16>
    %315 = vector.extract_strided_slice %282 {offsets = [0, 32], sizes = [96, 32], strides = [1, 1]} : vector<96x128xf32> to vector<96x32xf32>
    %316 = vector.shape_cast %315 : vector<96x32xf32> to vector<4x24x32xf32>
    %317 = arith.truncf %316 : vector<4x24x32xf32> to vector<4x24x32xbf16>
    "tpu.trace_start"() <{level = 10 : i32, message = "bqe,bke->bqk"}> : () -> ()
    %cst_85 = arith.constant dense<0.000000e+00> : vector<4x24x24xf32>
    %318 = tpu.matmul %311, %314, %cst_85 {dimension_numbers = #tpu.dot_dimension_numbers<[2], [2], [1], [1], [0, 0, 0, 1, 1, 1], [0], [0]>} : vector<4x24x32xbf16>, vector<4x24x32xbf16>, vector<4x24x24xf32> -> vector<4x24x24xf32>
    "tpu.trace_stop"() : () -> ()
    %319 = vector.shape_cast %39 : vector<24x24xf32> to vector<1x24x24xf32>
    %320 = vector.broadcast %319 : vector<1x24x24xf32> to vector<4x24x24xf32>
    %321 = arith.addf %318, %320 : vector<4x24x24xf32>
    %cst_86 = arith.constant dense<0xFF800000> : vector<4x24xf32>
    %322 = vector.multi_reduction <maximumf>, %321, %cst_86 [2] : vector<4x24x24xf32> to vector<4x24xf32>
    %323 = vector.shape_cast %322 : vector<4x24xf32> to vector<4x24x1xf32>
    %324 = vector.broadcast %323 : vector<4x24x1xf32> to vector<4x24x24xf32>
    %325 = arith.subf %321, %324 : vector<4x24x24xf32>
    %326 = math.exp %325 : vector<4x24x24xf32>
    %cst_87 = arith.constant dense<0.000000e+00> : vector<4x24xf32>
    %327 = vector.multi_reduction <add>, %326, %cst_87 [2] : vector<4x24x24xf32> to vector<4x24xf32>
    %328 = vector.shape_cast %327 : vector<4x24xf32> to vector<4x24x1xf32>
    %329 = tpu.reciprocal %328 {approx = true} : vector<4x24x1xf32> -> vector<4x24x1xf32>
    %330 = vector.broadcast %329 : vector<4x24x1xf32> to vector<4x24x24xf32>
    %331 = arith.mulf %326, %330 : vector<4x24x24xf32>
    %332 = arith.truncf %331 : vector<4x24x24xf32> to vector<4x24x24xbf16>
    "tpu.trace_start"() <{level = 10 : i32, message = "bqk,bke->bqe"}> : () -> ()
    %cst_88 = arith.constant dense<0.000000e+00> : vector<4x24x32xf32>
    %333 = tpu.matmul %332, %317, %cst_88 {dimension_numbers = #tpu.dot_dimension_numbers<[2], [1], [1], [2], [0, 0, 0, 1, 1, 2], [0], [0]>} : vector<4x24x24xbf16>, vector<4x24x32xbf16>, vector<4x24x32xf32> -> vector<4x24x32xf32>
    "tpu.trace_stop"() : () -> ()
    %334 = vector.shape_cast %333 : vector<4x24x32xf32> to vector<96x32xf32>
    %335 = vector.extract_strided_slice %280 {offsets = [0, 64], sizes = [96, 32], strides = [1, 1]} : vector<96x128xf32> to vector<96x32xf32>
    %336 = vector.shape_cast %335 : vector<96x32xf32> to vector<4x24x32xf32>
    %337 = arith.truncf %336 : vector<4x24x32xf32> to vector<4x24x32xbf16>
    %338 = vector.extract_strided_slice %281 {offsets = [0, 64], sizes = [96, 32], strides = [1, 1]} : vector<96x128xf32> to vector<96x32xf32>
    %339 = vector.shape_cast %338 : vector<96x32xf32> to vector<4x24x32xf32>
    %340 = arith.truncf %339 : vector<4x24x32xf32> to vector<4x24x32xbf16>
    %341 = vector.extract_strided_slice %282 {offsets = [0, 64], sizes = [96, 32], strides = [1, 1]} : vector<96x128xf32> to vector<96x32xf32>
    %342 = vector.shape_cast %341 : vector<96x32xf32> to vector<4x24x32xf32>
    %343 = arith.truncf %342 : vector<4x24x32xf32> to vector<4x24x32xbf16>
    "tpu.trace_start"() <{level = 10 : i32, message = "bqe,bke->bqk"}> : () -> ()
    %cst_89 = arith.constant dense<0.000000e+00> : vector<4x24x24xf32>
    %344 = tpu.matmul %337, %340, %cst_89 {dimension_numbers = #tpu.dot_dimension_numbers<[2], [2], [1], [1], [0, 0, 0, 1, 1, 1], [0], [0]>} : vector<4x24x32xbf16>, vector<4x24x32xbf16>, vector<4x24x24xf32> -> vector<4x24x24xf32>
    "tpu.trace_stop"() : () -> ()
    %345 = vector.shape_cast %39 : vector<24x24xf32> to vector<1x24x24xf32>
    %346 = vector.broadcast %345 : vector<1x24x24xf32> to vector<4x24x24xf32>
    %347 = arith.addf %344, %346 : vector<4x24x24xf32>
    %cst_90 = arith.constant dense<0xFF800000> : vector<4x24xf32>
    %348 = vector.multi_reduction <maximumf>, %347, %cst_90 [2] : vector<4x24x24xf32> to vector<4x24xf32>
    %349 = vector.shape_cast %348 : vector<4x24xf32> to vector<4x24x1xf32>
    %350 = vector.broadcast %349 : vector<4x24x1xf32> to vector<4x24x24xf32>
    %351 = arith.subf %347, %350 : vector<4x24x24xf32>
    %352 = math.exp %351 : vector<4x24x24xf32>
    %cst_91 = arith.constant dense<0.000000e+00> : vector<4x24xf32>
    %353 = vector.multi_reduction <add>, %352, %cst_91 [2] : vector<4x24x24xf32> to vector<4x24xf32>
    %354 = vector.shape_cast %353 : vector<4x24xf32> to vector<4x24x1xf32>
    %355 = tpu.reciprocal %354 {approx = true} : vector<4x24x1xf32> -> vector<4x24x1xf32>
    %356 = vector.broadcast %355 : vector<4x24x1xf32> to vector<4x24x24xf32>
    %357 = arith.mulf %352, %356 : vector<4x24x24xf32>
    %358 = arith.truncf %357 : vector<4x24x24xf32> to vector<4x24x24xbf16>
    "tpu.trace_start"() <{level = 10 : i32, message = "bqk,bke->bqe"}> : () -> ()
    %cst_92 = arith.constant dense<0.000000e+00> : vector<4x24x32xf32>
    %359 = tpu.matmul %358, %343, %cst_92 {dimension_numbers = #tpu.dot_dimension_numbers<[2], [1], [1], [2], [0, 0, 0, 1, 1, 2], [0], [0]>} : vector<4x24x24xbf16>, vector<4x24x32xbf16>, vector<4x24x32xf32> -> vector<4x24x32xf32>
    "tpu.trace_stop"() : () -> ()
    %360 = vector.shape_cast %359 : vector<4x24x32xf32> to vector<96x32xf32>
    %361 = vector.extract_strided_slice %280 {offsets = [0, 96], sizes = [96, 32], strides = [1, 1]} : vector<96x128xf32> to vector<96x32xf32>
    %362 = vector.shape_cast %361 : vector<96x32xf32> to vector<4x24x32xf32>
    %363 = arith.truncf %362 : vector<4x24x32xf32> to vector<4x24x32xbf16>
    %364 = vector.extract_strided_slice %281 {offsets = [0, 96], sizes = [96, 32], strides = [1, 1]} : vector<96x128xf32> to vector<96x32xf32>
    %365 = vector.shape_cast %364 : vector<96x32xf32> to vector<4x24x32xf32>
    %366 = arith.truncf %365 : vector<4x24x32xf32> to vector<4x24x32xbf16>
    %367 = vector.extract_strided_slice %282 {offsets = [0, 96], sizes = [96, 32], strides = [1, 1]} : vector<96x128xf32> to vector<96x32xf32>
    %368 = vector.shape_cast %367 : vector<96x32xf32> to vector<4x24x32xf32>
    %369 = arith.truncf %368 : vector<4x24x32xf32> to vector<4x24x32xbf16>
    "tpu.trace_start"() <{level = 10 : i32, message = "bqe,bke->bqk"}> : () -> ()
    %cst_93 = arith.constant dense<0.000000e+00> : vector<4x24x24xf32>
    %370 = tpu.matmul %363, %366, %cst_93 {dimension_numbers = #tpu.dot_dimension_numbers<[2], [2], [1], [1], [0, 0, 0, 1, 1, 1], [0], [0]>} : vector<4x24x32xbf16>, vector<4x24x32xbf16>, vector<4x24x24xf32> -> vector<4x24x24xf32>
    "tpu.trace_stop"() : () -> ()
    %371 = vector.shape_cast %39 : vector<24x24xf32> to vector<1x24x24xf32>
    %372 = vector.broadcast %371 : vector<1x24x24xf32> to vector<4x24x24xf32>
    %373 = arith.addf %370, %372 : vector<4x24x24xf32>
    %cst_94 = arith.constant dense<0xFF800000> : vector<4x24xf32>
    %374 = vector.multi_reduction <maximumf>, %373, %cst_94 [2] : vector<4x24x24xf32> to vector<4x24xf32>
    %375 = vector.shape_cast %374 : vector<4x24xf32> to vector<4x24x1xf32>
    %376 = vector.broadcast %375 : vector<4x24x1xf32> to vector<4x24x24xf32>
    %377 = arith.subf %373, %376 : vector<4x24x24xf32>
    %378 = math.exp %377 : vector<4x24x24xf32>
    %cst_95 = arith.constant dense<0.000000e+00> : vector<4x24xf32>
    %379 = vector.multi_reduction <add>, %378, %cst_95 [2] : vector<4x24x24xf32> to vector<4x24xf32>
    %380 = vector.shape_cast %379 : vector<4x24xf32> to vector<4x24x1xf32>
    %381 = tpu.reciprocal %380 {approx = true} : vector<4x24x1xf32> -> vector<4x24x1xf32>
    %382 = vector.broadcast %381 : vector<4x24x1xf32> to vector<4x24x24xf32>
    %383 = arith.mulf %378, %382 : vector<4x24x24xf32>
    %384 = arith.truncf %383 : vector<4x24x24xf32> to vector<4x24x24xbf16>
    "tpu.trace_start"() <{level = 10 : i32, message = "bqk,bke->bqe"}> : () -> ()
    %cst_96 = arith.constant dense<0.000000e+00> : vector<4x24x32xf32>
    %385 = tpu.matmul %384, %369, %cst_96 {dimension_numbers = #tpu.dot_dimension_numbers<[2], [1], [1], [2], [0, 0, 0, 1, 1, 2], [0], [0]>} : vector<4x24x24xbf16>, vector<4x24x32xbf16>, vector<4x24x32xf32> -> vector<4x24x32xf32>
    "tpu.trace_stop"() : () -> ()
    %386 = vector.shape_cast %385 : vector<4x24x32xf32> to vector<96x32xf32>
    %387 = tpu.concatenate %308, %334, %360, %386 in 1 : vector<96x32xf32>, vector<96x32xf32>, vector<96x32xf32>, vector<96x32xf32> -> vector<96x128xf32>
    %388 = arith.truncf %387 : vector<96x128xf32> to vector<96x128xbf16>
    %389 = vector.extract_strided_slice %242 {offsets = [0, 384], sizes = [128, 128], strides = [1, 1]} : vector<128x512xbf16> to vector<128x128xbf16>
    %cst_97 = arith.constant dense<0.000000e+00> : vector<96x128xf32>
    %390 = tpu.matmul %388, %389, %cst_97 {dimension_numbers = #tpu.dot_dimension_numbers<[1], [0], [0], [1], [0, 0, 1, 1], [], []>} : vector<96x128xbf16>, vector<128x128xbf16>, vector<96x128xf32> -> vector<96x128xf32>
    %391 = vector.broadcast %249 : vector<1x128xf32> to vector<96x128xf32>
    %392 = arith.addf %390, %391 : vector<96x128xf32>
    %393 = arith.addf %240, %392 : vector<96x128xf32>
    %cst_98 = arith.constant dense<0.000000e+00> : vector<96xf32>
    %394 = vector.multi_reduction <add>, %393, %cst_98 [1] : vector<96x128xf32> to vector<96xf32>
    %395 = vector.shape_cast %394 : vector<96xf32> to vector<96x1xf32>
    %cst_99 = arith.constant 1.280000e+02 : f32
    %396 = vector.broadcast %cst_99 : f32 to vector<96x1xf32>
    %397 = arith.divf %395, %396 : vector<96x1xf32>
    %398 = vector.broadcast %397 : vector<96x1xf32> to vector<96x128xf32>
    %399 = arith.subf %393, %398 : vector<96x128xf32>
    %400 = arith.mulf %399, %399 : vector<96x128xf32>
    %cst_100 = arith.constant dense<0.000000e+00> : vector<96xf32>
    %401 = vector.multi_reduction <add>, %400, %cst_100 [1] : vector<96x128xf32> to vector<96xf32>
    %402 = vector.shape_cast %401 : vector<96xf32> to vector<96x1xf32>
    %cst_101 = arith.constant 1.280000e+02 : f32
    %403 = vector.broadcast %cst_101 : f32 to vector<96x1xf32>
    %404 = arith.divf %402, %403 : vector<96x1xf32>
    %405 = vector.broadcast %397 : vector<96x1xf32> to vector<96x128xf32>
    %406 = arith.subf %393, %405 : vector<96x128xf32>
    %cst_102 = arith.constant 9.99999974E-6 : f32
    %407 = vector.broadcast %cst_102 : f32 to vector<96x1xf32>
    %408 = arith.addf %404, %407 : vector<96x1xf32>
    %409 = math.rsqrt %408 : vector<96x1xf32>
    %410 = vector.broadcast %409 : vector<96x1xf32> to vector<96x128xf32>
    %411 = arith.mulf %406, %410 : vector<96x128xf32>
    %412 = vector.broadcast %247 : vector<1x128xf32> to vector<96x128xf32>
    %413 = arith.mulf %411, %412 : vector<96x128xf32>
    %414 = vector.broadcast %248 : vector<1x128xf32> to vector<96x128xf32>
    %415 = arith.addf %413, %414 : vector<96x128xf32>
    %416 = arith.truncf %415 : vector<96x128xf32> to vector<96x128xbf16>
    %c1_103 = arith.constant 1 : index
    %c0_104 = arith.constant 0 : index
    %c0_105 = arith.constant 0 : index
    %417 = vector.load %arg6[%c1_103, %c0_104, %c0_105] : memref<2x128x256xbf16, #tpu.memory_space<vmem>>, vector<1x128x256xbf16>
    %418 = vector.shape_cast %417 : vector<1x128x256xbf16> to vector<128x256xbf16>
    %cst_106 = arith.constant dense<0.000000e+00> : vector<96x256xf32>
    %419 = tpu.matmul %416, %418, %cst_106 {dimension_numbers = #tpu.dot_dimension_numbers<[1], [0], [0], [1], [0, 0, 1, 1], [], []>} : vector<96x128xbf16>, vector<128x256xbf16>, vector<96x256xf32> -> vector<96x256xf32>
    %420 = vector.broadcast %251 : vector<1x256xf32> to vector<96x256xf32>
    %421 = arith.addf %419, %420 : vector<96x256xf32>
    %cst_107 = arith.constant 5.000000e-01 : f32
    %422 = vector.broadcast %cst_107 : f32 to vector<96x256xf32>
    %423 = arith.mulf %422, %421 : vector<96x256xf32>
    %cst_108 = arith.constant 4.471500e-02 : f32
    %424 = vector.broadcast %cst_108 : f32 to vector<96x256xf32>
    %425 = arith.mulf %424, %421 : vector<96x256xf32>
    %426 = arith.mulf %425, %421 : vector<96x256xf32>
    %427 = arith.mulf %426, %421 : vector<96x256xf32>
    %428 = arith.addf %421, %427 : vector<96x256xf32>
    %cst_109 = arith.constant 0.797884583 : f32
    %429 = vector.broadcast %cst_109 : f32 to vector<96x256xf32>
    %430 = arith.mulf %429, %428 : vector<96x256xf32>
    %431 = math.tanh %430 : vector<96x256xf32>
    %cst_110 = arith.constant 1.000000e+00 : f32
    %432 = vector.broadcast %cst_110 : f32 to vector<96x256xf32>
    %433 = arith.addf %432, %431 : vector<96x256xf32>
    %434 = arith.mulf %423, %433 : vector<96x256xf32>
    %435 = arith.truncf %434 : vector<96x256xf32> to vector<96x256xbf16>
    %c1_111 = arith.constant 1 : index
    %c0_112 = arith.constant 0 : index
    %c0_113 = arith.constant 0 : index
    %436 = vector.load %arg7[%c1_111, %c0_112, %c0_113] : memref<2x256x128xbf16, #tpu.memory_space<vmem>>, vector<1x256x128xbf16>
    %437 = vector.shape_cast %436 : vector<1x256x128xbf16> to vector<256x128xbf16>
    %cst_114 = arith.constant dense<0.000000e+00> : vector<96x128xf32>
    %438 = tpu.matmul %435, %437, %cst_114 {dimension_numbers = #tpu.dot_dimension_numbers<[1], [0], [0], [1], [0, 0, 1, 1], [], []>} : vector<96x256xbf16>, vector<256x128xbf16>, vector<96x128xf32> -> vector<96x128xf32>
    %439 = vector.broadcast %250 : vector<1x128xf32> to vector<96x128xf32>
    %440 = arith.addf %438, %439 : vector<96x128xf32>
    %441 = arith.addf %393, %440 : vector<96x128xf32>
    %442 = vector.extract_strided_slice %441 {offsets = [0, 0], sizes = [1, 128], strides = [1, 1]} : vector<96x128xf32> to vector<1x128xf32>
    %443 = vector.extract_strided_slice %441 {offsets = [24, 0], sizes = [1, 128], strides = [1, 1]} : vector<96x128xf32> to vector<1x128xf32>
    %444 = vector.extract_strided_slice %441 {offsets = [48, 0], sizes = [1, 128], strides = [1, 1]} : vector<96x128xf32> to vector<1x128xf32>
    %445 = vector.extract_strided_slice %441 {offsets = [72, 0], sizes = [1, 128], strides = [1, 1]} : vector<96x128xf32> to vector<1x128xf32>
    %446 = tpu.concatenate %442, %443, %444, %445 in 0 : vector<1x128xf32>, vector<1x128xf32>, vector<1x128xf32>, vector<1x128xf32> -> vector<4x128xf32>
    %c0_115 = arith.constant 0 : index
    %c0_116 = arith.constant 0 : index
    %447 = vector.load %arg9[%c0_115, %c0_116] : memref<3x128xf32, #tpu.memory_space<vmem>>, vector<3x128xf32>
    %448 = vector.extract_strided_slice %447 {offsets = [0, 0], sizes = [1, 128], strides = [1, 1]} : vector<3x128xf32> to vector<1x128xf32>
    %449 = vector.extract_strided_slice %447 {offsets = [1, 0], sizes = [1, 128], strides = [1, 1]} : vector<3x128xf32> to vector<1x128xf32>
    %cst_117 = arith.constant dense<0.000000e+00> : vector<4xf32>
    %450 = vector.multi_reduction <add>, %446, %cst_117 [1] : vector<4x128xf32> to vector<4xf32>
    %451 = vector.shape_cast %450 : vector<4xf32> to vector<4x1xf32>
    %cst_118 = arith.constant 1.280000e+02 : f32
    %452 = vector.broadcast %cst_118 : f32 to vector<4x1xf32>
    %453 = arith.divf %451, %452 : vector<4x1xf32>
    %454 = vector.broadcast %453 : vector<4x1xf32> to vector<4x128xf32>
    %455 = arith.subf %446, %454 : vector<4x128xf32>
    %456 = arith.mulf %455, %455 : vector<4x128xf32>
    %cst_119 = arith.constant dense<0.000000e+00> : vector<4xf32>
    %457 = vector.multi_reduction <add>, %456, %cst_119 [1] : vector<4x128xf32> to vector<4xf32>
    %458 = vector.shape_cast %457 : vector<4xf32> to vector<4x1xf32>
    %cst_120 = arith.constant 1.280000e+02 : f32
    %459 = vector.broadcast %cst_120 : f32 to vector<4x1xf32>
    %460 = arith.divf %458, %459 : vector<4x1xf32>
    %461 = vector.broadcast %453 : vector<4x1xf32> to vector<4x128xf32>
    %462 = arith.subf %446, %461 : vector<4x128xf32>
    %cst_121 = arith.constant 9.99999974E-6 : f32
    %463 = vector.broadcast %cst_121 : f32 to vector<4x1xf32>
    %464 = arith.addf %460, %463 : vector<4x1xf32>
    %465 = math.rsqrt %464 : vector<4x1xf32>
    %466 = vector.broadcast %465 : vector<4x1xf32> to vector<4x128xf32>
    %467 = arith.mulf %462, %466 : vector<4x128xf32>
    %468 = vector.broadcast %448 : vector<1x128xf32> to vector<4x128xf32>
    %469 = arith.mulf %467, %468 : vector<4x128xf32>
    %470 = vector.broadcast %449 : vector<1x128xf32> to vector<4x128xf32>
    %471 = arith.addf %469, %470 : vector<4x128xf32>
    %472 = arith.truncf %471 : vector<4x128xf32> to vector<4x128xbf16>
    %c0_122 = arith.constant 0 : index
    %c0_123 = arith.constant 0 : index
    %473 = vector.load %arg8[%c0_122, %c0_123] : memref<128x16xbf16, #tpu.memory_space<vmem>>, vector<128x16xbf16>
    %cst_124 = arith.constant dense<0.000000e+00> : vector<4x16xf32>
    %474 = tpu.matmul %472, %473, %cst_124 {dimension_numbers = #tpu.dot_dimension_numbers<[1], [0], [0], [1], [0, 0, 1, 1], [], []>} : vector<4x128xbf16>, vector<128x16xbf16>, vector<4x16xf32> -> vector<4x16xf32>
    %475 = vector.extract_strided_slice %447 {offsets = [2, 0], sizes = [1, 16], strides = [1, 1]} : vector<3x128xf32> to vector<1x16xf32>
    %476 = vector.broadcast %475 : vector<1x16xf32> to vector<4x16xf32>
    %477 = arith.addf %474, %476 : vector<4x16xf32>
    %c0_125 = arith.constant 0 : index
    %c0_126 = arith.constant 0 : index
    %c0_127 = arith.constant 0 : index
    %478 = vector.load %arg10[%c0_125, %c0_126, %c0_127] : memref<1x4x16xf32, #tpu.memory_space<vmem>>, vector<1x4x16xf32>
    %479 = vector.shape_cast %478 : vector<1x4x16xf32> to vector<4x16xf32>
    %480 = vector.shape_cast %477 : vector<4x16xf32> to vector<1x4x16xf32>
    tpu.vector_store %arg10[%c0_125, %c0_126, %c0_127], %480 {strides = array<i32>} : memref<1x4x16xf32, #tpu.memory_space<vmem>>, vector<1x4x16xf32>,
    return
  }
  func.func @transform_0(%arg0: i32) -> (i32, i32) {
    %c0_i32 = arith.constant 0 : i32
    %c0_i32_0 = arith.constant 0 : i32
    return %arg0, %c0_i32 : i32, i32
  }
  func.func @transform_1(%arg0: i32) -> (i32, i32) {
    %c0_i32 = arith.constant 0 : i32
    %c0_i32_0 = arith.constant 0 : i32
    %c0_i32_1 = arith.constant 0 : i32
    return %c0_i32, %c0_i32_0 : i32, i32
  }
  func.func @transform_2(%arg0: i32) -> (i32, i32) {
    %c0_i32 = arith.constant 0 : i32
    %c0_i32_0 = arith.constant 0 : i32
    %c0_i32_1 = arith.constant 0 : i32
    return %c0_i32, %c0_i32_0 : i32, i32
  }
  func.func @transform_3(%arg0: i32) -> (i32, i32, i32) {
    %c0_i32 = arith.constant 0 : i32
    %c0_i32_0 = arith.constant 0 : i32
    %c0_i32_1 = arith.constant 0 : i32
    %c0_i32_2 = arith.constant 0 : i32
    return %c0_i32, %c0_i32_0, %c0_i32_1 : i32, i32, i32
  }
  func.func @transform_4(%arg0: i32) -> (i32, i32, i32) {
    %c0_i32 = arith.constant 0 : i32
    %c0_i32_0 = arith.constant 0 : i32
    %c0_i32_1 = arith.constant 0 : i32
    %c0_i32_2 = arith.constant 0 : i32
    return %c0_i32, %c0_i32_0, %c0_i32_1 : i32, i32, i32
  }
  func.func @transform_5(%arg0: i32) -> (i32, i32, i32) {
    %c0_i32 = arith.constant 0 : i32
    %c0_i32_0 = arith.constant 0 : i32
    %c0_i32_1 = arith.constant 0 : i32
    %c0_i32_2 = arith.constant 0 : i32
    return %c0_i32, %c0_i32_0, %c0_i32_1 : i32, i32, i32
  }
  func.func @transform_6(%arg0: i32) -> (i32, i32, i32) {
    %c0_i32 = arith.constant 0 : i32
    %c0_i32_0 = arith.constant 0 : i32
    %c0_i32_1 = arith.constant 0 : i32
    %c0_i32_2 = arith.constant 0 : i32
    return %c0_i32, %c0_i32_0, %c0_i32_1 : i32, i32, i32
  }
  func.func @transform_7(%arg0: i32) -> (i32, i32) {
    %c0_i32 = arith.constant 0 : i32
    %c0_i32_0 = arith.constant 0 : i32
    %c0_i32_1 = arith.constant 0 : i32
    return %c0_i32, %c0_i32_0 : i32, i32
  }
  func.func @transform_8(%arg0: i32) -> (i32, i32) {
    %c0_i32 = arith.constant 0 : i32
    %c0_i32_0 = arith.constant 0 : i32
    %c0_i32_1 = arith.constant 0 : i32
    return %c0_i32, %c0_i32_0 : i32, i32
  }
  func.func @transform_9(%arg0: i32) -> (i32, i32, i32) {
    %c0_i32 = arith.constant 0 : i32
    %c0_i32_0 = arith.constant 0 : i32
    %c0_i32_1 = arith.constant 0 : i32
    return %arg0, %c0_i32, %c0_i32_0 : i32, i32, i32
  }
}

</mosaic_0001>

<llo_original>
// kernel: tpu_custom_call.1
$region0: #{tpu_custom_call.1}
  #allocation0 [shape = 'u32[]', space=smem, size = 0x4, offset = 0x4, fixed_abs, tag = 'smem constant byte address 0x4 - core index']
  #allocation1 [shape = 'u32[144,128]{1,0:T(1,128)}', space=vmem, size = 0x12000, scoped, tag = 'internal scratch']
  #allocation2 [shape = 'f32[96,128]{1,0:T(8,128)}', space=vmem, size = 0xc000, scoped, tag = 'scratch operand']
  %s0 = inlined_call_operand.vmem [shape: bf16[128,192], index: 0, kind: input, shape index: {}]
  %s1 = inlined_call_operand.hbm [shape: bf16[192,128], index: 1, kind: input, shape index: {}]
  %s2 = inlined_call_operand.hbm [shape: f32[24,128], index: 2, kind: input, shape index: {}]
  %s3 = inlined_call_operand.hbm [shape: bf16[2,128,512], index: 3, kind: input, shape index: {}]
  %s4 = inlined_call_operand.vmem [shape: f32[2,8,384], index: 4, kind: input, shape index: {}]
  %s5 = inlined_call_operand.vmem [shape: bf16[2,128,256], index: 5, kind: input, shape index: {}]
  %s6 = inlined_call_operand.hbm [shape: bf16[2,256,128], index: 6, kind: input, shape index: {}]
  %s7 = inlined_call_operand.vmem [shape: bf16[128,16], index: 7, kind: input, shape index: {}]
  %s8 = inlined_call_operand.vmem [shape: f32[3,128], index: 8, kind: input, shape index: {}]
  %s9 = inlined_call_operand.hbm [shape: f32[2,4,16], index: 9, kind: output, shape index: {}]
  %s10 = sld [smem:[#allocation0]]
  $region85: #{tpu_custom_call.1} parent=0
    _
  %s12 = ssub.s32 1, %s10
  %s13 = scalar_select 0, %s12, %s10
  $region1: #{tpu_custom_call.1} parent=0
    #allocation3 [shape = 'u8[49152]{0}', space=vmem, size = 0xc000, scoped, tag = 'input window, operand 1, single buffered']
    #allocation4 [shape = 's32[2]{0}', space=sflag, size = 0x8, scoped, tag = 'scoped memory for tpu_custom_call.1']
    #allocation5 [shape = 's32[2]{0}', space=sflag, size = 0x8, scoped, tag = 'scoped memory for tpu_custom_call.1']
    #allocation6 [shape = 'u8[12288]{0}', space=vmem, size = 0x3000, scoped, tag = 'input window, operand 2, single buffered']
    #allocation7 [shape = 's32[1]{0}', space=sflag, size = 0x4, scoped, tag = 'scoped memory for tpu_custom_call.1']
    #allocation8 [shape = 'u8[262144]{0}', space=vmem, size = 0x40000, scoped, tag = 'input window, operand 3, single buffered']
    #allocation9 [shape = 'u8[131072]{0}', space=vmem, size = 0x20000, scoped, tag = 'input window, operand 6, single buffered']
    #allocation10 [shape = 's32[1]{0}', space=sflag, size = 0x4, scoped, tag = 'scoped memory for tpu_custom_call.1']
    #allocation11 [shape = 'u8[4096]{0}', space=vmem, size = 0x1000, scoped, tag = 'output window, operand 0']
    %14 = vsyncpa [#allocation4], 0
    %15 = vsyncpa [#allocation7], 0
    %16 = vsyncpa [#allocation10], 0
    %17 = vsyncpa [#allocation5], 0
    %s18 = scalar_lea.sflag [#allocation5], 1
    %19 = vsyncpa %s18, 0
    loop: start=0, step=1, limit=4
    $region2: #{tpu_custom_call.1} parent=1 // loop_pre_header
      _
    $region3: #{tpu_custom_call.1} parent=1 // loop_header
      %s21 = sphi 0, %s25
      %p22 = scmp.ge.s32.totalorder %s21, 4
      %s31 = sphi 0, %s33
      %s34 = sphi 0, %s31
      %s35 = sphi 0, %s34
      %s51 = sphi 0, %s35
      %s55 = sphi 0, %s55
      %s57 = sphi 0, %s55
      %s58 = sphi 0, %s57
      %s72 = sphi 0, %s58
      %s76 = sphi 0, %s76
      %s78 = sphi 0, %s76
      %s79 = sphi 0, %s78
      %s93 = sphi 0, %s79
      %s97 = sphi 0, %s97
      %s99 = sphi 0, %s97
      %s100 = sphi 0, %s99
      %s114 = sphi 0, %s100
      %s118 = sphi 0, %s118
      %s120 = sphi 0, %s118
      %s121 = sphi 0, %s120
      %s135 = sphi 0, %s121
      %s139 = sphi 0, %s139
      %s141 = sphi 0, %s139
      %s142 = sphi 0, %s141
      %s156 = sphi 0, %s142
      %s160 = sphi 0, %s160
      %s162 = sphi 0, %s160
      %s163 = sphi 0, %s162
      %s177 = sphi 0, %s163
      %s181 = sphi 0, %s181
      %s183 = sphi 0, %s181
      %s184 = sphi 0, %s183
      %s198 = sphi 0, %s184
      %s202 = sphi 0, %s202
      %s204 = sphi 0, %s202
      %s205 = sphi 0, %s204
      %s219 = sphi 0, %s205
      %s225 = sphi 0, %s227
      %s228 = sphi 0, %s225
      %s229 = sphi 0, %s228
      %s245 = sphi 0, %s229
    $region4: #{tpu_custom_call.1} parent=1 // loop_header_branch
      %24 = sbr.rel (%p22) target = $region8
    $region5: #{tpu_custom_call.1} parent=1 // loop_body
      %s26 = ssub.s32 %s21, 1
      %s27 = ssub.s32 %s21, 2
      %s28 = sadd.s32 %s21, 1
      %s29 = ssub.s32 %s21, %s28
      %p30 = scmp.eq.s32.totalorder %s29, 0
      %s32 = sadd.s32 %s31, 1
      %s33 = scalar_select %p30, %s31, %s32
      %p36 = pneg %p30
      %p37 = scmp.eq.s32.totalorder %s21, 1
      %p38 = por %p36, %p37
      %p39 = scmp.ne.s32.totalorder %s31, %s34
      %p40 = scmp.eq.s32.totalorder %s21, 0
      %p41 = por %p39, %p40
      %p42 = scmp.ne.s32.totalorder %s31, %s34
      %p43 = scmp.eq.s32.totalorder %s26, 1
      %p44 = por %p42, %p43
      %p45 = scmp.ne.s32.totalorder %s34, %s35
      %p46 = scmp.eq.s32.totalorder %s26, 0
      %p47 = por %p45, %p46
      %p48 = scmp.ne.s32.totalorder %s34, %s35
      %p49 = scmp.eq.s32.totalorder %s27, 1
      %p50 = por %p48, %p49
      %p52 = scmp.ne.s32.totalorder %s35, %s51
      %p53 = scmp.eq.s32.totalorder %s27, 0
      %p54 = por %p52, %p53
      %s56 = sadd.s32 %s55, 1
      %p59 = scmp.eq.s32.totalorder %s21, 1
      %p60 = scmp.ne.s32.totalorder %s55, %s57
      %p61 = scmp.eq.s32.totalorder %s21, 0
      %p62 = por %p60, %p61
      %p63 = scmp.ne.s32.totalorder %s55, %s57
      %p64 = scmp.eq.s32.totalorder %s26, 1
      %p65 = por %p63, %p64
      %p66 = scmp.ne.s32.totalorder %s57, %s58
      %p67 = scmp.eq.s32.totalorder %s26, 0
      %p68 = por %p66, %p67
      %p69 = scmp.ne.s32.totalorder %s57, %s58
      %p70 = scmp.eq.s32.totalorder %s27, 1
      %p71 = por %p69, %p70
      %p73 = scmp.ne.s32.totalorder %s58, %s72
      %p74 = scmp.eq.s32.totalorder %s27, 0
      %p75 = por %p73, %p74
      %s77 = sadd.s32 %s76, 1
      %p80 = scmp.eq.s32.totalorder %s21, 1
      %p81 = scmp.ne.s32.totalorder %s76, %s78
      %p82 = scmp.eq.s32.totalorder %s21, 0
      %p83 = por %p81, %p82
      %p84 = scmp.ne.s32.totalorder %s76, %s78
      %p85 = scmp.eq.s32.totalorder %s26, 1
      %p86 = por %p84, %p85
      %p87 = scmp.ne.s32.totalorder %s78, %s79
      %p88 = scmp.eq.s32.totalorder %s26, 0
      %p89 = por %p87, %p88
      %p90 = scmp.ne.s32.totalorder %s78, %s79
      %p91 = scmp.eq.s32.totalorder %s27, 1
      %p92 = por %p90, %p91
      %p94 = scmp.ne.s32.totalorder %s79, %s93
      %p95 = scmp.eq.s32.totalorder %s27, 0
      %p96 = por %p94, %p95
      %s98 = sadd.s32 %s97, 1
      %p101 = scmp.eq.s32.totalorder %s21, 1
      %p102 = scmp.ne.s32.totalorder %s97, %s99
      %p103 = scmp.eq.s32.totalorder %s21, 0
      %p104 = por %p102, %p103
      %p105 = scmp.ne.s32.totalorder %s97, %s99
      %p106 = scmp.eq.s32.totalorder %s26, 1
      %p107 = por %p105, %p106
      %p108 = scmp.ne.s32.totalorder %s99, %s100
      %p109 = scmp.eq.s32.totalorder %s26, 0
      %p110 = por %p108, %p109
      %p111 = scmp.ne.s32.totalorder %s99, %s100
      %p112 = scmp.eq.s32.totalorder %s27, 1
      %p113 = por %p111, %p112
      %p115 = scmp.ne.s32.totalorder %s100, %s114
      %p116 = scmp.eq.s32.totalorder %s27, 0
      %p117 = por %p115, %p116
      %s119 = sadd.s32 %s118, 1
      %p122 = scmp.eq.s32.totalorder %s21, 1
      %p123 = scmp.ne.s32.totalorder %s118, %s120
      %p124 = scmp.eq.s32.totalorder %s21, 0
      %p125 = por %p123, %p124
      %p126 = scmp.ne.s32.totalorder %s118, %s120
      %p127 = scmp.eq.s32.totalorder %s26, 1
      %p128 = por %p126, %p127
      %p129 = scmp.ne.s32.totalorder %s120, %s121
      %p130 = scmp.eq.s32.totalorder %s26, 0
      %p131 = por %p129, %p130
      %p132 = scmp.ne.s32.totalorder %s120, %s121
      %p133 = scmp.eq.s32.totalorder %s27, 1
      %p134 = por %p132, %p133
      %p136 = scmp.ne.s32.totalorder %s121, %s135
      %p137 = scmp.eq.s32.totalorder %s27, 0
      %p138 = por %p136, %p137
      %s140 = sadd.s32 %s139, 1
      %p143 = scmp.eq.s32.totalorder %s21, 1
      %p144 = scmp.ne.s32.totalorder %s139, %s141
      %p145 = scmp.eq.s32.totalorder %s21, 0
      %p146 = por %p144, %p145
      %p147 = scmp.ne.s32.totalorder %s139, %s141
      %p148 = scmp.eq.s32.totalorder %s26, 1
      %p149 = por %p147, %p148
      %p150 = scmp.ne.s32.totalorder %s141, %s142
      %p151 = scmp.eq.s32.totalorder %s26, 0
      %p152 = por %p150, %p151
      %p153 = scmp.ne.s32.totalorder %s141, %s142
      %p154 = scmp.eq.s32.totalorder %s27, 1
      %p155 = por %p153, %p154
      %p157 = scmp.ne.s32.totalorder %s142, %s156
      %p158 = scmp.eq.s32.totalorder %s27, 0
      %p159 = por %p157, %p158
      %s161 = sadd.s32 %s160, 1
      %p164 = scmp.eq.s32.totalorder %s21, 1
      %p165 = scmp.ne.s32.totalorder %s160, %s162
      %p166 = scmp.eq.s32.totalorder %s21, 0
      %p167 = por %p165, %p166
      %p168 = scmp.ne.s32.totalorder %s160, %s162
      %p169 = scmp.eq.s32.totalorder %s26, 1
      %p170 = por %p168, %p169
      %p171 = scmp.ne.s32.totalorder %s162, %s163
      %p172 = scmp.eq.s32.totalorder %s26, 0
      %p173 = por %p171, %p172
      %p174 = scmp.ne.s32.totalorder %s162, %s163
      %p175 = scmp.eq.s32.totalorder %s27, 1
      %p176 = por %p174, %p175
      %p178 = scmp.ne.s32.totalorder %s163, %s177
      %p179 = scmp.eq.s32.totalorder %s27, 0
      %p180 = por %p178, %p179
      %s182 = sadd.s32 %s181, 1
      %p185 = scmp.eq.s32.totalorder %s21, 1
      %p186 = scmp.ne.s32.totalorder %s181, %s183
      %p187 = scmp.eq.s32.totalorder %s21, 0
      %p188 = por %p186, %p187
      %p189 = scmp.ne.s32.totalorder %s181, %s183
      %p190 = scmp.eq.s32.totalorder %s26, 1
      %p191 = por %p189, %p190
      %p192 = scmp.ne.s32.totalorder %s183, %s184
      %p193 = scmp.eq.s32.totalorder %s26, 0
      %p194 = por %p192, %p193
      %p195 = scmp.ne.s32.totalorder %s183, %s184
      %p196 = scmp.eq.s32.totalorder %s27, 1
      %p197 = por %p195, %p196
      %p199 = scmp.ne.s32.totalorder %s184, %s198
      %p200 = scmp.eq.s32.totalorder %s27, 0
      %p201 = por %p199, %p200
      %s203 = sadd.s32 %s202, 1
      %p206 = scmp.eq.s32.totalorder %s21, 1
      %p207 = scmp.ne.s32.totalorder %s202, %s204
      %p208 = scmp.eq.s32.totalorder %s21, 0
      %p209 = por %p207, %p208
      %p210 = scmp.ne.s32.totalorder %s202, %s204
      %p211 = scmp.eq.s32.totalorder %s26, 1
      %p212 = por %p210, %p211
      %p213 = scmp.ne.s32.totalorder %s204, %s205
      %p214 = scmp.eq.s32.totalorder %s26, 0
      %p215 = por %p213, %p214
      %p216 = scmp.ne.s32.totalorder %s204, %s205
      %p217 = scmp.eq.s32.totalorder %s27, 1
      %p218 = por %p216, %p217
      %p220 = scmp.ne.s32.totalorder %s205, %s219
      %p221 = scmp.eq.s32.totalorder %s27, 0
      %p222 = por %p220, %p221
      %s223 = ssub.s32 %s21, %s28
      %p224 = scmp.eq.s32.totalorder %s223, 0
      %s226 = sadd.s32 %s225, 1
      %s227 = scalar_select %p224, %s225, %s226
      %p230 = pneg %p224
      %p231 = scmp.eq.s32.totalorder %s21, 1
      %p232 = por %p230, %p231
      %p233 = scmp.ne.s32.totalorder %s225, %s228
      %p234 = scmp.eq.s32.totalorder %s21, 0
      %p235 = por %p233, %p234
      %p236 = scmp.ne.s32.totalorder %s225, %s228
      %p237 = scmp.eq.s32.totalorder %s26, 1
      %p238 = por %p236, %p237
      %p239 = scmp.ne.s32.totalorder %s228, %s229
      %p240 = scmp.eq.s32.totalorder %s26, 0
      %p241 = por %p239, %p240
      %p242 = scmp.ne.s32.totalorder %s228, %s229
      %p243 = scmp.eq.s32.totalorder %s27, 1
      %p244 = por %p242, %p243
      %p246 = scmp.ne.s32.totalorder %s229, %s245
      %p247 = scmp.eq.s32.totalorder %s27, 0
      %p248 = por %p246, %p247
      %p249 = scmp.le.s32.totalorder 1, %s21
      %p250 = scmp.lt.s32.totalorder %s21, 3
      %p251 = pnand %p249, %p250
      %p252 = pneg %p251
      // Predicated region
      $region9: #{tpu_custom_call.1} parent=5 // pred_check
        _
      $region10: #{tpu_custom_call.1} parent=5 // pred_check_branch
        %254 = sbr.rel (%p251) target = $region12
      $region11: #{tpu_custom_call.1} parent=5 // pred_region
        %s255 = ssub.s32 %s21, 1
        // Predicated region
        $region13: #{tpu_custom_call.1} parent=11 // pred_check
          %p256 = pneg %p68
        $region14: #{tpu_custom_call.1} parent=11 // pred_check_branch
          %258 = sbr.rel (%p256) target = $region16
        $region15: #{tpu_custom_call.1} parent=11 // pred_region
          %s260 = ssub.s32 1536, 1536
          %261 = vsyncadd [#allocation4], %s260
          %s262 = sshll.u32 [#allocation3], 4
          %s263 = int_to_ptr.vmem [resolvable:$true] %s262
          %268 = dma.hbm_to_vmem [thread:$0]  %s1, 1536, %s263, [#allocation4], 64, 64, 4
        $region16: #{tpu_custom_call.1} parent=11 // pred_fallthru
          _
        // Predicated region
        $region17: #{tpu_custom_call.1} parent=11 // pred_check
          %p269 = pneg %p89
        $region18: #{tpu_custom_call.1} parent=11 // pred_check_branch
          %271 = sbr.rel (%p269) target = $region20
        $region19: #{tpu_custom_call.1} parent=11 // pred_region
          %s273 = ssub.s32 384, 384
          %274 = vsyncadd [#allocation7], %s273
          %s275 = sshll.u32 [#allocation6], 4
          %s276 = int_to_ptr.vmem [resolvable:$true] %s275
          %281 = dma.hbm_to_vmem [thread:$0]  %s2, 384, %s276, [#allocation7], 128, 128, 8
        $region20: #{tpu_custom_call.1} parent=11 // pred_fallthru
          _
        // Predicated region
        $region21: #{tpu_custom_call.1} parent=11 // pred_check
          %p282 = pneg %p110
        $region22: #{tpu_custom_call.1} parent=11 // pred_check_branch
          %284 = sbr.rel (%p282) target = $region24
        $region23: #{tpu_custom_call.1} parent=11 // pred_region
          %s286 = ssub.s32 8192, 8192
          %287 = vsyncadd [#allocation7], %s286
          %s288 = sshll.u32 [#allocation8], 4
          %s289 = int_to_ptr.vmem [resolvable:$true] %s288
          %294 = dma.hbm_to_vmem [thread:$0]  %s3, 8192, %s289, [#allocation7], 256, 256, 16
        $region24: #{tpu_custom_call.1} parent=11 // pred_fallthru
          _
        // Predicated region
        $region25: #{tpu_custom_call.1} parent=11 // pred_check
          %p295 = pneg %p131
        $region26: #{tpu_custom_call.1} parent=11 // pred_check_branch
          %297 = sbr.rel (%p295) target = $region28
        $region27: #{tpu_custom_call.1} parent=11 // pred_region
          _
        $region28: #{tpu_custom_call.1} parent=11 // pred_fallthru
          _
        // Predicated region
        $region29: #{tpu_custom_call.1} parent=11 // pred_check
          %p298 = pneg %p152
        $region30: #{tpu_custom_call.1} parent=11 // pred_check_branch
          %300 = sbr.rel (%p298) target = $region32
        $region31: #{tpu_custom_call.1} parent=11 // pred_region
          _
        $region32: #{tpu_custom_call.1} parent=11 // pred_fallthru
          _
        // Predicated region
        $region33: #{tpu_custom_call.1} parent=11 // pred_check
          %p301 = pneg %p173
        $region34: #{tpu_custom_call.1} parent=11 // pred_check_branch
          %303 = sbr.rel (%p301) target = $region36
        $region35: #{tpu_custom_call.1} parent=11 // pred_region
          %s305 = ssub.s32 4096, 4096
          %306 = vsyncadd [#allocation10], %s305
          %s307 = sshll.u32 [#allocation9], 4
          %s308 = int_to_ptr.vmem [resolvable:$true] %s307
          %313 = dma.hbm_to_vmem [thread:$0]  %s6, 4096, %s308, [#allocation10], 64, 64, 4
        $region36: #{tpu_custom_call.1} parent=11 // pred_fallthru
          _
        // Predicated region
        $region37: #{tpu_custom_call.1} parent=11 // pred_check
          %p314 = pneg %p194
        $region38: #{tpu_custom_call.1} parent=11 // pred_check_branch
          %316 = sbr.rel (%p314) target = $region40
        $region39: #{tpu_custom_call.1} parent=11 // pred_region
          _
        $region40: #{tpu_custom_call.1} parent=11 // pred_fallthru
          _
        // Predicated region
        $region41: #{tpu_custom_call.1} parent=11 // pred_check
          %p317 = pneg %p215
        $region42: #{tpu_custom_call.1} parent=11 // pred_check_branch
          %319 = sbr.rel (%p317) target = $region44
        $region43: #{tpu_custom_call.1} parent=11 // pred_region
          _
        $region44: #{tpu_custom_call.1} parent=11 // pred_fallthru
          _
      $region12: #{tpu_custom_call.1} parent=5 // pred_fallthru
        _
      %p320 = scmp.lt.s32.totalorder %s21, 2
      // Predicated region
      $region45: #{tpu_custom_call.1} parent=5 // pred_check
        %p321 = pneg %p320
      $region46: #{tpu_custom_call.1} parent=5 // pred_check_branch
        %323 = sbr.rel (%p321) target = $region48
      $region47: #{tpu_custom_call.1} parent=5 // pred_region
        // Predicated region
        $region49: #{tpu_custom_call.1} parent=47 // pred_check
          %p324 = pneg %p41
        $region50: #{tpu_custom_call.1} parent=47 // pred_check_branch
          %326 = sbr.rel (%p324) target = $region52
        $region51: #{tpu_custom_call.1} parent=47 // pred_region
          %s327 = smul.u32 8, %s21
          %p328 = scmp.lt.s32.totalorder %s327, 15
          %s329 = scalar_select %p328, %s327, 15
          %s330 = smul.addr %s329, 2
          %s331 = smul.addr %s330, 4
          %s332 = scalar_lea.vmem %s0, %s331
          %s333 = smul.u32 8, %s21
        $region52: #{tpu_custom_call.1} parent=47 // pred_fallthru
          _
      $region48: #{tpu_custom_call.1} parent=5 // pred_fallthru
        _
      %p334 = scmp.le.s32.totalorder 1, %s21
      %p335 = scmp.lt.s32.totalorder %s21, 3
      %p336 = pnand %p334, %p335
      %p337 = pneg %p336
      // Predicated region
      $region53: #{tpu_custom_call.1} parent=5 // pred_check
        _
      $region54: #{tpu_custom_call.1} parent=5 // pred_check_branch
        %339 = sbr.rel (%p336) target = $region56
      $region55: #{tpu_custom_call.1} parent=5 // pred_region
        %s340 = ssub.s32 %s21, 1
        // Predicated region
        $region57: #{tpu_custom_call.1} parent=55 // pred_check
          %p341 = pneg %p68
        $region58: #{tpu_custom_call.1} parent=55 // pred_check_branch
          %343 = sbr.rel (%p341) target = $region60
        $region59: #{tpu_custom_call.1} parent=55 // pred_region
          %344 = dma.done [#allocation4], 1536
        $region60: #{tpu_custom_call.1} parent=55 // pred_fallthru
          _
        // Predicated region
        $region61: #{tpu_custom_call.1} parent=55 // pred_check
          %p345 = pneg %p89
        $region62: #{tpu_custom_call.1} parent=55 // pred_check_branch
          %347 = sbr.rel (%p345) target = $region64
        $region63: #{tpu_custom_call.1} parent=55 // pred_region
          %348 = dma.done [#allocation7], 384
        $region64: #{tpu_custom_call.1} parent=55 // pred_fallthru
          _
        // Predicated region
        $region65: #{tpu_custom_call.1} parent=55 // pred_check
          %p349 = pneg %p110
        $region66: #{tpu_custom_call.1} parent=55 // pred_check_branch
          %351 = sbr.rel (%p349) target = $region68
        $region67: #{tpu_custom_call.1} parent=55 // pred_region
          %352 = dma.done [#allocation7], 8192
        $region68: #{tpu_custom_call.1} parent=55 // pred_fallthru
          _
        // Predicated region
        $region69: #{tpu_custom_call.1} parent=55 // pred_check
          %p353 = pneg %p173
        $region70: #{tpu_custom_call.1} parent=55 // pred_check_branch
          %355 = sbr.rel (%p353) target = $region72
        $region71: #{tpu_custom_call.1} parent=55 // pred_region
          %356 = dma.done [#allocation10], 4096
        $region72: #{tpu_custom_call.1} parent=55 // pred_fallthru
          _
        %s357 = smul.u32 8, %s26
        %p358 = scmp.lt.s32.totalorder %s357, 15
        %s359 = scalar_select %p358, %s357, 15
        %s360 = smul.addr %s359, 2
        %s361 = smul.addr %s360, 4
        %s362 = scalar_lea.vmem %s0, %s361
        %p363 = pneg %p47
        %p364 = pneg %p44
        %p365 = pneg %p68
        %p366 = pneg %p65
        %p367 = pneg %p89
        %p368 = pneg %p86
        %p369 = pneg %p110
        %p370 = pneg %p107
        %p371 = pneg %p131
        %p372 = pneg %p128
        %p373 = pneg %p152
        %p374 = pneg %p149
        %p375 = pneg %p173
        %p376 = pneg %p170
        %p377 = pneg %p194
        %p378 = pneg %p191
        %p379 = pneg %p215
        %p380 = pneg %p212
        %p381 = pneg %p241
        %p382 = pneg %p238
        %s383 = sand.u32 %s228, 1
        %s384 = scalar_lea.sflag [#allocation5], %s383
        %s385 = sand.u32 %s228, 1
        %s386 = smul.addr %s385, 4
        %s387 = scalar_lea.vmem [#allocation11], %s386
        %s388 = smul.u32 8, %s26
        %p389 = scmp.lt.s32.totalorder %s388, 15
        %s390 = scalar_select %p389, %s388, 15
        %s391 = smul.addr %s390, 2
        %s392 = smul.addr %s391, 4
        %s393 = scalar_lea.vmem %s0, %s392
        %s394 = smul.u32 8, %s26
        %v396 = vld [vmem:[%s393] sm:$0xff]
        %v397 = vld [vmem:[%s393 + $0x8] sm:$0xff]
        %v398 = vld [vmem:[%s393 + $0x10] sm:$0xff]
        %v399 = vld [vmem:[%s393 + $0x18] sm:$0xff]
        %v400 = vld [vmem:[%s393 + $0x20] sm:$0xff]
        %v401 = vld [vmem:[%s393 + $0x28] sm:$0xff]
        %v402 = vld [vmem:[%s393 + $0x30] sm:$0xff]
        %v403 = vld [vmem:[%s393 + $0x38] sm:$0xff]
        %v404 = vld [vmem:[#allocation3] sm:$0xf]
        %v405 = vld [vmem:[#allocation3 + $0x4] sm:$0xf]
        %v406 = vld [vmem:[#allocation3 + $0x8] sm:$0xf]
        %v407 = vld [vmem:[#allocation3 + $0xc] sm:$0xf]
        %v408 = vld [vmem:[#allocation3 + $0x10] sm:$0xf]
        %v409 = vld [vmem:[#allocation3 + $0x14] sm:$0xf]
        %v410 = vld [vmem:[#allocation3 + $0x18] sm:$0xf]
        %v411 = vld [vmem:[#allocation3 + $0x1c] sm:$0xf]
        %v412 = vld [vmem:[#allocation3 + $0x20] sm:$0xf]
        %v413 = vld [vmem:[#allocation3 + $0x24] sm:$0xf]
        %v414 = vld [vmem:[#allocation3 + $0x28] sm:$0xf]
        %v415 = vld [vmem:[#allocation3 + $0x2c] sm:$0xf]
        %v416 = vld [vmem:[#allocation3 + $0x30] sm:$0xf]
        %v417 = vld [vmem:[#allocation3 + $0x34] sm:$0xf]
        %v418 = vld [vmem:[#allocation3 + $0x38] sm:$0xf]
        %v419 = vld [vmem:[#allocation3 + $0x3c] sm:$0xf]
        %v420 = vld [vmem:[#allocation3 + $0x40] sm:$0xf]
        %v421 = vld [vmem:[#allocation3 + $0x44] sm:$0xf]
        %v422 = vld [vmem:[#allocation3 + $0x48] sm:$0xf]
        %v423 = vld [vmem:[#allocation3 + $0x4c] sm:$0xf]
        %v424 = vld [vmem:[#allocation3 + $0x50] sm:$0xf]
        %v425 = vld [vmem:[#allocation3 + $0x54] sm:$0xf]
        %v426 = vld [vmem:[#allocation3 + $0x58] sm:$0xf]
        %v427 = vld [vmem:[#allocation3 + $0x5c] sm:$0xf]
        %v436 = vunpack.c.l.b16 %v396
        %v437 = vunpack.c.h.b16 %v396
        %v438 = vunpack.c.l.b16 %v397
        %v439 = vunpack.c.h.b16 %v397
        %v440 = vunpack.c.l.b16 %v398
        %v441 = vunpack.c.h.b16 %v398
        %v442 = vunpack.c.l.b16 %v399
        %v443 = vunpack.c.h.b16 %v399
        %v444 = vunpack.c.l.b16 %v400
        %v445 = vunpack.c.h.b16 %v400
        %v446 = vunpack.c.l.b16 %v401
        %v447 = vunpack.c.h.b16 %v401
        %v448 = vunpack.c.l.b16 %v402
        %v449 = vunpack.c.h.b16 %v402
        %v450 = vunpack.c.l.b16 %v403
        %v451 = vunpack.c.h.b16 %v403
        %v452 = vpack.c.b16 %v438, %v436
        %v453 = vpack.c.b16 %v439, %v437
        %v454 = vpack.c.b16 %v442, %v440
        %v455 = vpack.c.b16 %v443, %v441
        %v456 = vpack.c.b16 %v446, %v444
        %v457 = vpack.c.b16 %v447, %v445
        %v458 = vpack.c.b16 %v450, %v448
        %v459 = vpack.c.b16 %v451, %v449
        %v488 = vunpack.c.l.b16 %v404
        %v489 = vunpack.c.l.b16 %v405
        %v490 = vunpack.c.l.b16 %v406
        %v491 = vunpack.c.l.b16 %v407
        %v492 = vunpack.c.l.b16 %v408
        %v493 = vunpack.c.l.b16 %v409
        %v494 = vunpack.c.l.b16 %v410
        %v495 = vunpack.c.l.b16 %v411
        %v496 = vunpack.c.l.b16 %v412
        %v497 = vunpack.c.l.b16 %v413
        %v498 = vunpack.c.l.b16 %v414
        %v499 = vunpack.c.l.b16 %v415
        %v500 = vunpack.c.l.b16 %v416
        %v501 = vunpack.c.l.b16 %v417
        %v502 = vunpack.c.l.b16 %v418
        %v503 = vunpack.c.l.b16 %v419
        %v504 = vunpack.c.l.b16 %v420
        %v505 = vunpack.c.l.b16 %v421
        %v506 = vunpack.c.l.b16 %v422
        %v507 = vunpack.c.l.b16 %v423
        %v508 = vunpack.c.l.b16 %v424
        %v509 = vunpack.c.l.b16 %v425
        %v510 = vunpack.c.l.b16 %v426
        %v511 = vunpack.c.l.b16 %v427
        %v512 = vpack.c.b16 %v489, %v488
        %v513 = vpack.c.b16 %v491, %v490
        %v514 = vpack.c.b16 %v493, %v492
        %v515 = vpack.c.b16 %v495, %v494
        %v516 = vpack.c.b16 %v497, %v496
        %v517 = vpack.c.b16 %v499, %v498
        %v518 = vpack.c.b16 %v501, %v500
        %v519 = vpack.c.b16 %v503, %v502
        %v520 = vpack.c.b16 %v505, %v504
        %v521 = vpack.c.b16 %v507, %v506
        %v522 = vpack.c.b16 %v509, %v508
        %v523 = vpack.c.b16 %v511, %v510
        %vm536 = vcmask 523264
        %v538 = vsel %vm536, %v453, 0
        %v541 = vsel %vm536, %v455, 0
        %v544 = vsel %vm536, %v457, 0
        %v547 = vsel %vm536, %v459, 0
        %549 = vmatprep.subr.bf16.mxu0 0
        %550 = vmatpush1.bf16.msra.mxu0 %v519
        %551 = vmatprep.subr.bf16.mxu0 0
        %552 = vmatpush1.bf16.msra.mxu0 %v518
        %553 = vmatprep.subr.bf16.mxu0 0
        %554 = vmatpush1.bf16.msra.mxu0 %v517
        %555 = vmatprep.subr.bf16.mxu0 0
        %556 = vmatpush1.bf16.msra.mxu0 %v516
        %557 = vmatprep.subr.bf16.mxu0 0
        %558 = vmatpush1.bf16.msra.mxu0 %v515
        %559 = vmatprep.subr.bf16.mxu0 0
        %560 = vmatpush1.bf16.msra.mxu0 %v514
        %561 = vmatprep.subr.bf16.mxu0 0
        %562 = vmatpush1.bf16.msra.mxu0 %v513
        %563 = vmatprep.subr.bf16.mxu0 0
        %564 = vmatpush1.bf16.msra.mxu0 %v512
        %565 = vmatprep.subr.bf16.mxu0 0
        %566 = vmatpush2.bf16.msra.mxu0 0
        %567 = vmatprep.subr.bf16.mxu0 0
        %568 = vmatpush2.bf16.msra.mxu0 0
        %569 = vmatprep.subr.bf16.mxu0 0
        %570 = vmatpush2.bf16.msra.mxu0 0
        %571 = vmatprep.subr.bf16.mxu0 0
        %572 = vmatpush2.bf16.msra.mxu0 0
        %573 = vmatprep.subr.bf16.mxu0 0
        %574 = vmatpush2.bf16.msra.mxu0 %v523
        %575 = vmatprep.subr.bf16.mxu0 0
        %576 = vmatpush2.bf16.msra.mxu0 %v522
        %577 = vmatprep.subr.bf16.mxu0 0
        %578 = vmatpush2.bf16.msra.mxu0 %v521
        %579 = vmatprep.subr.bf16.mxu0 0
        %580 = vmatpush2.bf16.msra.mxu0 %v520
        %581 = vmatprep.mubr.bf16.mxu0 %v538
        %582 = vmatmul.mubr.bf16.gmra.mxu0 %v452
        %v583 = vpop.f32.mrf.mxu0
        %v584 = vadd.f32 0.0, %v583
        %v585 = vpop.f32.mrf.mxu0
        %v586 = vpop.f32.mrf.mxu0
        %v587 = vadd.f32 0.0, %v586
        %v588 = vpop.f32.mrf.mxu0
        %589 = vmatprep.mubr.bf16.mxu0 %v541
        %590 = vmatmul.mubr.bf16.gmra.mxu0 %v454
        %v591 = vpop.f32.mrf.mxu0
        %v592 = vadd.f32 0.0, %v591
        %v593 = vpop.f32.mrf.mxu0
        %v594 = vpop.f32.mrf.mxu0
        %v595 = vadd.f32 0.0, %v594
        %v596 = vpop.f32.mrf.mxu0
        %597 = vmatprep.mubr.bf16.mxu0 %v544
        %598 = vmatmul.mubr.bf16.gmra.mxu0 %v456
        %v599 = vpop.f32.mrf.mxu0
        %v600 = vadd.f32 0.0, %v599
        %v601 = vpop.f32.mrf.mxu0
        %v602 = vpop.f32.mrf.mxu0
        %v603 = vadd.f32 0.0, %v602
        %v604 = vpop.f32.mrf.mxu0
        %605 = vmatprep.mubr.bf16.mxu0 %v547
        %606 = vmatmul.mubr.bf16.gmra.mxu0 %v458
        %v607 = vpop.f32.mrf.mxu0
        %v608 = vadd.f32 0.0, %v607
        %v609 = vpop.f32.mrf.mxu0
        %v610 = vpop.f32.mrf.mxu0
        %v611 = vadd.f32 0.0, %v610
        %v612 = vpop.f32.mrf.mxu0
        %613 = vdwg.mxu0
        %v614 = vld [vmem:[#allocation6] sm:$0xff]
        %v615 = vld [vmem:[#allocation6 + $0x8] sm:$0xff]
        %v616 = vld [vmem:[#allocation6 + $0x10] sm:$0xff]
        %617 = vst [vmem:[#allocation2] sm:$0x1] %v614
        %vm621 = vcmask 1046528
        %v622 = vrot.slane %v614, 1
        %v623 = vrot.slane %v615, 1
        %v624 = vsel %vm621, %v622, %v623
        %v625 = vrot.slane %v616, 1
        %v626 = vsel %vm621, %v623, %v625
        %v629 = vadd.f32 %v584, %v624
        %v630 = vadd.f32 %v587, %v626
        %631 = vst [vmem:[#allocation2 + $0x1] sm:$0xff] %v629
        %632 = vst [vmem:[#allocation2 + $0x9] sm:$0xff] %v630
        %633 = vst [vmem:[#allocation2 + $0x11] sm:$0x7f] 0.0
        %634 = vst [vmem:[#allocation2 + $0x18] sm:$0x1] %v614
        %v635 = vadd.f32 %v592, %v624
        %v636 = vadd.f32 %v595, %v626
        %637 = vst [vmem:[#allocation2 + $0x19] sm:$0xff] %v635
        %638 = vst [vmem:[#allocation2 + $0x21] sm:$0xff] %v636
        %639 = vst [vmem:[#allocation2 + $0x29] sm:$0x7f] 0.0
        %640 = vst [vmem:[#allocation2 + $0x30] sm:$0x1] %v614
        %v641 = vadd.f32 %v600, %v624
        %v642 = vadd.f32 %v603, %v626
        %643 = vst [vmem:[#allocation2 + $0x31] sm:$0xff] %v641
        %644 = vst [vmem:[#allocation2 + $0x39] sm:$0xff] %v642
        %645 = vst [vmem:[#allocation2 + $0x41] sm:$0x7f] 0.0
        %646 = vst [vmem:[#allocation2 + $0x48] sm:$0x1] %v614
        %v647 = vadd.f32 %v608, %v624
        %v648 = vadd.f32 %v611, %v626
        %649 = vst [vmem:[#allocation2 + $0x49] sm:$0xff] %v647
        %650 = vst [vmem:[#allocation2 + $0x51] sm:$0xff] %v648
        %651 = vst [vmem:[#allocation2 + $0x59] sm:$0x7f] 0.0
        %v652 = vld [vmem:[#allocation2] sm:$0xff]
        %v653 = vld [vmem:[#allocation2 + $0x8] sm:$0xff]
        %v654 = vld [vmem:[#allocation2 + $0x10] sm:$0xff]
        %v655 = vld [vmem:[#allocation2 + $0x18] sm:$0xff]
        %v656 = vld [vmem:[#allocation2 + $0x20] sm:$0xff]
        %v657 = vld [vmem:[#allocation2 + $0x28] sm:$0xff]
        %v658 = vld [vmem:[#allocation2 + $0x30] sm:$0xff]
        %v659 = vld [vmem:[#allocation2 + $0x38] sm:$0xff]
        %v660 = vld [vmem:[#allocation2 + $0x40] sm:$0xff]
        %v661 = vld [vmem:[#allocation2 + $0x48] sm:$0xff]
        %v662 = vld [vmem:[#allocation2 + $0x50] sm:$0xff]
        %v663 = vld [vmem:[#allocation2 + $0x58] sm:$0xff]
        %v664 = vlaneseq
        %v665 = vand.u32 %v664, 127
        %vm666 = vcmp.lt.s32.totalorder %v665, 17
        %v667 = vsel %vm666, 0.0, -1e+30
        %v668 = vld [vmem:[#allocation8] sm:$0xff]
        %v669 = vld [vmem:[#allocation8 + $0x8] sm:$0xff]
        %v670 = vld [vmem:[#allocation8 + $0x10] sm:$0xff]
        %v671 = vld [vmem:[#allocation8 + $0x18] sm:$0xff]
        %v672 = vld [vmem:[#allocation8 + $0x20] sm:$0xff]
        %v673 = vld [vmem:[#allocation8 + $0x28] sm:$0xff]
        %v674 = vld [vmem:[#allocation8 + $0x30] sm:$0xff]
        %v675 = vld [vmem:[#allocation8 + $0x38] sm:$0xff]
        %v676 = vld [vmem:[#allocation8 + $0x40] sm:$0xff]
        %v677 = vld [vmem:[#allocation8 + $0x48] sm:$0xff]
        %v678 = vld [vmem:[#allocation8 + $0x50] sm:$0xff]
        %v679 = vld [vmem:[#allocation8 + $0x58] sm:$0xff]
        %v680 = vld [vmem:[#allocation8 + $0x60] sm:$0xff]
        %v681 = vld [vmem:[#allocation8 + $0x68] sm:$0xff]
        %v682 = vld [vmem:[#allocation8 + $0x70] sm:$0xff]
        %v683 = vld [vmem:[#allocation8 + $0x78] sm:$0xff]
        %v684 = vld [vmem:[#allocation8 + $0x80] sm:$0xff]
        %v685 = vld [vmem:[#allocation8 + $0x88] sm:$0xff]
        %v686 = vld [vmem:[#allocation8 + $0x90] sm:$0xff]
        %v687 = vld [vmem:[#allocation8 + $0x98] sm:$0xff]
        %v688 = vld [vmem:[#allocation8 + $0xa0] sm:$0xff]
        %v689 = vld [vmem:[#allocation8 + $0xa8] sm:$0xff]
        %v690 = vld [vmem:[#allocation8 + $0xb0] sm:$0xff]
        %v691 = vld [vmem:[#allocation8 + $0xb8] sm:$0xff]
        %v692 = vld [vmem:[#allocation8 + $0xc0] sm:$0xff]
        %v693 = vld [vmem:[#allocation8 + $0xc8] sm:$0xff]
        %v694 = vld [vmem:[#allocation8 + $0xd0] sm:$0xff]
        %v695 = vld [vmem:[#allocation8 + $0xd8] sm:$0xff]
        %v696 = vld [vmem:[#allocation8 + $0xe0] sm:$0xff]
        %v697 = vld [vmem:[#allocation8 + $0xe8] sm:$0xff]
        %v698 = vld [vmem:[#allocation8 + $0xf0] sm:$0xff]
        %v699 = vld [vmem:[#allocation8 + $0xf8] sm:$0xff]
        %v700 = vld [vmem:[%s4] sm:$0xff]
        %v701 = vld [vmem:[%s4 + $0x8] sm:$0xff]
        %v702 = vld [vmem:[%s4 + $0x10] sm:$0xff]
        %703 = vadd.xlane.f32.xlu0 %v652
        %v704 = vpop.xlane.xlu0 %703
        %705 = vadd.xlane.f32.xlu0 %v653
        %v706 = vpop.xlane.xlu0 %705
        %707 = vadd.xlane.f32.xlu0 %v654
        %v708 = vpop.xlane.xlu0 %707
        %709 = vadd.xlane.f32.xlu0 %v655
        %v710 = vpop.xlane.xlu0 %709
        %711 = vadd.xlane.f32.xlu0 %v656
        %v712 = vpop.xlane.xlu0 %711
        %713 = vadd.xlane.f32.xlu0 %v657
        %v714 = vpop.xlane.xlu0 %713
        %715 = vadd.xlane.f32.xlu0 %v658
        %v716 = vpop.xlane.xlu0 %715
        %717 = vadd.xlane.f32.xlu0 %v659
        %v718 = vpop.xlane.xlu0 %717
        %719 = vadd.xlane.f32.xlu0 %v660
        %v720 = vpop.xlane.xlu0 %719
        %721 = vadd.xlane.f32.xlu0 %v661
        %v722 = vpop.xlane.xlu0 %721
        %723 = vadd.xlane.f32.xlu0 %v662
        %v724 = vpop.xlane.xlu0 %723
        %725 = vadd.xlane.f32.xlu0 %v663
        %v726 = vpop.xlane.xlu0 %725
        %v727 = vrcp.pop 128.0
        %v728 = vmul.f32 %v704, %v727
        %v729 = vmul.f32 %v706, %v727
        %v730 = vmul.f32 %v708, %v727
        %v731 = vmul.f32 %v710, %v727
        %v732 = vmul.f32 %v712, %v727
        %v733 = vmul.f32 %v714, %v727
        %v734 = vmul.f32 %v716, %v727
        %v735 = vmul.f32 %v718, %v727
        %v736 = vmul.f32 %v720, %v727
        %v737 = vmul.f32 %v722, %v727
        %v738 = vmul.f32 %v724, %v727
        %v739 = vmul.f32 %v726, %v727
        %v740 = vsub.f32 %v652, %v728
        %v741 = vsub.f32 %v653, %v729
        %v742 = vsub.f32 %v654, %v730
        %v743 = vsub.f32 %v655, %v731
        %v744 = vsub.f32 %v656, %v732
        %v745 = vsub.f32 %v657, %v733
        %v746 = vsub.f32 %v658, %v734
        %v747 = vsub.f32 %v659, %v735
        %v748 = vsub.f32 %v660, %v736
        %v749 = vsub.f32 %v661, %v737
        %v750 = vsub.f32 %v662, %v738
        %v751 = vsub.f32 %v663, %v739
        %v752 = vmul.f32 %v740, %v740
        %v753 = vmul.f32 %v741, %v741
        %v754 = vmul.f32 %v742, %v742
        %v755 = vmul.f32 %v743, %v743
        %v756 = vmul.f32 %v744, %v744
        %v757 = vmul.f32 %v745, %v745
        %v758 = vmul.f32 %v746, %v746
        %v759 = vmul.f32 %v747, %v747
        %v760 = vmul.f32 %v748, %v748
        %v761 = vmul.f32 %v749, %v749
        %v762 = vmul.f32 %v750, %v750
        %v763 = vmul.f32 %v751, %v751
        %764 = vadd.xlane.f32.xlu0 %v752
        %v765 = vpop.xlane.xlu0 %764
        %766 = vadd.xlane.f32.xlu0 %v753
        %v767 = vpop.xlane.xlu0 %766
        %768 = vadd.xlane.f32.xlu0 %v754
        %v769 = vpop.xlane.xlu0 %768
        %770 = vadd.xlane.f32.xlu0 %v755
        %v771 = vpop.xlane.xlu0 %770
        %772 = vadd.xlane.f32.xlu0 %v756
        %v773 = vpop.xlane.xlu0 %772
        %774 = vadd.xlane.f32.xlu0 %v757
        %v775 = vpop.xlane.xlu0 %774
        %776 = vadd.xlane.f32.xlu0 %v758
        %v777 = vpop.xlane.xlu0 %776
        %778 = vadd.xlane.f32.xlu0 %v759
        %v779 = vpop.xlane.xlu0 %778
        %780 = vadd.xlane.f32.xlu0 %v760
        %v781 = vpop.xlane.xlu0 %780
        %782 = vadd.xlane.f32.xlu0 %v761
        %v783 = vpop.xlane.xlu0 %782
        %784 = vadd.xlane.f32.xlu0 %v762
        %v785 = vpop.xlane.xlu0 %784
        %786 = vadd.xlane.f32.xlu0 %v763
        %v787 = vpop.xlane.xlu0 %786
        %v788 = vmul.f32 %v765, %v727
        %v789 = vmul.f32 %v767, %v727
        %v790 = vmul.f32 %v769, %v727
        %v791 = vmul.f32 %v771, %v727
        %v792 = vmul.f32 %v773, %v727
        %v793 = vmul.f32 %v775, %v727
        %v794 = vmul.f32 %v777, %v727
        %v795 = vmul.f32 %v779, %v727
        %v796 = vmul.f32 %v781, %v727
        %v797 = vmul.f32 %v783, %v727
        %v798 = vmul.f32 %v785, %v727
        %v799 = vmul.f32 %v787, %v727
        %v800 = vadd.f32 %v788, 1e-05
        %v801 = vadd.f32 %v789, 1e-05
        %v802 = vadd.f32 %v790, 1e-05
        %v803 = vadd.f32 %v791, 1e-05
        %v804 = vadd.f32 %v792, 1e-05
        %v805 = vadd.f32 %v793, 1e-05
        %v806 = vadd.f32 %v794, 1e-05
        %v807 = vadd.f32 %v795, 1e-05
        %v808 = vadd.f32 %v796, 1e-05
        %v809 = vadd.f32 %v797, 1e-05
        %v810 = vadd.f32 %v798, 1e-05
        %v811 = vadd.f32 %v799, 1e-05
        %v812 = vrsqrt.pop %v800
        %v813 = vrsqrt.pop %v801
        %v814 = vrsqrt.pop %v802
        %v815 = vrsqrt.pop %v803
        %v816 = vrsqrt.pop %v804
        %v817 = vrsqrt.pop %v805
        %v818 = vrsqrt.pop %v806
        %v819 = vrsqrt.pop %v807
        %v820 = vrsqrt.pop %v808
        %v821 = vrsqrt.pop %v809
        %v822 = vrsqrt.pop %v810
        %v823 = vrsqrt.pop %v811
        %v824 = vmul.f32 %v740, %v812
        %v825 = vmul.f32 %v741, %v813
        %v826 = vmul.f32 %v742, %v814
        %v827 = vmul.f32 %v743, %v815
        %v828 = vmul.f32 %v744, %v816
        %v829 = vmul.f32 %v745, %v817
        %v830 = vmul.f32 %v746, %v818
        %v831 = vmul.f32 %v747, %v819
        %v832 = vmul.f32 %v748, %v820
        %v833 = vmul.f32 %v749, %v821
        %v834 = vmul.f32 %v750, %v822
        %v835 = vmul.f32 %v751, %v823
        %v836 = vlaneseq
        %v837 = vshrl.u32 %v836, 7
        %v838 = vsub.s32 0, %v837
        %v839 = vrot.slane %v700, %v838
        %v840 = vmul.f32 %v824, %v839
        %v841 = vmul.f32 %v825, %v839
        %v842 = vmul.f32 %v826, %v839
        %v843 = vmul.f32 %v827, %v839
        %v844 = vmul.f32 %v828, %v839
        %v845 = vmul.f32 %v829, %v839
        %v846 = vmul.f32 %v830, %v839
        %v847 = vmul.f32 %v831, %v839
        %v848 = vmul.f32 %v832, %v839
        %v849 = vmul.f32 %v833, %v839
        %v850 = vmul.f32 %v834, %v839
        %v851 = vmul.f32 %v835, %v839
        %v852 = vlaneseq
        %v853 = vshrl.u32 %v852, 7
        %v854 = vsub.s32 1, %v853
        %v855 = vrot.slane %v700, %v854
        %v856 = vadd.f32 %v840, %v855
        %v857 = vadd.f32 %v841, %v855
        %v858 = vadd.f32 %v842, %v855
        %v859 = vadd.f32 %v843, %v855
        %v860 = vadd.f32 %v844, %v855
        %v861 = vadd.f32 %v845, %v855
        %v862 = vadd.f32 %v846, %v855
        %v863 = vadd.f32 %v847, %v855
        %v864 = vadd.f32 %v848, %v855
        %v865 = vadd.f32 %v849, %v855
        %v866 = vadd.f32 %v850, %v855
        %v867 = vadd.f32 %v851, %v855
        %v868 = vpack.c.bf16 %v857, %v856
        %v869 = vpack.c.bf16 %v859, %v858
        %v870 = vpack.c.bf16 %v861, %v860
        %v871 = vpack.c.bf16 %v863, %v862
        %v872 = vpack.c.bf16 %v865, %v864
        %v873 = vpack.c.bf16 %v867, %v866
        %v874 = vlaneseq
        %v875 = vshrl.u32 %v874, 7
        %v876 = vsub.s32 7, %v875
        %v877 = vrot.slane %v700, %v876
        %v878 = vlaneseq
        %v879 = vshrl.u32 %v878, 7
        %v880 = vsub.s32 7, %v879
        %v881 = vrot.slane %v701, %v880
        %v882 = vlaneseq
        %v883 = vshrl.u32 %v882, 7
        %v884 = vsub.s32 7, %v883
        %v885 = vrot.slane %v702, %v884
        %v918 = vunpack.c.l.b16 %v668
        %v919 = vunpack.c.h.b16 %v668
        %v920 = vunpack.c.l.b16 %v669
        %v921 = vunpack.c.l.b16 %v670
        %v922 = vunpack.c.h.b16 %v670
        %v923 = vunpack.c.l.b16 %v671
        %v924 = vunpack.c.l.b16 %v672
        %v925 = vunpack.c.h.b16 %v672
        %v926 = vunpack.c.l.b16 %v673
        %v927 = vunpack.c.l.b16 %v674
        %v928 = vunpack.c.h.b16 %v674
        %v929 = vunpack.c.l.b16 %v675
        %v930 = vunpack.c.l.b16 %v676
        %v931 = vunpack.c.h.b16 %v676
        %v932 = vunpack.c.l.b16 %v677
        %v933 = vunpack.c.l.b16 %v678
        %v934 = vunpack.c.h.b16 %v678
        %v935 = vunpack.c.l.b16 %v679
        %v936 = vunpack.c.l.b16 %v680
        %v937 = vunpack.c.h.b16 %v680
        %v938 = vunpack.c.l.b16 %v681
        %v939 = vunpack.c.l.b16 %v682
        %v940 = vunpack.c.h.b16 %v682
        %v941 = vunpack.c.l.b16 %v683
        %v942 = vunpack.c.l.b16 %v684
        %v943 = vunpack.c.h.b16 %v684
        %v944 = vunpack.c.l.b16 %v685
        %v945 = vunpack.c.l.b16 %v686
        %v946 = vunpack.c.h.b16 %v686
        %v947 = vunpack.c.l.b16 %v687
        %v948 = vunpack.c.l.b16 %v688
        %v949 = vunpack.c.h.b16 %v688
        %v950 = vunpack.c.l.b16 %v689
        %v951 = vunpack.c.l.b16 %v690
        %v952 = vunpack.c.h.b16 %v690
        %v953 = vunpack.c.l.b16 %v691
        %v954 = vunpack.c.l.b16 %v692
        %v955 = vunpack.c.h.b16 %v692
        %v956 = vunpack.c.l.b16 %v693
        %v957 = vunpack.c.l.b16 %v694
        %v958 = vunpack.c.h.b16 %v694
        %v959 = vunpack.c.l.b16 %v695
        %v960 = vunpack.c.l.b16 %v696
        %v961 = vunpack.c.h.b16 %v696
        %v962 = vunpack.c.l.b16 %v697
        %v963 = vunpack.c.l.b16 %v698
        %v964 = vunpack.c.h.b16 %v698
        %v965 = vunpack.c.l.b16 %v699
        %v966 = vpack.c.b16 %v921, %v918
        %v967 = vpack.c.b16 %v922, %v919
        %v968 = vpack.c.b16 %v923, %v920
        %v969 = vpack.c.b16 %v927, %v924
        %v970 = vpack.c.b16 %v928, %v925
        %v971 = vpack.c.b16 %v929, %v926
        %v972 = vpack.c.b16 %v933, %v930
        %v973 = vpack.c.b16 %v934, %v931
        %v974 = vpack.c.b16 %v935, %v932
        %v975 = vpack.c.b16 %v939, %v936
        %v976 = vpack.c.b16 %v940, %v937
        %v977 = vpack.c.b16 %v941, %v938
        %v978 = vpack.c.b16 %v945, %v942
        %v979 = vpack.c.b16 %v946, %v943
        %v980 = vpack.c.b16 %v947, %v944
        %v981 = vpack.c.b16 %v951, %v948
        %v982 = vpack.c.b16 %v952, %v949
        %v983 = vpack.c.b16 %v953, %v950
        %v984 = vpack.c.b16 %v957, %v954
        %v985 = vpack.c.b16 %v958, %v955
        %v986 = vpack.c.b16 %v959, %v956
        %v987 = vpack.c.b16 %v963, %v960
        %v988 = vpack.c.b16 %v964, %v961
        %v989 = vpack.c.b16 %v965, %v962
        %1014 = vmatprep.subr.bf16.mxu0 %v988
        %1015 = vmatpush1.bf16.msra.mxu0 %v987
        %1016 = vmatprep.subr.bf16.mxu0 %v985
        %1017 = vmatpush1.bf16.msra.mxu0 %v984
        %1018 = vmatprep.subr.bf16.mxu0 %v982
        %1019 = vmatpush1.bf16.msra.mxu0 %v981
        %1020 = vmatprep.subr.bf16.mxu0 %v979
        %1021 = vmatpush1.bf16.msra.mxu0 %v978
        %1022 = vmatprep.subr.bf16.mxu0 %v976
        %1023 = vmatpush1.bf16.msra.mxu0 %v975
        %1024 = vmatprep.subr.bf16.mxu0 %v973
        %1025 = vmatpush1.bf16.msra.mxu0 %v972
        %1026 = vmatprep.subr.bf16.mxu0 %v970
        %1027 = vmatpush1.bf16.msra.mxu0 %v969
        %1028 = vmatprep.subr.bf16.mxu0 %v967
        %1029 = vmatpush1.bf16.msra.mxu0 %v966
        %1030 = vmatprep.subr.bf16.mxu0 0
        %1031 = vmatpush2.bf16.msra.mxu0 0
        %1032 = vmatprep.subr.bf16.mxu0 0
        %1033 = vmatpush2.bf16.msra.mxu0 0
        %1034 = vmatprep.subr.bf16.mxu0 0
        %1035 = vmatpush2.bf16.msra.mxu0 0
        %1036 = vmatprep.subr.bf16.mxu0 0
        %1037 = vmatpush2.bf16.msra.mxu0 0
        %1038 = vmatprep.subr.bf16.mxu0 0
        %1039 = vmatpush2.bf16.msra.mxu0 0
        %1040 = vmatprep.subr.bf16.mxu0 0
        %1041 = vmatpush2.bf16.msra.mxu0 0
        %1042 = vmatprep.subr.bf16.mxu0 0
        %1043 = vmatpush2.bf16.msra.mxu0 0
        %1044 = vmatprep.subr.bf16.mxu0 0
        %1045 = vmatpush2.bf16.msra.mxu0 0
        %1046 = vmatprep.mubr.bf16.mxu0 0
        %1047 = vmatmul.mubr.bf16.gmra.mxu0 %v868
        %v1048 = vpop.f32.mrf.mxu0
        %v1049 = vadd.f32 %v877, %v1048
        %v1050 = vpop.f32.mrf.mxu0
        %v1051 = vadd.f32 %v881, %v1050
        %v1052 = vpop.f32.mrf.mxu0
        %v1053 = vadd.f32 %v877, %v1052
        %v1054 = vpop.f32.mrf.mxu0
        %v1055 = vadd.f32 %v881, %v1054
        %1056 = vmatprep.mubr.bf16.mxu0 0
        %1057 = vmatmul.mubr.bf16.gmra.mxu0 %v869
        %v1058 = vpop.f32.mrf.mxu0
        %v1059 = vadd.f32 %v877, %v1058
        %v1060 = vpop.f32.mrf.mxu0
        %v1061 = vadd.f32 %v881, %v1060
        %v1062 = vpop.f32.mrf.mxu0
        %v1063 = vadd.f32 %v877, %v1062
        %v1064 = vpop.f32.mrf.mxu0
        %v1065 = vadd.f32 %v881, %v1064
        %1066 = vmatprep.mubr.bf16.mxu0 0
        %1067 = vmatmul.mubr.bf16.gmra.mxu0 %v870
        %v1068 = vpop.f32.mrf.mxu0
        %v1069 = vadd.f32 %v877, %v1068
        %v1070 = vpop.f32.mrf.mxu0
        %v1071 = vadd.f32 %v881, %v1070
        %v1072 = vpop.f32.mrf.mxu0
        %v1073 = vadd.f32 %v877, %v1072
        %v1074 = vpop.f32.mrf.mxu0
        %v1075 = vadd.f32 %v881, %v1074
        %1076 = vmatprep.mubr.bf16.mxu0 0
        %1077 = vmatmul.mubr.bf16.gmra.mxu0 %v871
        %v1078 = vpop.f32.mrf.mxu0
        %v1079 = vadd.f32 %v877, %v1078
        %v1080 = vpop.f32.mrf.mxu0
        %v1081 = vadd.f32 %v881, %v1080
        %v1082 = vpop.f32.mrf.mxu0
        %v1083 = vadd.f32 %v877, %v1082
        %v1084 = vpop.f32.mrf.mxu0
        %v1085 = vadd.f32 %v881, %v1084
        %1086 = vmatprep.mubr.bf16.mxu0 0
        %1087 = vmatmul.mubr.bf16.gmra.mxu0 %v872
        %v1088 = vpop.f32.mrf.mxu0
        %v1089 = vadd.f32 %v877, %v1088
        %v1090 = vpop.f32.mrf.mxu0
        %v1091 = vadd.f32 %v881, %v1090
        %v1092 = vpop.f32.mrf.mxu0
        %v1093 = vadd.f32 %v877, %v1092
        %v1094 = vpop.f32.mrf.mxu0
        %v1095 = vadd.f32 %v881, %v1094
        %1096 = vmatprep.mubr.bf16.mxu0 0
        %1097 = vmatmul.mubr.bf16.gmra.mxu0 %v873
        %v1098 = vpop.f32.mrf.mxu0
        %v1099 = vadd.f32 %v877, %v1098
        %v1100 = vpop.f32.mrf.mxu0
        %v1101 = vadd.f32 %v881, %v1100
        %v1102 = vpop.f32.mrf.mxu0
        %v1103 = vadd.f32 %v877, %v1102
        %v1104 = vpop.f32.mrf.mxu0
        %v1105 = vadd.f32 %v881, %v1104
        %1106 = vdwg.mxu0
        %1107 = vmatprep.subr.bf16.mxu0 0
        %1108 = vmatpush1.bf16.msra.mxu0 %v989
        %1109 = vmatprep.subr.bf16.mxu0 0
        %1110 = vmatpush1.bf16.msra.mxu0 %v986
        %1111 = vmatprep.subr.bf16.mxu0 0
        %1112 = vmatpush1.bf16.msra.mxu0 %v983
        %1113 = vmatprep.subr.bf16.mxu0 0
        %1114 = vmatpush1.bf16.msra.mxu0 %v980
        %1115 = vmatprep.subr.bf16.mxu0 0
        %1116 = vmatpush1.bf16.msra.mxu0 %v977
        %1117 = vmatprep.subr.bf16.mxu0 0
        %1118 = vmatpush1.bf16.msra.mxu0 %v974
        %1119 = vmatprep.subr.bf16.mxu0 0
        %1120 = vmatpush1.bf16.msra.mxu0 %v971
        %1121 = vmatprep.subr.bf16.mxu0 0
        %1122 = vmatpush1.bf16.msra.mxu0 %v968
        %1123 = vmatprep.subr.bf16.mxu0 0
        %1124 = vmatpush2.bf16.msra.mxu0 0
        %1125 = vmatprep.subr.bf16.mxu0 0
        %1126 = vmatpush2.bf16.msra.mxu0 0
        %1127 = vmatprep.subr.bf16.mxu0 0
        %1128 = vmatpush2.bf16.msra.mxu0 0
        %1129 = vmatprep.subr.bf16.mxu0 0
        %1130 = vmatpush2.bf16.msra.mxu0 0
        %1131 = vmatprep.subr.bf16.mxu0 0
        %1132 = vmatpush2.bf16.msra.mxu0 0
        %1133 = vmatprep.subr.bf16.mxu0 0
        %1134 = vmatpush2.bf16.msra.mxu0 0
        %1135 = vmatprep.subr.bf16.mxu0 0
        %1136 = vmatpush2.bf16.msra.mxu0 0
        %1137 = vmatprep.subr.bf16.mxu0 0
        %1138 = vmatpush2.bf16.msra.mxu0 0
        %1139 = vmatprep.mubr.bf16.mxu0 0
        %1140 = vmatmul.mubr.bf16.gmra.mxu0 %v868
        %v1141 = vpop.f32.mrf.mxu0
        %v1142 = vadd.f32 %v885, %v1141
        %v1143 = vpop.f32.mrf.mxu0
        %v1144 = vpop.f32.mrf.mxu0
        %v1145 = vadd.f32 %v885, %v1144
        %v1146 = vpop.f32.mrf.mxu0
        %1147 = vmatprep.mubr.bf16.mxu0 0
        %1148 = vmatmul.mubr.bf16.gmra.mxu0 %v869
        %v1149 = vpop.f32.mrf.mxu0
        %v1150 = vadd.f32 %v885, %v1149
        %v1151 = vpop.f32.mrf.mxu0
        %v1152 = vpop.f32.mrf.mxu0
        %v1153 = vadd.f32 %v885, %v1152
        %v1154 = vpop.f32.mrf.mxu0
        %1155 = vmatprep.mubr.bf16.mxu0 0
        %1156 = vmatmul.mubr.bf16.gmra.mxu0 %v870
        %v1157 = vpop.f32.mrf.mxu0
        %v1158 = vadd.f32 %v885, %v1157
        %v1159 = vpop.f32.mrf.mxu0
        %v1160 = vpop.f32.mrf.mxu0
        %v1161 = vadd.f32 %v885, %v1160
        %v1162 = vpop.f32.mrf.mxu0
        %1163 = vmatprep.mubr.bf16.mxu0 0
        %1164 = vmatmul.mubr.bf16.gmra.mxu0 %v871
        %v1165 = vpop.f32.mrf.mxu0
        %v1166 = vadd.f32 %v885, %v1165
        %v1167 = vpop.f32.mrf.mxu0
        %v1168 = vpop.f32.mrf.mxu0
        %v1169 = vadd.f32 %v885, %v1168
        %v1170 = vpop.f32.mrf.mxu0
        %1171 = vmatprep.mubr.bf16.mxu0 0
        %1172 = vmatmul.mubr.bf16.gmra.mxu0 %v872
        %v1173 = vpop.f32.mrf.mxu0
        %v1174 = vadd.f32 %v885, %v1173
        %v1175 = vpop.f32.mrf.mxu0
        %v1176 = vpop.f32.mrf.mxu0
        %v1177 = vadd.f32 %v885, %v1176
        %v1178 = vpop.f32.mrf.mxu0
        %1179 = vmatprep.mubr.bf16.mxu0 0
        %1180 = vmatmul.mubr.bf16.gmra.mxu0 %v873
        %v1181 = vpop.f32.mrf.mxu0
        %v1182 = vadd.f32 %v885, %v1181
        %v1183 = vpop.f32.mrf.mxu0
        %v1184 = vpop.f32.mrf.mxu0
        %v1185 = vadd.f32 %v885, %v1184
        %v1186 = vpop.f32.mrf.mxu0
        %1187 = vdwg.mxu0
        %v1188 = vpack.c.bf16 %v1053, %v1049
        %v1189 = vpack.c.bf16 %v1059, %v1059
        %v1190 = vpack.c.bf16 %v1069, %v1063
        %v1191 = vpack.c.bf16 %v1073, %v1073
        %v1192 = vpack.c.bf16 %v1083, %v1079
        %v1193 = vpack.c.bf16 %v1089, %v1089
        %v1194 = vpack.c.bf16 %v1099, %v1093
        %v1195 = vpack.c.bf16 %v1103, %v1103
        %v1196 = vpack.c.bf16 %v1055, %v1051
        %v1197 = vpack.c.bf16 %v1061, %v1061
        %v1198 = vpack.c.bf16 %v1071, %v1065
        %v1199 = vpack.c.bf16 %v1075, %v1075
        %v1200 = vpack.c.bf16 %v1085, %v1081
        %v1201 = vpack.c.bf16 %v1091, %v1091
        %v1202 = vpack.c.bf16 %v1101, %v1095
        %v1203 = vpack.c.bf16 %v1105, %v1105
        %v1204 = vpack.c.bf16 %v1145, %v1142
        %v1205 = vpack.c.bf16 %v1150, %v1150
        %v1206 = vpack.c.bf16 %v1158, %v1153
        %v1207 = vpack.c.bf16 %v1161, %v1161
        %v1208 = vpack.c.bf16 %v1169, %v1166
        %v1209 = vpack.c.bf16 %v1174, %v1174
        %v1210 = vpack.c.bf16 %v1182, %v1177
        %v1211 = vpack.c.bf16 %v1185, %v1185
        %vm1212 = vcmask 261120
        %v1214 = vsel %vm1212, %v1188, 0
        %v1217 = vsel %vm1212, %v1189, 0
        %v1220 = vsel %vm1212, %v1196, 0
        %v1223 = vsel %vm1212, %v1197, 0
        %1225 = vmatprep.subr.bf16.mxu0 0
        %1226 = vmatpush1.bf16.xpose.msra.mxu0 0
        %1227 = vmatprep.subr.bf16.mxu0 0
        %1228 = vmatpush1.bf16.xpose.msra.mxu0 0
        %1229 = vmatprep.subr.bf16.mxu0 0
        %1230 = vmatpush1.bf16.xpose.msra.mxu0 0
        %1231 = vmatprep.subr.bf16.mxu0 0
        %1232 = vmatpush1.bf16.xpose.msra.mxu0 0
        %1233 = vmatprep.subr.bf16.mxu0 0
        %1234 = vmatpush1.bf16.xpose.msra.mxu0 0
        %1235 = vmatprep.subr.bf16.mxu0 0
        %1236 = vmatpush1.bf16.xpose.msra.mxu0 0
        %1237 = vmatprep.subr.bf16.mxu0 0
        %1238 = vmatpush1.bf16.xpose.msra.mxu0 %v1223
        %1239 = vmatprep.subr.bf16.mxu0 0
        %1240 = vmatpush1.bf16.xpose.msra.mxu0 %v1220
        %1241 = vmatprep.subr.bf16.mxu0 0
        %1242 = vmatpush2.bf16.xpose.msra.mxu0 0
        %1243 = vmatprep.subr.bf16.mxu0 0
        %1244 = vmatpush2.bf16.xpose.msra.mxu0 0
        %1245 = vmatprep.subr.bf16.mxu0 0
        %1246 = vmatpush2.bf16.xpose.msra.mxu0 0
        %1247 = vmatprep.subr.bf16.mxu0 0
        %1248 = vmatpush2.bf16.xpose.msra.mxu0 0
        %1249 = vmatprep.subr.bf16.mxu0 0
        %1250 = vmatpush2.bf16.xpose.msra.mxu0 0
        %1251 = vmatprep.subr.bf16.mxu0 0
        %1252 = vmatpush2.bf16.xpose.msra.mxu0 0
        %1253 = vmatprep.subr.bf16.mxu0 0
        %1254 = vmatpush2.bf16.xpose.msra.mxu0 0
        %1255 = vmatprep.subr.bf16.mxu0 0
        %1256 = vmatpush2.bf16.xpose.msra.mxu0 0
        %1257 = vmatprep.mubr.bf16.mxu0 0
        %1258 = vmatmul.mubr.bf16.gmra.mxu0 %v1214
        %v1259 = vpop.f32.mrf.mxu0
        %v1260 = vadd.f32 %v667, %v1259
        %v1261 = vpop.f32.mrf.mxu0
        %v1262 = vpop.f32.mrf.mxu0
        %v1263 = vadd.f32 %v667, %v1262
        %v1264 = vpop.f32.mrf.mxu0
        %1265 = vmatprep.mubr.bf16.mxu0 0
        %1266 = vmatmul.mubr.bf16.gmra.mxu0 %v1217
        %v1267 = vpop.f32.mrf.mxu0
        %v1268 = vadd.f32 %v667, %v1267
        %v1269 = vpop.f32.mrf.mxu0
        %v1270 = vpop.f32.mrf.mxu0
        %v1271 = vpop.f32.mrf.mxu0
        %1272 = vdwg.mxu0
        %v1274 = vsel %vm1212, %v1190, 0
        %v1277 = vsel %vm1212, %v1191, 0
        %v1280 = vsel %vm1212, %v1198, 0
        %v1283 = vsel %vm1212, %v1199, 0
        %1285 = vmatprep.subr.bf16.mxu0 0
        %1286 = vmatpush1.bf16.xpose.msra.mxu0 0
        %1287 = vmatprep.subr.bf16.mxu0 0
        %1288 = vmatpush1.bf16.xpose.msra.mxu0 0
        %1289 = vmatprep.subr.bf16.mxu0 0
        %1290 = vmatpush1.bf16.xpose.msra.mxu0 0
        %1291 = vmatprep.subr.bf16.mxu0 0
        %1292 = vmatpush1.bf16.xpose.msra.mxu0 0
        %1293 = vmatprep.subr.bf16.mxu0 0
        %1294 = vmatpush1.bf16.xpose.msra.mxu0 0
        %1295 = vmatprep.subr.bf16.mxu0 0
        %1296 = vmatpush1.bf16.xpose.msra.mxu0 0
        %1297 = vmatprep.subr.bf16.mxu0 0
        %1298 = vmatpush1.bf16.xpose.msra.mxu0 %v1283
        %1299 = vmatprep.subr.bf16.mxu0 0
        %1300 = vmatpush1.bf16.xpose.msra.mxu0 %v1280
        %1301 = vmatprep.subr.bf16.mxu0 0
        %1302 = vmatpush2.bf16.xpose.msra.mxu0 0
        %1303 = vmatprep.subr.bf16.mxu0 0
        %1304 = vmatpush2.bf16.xpose.msra.mxu0 0
        %1305 = vmatprep.subr.bf16.mxu0 0
        %1306 = vmatpush2.bf16.xpose.msra.mxu0 0
        %1307 = vmatprep.subr.bf16.mxu0 0
        %1308 = vmatpush2.bf16.xpose.msra.mxu0 0
        %1309 = vmatprep.subr.bf16.mxu0 0
        %1310 = vmatpush2.bf16.xpose.msra.mxu0 0
        %1311 = vmatprep.subr.bf16.mxu0 0
        %1312 = vmatpush2.bf16.xpose.msra.mxu0 0
        %1313 = vmatprep.subr.bf16.mxu0 0
        %1314 = vmatpush2.bf16.xpose.msra.mxu0 0
        %1315 = vmatprep.subr.bf16.mxu0 0
        %1316 = vmatpush2.bf16.xpose.msra.mxu0 0
        %1317 = vmatprep.mubr.bf16.mxu0 0
        %1318 = vmatmul.mubr.bf16.gmra.mxu0 %v1274
        %v1319 = vpop.f32.mrf.mxu0
        %v1320 = vadd.f32 %v667, %v1319
        %v1321 = vpop.f32.mrf.mxu0
        %v1322 = vpop.f32.mrf.mxu0
        %v1323 = vadd.f32 %v667, %v1322
        %v1324 = vpop.f32.mrf.mxu0
        %1325 = vmatprep.mubr.bf16.mxu0 0
        %1326 = vmatmul.mubr.bf16.gmra.mxu0 %v1277
        %v1327 = vpop.f32.mrf.mxu0
        %v1328 = vadd.f32 %v667, %v1327
        %v1329 = vpop.f32.mrf.mxu0
        %v1330 = vpop.f32.mrf.mxu0
        %v1331 = vpop.f32.mrf.mxu0
        %1332 = vdwg.mxu0
        %v1334 = vsel %vm1212, %v1192, 0
        %v1337 = vsel %vm1212, %v1193, 0
        %v1340 = vsel %vm1212, %v1200, 0
        %v1343 = vsel %vm1212, %v1201, 0
        %1345 = vmatprep.subr.bf16.mxu0 0
        %1346 = vmatpush1.bf16.xpose.msra.mxu0 0
        %1347 = vmatprep.subr.bf16.mxu0 0
        %1348 = vmatpush1.bf16.xpose.msra.mxu0 0
        %1349 = vmatprep.subr.bf16.mxu0 0
        %1350 = vmatpush1.bf16.xpose.msra.mxu0 0
        %1351 = vmatprep.subr.bf16.mxu0 0
        %1352 = vmatpush1.bf16.xpose.msra.mxu0 0
        %1353 = vmatprep.subr.bf16.mxu0 0
        %1354 = vmatpush1.bf16.xpose.msra.mxu0 0
        %1355 = vmatprep.subr.bf16.mxu0 0
        %1356 = vmatpush1.bf16.xpose.msra.mxu0 0
        %1357 = vmatprep.subr.bf16.mxu0 0
        %1358 = vmatpush1.bf16.xpose.msra.mxu0 %v1343
        %1359 = vmatprep.subr.bf16.mxu0 0
        %1360 = vmatpush1.bf16.xpose.msra.mxu0 %v1340
        %1361 = vmatprep.subr.bf16.mxu0 0
        %1362 = vmatpush2.bf16.xpose.msra.mxu0 0
        %1363 = vmatprep.subr.bf16.mxu0 0
        %1364 = vmatpush2.bf16.xpose.msra.mxu0 0
        %1365 = vmatprep.subr.bf16.mxu0 0
        %1366 = vmatpush2.bf16.xpose.msra.mxu0 0
        %1367 = vmatprep.subr.bf16.mxu0 0
        %1368 = vmatpush2.bf16.xpose.msra.mxu0 0
        %1369 = vmatprep.subr.bf16.mxu0 0
        %1370 = vmatpush2.bf16.xpose.msra.mxu0 0
        %1371 = vmatprep.subr.bf16.mxu0 0
        %1372 = vmatpush2.bf16.xpose.msra.mxu0 0
        %1373 = vmatprep.subr.bf16.mxu0 0
        %1374 = vmatpush2.bf16.xpose.msra.mxu0 0
        %1375 = vmatprep.subr.bf16.mxu0 0
        %1376 = vmatpush2.bf16.xpose.msra.mxu0 0
        %1377 = vmatprep.mubr.bf16.mxu0 0
        %1378 = vmatmul.mubr.bf16.gmra.mxu0 %v1334
        %v1379 = vpop.f32.mrf.mxu0
        %v1380 = vadd.f32 %v667, %v1379
        %v1381 = vpop.f32.mrf.mxu0
        %v1382 = vpop.f32.mrf.mxu0
        %v1383 = vadd.f32 %v667, %v1382
        %v1384 = vpop.f32.mrf.mxu0
        %1385 = vmatprep.mubr.bf16.mxu0 0
        %1386 = vmatmul.mubr.bf16.gmra.mxu0 %v1337
        %v1387 = vpop.f32.mrf.mxu0
        %v1388 = vadd.f32 %v667, %v1387
        %v1389 = vpop.f32.mrf.mxu0
        %v1390 = vpop.f32.mrf.mxu0
        %v1391 = vpop.f32.mrf.mxu0
        %1392 = vdwg.mxu0
        %v1394 = vsel %vm1212, %v1194, 0
        %v1397 = vsel %vm1212, %v1195, 0
        %v1400 = vsel %vm1212, %v1202, 0
        %v1403 = vsel %vm1212, %v1203, 0
        %1405 = vmatprep.subr.bf16.mxu0 0
        %1406 = vmatpush1.bf16.xpose.msra.mxu0 0
        %1407 = vmatprep.subr.bf16.mxu0 0
        %1408 = vmatpush1.bf16.xpose.msra.mxu0 0
        %1409 = vmatprep.subr.bf16.mxu0 0
        %1410 = vmatpush1.bf16.xpose.msra.mxu0 0
        %1411 = vmatprep.subr.bf16.mxu0 0
        %1412 = vmatpush1.bf16.xpose.msra.mxu0 0
        %1413 = vmatprep.subr.bf16.mxu0 0
        %1414 = vmatpush1.bf16.xpose.msra.mxu0 0
        %1415 = vmatprep.subr.bf16.mxu0 0
        %1416 = vmatpush1.bf16.xpose.msra.mxu0 0
        %1417 = vmatprep.subr.bf16.mxu0 0
        %1418 = vmatpush1.bf16.xpose.msra.mxu0 %v1403
        %1419 = vmatprep.subr.bf16.mxu0 0
        %1420 = vmatpush1.bf16.xpose.msra.mxu0 %v1400
        %1421 = vmatprep.subr.bf16.mxu0 0
        %1422 = vmatpush2.bf16.xpose.msra.mxu0 0
        %1423 = vmatprep.subr.bf16.mxu0 0
        %1424 = vmatpush2.bf16.xpose.msra.mxu0 0
        %1425 = vmatprep.subr.bf16.mxu0 0
        %1426 = vmatpush2.bf16.xpose.msra.mxu0 0
        %1427 = vmatprep.subr.bf16.mxu0 0
        %1428 = vmatpush2.bf16.xpose.msra.mxu0 0
        %1429 = vmatprep.subr.bf16.mxu0 0
        %1430 = vmatpush2.bf16.xpose.msra.mxu0 0
        %1431 = vmatprep.subr.bf16.mxu0 0
        %1432 = vmatpush2.bf16.xpose.msra.mxu0 0
        %1433 = vmatprep.subr.bf16.mxu0 0
        %1434 = vmatpush2.bf16.xpose.msra.mxu0 0
        %1435 = vmatprep.subr.bf16.mxu0 0
        %1436 = vmatpush2.bf16.xpose.msra.mxu0 0
        %1437 = vmatprep.mubr.bf16.mxu0 0
        %1438 = vmatmul.mubr.bf16.gmra.mxu0 %v1394
        %v1439 = vpop.f32.mrf.mxu0
        %v1440 = vadd.f32 %v667, %v1439
        %v1441 = vpop.f32.mrf.mxu0
        %v1442 = vpop.f32.mrf.mxu0
        %v1443 = vadd.f32 %v667, %v1442
        %v1444 = vpop.f32.mrf.mxu0
        %1445 = vmatprep.mubr.bf16.mxu0 0
        %1446 = vmatmul.mubr.bf16.gmra.mxu0 %v1397
        %v1447 = vpop.f32.mrf.mxu0
        %v1448 = vadd.f32 %v667, %v1447
        %v1449 = vpop.f32.mrf.mxu0
        %v1450 = vpop.f32.mrf.mxu0
        %v1451 = vpop.f32.mrf.mxu0
        %1452 = vdwg.mxu0
        %vm1453 = vcmask 195584
        %v1454 = vsel %vm1453, %v1260, -inf
        %1455 = vmax.xlane.f32.xlu0 %v1454
        %v1456 = vpop.xlane.xlu0 %1455
        %v1457 = vsel %vm1453, %v1263, -inf
        %1458 = vmax.xlane.f32.xlu0 %v1457
        %v1459 = vpop.xlane.xlu0 %1458
        %v1460 = vsel %vm1453, %v1268, -inf
        %1461 = vmax.xlane.f32.xlu0 %v1460
        %v1462 = vpop.xlane.xlu0 %1461
        %v1463 = vsel %vm1453, %v1320, -inf
        %1464 = vmax.xlane.f32.xlu0 %v1463
        %v1465 = vpop.xlane.xlu0 %1464
        %v1466 = vsel %vm1453, %v1323, -inf
        %1467 = vmax.xlane.f32.xlu0 %v1466
        %v1468 = vpop.xlane.xlu0 %1467
        %v1469 = vsel %vm1453, %v1328, -inf
        %1470 = vmax.xlane.f32.xlu0 %v1469
        %v1471 = vpop.xlane.xlu0 %1470
        %v1472 = vsel %vm1453, %v1380, -inf
        %1473 = vmax.xlane.f32.xlu0 %v1472
        %v1474 = vpop.xlane.xlu0 %1473
        %v1475 = vsel %vm1453, %v1383, -inf
        %1476 = vmax.xlane.f32.xlu0 %v1475
        %v1477 = vpop.xlane.xlu0 %1476
        %v1478 = vsel %vm1453, %v1388, -inf
        %1479 = vmax.xlane.f32.xlu0 %v1478
        %v1480 = vpop.xlane.xlu0 %1479
        %v1481 = vsel %vm1453, %v1440, -inf
        %1482 = vmax.xlane.f32.xlu0 %v1481
        %v1483 = vpop.xlane.xlu0 %1482
        %v1484 = vsel %vm1453, %v1443, -inf
        %1485 = vmax.xlane.f32.xlu0 %v1484
        %v1486 = vpop.xlane.xlu0 %1485
        %v1487 = vsel %vm1453, %v1448, -inf
        %1488 = vmax.xlane.f32.xlu0 %v1487
        %v1489 = vpop.xlane.xlu0 %1488
        %v1490 = vsub.f32 %v1260, %v1456
        %v1491 = vsub.f32 %v1263, %v1459
        %v1492 = vsub.f32 %v1268, %v1462
        %v1493 = vsub.f32 %v1320, %v1465
        %v1494 = vsub.f32 %v1323, %v1468
        %v1495 = vsub.f32 %v1328, %v1471
        %v1496 = vsub.f32 %v1380, %v1474
        %v1497 = vsub.f32 %v1383, %v1477
        %v1498 = vsub.f32 %v1388, %v1480
        %v1499 = vsub.f32 %v1440, %v1483
        %v1500 = vsub.f32 %v1443, %v1486
        %v1501 = vsub.f32 %v1448, %v1489
        %v1502 = vmul.f32 %v1490, 1.442695
        %v1503 = vpow.pop %v1502
        %v1504 = vmul.f32 %v1491, 1.442695
        %v1505 = vpow.pop %v1504
        %v1506 = vmul.f32 %v1492, 1.442695
        %v1507 = vpow.pop %v1506
        %v1508 = vmul.f32 %v1493, 1.442695
        %v1509 = vpow.pop %v1508
        %v1510 = vmul.f32 %v1494, 1.442695
        %v1511 = vpow.pop %v1510
        %v1512 = vmul.f32 %v1495, 1.442695
        %v1513 = vpow.pop %v1512
        %v1514 = vmul.f32 %v1496, 1.442695
        %v1515 = vpow.pop %v1514
        %v1516 = vmul.f32 %v1497, 1.442695
        %v1517 = vpow.pop %v1516
        %v1518 = vmul.f32 %v1498, 1.442695
        %v1519 = vpow.pop %v1518
        %v1520 = vmul.f32 %v1499, 1.442695
        %v1521 = vpow.pop %v1520
        %v1522 = vmul.f32 %v1500, 1.442695
        %v1523 = vpow.pop %v1522
        %v1524 = vmul.f32 %v1501, 1.442695
        %v1525 = vpow.pop %v1524
        %v1526 = vsel %vm1453, %v1503, 0.0
        %1527 = vadd.xlane.f32.xlu0 %v1526
        %v1528 = vpop.xlane.xlu0 %1527
        %v1529 = vsel %vm1453, %v1505, 0.0
        %1530 = vadd.xlane.f32.xlu0 %v1529
        %v1531 = vpop.xlane.xlu0 %1530
        %v1532 = vsel %vm1453, %v1507, 0.0
        %1533 = vadd.xlane.f32.xlu0 %v1532
        %v1534 = vpop.xlane.xlu0 %1533
        %v1535 = vsel %vm1453, %v1509, 0.0
        %1536 = vadd.xlane.f32.xlu0 %v1535
        %v1537 = vpop.xlane.xlu0 %1536
        %v1538 = vsel %vm1453, %v1511, 0.0
        %1539 = vadd.xlane.f32.xlu0 %v1538
        %v1540 = vpop.xlane.xlu0 %1539
        %v1541 = vsel %vm1453, %v1513, 0.0
        %1542 = vadd.xlane.f32.xlu0 %v1541
        %v1543 = vpop.xlane.xlu0 %1542
        %v1544 = vsel %vm1453, %v1515, 0.0
        %1545 = vadd.xlane.f32.xlu0 %v1544
        %v1546 = vpop.xlane.xlu0 %1545
        %v1547 = vsel %vm1453, %v1517, 0.0
        %1548 = vadd.xlane.f32.xlu0 %v1547
        %v1549 = vpop.xlane.xlu0 %1548
        %v1550 = vsel %vm1453, %v1519, 0.0
        %1551 = vadd.xlane.f32.xlu0 %v1550
        %v1552 = vpop.xlane.xlu0 %1551
        %v1553 = vsel %vm1453, %v1521, 0.0
        %1554 = vadd.xlane.f32.xlu0 %v1553
        %v1555 = vpop.xlane.xlu0 %1554
        %v1556 = vsel %vm1453, %v1523, 0.0
        %1557 = vadd.xlane.f32.xlu0 %v1556
        %v1558 = vpop.xlane.xlu0 %1557
        %v1559 = vsel %vm1453, %v1525, 0.0
        %1560 = vadd.xlane.f32.xlu0 %v1559
        %v1561 = vpop.xlane.xlu0 %1560
        %v1562 = vrcp.pop %v1528
        %v1563 = vrcp.pop %v1531
        %v1564 = vrcp.pop %v1534
        %v1565 = vrcp.pop %v1537
        %v1566 = vrcp.pop %v1540
        %v1567 = vrcp.pop %v1543
        %v1568 = vrcp.pop %v1546
        %v1569 = vrcp.pop %v1549
        %v1570 = vrcp.pop %v1552
        %v1571 = vrcp.pop %v1555
        %v1572 = vrcp.pop %v1558
        %v1573 = vrcp.pop %v1561
        %v1574 = vmul.f32 %v1503, %v1562
        %v1575 = vmul.f32 %v1505, %v1563
        %v1576 = vmul.f32 %v1507, %v1564
        %v1577 = vmul.f32 %v1509, %v1565
        %v1578 = vmul.f32 %v1511, %v1566
        %v1579 = vmul.f32 %v1513, %v1567
        %v1580 = vmul.f32 %v1515, %v1568
        %v1581 = vmul.f32 %v1517, %v1569
        %v1582 = vmul.f32 %v1519, %v1570
        %v1583 = vmul.f32 %v1521, %v1571
        %v1584 = vmul.f32 %v1523, %v1572
        %v1585 = vmul.f32 %v1525, %v1573
        %v1586 = vpack.c.bf16 %v1575, %v1574
        %v1587 = vpack.c.bf16 %v1576, %v1576
        %v1588 = vpack.c.bf16 %v1578, %v1577
        %v1589 = vpack.c.bf16 %v1579, %v1579
        %v1590 = vpack.c.bf16 %v1581, %v1580
        %v1591 = vpack.c.bf16 %v1582, %v1582
        %v1592 = vpack.c.bf16 %v1584, %v1583
        %v1593 = vpack.c.bf16 %v1585, %v1585
        %v1595 = vsel %vm1453, %v1586, 0
        %v1598 = vsel %vm1453, %v1587, 0
        %vm1600 = vcmask 1043456
        %v1602 = vsel %vm1600, %v1205, 0
        %1604 = vmatprep.subr.bf16.mxu0 0
        %1605 = vmatpush1.bf16.msra.mxu0 0
        %1606 = vmatprep.subr.bf16.mxu0 0
        %1607 = vmatpush1.bf16.msra.mxu0 0
        %1608 = vmatprep.subr.bf16.mxu0 0
        %1609 = vmatpush1.bf16.msra.mxu0 0
        %1610 = vmatprep.subr.bf16.mxu0 0
        %1611 = vmatpush1.bf16.msra.mxu0 0
        %1612 = vmatprep.subr.bf16.mxu0 0
        %1613 = vmatpush1.bf16.msra.mxu0 0
        %1614 = vmatprep.subr.bf16.mxu0 0
        %1615 = vmatpush1.bf16.msra.mxu0 0
        %1616 = vmatprep.subr.bf16.mxu0 0
        %1617 = vmatpush1.bf16.msra.mxu0 %v1602
        %1618 = vmatprep.subr.bf16.mxu0 0
        %1619 = vmatpush1.bf16.msra.mxu0 %v1204
        %1620 = vmatprep.subr.bf16.mxu0 0
        %1621 = vmatpush2.bf16.msra.mxu0 0
        %1622 = vmatprep.subr.bf16.mxu0 0
        %1623 = vmatpush2.bf16.msra.mxu0 0
        %1624 = vmatprep.subr.bf16.mxu0 0
        %1625 = vmatpush2.bf16.msra.mxu0 0
        %1626 = vmatprep.subr.bf16.mxu0 0
        %1627 = vmatpush2.bf16.msra.mxu0 0
        %1628 = vmatprep.subr.bf16.mxu0 0
        %1629 = vmatpush2.bf16.msra.mxu0 0
        %1630 = vmatprep.subr.bf16.mxu0 0
        %1631 = vmatpush2.bf16.msra.mxu0 0
        %1632 = vmatprep.subr.bf16.mxu0 0
        %1633 = vmatpush2.bf16.msra.mxu0 0
        %1634 = vmatprep.subr.bf16.mxu0 0
        %1635 = vmatpush2.bf16.msra.mxu0 0
        %1636 = vmatprep.mubr.bf16.mxu0 0
        %1637 = vmatmul.mubr.bf16.gmra.mxu0 %v1595
        %v1638 = vpop.f32.mrf.mxu0
        %v1639 = vadd.f32 0.0, %v1638
        %v1640 = vpop.f32.mrf.mxu0
        %v1641 = vpop.f32.mrf.mxu0
        %v1642 = vadd.f32 0.0, %v1641
        %v1643 = vpop.f32.mrf.mxu0
        %1644 = vmatprep.mubr.bf16.mxu0 0
        %1645 = vmatmul.mubr.bf16.gmra.mxu0 %v1598
        %v1646 = vpop.f32.mrf.mxu0
        %v1647 = vadd.f32 0.0, %v1646
        %v1648 = vpop.f32.mrf.mxu0
        %v1649 = vpop.f32.mrf.mxu0
        %v1650 = vpop.f32.mrf.mxu0
        %1651 = vdwg.mxu0
        %v1653 = vsel %vm1453, %v1588, 0
        %v1656 = vsel %vm1453, %v1589, 0
        %v1659 = vsel %vm1600, %v1207, 0
        %1661 = vmatprep.subr.bf16.mxu0 0
        %1662 = vmatpush1.bf16.msra.mxu0 0
        %1663 = vmatprep.subr.bf16.mxu0 0
        %1664 = vmatpush1.bf16.msra.mxu0 0
        %1665 = vmatprep.subr.bf16.mxu0 0
        %1666 = vmatpush1.bf16.msra.mxu0 0
        %1667 = vmatprep.subr.bf16.mxu0 0
        %1668 = vmatpush1.bf16.msra.mxu0 0
        %1669 = vmatprep.subr.bf16.mxu0 0
        %1670 = vmatpush1.bf16.msra.mxu0 0
        %1671 = vmatprep.subr.bf16.mxu0 0
        %1672 = vmatpush1.bf16.msra.mxu0 0
        %1673 = vmatprep.subr.bf16.mxu0 0
        %1674 = vmatpush1.bf16.msra.mxu0 %v1659
        %1675 = vmatprep.subr.bf16.mxu0 0
        %1676 = vmatpush1.bf16.msra.mxu0 %v1206
        %1677 = vmatprep.subr.bf16.mxu0 0
        %1678 = vmatpush2.bf16.msra.mxu0 0
        %1679 = vmatprep.subr.bf16.mxu0 0
        %1680 = vmatpush2.bf16.msra.mxu0 0
        %1681 = vmatprep.subr.bf16.mxu0 0
        %1682 = vmatpush2.bf16.msra.mxu0 0
        %1683 = vmatprep.subr.bf16.mxu0 0
        %1684 = vmatpush2.bf16.msra.mxu0 0
        %1685 = vmatprep.subr.bf16.mxu0 0
        %1686 = vmatpush2.bf16.msra.mxu0 0
        %1687 = vmatprep.subr.bf16.mxu0 0
        %1688 = vmatpush2.bf16.msra.mxu0 0
        %1689 = vmatprep.subr.bf16.mxu0 0
        %1690 = vmatpush2.bf16.msra.mxu0 0
        %1691 = vmatprep.subr.bf16.mxu0 0
        %1692 = vmatpush2.bf16.msra.mxu0 0
        %1693 = vmatprep.mubr.bf16.mxu0 0
        %1694 = vmatmul.mubr.bf16.gmra.mxu0 %v1653
        %v1695 = vpop.f32.mrf.mxu0
        %v1696 = vadd.f32 0.0, %v1695
        %v1697 = vpop.f32.mrf.mxu0
        %v1698 = vpop.f32.mrf.mxu0
        %v1699 = vadd.f32 0.0, %v1698
        %v1700 = vpop.f32.mrf.mxu0
        %1701 = vmatprep.mubr.bf16.mxu0 0
        %1702 = vmatmul.mubr.bf16.gmra.mxu0 %v1656
        %v1703 = vpop.f32.mrf.mxu0
        %v1704 = vadd.f32 0.0, %v1703
        %v1705 = vpop.f32.mrf.mxu0
        %v1706 = vpop.f32.mrf.mxu0
        %v1707 = vpop.f32.mrf.mxu0
        %1708 = vdwg.mxu0
        %v1710 = vsel %vm1453, %v1590, 0
        %v1713 = vsel %vm1453, %v1591, 0
        %v1716 = vsel %vm1600, %v1209, 0
        %1718 = vmatprep.subr.bf16.mxu0 0
        %1719 = vmatpush1.bf16.msra.mxu0 0
        %1720 = vmatprep.subr.bf16.mxu0 0
        %1721 = vmatpush1.bf16.msra.mxu0 0
        %1722 = vmatprep.subr.bf16.mxu0 0
        %1723 = vmatpush1.bf16.msra.mxu0 0
        %1724 = vmatprep.subr.bf16.mxu0 0
        %1725 = vmatpush1.bf16.msra.mxu0 0
        %1726 = vmatprep.subr.bf16.mxu0 0
        %1727 = vmatpush1.bf16.msra.mxu0 0
        %1728 = vmatprep.subr.bf16.mxu0 0
        %1729 = vmatpush1.bf16.msra.mxu0 0
        %1730 = vmatprep.subr.bf16.mxu0 0
        %1731 = vmatpush1.bf16.msra.mxu0 %v1716
        %1732 = vmatprep.subr.bf16.mxu0 0
        %1733 = vmatpush1.bf16.msra.mxu0 %v1208
        %1734 = vmatprep.subr.bf16.mxu0 0
        %1735 = vmatpush2.bf16.msra.mxu0 0
        %1736 = vmatprep.subr.bf16.mxu0 0
        %1737 = vmatpush2.bf16.msra.mxu0 0
        %1738 = vmatprep.subr.bf16.mxu0 0
        %1739 = vmatpush2.bf16.msra.mxu0 0
        %1740 = vmatprep.subr.bf16.mxu0 0
        %1741 = vmatpush2.bf16.msra.mxu0 0
        %1742 = vmatprep.subr.bf16.mxu0 0
        %1743 = vmatpush2.bf16.msra.mxu0 0
        %1744 = vmatprep.subr.bf16.mxu0 0
        %1745 = vmatpush2.bf16.msra.mxu0 0
        %1746 = vmatprep.subr.bf16.mxu0 0
        %1747 = vmatpush2.bf16.msra.mxu0 0
        %1748 = vmatprep.subr.bf16.mxu0 0
        %1749 = vmatpush2.bf16.msra.mxu0 0
        %1750 = vmatprep.mubr.bf16.mxu0 0
        %1751 = vmatmul.mubr.bf16.gmra.mxu0 %v1710
        %v1752 = vpop.f32.mrf.mxu0
        %v1753 = vadd.f32 0.0, %v1752
        %v1754 = vpop.f32.mrf.mxu0
        %v1755 = vpop.f32.mrf.mxu0
        %v1756 = vadd.f32 0.0, %v1755
        %v1757 = vpop.f32.mrf.mxu0
        %1758 = vmatprep.mubr.bf16.mxu0 0
        %1759 = vmatmul.mubr.bf16.gmra.mxu0 %v1713
        %v1760 = vpop.f32.mrf.mxu0
        %v1761 = vadd.f32 0.0, %v1760
        %v1762 = vpop.f32.mrf.mxu0
        %v1763 = vpop.f32.mrf.mxu0
        %v1764 = vpop.f32.mrf.mxu0
        %1765 = vdwg.mxu0
        %v1767 = vsel %vm1453, %v1592, 0
        %v1770 = vsel %vm1453, %v1593, 0
        %v1773 = vsel %vm1600, %v1211, 0
        %1775 = vmatprep.subr.bf16.mxu0 0
        %1776 = vmatpush1.bf16.msra.mxu0 0
        %1777 = vmatprep.subr.bf16.mxu0 0
        %1778 = vmatpush1.bf16.msra.mxu0 0
        %1779 = vmatprep.subr.bf16.mxu0 0
        %1780 = vmatpush1.bf16.msra.mxu0 0
        %1781 = vmatprep.subr.bf16.mxu0 0
        %1782 = vmatpush1.bf16.msra.mxu0 0
        %1783 = vmatprep.subr.bf16.mxu0 0
        %1784 = vmatpush1.bf16.msra.mxu0 0
        %1785 = vmatprep.subr.bf16.mxu0 0
        %1786 = vmatpush1.bf16.msra.mxu0 0
        %1787 = vmatprep.subr.bf16.mxu0 0
        %1788 = vmatpush1.bf16.msra.mxu0 %v1773
        %1789 = vmatprep.subr.bf16.mxu0 0
        %1790 = vmatpush1.bf16.msra.mxu0 %v1210
        %1791 = vmatprep.subr.bf16.mxu0 0
        %1792 = vmatpush2.bf16.msra.mxu0 0
        %1793 = vmatprep.subr.bf16.mxu0 0
        %1794 = vmatpush2.bf16.msra.mxu0 0
        %1795 = vmatprep.subr.bf16.mxu0 0
        %1796 = vmatpush2.bf16.msra.mxu0 0
        %1797 = vmatprep.subr.bf16.mxu0 0
        %1798 = vmatpush2.bf16.msra.mxu0 0
        %1799 = vmatprep.subr.bf16.mxu0 0
        %1800 = vmatpush2.bf16.msra.mxu0 0
        %1801 = vmatprep.subr.bf16.mxu0 0
        %1802 = vmatpush2.bf16.msra.mxu0 0
        %1803 = vmatprep.subr.bf16.mxu0 0
        %1804 = vmatpush2.bf16.msra.mxu0 0
        %1805 = vmatprep.subr.bf16.mxu0 0
        %1806 = vmatpush2.bf16.msra.mxu0 0
        %1807 = vmatprep.mubr.bf16.mxu0 0
        %1808 = vmatmul.mubr.bf16.gmra.mxu0 %v1767
        %v1809 = vpop.f32.mrf.mxu0
        %v1810 = vadd.f32 0.0, %v1809
        %v1811 = vpop.f32.mrf.mxu0
        %v1812 = vpop.f32.mrf.mxu0
        %v1813 = vadd.f32 0.0, %v1812
        %v1814 = vpop.f32.mrf.mxu0
        %1815 = vmatprep.mubr.bf16.mxu0 0
        %1816 = vmatmul.mubr.bf16.gmra.mxu0 %v1770
        %v1817 = vpop.f32.mrf.mxu0
        %v1818 = vadd.f32 0.0, %v1817
        %v1819 = vpop.f32.mrf.mxu0
        %v1820 = vpop.f32.mrf.mxu0
        %v1821 = vpop.f32.mrf.mxu0
        %1822 = vdwg.mxu0
        %1825 = vrot.lane.b32.xlu0 %v1188, 96
        %v1826 = vpop.permute.xlu0 %1825
        %1827 = vrot.lane.b32.xlu0 %v1189, 96
        %v1828 = vpop.permute.xlu0 %1827
        %1831 = vrot.lane.b32.xlu0 %v1196, 96
        %v1832 = vpop.permute.xlu0 %1831
        %1833 = vrot.lane.b32.xlu0 %v1197, 96
        %v1834 = vpop.permute.xlu0 %1833
        %v1836 = vsel %vm1212, %v1826, 0
        %v1839 = vsel %vm1212, %v1828, 0
        %v1842 = vsel %vm1212, %v1832, 0
        %v1845 = vsel %vm1212, %v1834, 0
        %1847 = vmatprep.subr.bf16.mxu0 0
        %1848 = vmatpush1.bf16.xpose.msra.mxu0 0
        %1849 = vmatprep.subr.bf16.mxu0 0
        %1850 = vmatpush1.bf16.xpose.msra.mxu0 0
        %1851 = vmatprep.subr.bf16.mxu0 0
        %1852 = vmatpush1.bf16.xpose.msra.mxu0 0
        %1853 = vmatprep.subr.bf16.mxu0 0
        %1854 = vmatpush1.bf16.xpose.msra.mxu0 0
        %1855 = vmatprep.subr.bf16.mxu0 0
        %1856 = vmatpush1.bf16.xpose.msra.mxu0 0
        %1857 = vmatprep.subr.bf16.mxu0 0
        %1858 = vmatpush1.bf16.xpose.msra.mxu0 0
        %1859 = vmatprep.subr.bf16.mxu0 0
        %1860 = vmatpush1.bf16.xpose.msra.mxu0 %v1845
        %1861 = vmatprep.subr.bf16.mxu0 0
        %1862 = vmatpush1.bf16.xpose.msra.mxu0 %v1842
        %1863 = vmatprep.subr.bf16.mxu0 0
        %1864 = vmatpush2.bf16.xpose.msra.mxu0 0
        %1865 = vmatprep.subr.bf16.mxu0 0
        %1866 = vmatpush2.bf16.xpose.msra.mxu0 0
        %1867 = vmatprep.subr.bf16.mxu0 0
        %1868 = vmatpush2.bf16.xpose.msra.mxu0 0
        %1869 = vmatprep.subr.bf16.mxu0 0
        %1870 = vmatpush2.bf16.xpose.msra.mxu0 0
        %1871 = vmatprep.subr.bf16.mxu0 0
        %1872 = vmatpush2.bf16.xpose.msra.mxu0 0
        %1873 = vmatprep.subr.bf16.mxu0 0
        %1874 = vmatpush2.bf16.xpose.msra.mxu0 0
        %1875 = vmatprep.subr.bf16.mxu0 0
        %1876 = vmatpush2.bf16.xpose.msra.mxu0 0
        %1877 = vmatprep.subr.bf16.mxu0 0
        %1878 = vmatpush2.bf16.xpose.msra.mxu0 0
        %1879 = vmatprep.mubr.bf16.mxu0 0
        %1880 = vmatmul.mubr.bf16.gmra.mxu0 %v1836
        %v1881 = vpop.f32.mrf.mxu0
        %v1882 = vadd.f32 %v667, %v1881
        %v1883 = vpop.f32.mrf.mxu0
        %v1884 = vpop.f32.mrf.mxu0
        %v1885 = vadd.f32 %v667, %v1884
        %v1886 = vpop.f32.mrf.mxu0
        %1887 = vmatprep.mubr.bf16.mxu0 0
        %1888 = vmatmul.mubr.bf16.gmra.mxu0 %v1839
        %v1889 = vpop.f32.mrf.mxu0
        %v1890 = vadd.f32 %v667, %v1889
        %v1891 = vpop.f32.mrf.mxu0
        %v1892 = vpop.f32.mrf.mxu0
        %v1893 = vpop.f32.mrf.mxu0
        %1894 = vdwg.mxu0
        %1897 = vrot.lane.b32.xlu0 %v1190, 96
        %v1898 = vpop.permute.xlu0 %1897
        %1899 = vrot.lane.b32.xlu0 %v1191, 96
        %v1900 = vpop.permute.xlu0 %1899
        %1903 = vrot.lane.b32.xlu0 %v1198, 96
        %v1904 = vpop.permute.xlu0 %1903
        %1905 = vrot.lane.b32.xlu0 %v1199, 96
        %v1906 = vpop.permute.xlu0 %1905
        %v1908 = vsel %vm1212, %v1898, 0
        %v1911 = vsel %vm1212, %v1900, 0
        %v1914 = vsel %vm1212, %v1904, 0
        %v1917 = vsel %vm1212, %v1906, 0
        %1919 = vmatprep.subr.bf16.mxu0 0
        %1920 = vmatpush1.bf16.xpose.msra.mxu0 0
        %1921 = vmatprep.subr.bf16.mxu0 0
        %1922 = vmatpush1.bf16.xpose.msra.mxu0 0
        %1923 = vmatprep.subr.bf16.mxu0 0
        %1924 = vmatpush1.bf16.xpose.msra.mxu0 0
        %1925 = vmatprep.subr.bf16.mxu0 0
        %1926 = vmatpush1.bf16.xpose.msra.mxu0 0
        %1927 = vmatprep.subr.bf16.mxu0 0
        %1928 = vmatpush1.bf16.xpose.msra.mxu0 0
        %1929 = vmatprep.subr.bf16.mxu0 0
        %1930 = vmatpush1.bf16.xpose.msra.mxu0 0
        %1931 = vmatprep.subr.bf16.mxu0 0
        %1932 = vmatpush1.bf16.xpose.msra.mxu0 %v1917
        %1933 = vmatprep.subr.bf16.mxu0 0
        %1934 = vmatpush1.bf16.xpose.msra.mxu0 %v1914
        %1935 = vmatprep.subr.bf16.mxu0 0
        %1936 = vmatpush2.bf16.xpose.msra.mxu0 0
        %1937 = vmatprep.subr.bf16.mxu0 0
        %1938 = vmatpush2.bf16.xpose.msra.mxu0 0
        %1939 = vmatprep.subr.bf16.mxu0 0
        %1940 = vmatpush2.bf16.xpose.msra.mxu0 0
        %1941 = vmatprep.subr.bf16.mxu0 0
        %1942 = vmatpush2.bf16.xpose.msra.mxu0 0
        %1943 = vmatprep.subr.bf16.mxu0 0
        %1944 = vmatpush2.bf16.xpose.msra.mxu0 0
        %1945 = vmatprep.subr.bf16.mxu0 0
        %1946 = vmatpush2.bf16.xpose.msra.mxu0 0
        %1947 = vmatprep.subr.bf16.mxu0 0
        %1948 = vmatpush2.bf16.xpose.msra.mxu0 0
        %1949 = vmatprep.subr.bf16.mxu0 0
        %1950 = vmatpush2.bf16.xpose.msra.mxu0 0
        %1951 = vmatprep.mubr.bf16.mxu0 0
        %1952 = vmatmul.mubr.bf16.gmra.mxu0 %v1908
        %v1953 = vpop.f32.mrf.mxu0
        %v1954 = vadd.f32 %v667, %v1953
        %v1955 = vpop.f32.mrf.mxu0
        %v1956 = vpop.f32.mrf.mxu0
        %v1957 = vadd.f32 %v667, %v1956
        %v1958 = vpop.f32.mrf.mxu0
        %1959 = vmatprep.mubr.bf16.mxu0 0
        %1960 = vmatmul.mubr.bf16.gmra.mxu0 %v1911
        %v1961 = vpop.f32.mrf.mxu0
        %v1962 = vadd.f32 %v667, %v1961
        %v1963 = vpop.f32.mrf.mxu0
        %v1964 = vpop.f32.mrf.mxu0
        %v1965 = vpop.f32.mrf.mxu0
        %1966 = vdwg.mxu0
        %1969 = vrot.lane.b32.xlu0 %v1192, 96
        %v1970 = vpop.permute.xlu0 %1969
        %1971 = vrot.lane.b32.xlu0 %v1193, 96
        %v1972 = vpop.permute.xlu0 %1971
        %1975 = vrot.lane.b32.xlu0 %v1200, 96
        %v1976 = vpop.permute.xlu0 %1975
        %1977 = vrot.lane.b32.xlu0 %v1201, 96
        %v1978 = vpop.permute.xlu0 %1977
        %v1980 = vsel %vm1212, %v1970, 0
        %v1983 = vsel %vm1212, %v1972, 0
        %v1986 = vsel %vm1212, %v1976, 0
        %v1989 = vsel %vm1212, %v1978, 0
        %1991 = vmatprep.subr.bf16.mxu0 0
        %1992 = vmatpush1.bf16.xpose.msra.mxu0 0
        %1993 = vmatprep.subr.bf16.mxu0 0
        %1994 = vmatpush1.bf16.xpose.msra.mxu0 0
        %1995 = vmatprep.subr.bf16.mxu0 0
        %1996 = vmatpush1.bf16.xpose.msra.mxu0 0
        %1997 = vmatprep.subr.bf16.mxu0 0
        %1998 = vmatpush1.bf16.xpose.msra.mxu0 0
        %1999 = vmatprep.subr.bf16.mxu0 0
        %2000 = vmatpush1.bf16.xpose.msra.mxu0 0
        %2001 = vmatprep.subr.bf16.mxu0 0
        %2002 = vmatpush1.bf16.xpose.msra.mxu0 0
        %2003 = vmatprep.subr.bf16.mxu0 0
        %2004 = vmatpush1.bf16.xpose.msra.mxu0 %v1989
        %2005 = vmatprep.subr.bf16.mxu0 0
        %2006 = vmatpush1.bf16.xpose.msra.mxu0 %v1986
        %2007 = vmatprep.subr.bf16.mxu0 0
        %2008 = vmatpush2.bf16.xpose.msra.mxu0 0
        %2009 = vmatprep.subr.bf16.mxu0 0
        %2010 = vmatpush2.bf16.xpose.msra.mxu0 0
        %2011 = vmatprep.subr.bf16.mxu0 0
        %2012 = vmatpush2.bf16.xpose.msra.mxu0 0
        %2013 = vmatprep.subr.bf16.mxu0 0
        %2014 = vmatpush2.bf16.xpose.msra.mxu0 0
        %2015 = vmatprep.subr.bf16.mxu0 0
        %2016 = vmatpush2.bf16.xpose.msra.mxu0 0
        %2017 = vmatprep.subr.bf16.mxu0 0
        %2018 = vmatpush2.bf16.xpose.msra.mxu0 0
        %2019 = vmatprep.subr.bf16.mxu0 0
        %2020 = vmatpush2.bf16.xpose.msra.mxu0 0
        %2021 = vmatprep.subr.bf16.mxu0 0
        %2022 = vmatpush2.bf16.xpose.msra.mxu0 0
        %2023 = vmatprep.mubr.bf16.mxu0 0
        %2024 = vmatmul.mubr.bf16.gmra.mxu0 %v1980
        %v2025 = vpop.f32.mrf.mxu0
        %v2026 = vadd.f32 %v667, %v2025
        %v2027 = vpop.f32.mrf.mxu0
        %v2028 = vpop.f32.mrf.mxu0
        %v2029 = vadd.f32 %v667, %v2028
        %v2030 = vpop.f32.mrf.mxu0
        %2031 = vmatprep.mubr.bf16.mxu0 0
        %2032 = vmatmul.mubr.bf16.gmra.mxu0 %v1983
        %v2033 = vpop.f32.mrf.mxu0
        %v2034 = vadd.f32 %v667, %v2033
        %v2035 = vpop.f32.mrf.mxu0
        %v2036 = vpop.f32.mrf.mxu0
        %v2037 = vpop.f32.mrf.mxu0
        %2038 = vdwg.mxu0
        %2041 = vrot.lane.b32.xlu0 %v1194, 96
        %v2042 = vpop.permute.xlu0 %2041
        %2043 = vrot.lane.b32.xlu0 %v1195, 96
        %v2044 = vpop.permute.xlu0 %2043
        %2047 = vrot.lane.b32.xlu0 %v1202, 96
        %v2048 = vpop.permute.xlu0 %2047
        %2049 = vrot.lane.b32.xlu0 %v1203, 96
        %v2050 = vpop.permute.xlu0 %2049
        %v2052 = vsel %vm1212, %v2042, 0
        %v2055 = vsel %vm1212, %v2044, 0
        %v2058 = vsel %vm1212, %v2048, 0
        %v2061 = vsel %vm1212, %v2050, 0
        %2063 = vmatprep.subr.bf16.mxu0 0
        %2064 = vmatpush1.bf16.xpose.msra.mxu0 0
        %2065 = vmatprep.subr.bf16.mxu0 0
        %2066 = vmatpush1.bf16.xpose.msra.mxu0 0
        %2067 = vmatprep.subr.bf16.mxu0 0
        %2068 = vmatpush1.bf16.xpose.msra.mxu0 0
        %2069 = vmatprep.subr.bf16.mxu0 0
        %2070 = vmatpush1.bf16.xpose.msra.mxu0 0
        %2071 = vmatprep.subr.bf16.mxu0 0
        %2072 = vmatpush1.bf16.xpose.msra.mxu0 0
        %2073 = vmatprep.subr.bf16.mxu0 0
        %2074 = vmatpush1.bf16.xpose.msra.mxu0 0
        %2075 = vmatprep.subr.bf16.mxu0 0
        %2076 = vmatpush1.bf16.xpose.msra.mxu0 %v2061
        %2077 = vmatprep.subr.bf16.mxu0 0
        %2078 = vmatpush1.bf16.xpose.msra.mxu0 %v2058
        %2079 = vmatprep.subr.bf16.mxu0 0
        %2080 = vmatpush2.bf16.xpose.msra.mxu0 0
        %2081 = vmatprep.subr.bf16.mxu0 0
        %2082 = vmatpush2.bf16.xpose.msra.mxu0 0
        %2083 = vmatprep.subr.bf16.mxu0 0
        %2084 = vmatpush2.bf16.xpose.msra.mxu0 0
        %2085 = vmatprep.subr.bf16.mxu0 0
        %2086 = vmatpush2.bf16.xpose.msra.mxu0 0
        %2087 = vmatprep.subr.bf16.mxu0 0
        %2088 = vmatpush2.bf16.xpose.msra.mxu0 0
        %2089 = vmatprep.subr.bf16.mxu0 0
        %2090 = vmatpush2.bf16.xpose.msra.mxu0 0
        %2091 = vmatprep.subr.bf16.mxu0 0
        %2092 = vmatpush2.bf16.xpose.msra.mxu0 0
        %2093 = vmatprep.subr.bf16.mxu0 0
        %2094 = vmatpush2.bf16.xpose.msra.mxu0 0
        %2095 = vmatprep.mubr.bf16.mxu0 0
        %2096 = vmatmul.mubr.bf16.gmra.mxu0 %v2052
        %v2097 = vpop.f32.mrf.mxu0
        %v2098 = vadd.f32 %v667, %v2097
        %v2099 = vpop.f32.mrf.mxu0
        %v2100 = vpop.f32.mrf.mxu0
        %v2101 = vadd.f32 %v667, %v2100
        %v2102 = vpop.f32.mrf.mxu0
        %2103 = vmatprep.mubr.bf16.mxu0 0
        %2104 = vmatmul.mubr.bf16.gmra.mxu0 %v2055
        %v2105 = vpop.f32.mrf.mxu0
        %v2106 = vadd.f32 %v667, %v2105
        %v2107 = vpop.f32.mrf.mxu0
        %v2108 = vpop.f32.mrf.mxu0
        %v2109 = vpop.f32.mrf.mxu0
        %2110 = vdwg.mxu0
        %v2111 = vsel %vm1453, %v1882, -inf
        %2112 = vmax.xlane.f32.xlu0 %v2111
        %v2113 = vpop.xlane.xlu0 %2112
        %v2114 = vsel %vm1453, %v1885, -inf
        %2115 = vmax.xlane.f32.xlu0 %v2114
        %v2116 = vpop.xlane.xlu0 %2115
        %v2117 = vsel %vm1453, %v1890, -inf
        %2118 = vmax.xlane.f32.xlu0 %v2117
        %v2119 = vpop.xlane.xlu0 %2118
        %v2120 = vsel %vm1453, %v1954, -inf
        %2121 = vmax.xlane.f32.xlu0 %v2120
        %v2122 = vpop.xlane.xlu0 %2121
        %v2123 = vsel %vm1453, %v1957, -inf
        %2124 = vmax.xlane.f32.xlu0 %v2123
        %v2125 = vpop.xlane.xlu0 %2124
        %v2126 = vsel %vm1453, %v1962, -inf
        %2127 = vmax.xlane.f32.xlu0 %v2126
        %v2128 = vpop.xlane.xlu0 %2127
        %v2129 = vsel %vm1453, %v2026, -inf
        %2130 = vmax.xlane.f32.xlu0 %v2129
        %v2131 = vpop.xlane.xlu0 %2130
        %v2132 = vsel %vm1453, %v2029, -inf
        %2133 = vmax.xlane.f32.xlu0 %v2132
        %v2134 = vpop.xlane.xlu0 %2133
        %v2135 = vsel %vm1453, %v2034, -inf
        %2136 = vmax.xlane.f32.xlu0 %v2135
        %v2137 = vpop.xlane.xlu0 %2136
        %v2138 = vsel %vm1453, %v2098, -inf
        %2139 = vmax.xlane.f32.xlu0 %v2138
        %v2140 = vpop.xlane.xlu0 %2139
        %v2141 = vsel %vm1453, %v2101, -inf
        %2142 = vmax.xlane.f32.xlu0 %v2141
        %v2143 = vpop.xlane.xlu0 %2142
        %v2144 = vsel %vm1453, %v2106, -inf
        %2145 = vmax.xlane.f32.xlu0 %v2144
        %v2146 = vpop.xlane.xlu0 %2145
        %v2147 = vsub.f32 %v1882, %v2113
        %v2148 = vsub.f32 %v1885, %v2116
        %v2149 = vsub.f32 %v1890, %v2119
        %v2150 = vsub.f32 %v1954, %v2122
        %v2151 = vsub.f32 %v1957, %v2125
        %v2152 = vsub.f32 %v1962, %v2128
        %v2153 = vsub.f32 %v2026, %v2131
        %v2154 = vsub.f32 %v2029, %v2134
        %v2155 = vsub.f32 %v2034, %v2137
        %v2156 = vsub.f32 %v2098, %v2140
        %v2157 = vsub.f32 %v2101, %v2143
        %v2158 = vsub.f32 %v2106, %v2146
        %v2159 = vmul.f32 %v2147, 1.442695
        %v2160 = vpow.pop %v2159
        %v2161 = vmul.f32 %v2148, 1.442695
        %v2162 = vpow.pop %v2161
        %v2163 = vmul.f32 %v2149, 1.442695
        %v2164 = vpow.pop %v2163
        %v2165 = vmul.f32 %v2150, 1.442695
        %v2166 = vpow.pop %v2165
        %v2167 = vmul.f32 %v2151, 1.442695
        %v2168 = vpow.pop %v2167
        %v2169 = vmul.f32 %v2152, 1.442695
        %v2170 = vpow.pop %v2169
        %v2171 = vmul.f32 %v2153, 1.442695
        %v2172 = vpow.pop %v2171
        %v2173 = vmul.f32 %v2154, 1.442695
        %v2174 = vpow.pop %v2173
        %v2175 = vmul.f32 %v2155, 1.442695
        %v2176 = vpow.pop %v2175
        %v2177 = vmul.f32 %v2156, 1.442695
        %v2178 = vpow.pop %v2177
        %v2179 = vmul.f32 %v2157, 1.442695
        %v2180 = vpow.pop %v2179
        %v2181 = vmul.f32 %v2158, 1.442695
        %v2182 = vpow.pop %v2181
        %v2183 = vsel %vm1453, %v2160, 0.0
        %2184 = vadd.xlane.f32.xlu0 %v2183
        %v2185 = vpop.xlane.xlu0 %2184
        %v2186 = vsel %vm1453, %v2162, 0.0
        %2187 = vadd.xlane.f32.xlu0 %v2186
        %v2188 = vpop.xlane.xlu0 %2187
        %v2189 = vsel %vm1453, %v2164, 0.0
        %2190 = vadd.xlane.f32.xlu0 %v2189
        %v2191 = vpop.xlane.xlu0 %2190
        %v2192 = vsel %vm1453, %v2166, 0.0
        %2193 = vadd.xlane.f32.xlu0 %v2192
        %v2194 = vpop.xlane.xlu0 %2193
        %v2195 = vsel %vm1453, %v2168, 0.0
        %2196 = vadd.xlane.f32.xlu0 %v2195
        %v2197 = vpop.xlane.xlu0 %2196
        %v2198 = vsel %vm1453, %v2170, 0.0
        %2199 = vadd.xlane.f32.xlu0 %v2198
        %v2200 = vpop.xlane.xlu0 %2199
        %v2201 = vsel %vm1453, %v2172, 0.0
        %2202 = vadd.xlane.f32.xlu0 %v2201
        %v2203 = vpop.xlane.xlu0 %2202
        %v2204 = vsel %vm1453, %v2174, 0.0
        %2205 = vadd.xlane.f32.xlu0 %v2204
        %v2206 = vpop.xlane.xlu0 %2205
        %v2207 = vsel %vm1453, %v2176, 0.0
        %2208 = vadd.xlane.f32.xlu0 %v2207
        %v2209 = vpop.xlane.xlu0 %2208
        %v2210 = vsel %vm1453, %v2178, 0.0
        %2211 = vadd.xlane.f32.xlu0 %v2210
        %v2212 = vpop.xlane.xlu0 %2211
        %v2213 = vsel %vm1453, %v2180, 0.0
        %2214 = vadd.xlane.f32.xlu0 %v2213
        %v2215 = vpop.xlane.xlu0 %2214
        %v2216 = vsel %vm1453, %v2182, 0.0
        %2217 = vadd.xlane.f32.xlu0 %v2216
        %v2218 = vpop.xlane.xlu0 %2217
        %v2219 = vrcp.pop %v2185
        %v2220 = vrcp.pop %v2188
        %v2221 = vrcp.pop %v2191
        %v2222 = vrcp.pop %v2194
        %v2223 = vrcp.pop %v2197
        %v2224 = vrcp.pop %v2200
        %v2225 = vrcp.pop %v2203
        %v2226 = vrcp.pop %v2206
        %v2227 = vrcp.pop %v2209
        %v2228 = vrcp.pop %v2212
        %v2229 = vrcp.pop %v2215
        %v2230 = vrcp.pop %v2218
        %v2231 = vmul.f32 %v2160, %v2219
        %v2232 = vmul.f32 %v2162, %v2220
        %v2233 = vmul.f32 %v2164, %v2221
        %v2234 = vmul.f32 %v2166, %v2222
        %v2235 = vmul.f32 %v2168, %v2223
        %v2236 = vmul.f32 %v2170, %v2224
        %v2237 = vmul.f32 %v2172, %v2225
        %v2238 = vmul.f32 %v2174, %v2226
        %v2239 = vmul.f32 %v2176, %v2227
        %v2240 = vmul.f32 %v2178, %v2228
        %v2241 = vmul.f32 %v2180, %v2229
        %v2242 = vmul.f32 %v2182, %v2230
        %v2243 = vpack.c.bf16 %v2232, %v2231
        %v2244 = vpack.c.bf16 %v2233, %v2233
        %v2245 = vpack.c.bf16 %v2235, %v2234
        %v2246 = vpack.c.bf16 %v2236, %v2236
        %v2247 = vpack.c.bf16 %v2238, %v2237
        %v2248 = vpack.c.bf16 %v2239, %v2239
        %v2249 = vpack.c.bf16 %v2241, %v2240
        %v2250 = vpack.c.bf16 %v2242, %v2242
        %2253 = vrot.lane.b32.xlu0 %v1204, 96
        %v2254 = vpop.permute.xlu0 %2253
        %2255 = vrot.lane.b32.xlu0 %v1205, 96
        %v2256 = vpop.permute.xlu0 %2255
        %v2259 = vsel %vm1453, %v2243, 0
        %v2262 = vsel %vm1453, %v2244, 0
        %v2265 = vsel %vm1600, %v2256, 0
        %2267 = vmatprep.subr.bf16.mxu0 0
        %2268 = vmatpush1.bf16.msra.mxu0 0
        %2269 = vmatprep.subr.bf16.mxu0 0
        %2270 = vmatpush1.bf16.msra.mxu0 0
        %2271 = vmatprep.subr.bf16.mxu0 0
        %2272 = vmatpush1.bf16.msra.mxu0 0
        %2273 = vmatprep.subr.bf16.mxu0 0
        %2274 = vmatpush1.bf16.msra.mxu0 0
        %2275 = vmatprep.subr.bf16.mxu0 0
        %2276 = vmatpush1.bf16.msra.mxu0 0
        %2277 = vmatprep.subr.bf16.mxu0 0
        %2278 = vmatpush1.bf16.msra.mxu0 0
        %2279 = vmatprep.subr.bf16.mxu0 0
        %2280 = vmatpush1.bf16.msra.mxu0 %v2265
        %2281 = vmatprep.subr.bf16.mxu0 0
        %2282 = vmatpush1.bf16.msra.mxu0 %v2254
        %2283 = vmatprep.subr.bf16.mxu0 0
        %2284 = vmatpush2.bf16.msra.mxu0 0
        %2285 = vmatprep.subr.bf16.mxu0 0
        %2286 = vmatpush2.bf16.msra.mxu0 0
        %2287 = vmatprep.subr.bf16.mxu0 0
        %2288 = vmatpush2.bf16.msra.mxu0 0
        %2289 = vmatprep.subr.bf16.mxu0 0
        %2290 = vmatpush2.bf16.msra.mxu0 0
        %2291 = vmatprep.subr.bf16.mxu0 0
        %2292 = vmatpush2.bf16.msra.mxu0 0
        %2293 = vmatprep.subr.bf16.mxu0 0
        %2294 = vmatpush2.bf16.msra.mxu0 0
        %2295 = vmatprep.subr.bf16.mxu0 0
        %2296 = vmatpush2.bf16.msra.mxu0 0
        %2297 = vmatprep.subr.bf16.mxu0 0
        %2298 = vmatpush2.bf16.msra.mxu0 0
        %2299 = vmatprep.mubr.bf16.mxu0 0
        %2300 = vmatmul.mubr.bf16.gmra.mxu0 %v2259
        %v2301 = vpop.f32.mrf.mxu0
        %v2302 = vadd.f32 0.0, %v2301
        %v2303 = vpop.f32.mrf.mxu0
        %v2304 = vpop.f32.mrf.mxu0
        %v2305 = vadd.f32 0.0, %v2304
        %v2306 = vpop.f32.mrf.mxu0
        %2307 = vmatprep.mubr.bf16.mxu0 0
        %2308 = vmatmul.mubr.bf16.gmra.mxu0 %v2262
        %v2309 = vpop.f32.mrf.mxu0
        %v2310 = vadd.f32 0.0, %v2309
        %v2311 = vpop.f32.mrf.mxu0
        %v2312 = vpop.f32.mrf.mxu0
        %v2313 = vpop.f32.mrf.mxu0
        %2314 = vdwg.mxu0
        %2317 = vrot.lane.b32.xlu0 %v1206, 96
        %v2318 = vpop.permute.xlu0 %2317
        %2319 = vrot.lane.b32.xlu0 %v1207, 96
        %v2320 = vpop.permute.xlu0 %2319
        %v2323 = vsel %vm1453, %v2245, 0
        %v2326 = vsel %vm1453, %v2246, 0
        %v2329 = vsel %vm1600, %v2320, 0
        %2331 = vmatprep.subr.bf16.mxu0 0
        %2332 = vmatpush1.bf16.msra.mxu0 0
        %2333 = vmatprep.subr.bf16.mxu0 0
        %2334 = vmatpush1.bf16.msra.mxu0 0
        %2335 = vmatprep.subr.bf16.mxu0 0
        %2336 = vmatpush1.bf16.msra.mxu0 0
        %2337 = vmatprep.subr.bf16.mxu0 0
        %2338 = vmatpush1.bf16.msra.mxu0 0
        %2339 = vmatprep.subr.bf16.mxu0 0
        %2340 = vmatpush1.bf16.msra.mxu0 0
        %2341 = vmatprep.subr.bf16.mxu0 0
        %2342 = vmatpush1.bf16.msra.mxu0 0
        %2343 = vmatprep.subr.bf16.mxu0 0
        %2344 = vmatpush1.bf16.msra.mxu0 %v2329
        %2345 = vmatprep.subr.bf16.mxu0 0
        %2346 = vmatpush1.bf16.msra.mxu0 %v2318
        %2347 = vmatprep.subr.bf16.mxu0 0
        %2348 = vmatpush2.bf16.msra.mxu0 0
        %2349 = vmatprep.subr.bf16.mxu0 0
        %2350 = vmatpush2.bf16.msra.mxu0 0
        %2351 = vmatprep.subr.bf16.mxu0 0
        %2352 = vmatpush2.bf16.msra.mxu0 0
        %2353 = vmatprep.subr.bf16.mxu0 0
        %2354 = vmatpush2.bf16.msra.mxu0 0
        %2355 = vmatprep.subr.bf16.mxu0 0
        %2356 = vmatpush2.bf16.msra.mxu0 0
        %2357 = vmatprep.subr.bf16.mxu0 0
        %2358 = vmatpush2.bf16.msra.mxu0 0
        %2359 = vmatprep.subr.bf16.mxu0 0
        %2360 = vmatpush2.bf16.msra.mxu0 0
        %2361 = vmatprep.subr.bf16.mxu0 0
        %2362 = vmatpush2.bf16.msra.mxu0 0
        %2363 = vmatprep.mubr.bf16.mxu0 0
        %2364 = vmatmul.mubr.bf16.gmra.mxu0 %v2323
        %v2365 = vpop.f32.mrf.mxu0
        %v2366 = vadd.f32 0.0, %v2365
        %v2367 = vpop.f32.mrf.mxu0
        %v2368 = vpop.f32.mrf.mxu0
        %v2369 = vadd.f32 0.0, %v2368
        %v2370 = vpop.f32.mrf.mxu0
        %2371 = vmatprep.mubr.bf16.mxu0 0
        %2372 = vmatmul.mubr.bf16.gmra.mxu0 %v2326
        %v2373 = vpop.f32.mrf.mxu0
        %v2374 = vadd.f32 0.0, %v2373
        %v2375 = vpop.f32.mrf.mxu0
        %v2376 = vpop.f32.mrf.mxu0
        %v2377 = vpop.f32.mrf.mxu0
        %2378 = vdwg.mxu0
        %2381 = vrot.lane.b32.xlu0 %v1208, 96
        %v2382 = vpop.permute.xlu0 %2381
        %2383 = vrot.lane.b32.xlu0 %v1209, 96
        %v2384 = vpop.permute.xlu0 %2383
        %v2387 = vsel %vm1453, %v2247, 0
        %v2390 = vsel %vm1453, %v2248, 0
        %v2393 = vsel %vm1600, %v2384, 0
        %2395 = vmatprep.subr.bf16.mxu0 0
        %2396 = vmatpush1.bf16.msra.mxu0 0
        %2397 = vmatprep.subr.bf16.mxu0 0
        %2398 = vmatpush1.bf16.msra.mxu0 0
        %2399 = vmatprep.subr.bf16.mxu0 0
        %2400 = vmatpush1.bf16.msra.mxu0 0
        %2401 = vmatprep.subr.bf16.mxu0 0
        %2402 = vmatpush1.bf16.msra.mxu0 0
        %2403 = vmatprep.subr.bf16.mxu0 0
        %2404 = vmatpush1.bf16.msra.mxu0 0
        %2405 = vmatprep.subr.bf16.mxu0 0
        %2406 = vmatpush1.bf16.msra.mxu0 0
        %2407 = vmatprep.subr.bf16.mxu0 0
        %2408 = vmatpush1.bf16.msra.mxu0 %v2393
        %2409 = vmatprep.subr.bf16.mxu0 0
        %2410 = vmatpush1.bf16.msra.mxu0 %v2382
        %2411 = vmatprep.subr.bf16.mxu0 0
        %2412 = vmatpush2.bf16.msra.mxu0 0
        %2413 = vmatprep.subr.bf16.mxu0 0
        %2414 = vmatpush2.bf16.msra.mxu0 0
        %2415 = vmatprep.subr.bf16.mxu0 0
        %2416 = vmatpush2.bf16.msra.mxu0 0
        %2417 = vmatprep.subr.bf16.mxu0 0
        %2418 = vmatpush2.bf16.msra.mxu0 0
        %2419 = vmatprep.subr.bf16.mxu0 0
        %2420 = vmatpush2.bf16.msra.mxu0 0
        %2421 = vmatprep.subr.bf16.mxu0 0
        %2422 = vmatpush2.bf16.msra.mxu0 0
        %2423 = vmatprep.subr.bf16.mxu0 0
        %2424 = vmatpush2.bf16.msra.mxu0 0
        %2425 = vmatprep.subr.bf16.mxu0 0
        %2426 = vmatpush2.bf16.msra.mxu0 0
        %2427 = vmatprep.mubr.bf16.mxu0 0
        %2428 = vmatmul.mubr.bf16.gmra.mxu0 %v2387
        %v2429 = vpop.f32.mrf.mxu0
        %v2430 = vadd.f32 0.0, %v2429
        %v2431 = vpop.f32.mrf.mxu0
        %v2432 = vpop.f32.mrf.mxu0
        %v2433 = vadd.f32 0.0, %v2432
        %v2434 = vpop.f32.mrf.mxu0
        %2435 = vmatprep.mubr.bf16.mxu0 0
        %2436 = vmatmul.mubr.bf16.gmra.mxu0 %v2390
        %v2437 = vpop.f32.mrf.mxu0
        %v2438 = vadd.f32 0.0, %v2437
        %v2439 = vpop.f32.mrf.mxu0
        %v2440 = vpop.f32.mrf.mxu0
        %v2441 = vpop.f32.mrf.mxu0
        %2442 = vdwg.mxu0
        %2445 = vrot.lane.b32.xlu0 %v1210, 96
        %v2446 = vpop.permute.xlu0 %2445
        %2447 = vrot.lane.b32.xlu0 %v1211, 96
        %v2448 = vpop.permute.xlu0 %2447
        %v2451 = vsel %vm1453, %v2249, 0
        %v2454 = vsel %vm1453, %v2250, 0
        %v2457 = vsel %vm1600, %v2448, 0
        %2459 = vmatprep.subr.bf16.mxu0 0
        %2460 = vmatpush1.bf16.msra.mxu0 0
        %2461 = vmatprep.subr.bf16.mxu0 0
        %2462 = vmatpush1.bf16.msra.mxu0 0
        %2463 = vmatprep.subr.bf16.mxu0 0
        %2464 = vmatpush1.bf16.msra.mxu0 0
        %2465 = vmatprep.subr.bf16.mxu0 0
        %2466 = vmatpush1.bf16.msra.mxu0 0
        %2467 = vmatprep.subr.bf16.mxu0 0
        %2468 = vmatpush1.bf16.msra.mxu0 0
        %2469 = vmatprep.subr.bf16.mxu0 0
        %2470 = vmatpush1.bf16.msra.mxu0 0
        %2471 = vmatprep.subr.bf16.mxu0 0
        %2472 = vmatpush1.bf16.msra.mxu0 %v2457
        %2473 = vmatprep.subr.bf16.mxu0 0
        %2474 = vmatpush1.bf16.msra.mxu0 %v2446
        %2475 = vmatprep.subr.bf16.mxu0 0
        %2476 = vmatpush2.bf16.msra.mxu0 0
        %2477 = vmatprep.subr.bf16.mxu0 0
        %2478 = vmatpush2.bf16.msra.mxu0 0
        %2479 = vmatprep.subr.bf16.mxu0 0
        %2480 = vmatpush2.bf16.msra.mxu0 0
        %2481 = vmatprep.subr.bf16.mxu0 0
        %2482 = vmatpush2.bf16.msra.mxu0 0
        %2483 = vmatprep.subr.bf16.mxu0 0
        %2484 = vmatpush2.bf16.msra.mxu0 0
        %2485 = vmatprep.subr.bf16.mxu0 0
        %2486 = vmatpush2.bf16.msra.mxu0 0
        %2487 = vmatprep.subr.bf16.mxu0 0
        %2488 = vmatpush2.bf16.msra.mxu0 0
        %2489 = vmatprep.subr.bf16.mxu0 0
        %2490 = vmatpush2.bf16.msra.mxu0 0
        %2491 = vmatprep.mubr.bf16.mxu0 0
        %2492 = vmatmul.mubr.bf16.gmra.mxu0 %v2451
        %v2493 = vpop.f32.mrf.mxu0
        %v2494 = vadd.f32 0.0, %v2493
        %v2495 = vpop.f32.mrf.mxu0
        %v2496 = vpop.f32.mrf.mxu0
        %v2497 = vadd.f32 0.0, %v2496
        %v2498 = vpop.f32.mrf.mxu0
        %2499 = vmatprep.mubr.bf16.mxu0 0
        %2500 = vmatmul.mubr.bf16.gmra.mxu0 %v2454
        %v2501 = vpop.f32.mrf.mxu0
        %v2502 = vadd.f32 0.0, %v2501
        %v2503 = vpop.f32.mrf.mxu0
        %v2504 = vpop.f32.mrf.mxu0
        %v2505 = vpop.f32.mrf.mxu0
        %2506 = vdwg.mxu0
        %2507 = vrot.lane.b32.xlu0 %v1188, 64
        %v2508 = vpop.permute.xlu0 %2507
        %2509 = vrot.lane.b32.xlu0 %v1189, 64
        %v2510 = vpop.permute.xlu0 %2509
        %2511 = vrot.lane.b32.xlu0 %v1196, 64
        %v2512 = vpop.permute.xlu0 %2511
        %2513 = vrot.lane.b32.xlu0 %v1197, 64
        %v2514 = vpop.permute.xlu0 %2513
        %v2516 = vsel %vm1212, %v2508, 0
        %v2519 = vsel %vm1212, %v2510, 0
        %v2522 = vsel %vm1212, %v2512, 0
        %v2525 = vsel %vm1212, %v2514, 0
        %2527 = vmatprep.subr.bf16.mxu0 0
        %2528 = vmatpush1.bf16.xpose.msra.mxu0 0
        %2529 = vmatprep.subr.bf16.mxu0 0
        %2530 = vmatpush1.bf16.xpose.msra.mxu0 0
        %2531 = vmatprep.subr.bf16.mxu0 0
        %2532 = vmatpush1.bf16.xpose.msra.mxu0 0
        %2533 = vmatprep.subr.bf16.mxu0 0
        %2534 = vmatpush1.bf16.xpose.msra.mxu0 0
        %2535 = vmatprep.subr.bf16.mxu0 0
        %2536 = vmatpush1.bf16.xpose.msra.mxu0 0
        %2537 = vmatprep.subr.bf16.mxu0 0
        %2538 = vmatpush1.bf16.xpose.msra.mxu0 0
        %2539 = vmatprep.subr.bf16.mxu0 0
        %2540 = vmatpush1.bf16.xpose.msra.mxu0 %v2525
        %2541 = vmatprep.subr.bf16.mxu0 0
        %2542 = vmatpush1.bf16.xpose.msra.mxu0 %v2522
        %2543 = vmatprep.subr.bf16.mxu0 0
        %2544 = vmatpush2.bf16.xpose.msra.mxu0 0
        %2545 = vmatprep.subr.bf16.mxu0 0
        %2546 = vmatpush2.bf16.xpose.msra.mxu0 0
        %2547 = vmatprep.subr.bf16.mxu0 0
        %2548 = vmatpush2.bf16.xpose.msra.mxu0 0
        %2549 = vmatprep.subr.bf16.mxu0 0
        %2550 = vmatpush2.bf16.xpose.msra.mxu0 0
        %2551 = vmatprep.subr.bf16.mxu0 0
        %2552 = vmatpush2.bf16.xpose.msra.mxu0 0
        %2553 = vmatprep.subr.bf16.mxu0 0
        %2554 = vmatpush2.bf16.xpose.msra.mxu0 0
        %2555 = vmatprep.subr.bf16.mxu0 0
        %2556 = vmatpush2.bf16.xpose.msra.mxu0 0
        %2557 = vmatprep.subr.bf16.mxu0 0
        %2558 = vmatpush2.bf16.xpose.msra.mxu0 0
        %2559 = vmatprep.mubr.bf16.mxu0 0
        %2560 = vmatmul.mubr.bf16.gmra.mxu0 %v2516
        %v2561 = vpop.f32.mrf.mxu0
        %v2562 = vadd.f32 %v667, %v2561
        %v2563 = vpop.f32.mrf.mxu0
        %v2564 = vpop.f32.mrf.mxu0
        %v2565 = vadd.f32 %v667, %v2564
        %v2566 = vpop.f32.mrf.mxu0
        %2567 = vmatprep.mubr.bf16.mxu0 0
        %2568 = vmatmul.mubr.bf16.gmra.mxu0 %v2519
        %v2569 = vpop.f32.mrf.mxu0
        %v2570 = vadd.f32 %v667, %v2569
        %v2571 = vpop.f32.mrf.mxu0
        %v2572 = vpop.f32.mrf.mxu0
        %v2573 = vpop.f32.mrf.mxu0
        %2574 = vdwg.mxu0
        %2575 = vrot.lane.b32.xlu0 %v1190, 64
        %v2576 = vpop.permute.xlu0 %2575
        %2577 = vrot.lane.b32.xlu0 %v1191, 64
        %v2578 = vpop.permute.xlu0 %2577
        %2579 = vrot.lane.b32.xlu0 %v1198, 64
        %v2580 = vpop.permute.xlu0 %2579
        %2581 = vrot.lane.b32.xlu0 %v1199, 64
        %v2582 = vpop.permute.xlu0 %2581
        %v2584 = vsel %vm1212, %v2576, 0
        %v2587 = vsel %vm1212, %v2578, 0
        %v2590 = vsel %vm1212, %v2580, 0
        %v2593 = vsel %vm1212, %v2582, 0
        %2595 = vmatprep.subr.bf16.mxu0 0
        %2596 = vmatpush1.bf16.xpose.msra.mxu0 0
        %2597 = vmatprep.subr.bf16.mxu0 0
        %2598 = vmatpush1.bf16.xpose.msra.mxu0 0
        %2599 = vmatprep.subr.bf16.mxu0 0
        %2600 = vmatpush1.bf16.xpose.msra.mxu0 0
        %2601 = vmatprep.subr.bf16.mxu0 0
        %2602 = vmatpush1.bf16.xpose.msra.mxu0 0
        %2603 = vmatprep.subr.bf16.mxu0 0
        %2604 = vmatpush1.bf16.xpose.msra.mxu0 0
        %2605 = vmatprep.subr.bf16.mxu0 0
        %2606 = vmatpush1.bf16.xpose.msra.mxu0 0
        %2607 = vmatprep.subr.bf16.mxu0 0
        %2608 = vmatpush1.bf16.xpose.msra.mxu0 %v2593
        %2609 = vmatprep.subr.bf16.mxu0 0
        %2610 = vmatpush1.bf16.xpose.msra.mxu0 %v2590
        %2611 = vmatprep.subr.bf16.mxu0 0
        %2612 = vmatpush2.bf16.xpose.msra.mxu0 0
        %2613 = vmatprep.subr.bf16.mxu0 0
        %2614 = vmatpush2.bf16.xpose.msra.mxu0 0
        %2615 = vmatprep.subr.bf16.mxu0 0
        %2616 = vmatpush2.bf16.xpose.msra.mxu0 0
        %2617 = vmatprep.subr.bf16.mxu0 0
        %2618 = vmatpush2.bf16.xpose.msra.mxu0 0
        %2619 = vmatprep.subr.bf16.mxu0 0
        %2620 = vmatpush2.bf16.xpose.msra.mxu0 0
        %2621 = vmatprep.subr.bf16.mxu0 0
        %2622 = vmatpush2.bf16.xpose.msra.mxu0 0
        %2623 = vmatprep.subr.bf16.mxu0 0
        %2624 = vmatpush2.bf16.xpose.msra.mxu0 0
        %2625 = vmatprep.subr.bf16.mxu0 0
        %2626 = vmatpush2.bf16.xpose.msra.mxu0 0
        %2627 = vmatprep.mubr.bf16.mxu0 0
        %2628 = vmatmul.mubr.bf16.gmra.mxu0 %v2584
        %v2629 = vpop.f32.mrf.mxu0
        %v2630 = vadd.f32 %v667, %v2629
        %v2631 = vpop.f32.mrf.mxu0
        %v2632 = vpop.f32.mrf.mxu0
        %v2633 = vadd.f32 %v667, %v2632
        %v2634 = vpop.f32.mrf.mxu0
        %2635 = vmatprep.mubr.bf16.mxu0 0
        %2636 = vmatmul.mubr.bf16.gmra.mxu0 %v2587
        %v2637 = vpop.f32.mrf.mxu0
        %v2638 = vadd.f32 %v667, %v2637
        %v2639 = vpop.f32.mrf.mxu0
        %v2640 = vpop.f32.mrf.mxu0
        %v2641 = vpop.f32.mrf.mxu0
        %2642 = vdwg.mxu0
        %2643 = vrot.lane.b32.xlu0 %v1192, 64
        %v2644 = vpop.permute.xlu0 %2643
        %2645 = vrot.lane.b32.xlu0 %v1193, 64
        %v2646 = vpop.permute.xlu0 %2645
        %2647 = vrot.lane.b32.xlu0 %v1200, 64
        %v2648 = vpop.permute.xlu0 %2647
        %2649 = vrot.lane.b32.xlu0 %v1201, 64
        %v2650 = vpop.permute.xlu0 %2649
        %v2652 = vsel %vm1212, %v2644, 0
        %v2655 = vsel %vm1212, %v2646, 0
        %v2658 = vsel %vm1212, %v2648, 0
        %v2661 = vsel %vm1212, %v2650, 0
        %2663 = vmatprep.subr.bf16.mxu0 0
        %2664 = vmatpush1.bf16.xpose.msra.mxu0 0
        %2665 = vmatprep.subr.bf16.mxu0 0
        %2666 = vmatpush1.bf16.xpose.msra.mxu0 0
        %2667 = vmatprep.subr.bf16.mxu0 0
        %2668 = vmatpush1.bf16.xpose.msra.mxu0 0
        %2669 = vmatprep.subr.bf16.mxu0 0
        %2670 = vmatpush1.bf16.xpose.msra.mxu0 0
        %2671 = vmatprep.subr.bf16.mxu0 0
        %2672 = vmatpush1.bf16.xpose.msra.mxu0 0
        %2673 = vmatprep.subr.bf16.mxu0 0
        %2674 = vmatpush1.bf16.xpose.msra.mxu0 0
        %2675 = vmatprep.subr.bf16.mxu0 0
        %2676 = vmatpush1.bf16.xpose.msra.mxu0 %v2661
        %2677 = vmatprep.subr.bf16.mxu0 0
        %2678 = vmatpush1.bf16.xpose.msra.mxu0 %v2658
        %2679 = vmatprep.subr.bf16.mxu0 0
        %2680 = vmatpush2.bf16.xpose.msra.mxu0 0
        %2681 = vmatprep.subr.bf16.mxu0 0
        %2682 = vmatpush2.bf16.xpose.msra.mxu0 0
        %2683 = vmatprep.subr.bf16.mxu0 0
        %2684 = vmatpush2.bf16.xpose.msra.mxu0 0
        %2685 = vmatprep.subr.bf16.mxu0 0
        %2686 = vmatpush2.bf16.xpose.msra.mxu0 0
        %2687 = vmatprep.subr.bf16.mxu0 0
        %2688 = vmatpush2.bf16.xpose.msra.mxu0 0
        %2689 = vmatprep.subr.bf16.mxu0 0
        %2690 = vmatpush2.bf16.xpose.msra.mxu0 0
        %2691 = vmatprep.subr.bf16.mxu0 0
        %2692 = vmatpush2.bf16.xpose.msra.mxu0 0
        %2693 = vmatprep.subr.bf16.mxu0 0
        %2694 = vmatpush2.bf16.xpose.msra.mxu0 0
        %2695 = vmatprep.mubr.bf16.mxu0 0
        %2696 = vmatmul.mubr.bf16.gmra.mxu0 %v2652
        %v2697 = vpop.f32.mrf.mxu0
        %v2698 = vadd.f32 %v667, %v2697
        %v2699 = vpop.f32.mrf.mxu0
        %v2700 = vpop.f32.mrf.mxu0
        %v2701 = vadd.f32 %v667, %v2700
        %v2702 = vpop.f32.mrf.mxu0
        %2703 = vmatprep.mubr.bf16.mxu0 0
        %2704 = vmatmul.mubr.bf16.gmra.mxu0 %v2655
        %v2705 = vpop.f32.mrf.mxu0
        %v2706 = vadd.f32 %v667, %v2705
        %v2707 = vpop.f32.mrf.mxu0
        %v2708 = vpop.f32.mrf.mxu0
        %v2709 = vpop.f32.mrf.mxu0
        %2710 = vdwg.mxu0
        %2711 = vrot.lane.b32.xlu0 %v1194, 64
        %v2712 = vpop.permute.xlu0 %2711
        %2713 = vrot.lane.b32.xlu0 %v1195, 64
        %v2714 = vpop.permute.xlu0 %2713
        %2715 = vrot.lane.b32.xlu0 %v1202, 64
        %v2716 = vpop.permute.xlu0 %2715
        %2717 = vrot.lane.b32.xlu0 %v1203, 64
        %v2718 = vpop.permute.xlu0 %2717
        %v2720 = vsel %vm1212, %v2712, 0
        %v2723 = vsel %vm1212, %v2714, 0
        %v2726 = vsel %vm1212, %v2716, 0
        %v2729 = vsel %vm1212, %v2718, 0
        %2731 = vmatprep.subr.bf16.mxu0 0
        %2732 = vmatpush1.bf16.xpose.msra.mxu0 0
        %2733 = vmatprep.subr.bf16.mxu0 0
        %2734 = vmatpush1.bf16.xpose.msra.mxu0 0
        %2735 = vmatprep.subr.bf16.mxu0 0
        %2736 = vmatpush1.bf16.xpose.msra.mxu0 0
        %2737 = vmatprep.subr.bf16.mxu0 0
        %2738 = vmatpush1.bf16.xpose.msra.mxu0 0
        %2739 = vmatprep.subr.bf16.mxu0 0
        %2740 = vmatpush1.bf16.xpose.msra.mxu0 0
        %2741 = vmatprep.subr.bf16.mxu0 0
        %2742 = vmatpush1.bf16.xpose.msra.mxu0 0
        %2743 = vmatprep.subr.bf16.mxu0 0
        %2744 = vmatpush1.bf16.xpose.msra.mxu0 %v2729
        %2745 = vmatprep.subr.bf16.mxu0 0
        %2746 = vmatpush1.bf16.xpose.msra.mxu0 %v2726
        %2747 = vmatprep.subr.bf16.mxu0 0
        %2748 = vmatpush2.bf16.xpose.msra.mxu0 0
        %2749 = vmatprep.subr.bf16.mxu0 0
        %2750 = vmatpush2.bf16.xpose.msra.mxu0 0
        %2751 = vmatprep.subr.bf16.mxu0 0
        %2752 = vmatpush2.bf16.xpose.msra.mxu0 0
        %2753 = vmatprep.subr.bf16.mxu0 0
        %2754 = vmatpush2.bf16.xpose.msra.mxu0 0
        %2755 = vmatprep.subr.bf16.mxu0 0
        %2756 = vmatpush2.bf16.xpose.msra.mxu0 0
        %2757 = vmatprep.subr.bf16.mxu0 0
        %2758 = vmatpush2.bf16.xpose.msra.mxu0 0
        %2759 = vmatprep.subr.bf16.mxu0 0
        %2760 = vmatpush2.bf16.xpose.msra.mxu0 0
        %2761 = vmatprep.subr.bf16.mxu0 0
        %2762 = vmatpush2.bf16.xpose.msra.mxu0 0
        %2763 = vmatprep.mubr.bf16.mxu0 0
        %2764 = vmatmul.mubr.bf16.gmra.mxu0 %v2720
        %v2765 = vpop.f32.mrf.mxu0
        %v2766 = vadd.f32 %v667, %v2765
        %v2767 = vpop.f32.mrf.mxu0
        %v2768 = vpop.f32.mrf.mxu0
        %v2769 = vadd.f32 %v667, %v2768
        %v2770 = vpop.f32.mrf.mxu0
        %2771 = vmatprep.mubr.bf16.mxu0 0
        %2772 = vmatmul.mubr.bf16.gmra.mxu0 %v2723
        %v2773 = vpop.f32.mrf.mxu0
        %v2774 = vadd.f32 %v667, %v2773
        %v2775 = vpop.f32.mrf.mxu0
        %v2776 = vpop.f32.mrf.mxu0
        %v2777 = vpop.f32.mrf.mxu0
        %2778 = vdwg.mxu0
        %v2779 = vsel %vm1453, %v2562, -inf
        %2780 = vmax.xlane.f32.xlu0 %v2779
        %v2781 = vpop.xlane.xlu0 %2780
        %v2782 = vsel %vm1453, %v2565, -inf
        %2783 = vmax.xlane.f32.xlu0 %v2782
        %v2784 = vpop.xlane.xlu0 %2783
        %v2785 = vsel %vm1453, %v2570, -inf
        %2786 = vmax.xlane.f32.xlu0 %v2785
        %v2787 = vpop.xlane.xlu0 %2786
        %v2788 = vsel %vm1453, %v2630, -inf
        %2789 = vmax.xlane.f32.xlu0 %v2788
        %v2790 = vpop.xlane.xlu0 %2789
        %v2791 = vsel %vm1453, %v2633, -inf
        %2792 = vmax.xlane.f32.xlu0 %v2791
        %v2793 = vpop.xlane.xlu0 %2792
        %v2794 = vsel %vm1453, %v2638, -inf
        %2795 = vmax.xlane.f32.xlu0 %v2794
        %v2796 = vpop.xlane.xlu0 %2795
        %v2797 = vsel %vm1453, %v2698, -inf
        %2798 = vmax.xlane.f32.xlu0 %v2797
        %v2799 = vpop.xlane.xlu0 %2798
        %v2800 = vsel %vm1453, %v2701, -inf
        %2801 = vmax.xlane.f32.xlu0 %v2800
        %v2802 = vpop.xlane.xlu0 %2801
        %v2803 = vsel %vm1453, %v2706, -inf
        %2804 = vmax.xlane.f32.xlu0 %v2803
        %v2805 = vpop.xlane.xlu0 %2804
        %v2806 = vsel %vm1453, %v2766, -inf
        %2807 = vmax.xlane.f32.xlu0 %v2806
        %v2808 = vpop.xlane.xlu0 %2807
        %v2809 = vsel %vm1453, %v2769, -inf
        %2810 = vmax.xlane.f32.xlu0 %v2809
        %v2811 = vpop.xlane.xlu0 %2810
        %v2812 = vsel %vm1453, %v2774, -inf
        %2813 = vmax.xlane.f32.xlu0 %v2812
        %v2814 = vpop.xlane.xlu0 %2813
        %v2815 = vsub.f32 %v2562, %v2781
        %v2816 = vsub.f32 %v2565, %v2784
        %v2817 = vsub.f32 %v2570, %v2787
        %v2818 = vsub.f32 %v2630, %v2790
        %v2819 = vsub.f32 %v2633, %v2793
        %v2820 = vsub.f32 %v2638, %v2796
        %v2821 = vsub.f32 %v2698, %v2799
        %v2822 = vsub.f32 %v2701, %v2802
        %v2823 = vsub.f32 %v2706, %v2805
        %v2824 = vsub.f32 %v2766, %v2808
        %v2825 = vsub.f32 %v2769, %v2811
        %v2826 = vsub.f32 %v2774, %v2814
        %v2827 = vmul.f32 %v2815, 1.442695
        %v2828 = vpow.pop %v2827
        %v2829 = vmul.f32 %v2816, 1.442695
        %v2830 = vpow.pop %v2829
        %v2831 = vmul.f32 %v2817, 1.442695
        %v2832 = vpow.pop %v2831
        %v2833 = vmul.f32 %v2818, 1.442695
        %v2834 = vpow.pop %v2833
        %v2835 = vmul.f32 %v2819, 1.442695
        %v2836 = vpow.pop %v2835
        %v2837 = vmul.f32 %v2820, 1.442695
        %v2838 = vpow.pop %v2837
        %v2839 = vmul.f32 %v2821, 1.442695
        %v2840 = vpow.pop %v2839
        %v2841 = vmul.f32 %v2822, 1.442695
        %v2842 = vpow.pop %v2841
        %v2843 = vmul.f32 %v2823, 1.442695
        %v2844 = vpow.pop %v2843
        %v2845 = vmul.f32 %v2824, 1.442695
        %v2846 = vpow.pop %v2845
        %v2847 = vmul.f32 %v2825, 1.442695
        %v2848 = vpow.pop %v2847
        %v2849 = vmul.f32 %v2826, 1.442695
        %v2850 = vpow.pop %v2849
        %v2851 = vsel %vm1453, %v2828, 0.0
        %2852 = vadd.xlane.f32.xlu0 %v2851
        %v2853 = vpop.xlane.xlu0 %2852
        %v2854 = vsel %vm1453, %v2830, 0.0
        %2855 = vadd.xlane.f32.xlu0 %v2854
        %v2856 = vpop.xlane.xlu0 %2855
        %v2857 = vsel %vm1453, %v2832, 0.0
        %2858 = vadd.xlane.f32.xlu0 %v2857
        %v2859 = vpop.xlane.xlu0 %2858
        %v2860 = vsel %vm1453, %v2834, 0.0
        %2861 = vadd.xlane.f32.xlu0 %v2860
        %v2862 = vpop.xlane.xlu0 %2861
        %v2863 = vsel %vm1453, %v2836, 0.0
        %2864 = vadd.xlane.f32.xlu0 %v2863
        %v2865 = vpop.xlane.xlu0 %2864
        %v2866 = vsel %vm1453, %v2838, 0.0
        %2867 = vadd.xlane.f32.xlu0 %v2866
        %v2868 = vpop.xlane.xlu0 %2867
        %v2869 = vsel %vm1453, %v2840, 0.0
        %2870 = vadd.xlane.f32.xlu0 %v2869
        %v2871 = vpop.xlane.xlu0 %2870
        %v2872 = vsel %vm1453, %v2842, 0.0
        %2873 = vadd.xlane.f32.xlu0 %v2872
        %v2874 = vpop.xlane.xlu0 %2873
        %v2875 = vsel %vm1453, %v2844, 0.0
        %2876 = vadd.xlane.f32.xlu0 %v2875
        %v2877 = vpop.xlane.xlu0 %2876
        %v2878 = vsel %vm1453, %v2846, 0.0
        %2879 = vadd.xlane.f32.xlu0 %v2878
        %v2880 = vpop.xlane.xlu0 %2879
        %v2881 = vsel %vm1453, %v2848, 0.0
        %2882 = vadd.xlane.f32.xlu0 %v2881
        %v2883 = vpop.xlane.xlu0 %2882
        %v2884 = vsel %vm1453, %v2850, 0.0
        %2885 = vadd.xlane.f32.xlu0 %v2884
        %v2886 = vpop.xlane.xlu0 %2885
        %v2887 = vrcp.pop %v2853
        %v2888 = vrcp.pop %v2856
        %v2889 = vrcp.pop %v2859
        %v2890 = vrcp.pop %v2862
        %v2891 = vrcp.pop %v2865
        %v2892 = vrcp.pop %v2868
        %v2893 = vrcp.pop %v2871
        %v2894 = vrcp.pop %v2874
        %v2895 = vrcp.pop %v2877
        %v2896 = vrcp.pop %v2880
        %v2897 = vrcp.pop %v2883
        %v2898 = vrcp.pop %v2886
        %v2899 = vmul.f32 %v2828, %v2887
        %v2900 = vmul.f32 %v2830, %v2888
        %v2901 = vmul.f32 %v2832, %v2889
        %v2902 = vmul.f32 %v2834, %v2890
        %v2903 = vmul.f32 %v2836, %v2891
        %v2904 = vmul.f32 %v2838, %v2892
        %v2905 = vmul.f32 %v2840, %v2893
        %v2906 = vmul.f32 %v2842, %v2894
        %v2907 = vmul.f32 %v2844, %v2895
        %v2908 = vmul.f32 %v2846, %v2896
        %v2909 = vmul.f32 %v2848, %v2897
        %v2910 = vmul.f32 %v2850, %v2898
        %v2911 = vpack.c.bf16 %v2900, %v2899
        %v2912 = vpack.c.bf16 %v2901, %v2901
        %v2913 = vpack.c.bf16 %v2903, %v2902
        %v2914 = vpack.c.bf16 %v2904, %v2904
        %v2915 = vpack.c.bf16 %v2906, %v2905
        %v2916 = vpack.c.bf16 %v2907, %v2907
        %v2917 = vpack.c.bf16 %v2909, %v2908
        %v2918 = vpack.c.bf16 %v2910, %v2910
        %2919 = vrot.lane.b32.xlu0 %v1204, 64
        %v2920 = vpop.permute.xlu0 %2919
        %2921 = vrot.lane.b32.xlu0 %v1205, 64
        %v2922 = vpop.permute.xlu0 %2921
        %v2925 = vsel %vm1453, %v2911, 0
        %v2928 = vsel %vm1453, %v2912, 0
        %v2931 = vsel %vm1600, %v2922, 0
        %2933 = vmatprep.subr.bf16.mxu0 0
        %2934 = vmatpush1.bf16.msra.mxu0 0
        %2935 = vmatprep.subr.bf16.mxu0 0
        %2936 = vmatpush1.bf16.msra.mxu0 0
        %2937 = vmatprep.subr.bf16.mxu0 0
        %2938 = vmatpush1.bf16.msra.mxu0 0
        %2939 = vmatprep.subr.bf16.mxu0 0
        %2940 = vmatpush1.bf16.msra.mxu0 0
        %2941 = vmatprep.subr.bf16.mxu0 0
        %2942 = vmatpush1.bf16.msra.mxu0 0
        %2943 = vmatprep.subr.bf16.mxu0 0
        %2944 = vmatpush1.bf16.msra.mxu0 0
        %2945 = vmatprep.subr.bf16.mxu0 0
        %2946 = vmatpush1.bf16.msra.mxu0 %v2931
        %2947 = vmatprep.subr.bf16.mxu0 0
        %2948 = vmatpush1.bf16.msra.mxu0 %v2920
        %2949 = vmatprep.subr.bf16.mxu0 0
        %2950 = vmatpush2.bf16.msra.mxu0 0
        %2951 = vmatprep.subr.bf16.mxu0 0
        %2952 = vmatpush2.bf16.msra.mxu0 0
        %2953 = vmatprep.subr.bf16.mxu0 0
        %2954 = vmatpush2.bf16.msra.mxu0 0
        %2955 = vmatprep.subr.bf16.mxu0 0
        %2956 = vmatpush2.bf16.msra.mxu0 0
        %2957 = vmatprep.subr.bf16.mxu0 0
        %2958 = vmatpush2.bf16.msra.mxu0 0
        %2959 = vmatprep.subr.bf16.mxu0 0
        %2960 = vmatpush2.bf16.msra.mxu0 0
        %2961 = vmatprep.subr.bf16.mxu0 0
        %2962 = vmatpush2.bf16.msra.mxu0 0
        %2963 = vmatprep.subr.bf16.mxu0 0
        %2964 = vmatpush2.bf16.msra.mxu0 0
        %2965 = vmatprep.mubr.bf16.mxu0 0
        %2966 = vmatmul.mubr.bf16.gmra.mxu0 %v2925
        %v2967 = vpop.f32.mrf.mxu0
        %v2968 = vadd.f32 0.0, %v2967
        %v2969 = vpop.f32.mrf.mxu0
        %v2970 = vpop.f32.mrf.mxu0
        %v2971 = vadd.f32 0.0, %v2970
        %v2972 = vpop.f32.mrf.mxu0
        %2973 = vmatprep.mubr.bf16.mxu0 0
        %2974 = vmatmul.mubr.bf16.gmra.mxu0 %v2928
        %v2975 = vpop.f32.mrf.mxu0
        %v2976 = vadd.f32 0.0, %v2975
        %v2977 = vpop.f32.mrf.mxu0
        %v2978 = vpop.f32.mrf.mxu0
        %v2979 = vpop.f32.mrf.mxu0
        %2980 = vdwg.mxu0
        %2981 = vrot.lane.b32.xlu0 %v1206, 64
        %v2982 = vpop.permute.xlu0 %2981
        %2983 = vrot.lane.b32.xlu0 %v1207, 64
        %v2984 = vpop.permute.xlu0 %2983
        %v2987 = vsel %vm1453, %v2913, 0
        %v2990 = vsel %vm1453, %v2914, 0
        %v2993 = vsel %vm1600, %v2984, 0
        %2995 = vmatprep.subr.bf16.mxu0 0
        %2996 = vmatpush1.bf16.msra.mxu0 0
        %2997 = vmatprep.subr.bf16.mxu0 0
        %2998 = vmatpush1.bf16.msra.mxu0 0
        %2999 = vmatprep.subr.bf16.mxu0 0
        %3000 = vmatpush1.bf16.msra.mxu0 0
        %3001 = vmatprep.subr.bf16.mxu0 0
        %3002 = vmatpush1.bf16.msra.mxu0 0
        %3003 = vmatprep.subr.bf16.mxu0 0
        %3004 = vmatpush1.bf16.msra.mxu0 0
        %3005 = vmatprep.subr.bf16.mxu0 0
        %3006 = vmatpush1.bf16.msra.mxu0 0
        %3007 = vmatprep.subr.bf16.mxu0 0
        %3008 = vmatpush1.bf16.msra.mxu0 %v2993
        %3009 = vmatprep.subr.bf16.mxu0 0
        %3010 = vmatpush1.bf16.msra.mxu0 %v2982
        %3011 = vmatprep.subr.bf16.mxu0 0
        %3012 = vmatpush2.bf16.msra.mxu0 0
        %3013 = vmatprep.subr.bf16.mxu0 0
        %3014 = vmatpush2.bf16.msra.mxu0 0
        %3015 = vmatprep.subr.bf16.mxu0 0
        %3016 = vmatpush2.bf16.msra.mxu0 0
        %3017 = vmatprep.subr.bf16.mxu0 0
        %3018 = vmatpush2.bf16.msra.mxu0 0
        %3019 = vmatprep.subr.bf16.mxu0 0
        %3020 = vmatpush2.bf16.msra.mxu0 0
        %3021 = vmatprep.subr.bf16.mxu0 0
        %3022 = vmatpush2.bf16.msra.mxu0 0
        %3023 = vmatprep.subr.bf16.mxu0 0
        %3024 = vmatpush2.bf16.msra.mxu0 0
        %3025 = vmatprep.subr.bf16.mxu0 0
        %3026 = vmatpush2.bf16.msra.mxu0 0
        %3027 = vmatprep.mubr.bf16.mxu0 0
        %3028 = vmatmul.mubr.bf16.gmra.mxu0 %v2987
        %v3029 = vpop.f32.mrf.mxu0
        %v3030 = vadd.f32 0.0, %v3029
        %v3031 = vpop.f32.mrf.mxu0
        %v3032 = vpop.f32.mrf.mxu0
        %v3033 = vadd.f32 0.0, %v3032
        %v3034 = vpop.f32.mrf.mxu0
        %3035 = vmatprep.mubr.bf16.mxu0 0
        %3036 = vmatmul.mubr.bf16.gmra.mxu0 %v2990
        %v3037 = vpop.f32.mrf.mxu0
        %v3038 = vadd.f32 0.0, %v3037
        %v3039 = vpop.f32.mrf.mxu0
        %v3040 = vpop.f32.mrf.mxu0
        %v3041 = vpop.f32.mrf.mxu0
        %3042 = vdwg.mxu0
        %3043 = vrot.lane.b32.xlu0 %v1208, 64
        %v3044 = vpop.permute.xlu0 %3043
        %3045 = vrot.lane.b32.xlu0 %v1209, 64
        %v3046 = vpop.permute.xlu0 %3045
        %v3049 = vsel %vm1453, %v2915, 0
        %v3052 = vsel %vm1453, %v2916, 0
        %v3055 = vsel %vm1600, %v3046, 0
        %3057 = vmatprep.subr.bf16.mxu0 0
        %3058 = vmatpush1.bf16.msra.mxu0 0
        %3059 = vmatprep.subr.bf16.mxu0 0
        %3060 = vmatpush1.bf16.msra.mxu0 0
        %3061 = vmatprep.subr.bf16.mxu0 0
        %3062 = vmatpush1.bf16.msra.mxu0 0
        %3063 = vmatprep.subr.bf16.mxu0 0
        %3064 = vmatpush1.bf16.msra.mxu0 0
        %3065 = vmatprep.subr.bf16.mxu0 0
        %3066 = vmatpush1.bf16.msra.mxu0 0
        %3067 = vmatprep.subr.bf16.mxu0 0
        %3068 = vmatpush1.bf16.msra.mxu0 0
        %3069 = vmatprep.subr.bf16.mxu0 0
        %3070 = vmatpush1.bf16.msra.mxu0 %v3055
        %3071 = vmatprep.subr.bf16.mxu0 0
        %3072 = vmatpush1.bf16.msra.mxu0 %v3044
        %3073 = vmatprep.subr.bf16.mxu0 0
        %3074 = vmatpush2.bf16.msra.mxu0 0
        %3075 = vmatprep.subr.bf16.mxu0 0
        %3076 = vmatpush2.bf16.msra.mxu0 0
        %3077 = vmatprep.subr.bf16.mxu0 0
        %3078 = vmatpush2.bf16.msra.mxu0 0
        %3079 = vmatprep.subr.bf16.mxu0 0
        %3080 = vmatpush2.bf16.msra.mxu0 0
        %3081 = vmatprep.subr.bf16.mxu0 0
        %3082 = vmatpush2.bf16.msra.mxu0 0
        %3083 = vmatprep.subr.bf16.mxu0 0
        %3084 = vmatpush2.bf16.msra.mxu0 0
        %3085 = vmatprep.subr.bf16.mxu0 0
        %3086 = vmatpush2.bf16.msra.mxu0 0
        %3087 = vmatprep.subr.bf16.mxu0 0
        %3088 = vmatpush2.bf16.msra.mxu0 0
        %3089 = vmatprep.mubr.bf16.mxu0 0
        %3090 = vmatmul.mubr.bf16.gmra.mxu0 %v3049
        %v3091 = vpop.f32.mrf.mxu0
        %v3092 = vadd.f32 0.0, %v3091
        %v3093 = vpop.f32.mrf.mxu0
        %v3094 = vpop.f32.mrf.mxu0
        %v3095 = vadd.f32 0.0, %v3094
        %v3096 = vpop.f32.mrf.mxu0
        %3097 = vmatprep.mubr.bf16.mxu0 0
        %3098 = vmatmul.mubr.bf16.gmra.mxu0 %v3052
        %v3099 = vpop.f32.mrf.mxu0
        %v3100 = vadd.f32 0.0, %v3099
        %v3101 = vpop.f32.mrf.mxu0
        %v3102 = vpop.f32.mrf.mxu0
        %v3103 = vpop.f32.mrf.mxu0
        %3104 = vdwg.mxu0
        %3105 = vrot.lane.b32.xlu0 %v1210, 64
        %v3106 = vpop.permute.xlu0 %3105
        %3107 = vrot.lane.b32.xlu0 %v1211, 64
        %v3108 = vpop.permute.xlu0 %3107
        %v3111 = vsel %vm1453, %v2917, 0
        %v3114 = vsel %vm1453, %v2918, 0
        %v3117 = vsel %vm1600, %v3108, 0
        %3119 = vmatprep.subr.bf16.mxu0 0
        %3120 = vmatpush1.bf16.msra.mxu0 0
        %3121 = vmatprep.subr.bf16.mxu0 0
        %3122 = vmatpush1.bf16.msra.mxu0 0
        %3123 = vmatprep.subr.bf16.mxu0 0
        %3124 = vmatpush1.bf16.msra.mxu0 0
        %3125 = vmatprep.subr.bf16.mxu0 0
        %3126 = vmatpush1.bf16.msra.mxu0 0
        %3127 = vmatprep.subr.bf16.mxu0 0
        %3128 = vmatpush1.bf16.msra.mxu0 0
        %3129 = vmatprep.subr.bf16.mxu0 0
        %3130 = vmatpush1.bf16.msra.mxu0 0
        %3131 = vmatprep.subr.bf16.mxu0 0
        %3132 = vmatpush1.bf16.msra.mxu0 %v3117
        %3133 = vmatprep.subr.bf16.mxu0 0
        %3134 = vmatpush1.bf16.msra.mxu0 %v3106
        %3135 = vmatprep.subr.bf16.mxu0 0
        %3136 = vmatpush2.bf16.msra.mxu0 0
        %3137 = vmatprep.subr.bf16.mxu0 0
        %3138 = vmatpush2.bf16.msra.mxu0 0
        %3139 = vmatprep.subr.bf16.mxu0 0
        %3140 = vmatpush2.bf16.msra.mxu0 0
        %3141 = vmatprep.subr.bf16.mxu0 0
        %3142 = vmatpush2.bf16.msra.mxu0 0
        %3143 = vmatprep.subr.bf16.mxu0 0
        %3144 = vmatpush2.bf16.msra.mxu0 0
        %3145 = vmatprep.subr.bf16.mxu0 0
        %3146 = vmatpush2.bf16.msra.mxu0 0
        %3147 = vmatprep.subr.bf16.mxu0 0
        %3148 = vmatpush2.bf16.msra.mxu0 0
        %3149 = vmatprep.subr.bf16.mxu0 0
        %3150 = vmatpush2.bf16.msra.mxu0 0
        %3151 = vmatprep.mubr.bf16.mxu0 0
        %3152 = vmatmul.mubr.bf16.gmra.mxu0 %v3111
        %v3153 = vpop.f32.mrf.mxu0
        %v3154 = vadd.f32 0.0, %v3153
        %v3155 = vpop.f32.mrf.mxu0
        %v3156 = vpop.f32.mrf.mxu0
        %v3157 = vadd.f32 0.0, %v3156
        %v3158 = vpop.f32.mrf.mxu0
        %3159 = vmatprep.mubr.bf16.mxu0 0
        %3160 = vmatmul.mubr.bf16.gmra.mxu0 %v3114
        %v3161 = vpop.f32.mrf.mxu0
        %v3162 = vadd.f32 0.0, %v3161
        %v3163 = vpop.f32.mrf.mxu0
        %v3164 = vpop.f32.mrf.mxu0
        %v3165 = vpop.f32.mrf.mxu0
        %3166 = vdwg.mxu0
        %3167 = vrot.lane.b32.xlu0 %v1188, 32
        %v3168 = vpop.permute.xlu0 %3167
        %3169 = vrot.lane.b32.xlu0 %v1189, 32
        %v3170 = vpop.permute.xlu0 %3169
        %3171 = vrot.lane.b32.xlu0 %v1196, 32
        %v3172 = vpop.permute.xlu0 %3171
        %3173 = vrot.lane.b32.xlu0 %v1197, 32
        %v3174 = vpop.permute.xlu0 %3173
        %v3176 = vsel %vm1212, %v3168, 0
        %v3179 = vsel %vm1212, %v3170, 0
        %v3182 = vsel %vm1212, %v3172, 0
        %v3185 = vsel %vm1212, %v3174, 0
        %3187 = vmatprep.subr.bf16.mxu0 0
        %3188 = vmatpush1.bf16.xpose.msra.mxu0 0
        %3189 = vmatprep.subr.bf16.mxu0 0
        %3190 = vmatpush1.bf16.xpose.msra.mxu0 0
        %3191 = vmatprep.subr.bf16.mxu0 0
        %3192 = vmatpush1.bf16.xpose.msra.mxu0 0
        %3193 = vmatprep.subr.bf16.mxu0 0
        %3194 = vmatpush1.bf16.xpose.msra.mxu0 0
        %3195 = vmatprep.subr.bf16.mxu0 0
        %3196 = vmatpush1.bf16.xpose.msra.mxu0 0
        %3197 = vmatprep.subr.bf16.mxu0 0
        %3198 = vmatpush1.bf16.xpose.msra.mxu0 0
        %3199 = vmatprep.subr.bf16.mxu0 0
        %3200 = vmatpush1.bf16.xpose.msra.mxu0 %v3185
        %3201 = vmatprep.subr.bf16.mxu0 0
        %3202 = vmatpush1.bf16.xpose.msra.mxu0 %v3182
        %3203 = vmatprep.subr.bf16.mxu0 0
        %3204 = vmatpush2.bf16.xpose.msra.mxu0 0
        %3205 = vmatprep.subr.bf16.mxu0 0
        %3206 = vmatpush2.bf16.xpose.msra.mxu0 0
        %3207 = vmatprep.subr.bf16.mxu0 0
        %3208 = vmatpush2.bf16.xpose.msra.mxu0 0
        %3209 = vmatprep.subr.bf16.mxu0 0
        %3210 = vmatpush2.bf16.xpose.msra.mxu0 0
        %3211 = vmatprep.subr.bf16.mxu0 0
        %3212 = vmatpush2.bf16.xpose.msra.mxu0 0
        %3213 = vmatprep.subr.bf16.mxu0 0
        %3214 = vmatpush2.bf16.xpose.msra.mxu0 0
        %3215 = vmatprep.subr.bf16.mxu0 0
        %3216 = vmatpush2.bf16.xpose.msra.mxu0 0
        %3217 = vmatprep.subr.bf16.mxu0 0
        %3218 = vmatpush2.bf16.xpose.msra.mxu0 0
        %3219 = vmatprep.mubr.bf16.mxu0 0
        %3220 = vmatmul.mubr.bf16.gmra.mxu0 %v3176
        %v3221 = vpop.f32.mrf.mxu0
        %v3222 = vadd.f32 %v667, %v3221
        %v3223 = vpop.f32.mrf.mxu0
        %v3224 = vpop.f32.mrf.mxu0
        %v3225 = vadd.f32 %v667, %v3224
        %v3226 = vpop.f32.mrf.mxu0
        %3227 = vmatprep.mubr.bf16.mxu0 0
        %3228 = vmatmul.mubr.bf16.gmra.mxu0 %v3179
        %v3229 = vpop.f32.mrf.mxu0
        %v3230 = vadd.f32 %v667, %v3229
        %v3231 = vpop.f32.mrf.mxu0
        %v3232 = vpop.f32.mrf.mxu0
        %v3233 = vpop.f32.mrf.mxu0
        %3234 = vdwg.mxu0
        %3235 = vrot.lane.b32.xlu0 %v1190, 32
        %v3236 = vpop.permute.xlu0 %3235
        %3237 = vrot.lane.b32.xlu0 %v1191, 32
        %v3238 = vpop.permute.xlu0 %3237
        %3239 = vrot.lane.b32.xlu0 %v1198, 32
        %v3240 = vpop.permute.xlu0 %3239
        %3241 = vrot.lane.b32.xlu0 %v1199, 32
        %v3242 = vpop.permute.xlu0 %3241
        %v3244 = vsel %vm1212, %v3236, 0
        %v3247 = vsel %vm1212, %v3238, 0
        %v3250 = vsel %vm1212, %v3240, 0
        %v3253 = vsel %vm1212, %v3242, 0
        %3255 = vmatprep.subr.bf16.mxu0 0
        %3256 = vmatpush1.bf16.xpose.msra.mxu0 0
        %3257 = vmatprep.subr.bf16.mxu0 0
        %3258 = vmatpush1.bf16.xpose.msra.mxu0 0
        %3259 = vmatprep.subr.bf16.mxu0 0
        %3260 = vmatpush1.bf16.xpose.msra.mxu0 0
        %3261 = vmatprep.subr.bf16.mxu0 0
        %3262 = vmatpush1.bf16.xpose.msra.mxu0 0
        %3263 = vmatprep.subr.bf16.mxu0 0
        %3264 = vmatpush1.bf16.xpose.msra.mxu0 0
        %3265 = vmatprep.subr.bf16.mxu0 0
        %3266 = vmatpush1.bf16.xpose.msra.mxu0 0
        %3267 = vmatprep.subr.bf16.mxu0 0
        %3268 = vmatpush1.bf16.xpose.msra.mxu0 %v3253
        %3269 = vmatprep.subr.bf16.mxu0 0
        %3270 = vmatpush1.bf16.xpose.msra.mxu0 %v3250
        %3271 = vmatprep.subr.bf16.mxu0 0
        %3272 = vmatpush2.bf16.xpose.msra.mxu0 0
        %3273 = vmatprep.subr.bf16.mxu0 0
        %3274 = vmatpush2.bf16.xpose.msra.mxu0 0
        %3275 = vmatprep.subr.bf16.mxu0 0
        %3276 = vmatpush2.bf16.xpose.msra.mxu0 0
        %3277 = vmatprep.subr.bf16.mxu0 0
        %3278 = vmatpush2.bf16.xpose.msra.mxu0 0
        %3279 = vmatprep.subr.bf16.mxu0 0
        %3280 = vmatpush2.bf16.xpose.msra.mxu0 0
        %3281 = vmatprep.subr.bf16.mxu0 0
        %3282 = vmatpush2.bf16.xpose.msra.mxu0 0
        %3283 = vmatprep.subr.bf16.mxu0 0
        %3284 = vmatpush2.bf16.xpose.msra.mxu0 0
        %3285 = vmatprep.subr.bf16.mxu0 0
        %3286 = vmatpush2.bf16.xpose.msra.mxu0 0
        %3287 = vmatprep.mubr.bf16.mxu0 0
        %3288 = vmatmul.mubr.bf16.gmra.mxu0 %v3244
        %v3289 = vpop.f32.mrf.mxu0
        %v3290 = vadd.f32 %v667, %v3289
        %v3291 = vpop.f32.mrf.mxu0
        %v3292 = vpop.f32.mrf.mxu0
        %v3293 = vadd.f32 %v667, %v3292
        %v3294 = vpop.f32.mrf.mxu0
        %3295 = vmatprep.mubr.bf16.mxu0 0
        %3296 = vmatmul.mubr.bf16.gmra.mxu0 %v3247
        %v3297 = vpop.f32.mrf.mxu0
        %v3298 = vadd.f32 %v667, %v3297
        %v3299 = vpop.f32.mrf.mxu0
        %v3300 = vpop.f32.mrf.mxu0
        %v3301 = vpop.f32.mrf.mxu0
        %3302 = vdwg.mxu0
        %3303 = vrot.lane.b32.xlu0 %v1192, 32
        %v3304 = vpop.permute.xlu0 %3303
        %3305 = vrot.lane.b32.xlu0 %v1193, 32
        %v3306 = vpop.permute.xlu0 %3305
        %3307 = vrot.lane.b32.xlu0 %v1200, 32
        %v3308 = vpop.permute.xlu0 %3307
        %3309 = vrot.lane.b32.xlu0 %v1201, 32
        %v3310 = vpop.permute.xlu0 %3309
        %v3312 = vsel %vm1212, %v3304, 0
        %v3315 = vsel %vm1212, %v3306, 0
        %v3318 = vsel %vm1212, %v3308, 0
        %v3321 = vsel %vm1212, %v3310, 0
        %3323 = vmatprep.subr.bf16.mxu0 0
        %3324 = vmatpush1.bf16.xpose.msra.mxu0 0
        %3325 = vmatprep.subr.bf16.mxu0 0
        %3326 = vmatpush1.bf16.xpose.msra.mxu0 0
        %3327 = vmatprep.subr.bf16.mxu0 0
        %3328 = vmatpush1.bf16.xpose.msra.mxu0 0
        %3329 = vmatprep.subr.bf16.mxu0 0
        %3330 = vmatpush1.bf16.xpose.msra.mxu0 0
        %3331 = vmatprep.subr.bf16.mxu0 0
        %3332 = vmatpush1.bf16.xpose.msra.mxu0 0
        %3333 = vmatprep.subr.bf16.mxu0 0
        %3334 = vmatpush1.bf16.xpose.msra.mxu0 0
        %3335 = vmatprep.subr.bf16.mxu0 0
        %3336 = vmatpush1.bf16.xpose.msra.mxu0 %v3321
        %3337 = vmatprep.subr.bf16.mxu0 0
        %3338 = vmatpush1.bf16.xpose.msra.mxu0 %v3318
        %3339 = vmatprep.subr.bf16.mxu0 0
        %3340 = vmatpush2.bf16.xpose.msra.mxu0 0
        %3341 = vmatprep.subr.bf16.mxu0 0
        %3342 = vmatpush2.bf16.xpose.msra.mxu0 0
        %3343 = vmatprep.subr.bf16.mxu0 0
        %3344 = vmatpush2.bf16.xpose.msra.mxu0 0
        %3345 = vmatprep.subr.bf16.mxu0 0
        %3346 = vmatpush2.bf16.xpose.msra.mxu0 0
        %3347 = vmatprep.subr.bf16.mxu0 0
        %3348 = vmatpush2.bf16.xpose.msra.mxu0 0
        %3349 = vmatprep.subr.bf16.mxu0 0
        %3350 = vmatpush2.bf16.xpose.msra.mxu0 0
        %3351 = vmatprep.subr.bf16.mxu0 0
        %3352 = vmatpush2.bf16.xpose.msra.mxu0 0
        %3353 = vmatprep.subr.bf16.mxu0 0
        %3354 = vmatpush2.bf16.xpose.msra.mxu0 0
        %3355 = vmatprep.mubr.bf16.mxu0 0
        %3356 = vmatmul.mubr.bf16.gmra.mxu0 %v3312
        %v3357 = vpop.f32.mrf.mxu0
        %v3358 = vadd.f32 %v667, %v3357
        %v3359 = vpop.f32.mrf.mxu0
        %v3360 = vpop.f32.mrf.mxu0
        %v3361 = vadd.f32 %v667, %v3360
        %v3362 = vpop.f32.mrf.mxu0
        %3363 = vmatprep.mubr.bf16.mxu0 0
        %3364 = vmatmul.mubr.bf16.gmra.mxu0 %v3315
        %v3365 = vpop.f32.mrf.mxu0
        %v3366 = vadd.f32 %v667, %v3365
        %v3367 = vpop.f32.mrf.mxu0
        %v3368 = vpop.f32.mrf.mxu0
        %v3369 = vpop.f32.mrf.mxu0
        %3370 = vdwg.mxu0
        %3371 = vrot.lane.b32.xlu0 %v1194, 32
        %v3372 = vpop.permute.xlu0 %3371
        %3373 = vrot.lane.b32.xlu0 %v1195, 32
        %v3374 = vpop.permute.xlu0 %3373
        %3375 = vrot.lane.b32.xlu0 %v1202, 32
        %v3376 = vpop.permute.xlu0 %3375
        %3377 = vrot.lane.b32.xlu0 %v1203, 32
        %v3378 = vpop.permute.xlu0 %3377
        %v3380 = vsel %vm1212, %v3372, 0
        %v3383 = vsel %vm1212, %v3374, 0
        %v3386 = vsel %vm1212, %v3376, 0
        %v3389 = vsel %vm1212, %v3378, 0
        %3391 = vmatprep.subr.bf16.mxu0 0
        %3392 = vmatpush1.bf16.xpose.msra.mxu0 0
        %3393 = vmatprep.subr.bf16.mxu0 0
        %3394 = vmatpush1.bf16.xpose.msra.mxu0 0
        %3395 = vmatprep.subr.bf16.mxu0 0
        %3396 = vmatpush1.bf16.xpose.msra.mxu0 0
        %3397 = vmatprep.subr.bf16.mxu0 0
        %3398 = vmatpush1.bf16.xpose.msra.mxu0 0
        %3399 = vmatprep.subr.bf16.mxu0 0
        %3400 = vmatpush1.bf16.xpose.msra.mxu0 0
        %3401 = vmatprep.subr.bf16.mxu0 0
        %3402 = vmatpush1.bf16.xpose.msra.mxu0 0
        %3403 = vmatprep.subr.bf16.mxu0 0
        %3404 = vmatpush1.bf16.xpose.msra.mxu0 %v3389
        %3405 = vmatprep.subr.bf16.mxu0 0
        %3406 = vmatpush1.bf16.xpose.msra.mxu0 %v3386
        %3407 = vmatprep.subr.bf16.mxu0 0
        %3408 = vmatpush2.bf16.xpose.msra.mxu0 0
        %3409 = vmatprep.subr.bf16.mxu0 0
        %3410 = vmatpush2.bf16.xpose.msra.mxu0 0
        %3411 = vmatprep.subr.bf16.mxu0 0
        %3412 = vmatpush2.bf16.xpose.msra.mxu0 0
        %3413 = vmatprep.subr.bf16.mxu0 0
        %3414 = vmatpush2.bf16.xpose.msra.mxu0 0
        %3415 = vmatprep.subr.bf16.mxu0 0
        %3416 = vmatpush2.bf16.xpose.msra.mxu0 0
        %3417 = vmatprep.subr.bf16.mxu0 0
        %3418 = vmatpush2.bf16.xpose.msra.mxu0 0
        %3419 = vmatprep.subr.bf16.mxu0 0
        %3420 = vmatpush2.bf16.xpose.msra.mxu0 0
        %3421 = vmatprep.subr.bf16.mxu0 0
        %3422 = vmatpush2.bf16.xpose.msra.mxu0 0
        %3423 = vmatprep.mubr.bf16.mxu0 0
        %3424 = vmatmul.mubr.bf16.gmra.mxu0 %v3380
        %v3425 = vpop.f32.mrf.mxu0
        %v3426 = vadd.f32 %v667, %v3425
        %v3427 = vpop.f32.mrf.mxu0
        %v3428 = vpop.f32.mrf.mxu0
        %v3429 = vadd.f32 %v667, %v3428
        %v3430 = vpop.f32.mrf.mxu0
        %3431 = vmatprep.mubr.bf16.mxu0 0
        %3432 = vmatmul.mubr.bf16.gmra.mxu0 %v3383
        %v3433 = vpop.f32.mrf.mxu0
        %v3434 = vadd.f32 %v667, %v3433
        %v3435 = vpop.f32.mrf.mxu0
        %v3436 = vpop.f32.mrf.mxu0
        %v3437 = vpop.f32.mrf.mxu0
        %3438 = vdwg.mxu0
        %v3439 = vsel %vm1453, %v3222, -inf
        %3440 = vmax.xlane.f32.xlu0 %v3439
        %v3441 = vpop.xlane.xlu0 %3440
        %v3442 = vsel %vm1453, %v3225, -inf
        %3443 = vmax.xlane.f32.xlu0 %v3442
        %v3444 = vpop.xlane.xlu0 %3443
        %v3445 = vsel %vm1453, %v3230, -inf
        %3446 = vmax.xlane.f32.xlu0 %v3445
        %v3447 = vpop.xlane.xlu0 %3446
        %v3448 = vsel %vm1453, %v3290, -inf
        %3449 = vmax.xlane.f32.xlu0 %v3448
        %v3450 = vpop.xlane.xlu0 %3449
        %v3451 = vsel %vm1453, %v3293, -inf
        %3452 = vmax.xlane.f32.xlu0 %v3451
        %v3453 = vpop.xlane.xlu0 %3452
        %v3454 = vsel %vm1453, %v3298, -inf
        %3455 = vmax.xlane.f32.xlu0 %v3454
        %v3456 = vpop.xlane.xlu0 %3455
        %v3457 = vsel %vm1453, %v3358, -inf
        %3458 = vmax.xlane.f32.xlu0 %v3457
        %v3459 = vpop.xlane.xlu0 %3458
        %v3460 = vsel %vm1453, %v3361, -inf
        %3461 = vmax.xlane.f32.xlu0 %v3460
        %v3462 = vpop.xlane.xlu0 %3461
        %v3463 = vsel %vm1453, %v3366, -inf
        %3464 = vmax.xlane.f32.xlu0 %v3463
        %v3465 = vpop.xlane.xlu0 %3464
        %v3466 = vsel %vm1453, %v3426, -inf
        %3467 = vmax.xlane.f32.xlu0 %v3466
        %v3468 = vpop.xlane.xlu0 %3467
        %v3469 = vsel %vm1453, %v3429, -inf
        %3470 = vmax.xlane.f32.xlu0 %v3469
        %v3471 = vpop.xlane.xlu0 %3470
        %v3472 = vsel %vm1453, %v3434, -inf
        %3473 = vmax.xlane.f32.xlu0 %v3472
        %v3474 = vpop.xlane.xlu0 %3473
        %v3475 = vsub.f32 %v3222, %v3441
        %v3476 = vsub.f32 %v3225, %v3444
        %v3477 = vsub.f32 %v3230, %v3447
        %v3478 = vsub.f32 %v3290, %v3450
        %v3479 = vsub.f32 %v3293, %v3453
        %v3480 = vsub.f32 %v3298, %v3456
        %v3481 = vsub.f32 %v3358, %v3459
        %v3482 = vsub.f32 %v3361, %v3462
        %v3483 = vsub.f32 %v3366, %v3465
        %v3484 = vsub.f32 %v3426, %v3468
        %v3485 = vsub.f32 %v3429, %v3471
        %v3486 = vsub.f32 %v3434, %v3474
        %v3487 = vmul.f32 %v3475, 1.442695
        %v3488 = vpow.pop %v3487
        %v3489 = vmul.f32 %v3476, 1.442695
        %v3490 = vpow.pop %v3489
        %v3491 = vmul.f32 %v3477, 1.442695
        %v3492 = vpow.pop %v3491
        %v3493 = vmul.f32 %v3478, 1.442695
        %v3494 = vpow.pop %v3493
        %v3495 = vmul.f32 %v3479, 1.442695
        %v3496 = vpow.pop %v3495
        %v3497 = vmul.f32 %v3480, 1.442695
        %v3498 = vpow.pop %v3497
        %v3499 = vmul.f32 %v3481, 1.442695
        %v3500 = vpow.pop %v3499
        %v3501 = vmul.f32 %v3482, 1.442695
        %v3502 = vpow.pop %v3501
        %v3503 = vmul.f32 %v3483, 1.442695
        %v3504 = vpow.pop %v3503
        %v3505 = vmul.f32 %v3484, 1.442695
        %v3506 = vpow.pop %v3505
        %v3507 = vmul.f32 %v3485, 1.442695
        %v3508 = vpow.pop %v3507
        %v3509 = vmul.f32 %v3486, 1.442695
        %v3510 = vpow.pop %v3509
        %v3511 = vsel %vm1453, %v3488, 0.0
        %3512 = vadd.xlane.f32.xlu0 %v3511
        %v3513 = vpop.xlane.xlu0 %3512
        %v3514 = vsel %vm1453, %v3490, 0.0
        %3515 = vadd.xlane.f32.xlu0 %v3514
        %v3516 = vpop.xlane.xlu0 %3515
        %v3517 = vsel %vm1453, %v3492, 0.0
        %3518 = vadd.xlane.f32.xlu0 %v3517
        %v3519 = vpop.xlane.xlu0 %3518
        %v3520 = vsel %vm1453, %v3494, 0.0
        %3521 = vadd.xlane.f32.xlu0 %v3520
        %v3522 = vpop.xlane.xlu0 %3521
        %v3523 = vsel %vm1453, %v3496, 0.0
        %3524 = vadd.xlane.f32.xlu0 %v3523
        %v3525 = vpop.xlane.xlu0 %3524
        %v3526 = vsel %vm1453, %v3498, 0.0
        %3527 = vadd.xlane.f32.xlu0 %v3526
        %v3528 = vpop.xlane.xlu0 %3527
        %v3529 = vsel %vm1453, %v3500, 0.0
        %3530 = vadd.xlane.f32.xlu0 %v3529
        %v3531 = vpop.xlane.xlu0 %3530
        %v3532 = vsel %vm1453, %v3502, 0.0
        %3533 = vadd.xlane.f32.xlu0 %v3532
        %v3534 = vpop.xlane.xlu0 %3533
        %v3535 = vsel %vm1453, %v3504, 0.0
        %3536 = vadd.xlane.f32.xlu0 %v3535
        %v3537 = vpop.xlane.xlu0 %3536
        %v3538 = vsel %vm1453, %v3506, 0.0
        %3539 = vadd.xlane.f32.xlu0 %v3538
        %v3540 = vpop.xlane.xlu0 %3539
        %v3541 = vsel %vm1453, %v3508, 0.0
        %3542 = vadd.xlane.f32.xlu0 %v3541
        %v3543 = vpop.xlane.xlu0 %3542
        %v3544 = vsel %vm1453, %v3510, 0.0
        %3545 = vadd.xlane.f32.xlu0 %v3544
        %v3546 = vpop.xlane.xlu0 %3545
        %v3547 = vrcp.pop %v3513
        %v3548 = vrcp.pop %v3516
        %v3549 = vrcp.pop %v3519
        %v3550 = vrcp.pop %v3522
        %v3551 = vrcp.pop %v3525
        %v3552 = vrcp.pop %v3528
        %v3553 = vrcp.pop %v3531
        %v3554 = vrcp.pop %v3534
        %v3555 = vrcp.pop %v3537
        %v3556 = vrcp.pop %v3540
        %v3557 = vrcp.pop %v3543
        %v3558 = vrcp.pop %v3546
        %v3559 = vmul.f32 %v3488, %v3547
        %v3560 = vmul.f32 %v3490, %v3548
        %v3561 = vmul.f32 %v3492, %v3549
        %v3562 = vmul.f32 %v3494, %v3550
        %v3563 = vmul.f32 %v3496, %v3551
        %v3564 = vmul.f32 %v3498, %v3552
        %v3565 = vmul.f32 %v3500, %v3553
        %v3566 = vmul.f32 %v3502, %v3554
        %v3567 = vmul.f32 %v3504, %v3555
        %v3568 = vmul.f32 %v3506, %v3556
        %v3569 = vmul.f32 %v3508, %v3557
        %v3570 = vmul.f32 %v3510, %v3558
        %v3571 = vpack.c.bf16 %v3560, %v3559
        %v3572 = vpack.c.bf16 %v3561, %v3561
        %v3573 = vpack.c.bf16 %v3563, %v3562
        %v3574 = vpack.c.bf16 %v3564, %v3564
        %v3575 = vpack.c.bf16 %v3566, %v3565
        %v3576 = vpack.c.bf16 %v3567, %v3567
        %v3577 = vpack.c.bf16 %v3569, %v3568
        %v3578 = vpack.c.bf16 %v3570, %v3570
        %3579 = vrot.lane.b32.xlu0 %v1204, 32
        %v3580 = vpop.permute.xlu0 %3579
        %3581 = vrot.lane.b32.xlu0 %v1205, 32
        %v3582 = vpop.permute.xlu0 %3581
        %v3585 = vsel %vm1453, %v3571, 0
        %v3588 = vsel %vm1453, %v3572, 0
        %v3591 = vsel %vm1600, %v3582, 0
        %3593 = vmatprep.subr.bf16.mxu0 0
        %3594 = vmatpush1.bf16.msra.mxu0 0
        %3595 = vmatprep.subr.bf16.mxu0 0
        %3596 = vmatpush1.bf16.msra.mxu0 0
        %3597 = vmatprep.subr.bf16.mxu0 0
        %3598 = vmatpush1.bf16.msra.mxu0 0
        %3599 = vmatprep.subr.bf16.mxu0 0
        %3600 = vmatpush1.bf16.msra.mxu0 0
        %3601 = vmatprep.subr.bf16.mxu0 0
        %3602 = vmatpush1.bf16.msra.mxu0 0
        %3603 = vmatprep.subr.bf16.mxu0 0
        %3604 = vmatpush1.bf16.msra.mxu0 0
        %3605 = vmatprep.subr.bf16.mxu0 0
        %3606 = vmatpush1.bf16.msra.mxu0 %v3591
        %3607 = vmatprep.subr.bf16.mxu0 0
        %3608 = vmatpush1.bf16.msra.mxu0 %v3580
        %3609 = vmatprep.subr.bf16.mxu0 0
        %3610 = vmatpush2.bf16.msra.mxu0 0
        %3611 = vmatprep.subr.bf16.mxu0 0
        %3612 = vmatpush2.bf16.msra.mxu0 0
        %3613 = vmatprep.subr.bf16.mxu0 0
        %3614 = vmatpush2.bf16.msra.mxu0 0
        %3615 = vmatprep.subr.bf16.mxu0 0
        %3616 = vmatpush2.bf16.msra.mxu0 0
        %3617 = vmatprep.subr.bf16.mxu0 0
        %3618 = vmatpush2.bf16.msra.mxu0 0
        %3619 = vmatprep.subr.bf16.mxu0 0
        %3620 = vmatpush2.bf16.msra.mxu0 0
        %3621 = vmatprep.subr.bf16.mxu0 0
        %3622 = vmatpush2.bf16.msra.mxu0 0
        %3623 = vmatprep.subr.bf16.mxu0 0
        %3624 = vmatpush2.bf16.msra.mxu0 0
        %3625 = vmatprep.mubr.bf16.mxu0 0
        %3626 = vmatmul.mubr.bf16.gmra.mxu0 %v3585
        %v3627 = vpop.f32.mrf.mxu0
        %v3628 = vadd.f32 0.0, %v3627
        %v3629 = vpop.f32.mrf.mxu0
        %v3630 = vpop.f32.mrf.mxu0
        %v3631 = vadd.f32 0.0, %v3630
        %v3632 = vpop.f32.mrf.mxu0
        %3633 = vmatprep.mubr.bf16.mxu0 0
        %3634 = vmatmul.mubr.bf16.gmra.mxu0 %v3588
        %v3635 = vpop.f32.mrf.mxu0
        %v3636 = vadd.f32 0.0, %v3635
        %v3637 = vpop.f32.mrf.mxu0
        %v3638 = vpop.f32.mrf.mxu0
        %v3639 = vpop.f32.mrf.mxu0
        %3640 = vdwg.mxu0
        %3641 = vrot.lane.b32.xlu0 %v1206, 32
        %v3642 = vpop.permute.xlu0 %3641
        %3643 = vrot.lane.b32.xlu0 %v1207, 32
        %v3644 = vpop.permute.xlu0 %3643
        %v3647 = vsel %vm1453, %v3573, 0
        %v3650 = vsel %vm1453, %v3574, 0
        %v3653 = vsel %vm1600, %v3644, 0
        %3655 = vmatprep.subr.bf16.mxu0 0
        %3656 = vmatpush1.bf16.msra.mxu0 0
        %3657 = vmatprep.subr.bf16.mxu0 0
        %3658 = vmatpush1.bf16.msra.mxu0 0
        %3659 = vmatprep.subr.bf16.mxu0 0
        %3660 = vmatpush1.bf16.msra.mxu0 0
        %3661 = vmatprep.subr.bf16.mxu0 0
        %3662 = vmatpush1.bf16.msra.mxu0 0
        %3663 = vmatprep.subr.bf16.mxu0 0
        %3664 = vmatpush1.bf16.msra.mxu0 0
        %3665 = vmatprep.subr.bf16.mxu0 0
        %3666 = vmatpush1.bf16.msra.mxu0 0
        %3667 = vmatprep.subr.bf16.mxu0 0
        %3668 = vmatpush1.bf16.msra.mxu0 %v3653
        %3669 = vmatprep.subr.bf16.mxu0 0
        %3670 = vmatpush1.bf16.msra.mxu0 %v3642
        %3671 = vmatprep.subr.bf16.mxu0 0
        %3672 = vmatpush2.bf16.msra.mxu0 0
        %3673 = vmatprep.subr.bf16.mxu0 0
        %3674 = vmatpush2.bf16.msra.mxu0 0
        %3675 = vmatprep.subr.bf16.mxu0 0
        %3676 = vmatpush2.bf16.msra.mxu0 0
        %3677 = vmatprep.subr.bf16.mxu0 0
        %3678 = vmatpush2.bf16.msra.mxu0 0
        %3679 = vmatprep.subr.bf16.mxu0 0
        %3680 = vmatpush2.bf16.msra.mxu0 0
        %3681 = vmatprep.subr.bf16.mxu0 0
        %3682 = vmatpush2.bf16.msra.mxu0 0
        %3683 = vmatprep.subr.bf16.mxu0 0
        %3684 = vmatpush2.bf16.msra.mxu0 0
        %3685 = vmatprep.subr.bf16.mxu0 0
        %3686 = vmatpush2.bf16.msra.mxu0 0
        %3687 = vmatprep.mubr.bf16.mxu0 0
        %3688 = vmatmul.mubr.bf16.gmra.mxu0 %v3647
        %v3689 = vpop.f32.mrf.mxu0
        %v3690 = vadd.f32 0.0, %v3689
        %v3691 = vpop.f32.mrf.mxu0
        %v3692 = vpop.f32.mrf.mxu0
        %v3693 = vadd.f32 0.0, %v3692
        %v3694 = vpop.f32.mrf.mxu0
        %3695 = vmatprep.mubr.bf16.mxu0 0
        %3696 = vmatmul.mubr.bf16.gmra.mxu0 %v3650
        %v3697 = vpop.f32.mrf.mxu0
        %v3698 = vadd.f32 0.0, %v3697
        %v3699 = vpop.f32.mrf.mxu0
        %v3700 = vpop.f32.mrf.mxu0
        %v3701 = vpop.f32.mrf.mxu0
        %3702 = vdwg.mxu0
        %3703 = vrot.lane.b32.xlu0 %v1208, 32
        %v3704 = vpop.permute.xlu0 %3703
        %3705 = vrot.lane.b32.xlu0 %v1209, 32
        %v3706 = vpop.permute.xlu0 %3705
        %v3709 = vsel %vm1453, %v3575, 0
        %v3712 = vsel %vm1453, %v3576, 0
        %v3715 = vsel %vm1600, %v3706, 0
        %3717 = vmatprep.subr.bf16.mxu0 0
        %3718 = vmatpush1.bf16.msra.mxu0 0
        %3719 = vmatprep.subr.bf16.mxu0 0
        %3720 = vmatpush1.bf16.msra.mxu0 0
        %3721 = vmatprep.subr.bf16.mxu0 0
        %3722 = vmatpush1.bf16.msra.mxu0 0
        %3723 = vmatprep.subr.bf16.mxu0 0
        %3724 = vmatpush1.bf16.msra.mxu0 0
        %3725 = vmatprep.subr.bf16.mxu0 0
        %3726 = vmatpush1.bf16.msra.mxu0 0
        %3727 = vmatprep.subr.bf16.mxu0 0
        %3728 = vmatpush1.bf16.msra.mxu0 0
        %3729 = vmatprep.subr.bf16.mxu0 0
        %3730 = vmatpush1.bf16.msra.mxu0 %v3715
        %3731 = vmatprep.subr.bf16.mxu0 0
        %3732 = vmatpush1.bf16.msra.mxu0 %v3704
        %3733 = vmatprep.subr.bf16.mxu0 0
        %3734 = vmatpush2.bf16.msra.mxu0 0
        %3735 = vmatprep.subr.bf16.mxu0 0
        %3736 = vmatpush2.bf16.msra.mxu0 0
        %3737 = vmatprep.subr.bf16.mxu0 0
        %3738 = vmatpush2.bf16.msra.mxu0 0
        %3739 = vmatprep.subr.bf16.mxu0 0
        %3740 = vmatpush2.bf16.msra.mxu0 0
        %3741 = vmatprep.subr.bf16.mxu0 0
        %3742 = vmatpush2.bf16.msra.mxu0 0
        %3743 = vmatprep.subr.bf16.mxu0 0
        %3744 = vmatpush2.bf16.msra.mxu0 0
        %3745 = vmatprep.subr.bf16.mxu0 0
        %3746 = vmatpush2.bf16.msra.mxu0 0
        %3747 = vmatprep.subr.bf16.mxu0 0
        %3748 = vmatpush2.bf16.msra.mxu0 0
        %3749 = vmatprep.mubr.bf16.mxu0 0
        %3750 = vmatmul.mubr.bf16.gmra.mxu0 %v3709
        %v3751 = vpop.f32.mrf.mxu0
        %v3752 = vadd.f32 0.0, %v3751
        %v3753 = vpop.f32.mrf.mxu0
        %v3754 = vpop.f32.mrf.mxu0
        %v3755 = vadd.f32 0.0, %v3754
        %v3756 = vpop.f32.mrf.mxu0
        %3757 = vmatprep.mubr.bf16.mxu0 0
        %3758 = vmatmul.mubr.bf16.gmra.mxu0 %v3712
        %v3759 = vpop.f32.mrf.mxu0
        %v3760 = vadd.f32 0.0, %v3759
        %v3761 = vpop.f32.mrf.mxu0
        %v3762 = vpop.f32.mrf.mxu0
        %v3763 = vpop.f32.mrf.mxu0
        %3764 = vdwg.mxu0
        %3765 = vrot.lane.b32.xlu0 %v1210, 32
        %v3766 = vpop.permute.xlu0 %3765
        %3767 = vrot.lane.b32.xlu0 %v1211, 32
        %v3768 = vpop.permute.xlu0 %3767
        %v3771 = vsel %vm1453, %v3577, 0
        %v3774 = vsel %vm1453, %v3578, 0
        %v3777 = vsel %vm1600, %v3768, 0
        %3779 = vmatprep.subr.bf16.mxu0 0
        %3780 = vmatpush1.bf16.msra.mxu0 0
        %3781 = vmatprep.subr.bf16.mxu0 0
        %3782 = vmatpush1.bf16.msra.mxu0 0
        %3783 = vmatprep.subr.bf16.mxu0 0
        %3784 = vmatpush1.bf16.msra.mxu0 0
        %3785 = vmatprep.subr.bf16.mxu0 0
        %3786 = vmatpush1.bf16.msra.mxu0 0
        %3787 = vmatprep.subr.bf16.mxu0 0
        %3788 = vmatpush1.bf16.msra.mxu0 0
        %3789 = vmatprep.subr.bf16.mxu0 0
        %3790 = vmatpush1.bf16.msra.mxu0 0
        %3791 = vmatprep.subr.bf16.mxu0 0
        %3792 = vmatpush1.bf16.msra.mxu0 %v3777
        %3793 = vmatprep.subr.bf16.mxu0 0
        %3794 = vmatpush1.bf16.msra.mxu0 %v3766
        %3795 = vmatprep.subr.bf16.mxu0 0
        %3796 = vmatpush2.bf16.msra.mxu0 0
        %3797 = vmatprep.subr.bf16.mxu0 0
        %3798 = vmatpush2.bf16.msra.mxu0 0
        %3799 = vmatprep.subr.bf16.mxu0 0
        %3800 = vmatpush2.bf16.msra.mxu0 0
        %3801 = vmatprep.subr.bf16.mxu0 0
        %3802 = vmatpush2.bf16.msra.mxu0 0
        %3803 = vmatprep.subr.bf16.mxu0 0
        %3804 = vmatpush2.bf16.msra.mxu0 0
        %3805 = vmatprep.subr.bf16.mxu0 0
        %3806 = vmatpush2.bf16.msra.mxu0 0
        %3807 = vmatprep.subr.bf16.mxu0 0
        %3808 = vmatpush2.bf16.msra.mxu0 0
        %3809 = vmatprep.subr.bf16.mxu0 0
        %3810 = vmatpush2.bf16.msra.mxu0 0
        %3811 = vmatprep.mubr.bf16.mxu0 0
        %3812 = vmatmul.mubr.bf16.gmra.mxu0 %v3771
        %v3813 = vpop.f32.mrf.mxu0
        %v3814 = vadd.f32 0.0, %v3813
        %v3815 = vpop.f32.mrf.mxu0
        %v3816 = vpop.f32.mrf.mxu0
        %v3817 = vadd.f32 0.0, %v3816
        %v3818 = vpop.f32.mrf.mxu0
        %3819 = vmatprep.mubr.bf16.mxu0 0
        %3820 = vmatmul.mubr.bf16.gmra.mxu0 %v3774
        %v3821 = vpop.f32.mrf.mxu0
        %v3822 = vadd.f32 0.0, %v3821
        %v3823 = vpop.f32.mrf.mxu0
        %v3824 = vpop.f32.mrf.mxu0
        %v3825 = vpop.f32.mrf.mxu0
        %3826 = vdwg.mxu0
        %3839 = vrot.lane.b32.xlu0 %v2302, 32
        %v3840 = vpop.permute.xlu0 %3839
        %3841 = vrot.lane.b32.xlu0 %v2305, 32
        %v3842 = vpop.permute.xlu0 %3841
        %3843 = vrot.lane.b32.xlu0 %v2310, 32
        %v3844 = vpop.permute.xlu0 %3843
        %3845 = vrot.lane.b32.xlu0 %v2366, 32
        %v3846 = vpop.permute.xlu0 %3845
        %3847 = vrot.lane.b32.xlu0 %v2369, 32
        %v3848 = vpop.permute.xlu0 %3847
        %3849 = vrot.lane.b32.xlu0 %v2374, 32
        %v3850 = vpop.permute.xlu0 %3849
        %3851 = vrot.lane.b32.xlu0 %v2430, 32
        %v3852 = vpop.permute.xlu0 %3851
        %3853 = vrot.lane.b32.xlu0 %v2433, 32
        %v3854 = vpop.permute.xlu0 %3853
        %3855 = vrot.lane.b32.xlu0 %v2438, 32
        %v3856 = vpop.permute.xlu0 %3855
        %3857 = vrot.lane.b32.xlu0 %v2494, 32
        %v3858 = vpop.permute.xlu0 %3857
        %3859 = vrot.lane.b32.xlu0 %v2497, 32
        %v3860 = vpop.permute.xlu0 %3859
        %3861 = vrot.lane.b32.xlu0 %v2502, 32
        %v3862 = vpop.permute.xlu0 %3861
        %3887 = vrot.lane.b32.xlu0 %v2968, 64
        %v3888 = vpop.permute.xlu0 %3887
        %3889 = vrot.lane.b32.xlu0 %v2971, 64
        %v3890 = vpop.permute.xlu0 %3889
        %3891 = vrot.lane.b32.xlu0 %v2976, 64
        %v3892 = vpop.permute.xlu0 %3891
        %3893 = vrot.lane.b32.xlu0 %v3030, 64
        %v3894 = vpop.permute.xlu0 %3893
        %3895 = vrot.lane.b32.xlu0 %v3033, 64
        %v3896 = vpop.permute.xlu0 %3895
        %3897 = vrot.lane.b32.xlu0 %v3038, 64
        %v3898 = vpop.permute.xlu0 %3897
        %3899 = vrot.lane.b32.xlu0 %v3092, 64
        %v3900 = vpop.permute.xlu0 %3899
        %3901 = vrot.lane.b32.xlu0 %v3095, 64
        %v3902 = vpop.permute.xlu0 %3901
        %3903 = vrot.lane.b32.xlu0 %v3100, 64
        %v3904 = vpop.permute.xlu0 %3903
        %3905 = vrot.lane.b32.xlu0 %v3154, 64
        %v3906 = vpop.permute.xlu0 %3905
        %3907 = vrot.lane.b32.xlu0 %v3157, 64
        %v3908 = vpop.permute.xlu0 %3907
        %3909 = vrot.lane.b32.xlu0 %v3162, 64
        %v3910 = vpop.permute.xlu0 %3909
        %3935 = vrot.lane.b32.xlu0 %v3628, 96
        %v3936 = vpop.permute.xlu0 %3935
        %3937 = vrot.lane.b32.xlu0 %v3631, 96
        %v3938 = vpop.permute.xlu0 %3937
        %3939 = vrot.lane.b32.xlu0 %v3636, 96
        %v3940 = vpop.permute.xlu0 %3939
        %3941 = vrot.lane.b32.xlu0 %v3690, 96
        %v3942 = vpop.permute.xlu0 %3941
        %3943 = vrot.lane.b32.xlu0 %v3693, 96
        %v3944 = vpop.permute.xlu0 %3943
        %3945 = vrot.lane.b32.xlu0 %v3698, 96
        %v3946 = vpop.permute.xlu0 %3945
        %3947 = vrot.lane.b32.xlu0 %v3752, 96
        %v3948 = vpop.permute.xlu0 %3947
        %3949 = vrot.lane.b32.xlu0 %v3755, 96
        %v3950 = vpop.permute.xlu0 %3949
        %3951 = vrot.lane.b32.xlu0 %v3760, 96
        %v3952 = vpop.permute.xlu0 %3951
        %3953 = vrot.lane.b32.xlu0 %v3814, 96
        %v3954 = vpop.permute.xlu0 %3953
        %3955 = vrot.lane.b32.xlu0 %v3817, 96
        %v3956 = vpop.permute.xlu0 %3955
        %3957 = vrot.lane.b32.xlu0 %v3822, 96
        %v3958 = vpop.permute.xlu0 %3957
        %v3971 = vsel %vm1212, %v1639, %v3840
        %v3972 = vsel %vm1212, %v1642, %v3842
        %v3973 = vsel %vm1212, %v1647, %v3844
        %v3974 = vsel %vm1212, %v1696, %v3846
        %v3975 = vsel %vm1212, %v1699, %v3848
        %v3976 = vsel %vm1212, %v1704, %v3850
        %v3977 = vsel %vm1212, %v1753, %v3852
        %v3978 = vsel %vm1212, %v1756, %v3854
        %v3979 = vsel %vm1212, %v1761, %v3856
        %v3980 = vsel %vm1212, %v1810, %v3858
        %v3981 = vsel %vm1212, %v1813, %v3860
        %v3982 = vsel %vm1212, %v1818, %v3862
        %v3983 = vsel %vm536, %v3971, %v3888
        %v3984 = vsel %vm536, %v3972, %v3890
        %v3985 = vsel %vm536, %v3973, %v3892
        %v3986 = vsel %vm536, %v3974, %v3894
        %v3987 = vsel %vm536, %v3975, %v3896
        %v3988 = vsel %vm536, %v3976, %v3898
        %v3989 = vsel %vm536, %v3977, %v3900
        %v3990 = vsel %vm536, %v3978, %v3902
        %v3991 = vsel %vm536, %v3979, %v3904
        %v3992 = vsel %vm536, %v3980, %v3906
        %v3993 = vsel %vm536, %v3981, %v3908
        %v3994 = vsel %vm536, %v3982, %v3910
        %vm3995 = vcmask 785408
        %v3996 = vsel %vm3995, %v3983, %v3936
        %v3997 = vsel %vm3995, %v3984, %v3938
        %v3998 = vsel %vm3995, %v3985, %v3940
        %v3999 = vsel %vm3995, %v3986, %v3942
        %v4000 = vsel %vm3995, %v3987, %v3944
        %v4001 = vsel %vm3995, %v3988, %v3946
        %v4002 = vsel %vm3995, %v3989, %v3948
        %v4003 = vsel %vm3995, %v3990, %v3950
        %v4004 = vsel %vm3995, %v3991, %v3952
        %v4005 = vsel %vm3995, %v3992, %v3954
        %v4006 = vsel %vm3995, %v3993, %v3956
        %v4007 = vsel %vm3995, %v3994, %v3958
        %v4008 = vpack.c.bf16 %v3997, %v3996
        %v4009 = vpack.c.bf16 %v3999, %v3998
        %v4010 = vpack.c.bf16 %v4001, %v4000
        %v4011 = vpack.c.bf16 %v4003, %v4002
        %v4012 = vpack.c.bf16 %v4005, %v4004
        %v4013 = vpack.c.bf16 %v4007, %v4006
        %v4014 = vlaneseq
        %v4015 = vshrl.u32 %v4014, 7
        %v4016 = vsub.s32 4, %v4015
        %v4017 = vrot.slane %v700, %v4016
        %v4018 = vunpack.c.h.b16 %v669
        %v4019 = vunpack.c.h.b16 %v671
        %v4020 = vunpack.c.h.b16 %v673
        %v4021 = vunpack.c.h.b16 %v675
        %v4022 = vunpack.c.h.b16 %v677
        %v4023 = vunpack.c.h.b16 %v679
        %v4024 = vunpack.c.h.b16 %v681
        %v4025 = vunpack.c.h.b16 %v683
        %v4026 = vunpack.c.h.b16 %v685
        %v4027 = vunpack.c.h.b16 %v687
        %v4028 = vunpack.c.h.b16 %v689
        %v4029 = vunpack.c.h.b16 %v691
        %v4030 = vunpack.c.h.b16 %v693
        %v4031 = vunpack.c.h.b16 %v695
        %v4032 = vunpack.c.h.b16 %v697
        %v4033 = vunpack.c.h.b16 %v699
        %v4034 = vpack.c.b16 %v4019, %v4018
        %v4035 = vpack.c.b16 %v4021, %v4020
        %v4036 = vpack.c.b16 %v4023, %v4022
        %v4037 = vpack.c.b16 %v4025, %v4024
        %v4038 = vpack.c.b16 %v4027, %v4026
        %v4039 = vpack.c.b16 %v4029, %v4028
        %v4040 = vpack.c.b16 %v4031, %v4030
        %v4041 = vpack.c.b16 %v4033, %v4032
        %4050 = vmatprep.subr.bf16.mxu0 0
        %4051 = vmatpush1.bf16.msra.mxu0 %v4041
        %4052 = vmatprep.subr.bf16.mxu0 0
        %4053 = vmatpush1.bf16.msra.mxu0 %v4040
        %4054 = vmatprep.subr.bf16.mxu0 0
        %4055 = vmatpush1.bf16.msra.mxu0 %v4039
        %4056 = vmatprep.subr.bf16.mxu0 0
        %4057 = vmatpush1.bf16.msra.mxu0 %v4038
        %4058 = vmatprep.subr.bf16.mxu0 0
        %4059 = vmatpush1.bf16.msra.mxu0 %v4037
        %4060 = vmatprep.subr.bf16.mxu0 0
        %4061 = vmatpush1.bf16.msra.mxu0 %v4036
        %4062 = vmatprep.subr.bf16.mxu0 0
        %4063 = vmatpush1.bf16.msra.mxu0 %v4035
        %4064 = vmatprep.subr.bf16.mxu0 0
        %4065 = vmatpush1.bf16.msra.mxu0 %v4034
        %4066 = vmatprep.subr.bf16.mxu0 0
        %4067 = vmatpush2.bf16.msra.mxu0 0
        %4068 = vmatprep.subr.bf16.mxu0 0
        %4069 = vmatpush2.bf16.msra.mxu0 0
        %4070 = vmatprep.subr.bf16.mxu0 0
        %4071 = vmatpush2.bf16.msra.mxu0 0
        %4072 = vmatprep.subr.bf16.mxu0 0
        %4073 = vmatpush2.bf16.msra.mxu0 0
        %4074 = vmatprep.subr.bf16.mxu0 0
        %4075 = vmatpush2.bf16.msra.mxu0 0
        %4076 = vmatprep.subr.bf16.mxu0 0
        %4077 = vmatpush2.bf16.msra.mxu0 0
        %4078 = vmatprep.subr.bf16.mxu0 0
        %4079 = vmatpush2.bf16.msra.mxu0 0
        %4080 = vmatprep.subr.bf16.mxu0 0
        %4081 = vmatpush2.bf16.msra.mxu0 0
        %4082 = vmatprep.mubr.bf16.mxu0 0
        %4083 = vmatmul.mubr.bf16.gmra.mxu0 %v4008
        %v4084 = vpop.f32.mrf.mxu0
        %v4085 = vadd.f32 %v4017, %v4084
        %v4086 = vpop.f32.mrf.mxu0
        %v4087 = vpop.f32.mrf.mxu0
        %v4088 = vadd.f32 %v4017, %v4087
        %v4089 = vpop.f32.mrf.mxu0
        %4090 = vmatprep.mubr.bf16.mxu0 0
        %4091 = vmatmul.mubr.bf16.gmra.mxu0 %v4009
        %v4092 = vpop.f32.mrf.mxu0
        %v4093 = vadd.f32 %v4017, %v4092
        %v4094 = vpop.f32.mrf.mxu0
        %v4095 = vpop.f32.mrf.mxu0
        %v4096 = vadd.f32 %v4017, %v4095
        %v4097 = vpop.f32.mrf.mxu0
        %4098 = vmatprep.mubr.bf16.mxu0 0
        %4099 = vmatmul.mubr.bf16.gmra.mxu0 %v4010
        %v4100 = vpop.f32.mrf.mxu0
        %v4101 = vadd.f32 %v4017, %v4100
        %v4102 = vpop.f32.mrf.mxu0
        %v4103 = vpop.f32.mrf.mxu0
        %v4104 = vadd.f32 %v4017, %v4103
        %v4105 = vpop.f32.mrf.mxu0
        %4106 = vmatprep.mubr.bf16.mxu0 0
        %4107 = vmatmul.mubr.bf16.gmra.mxu0 %v4011
        %v4108 = vpop.f32.mrf.mxu0
        %v4109 = vadd.f32 %v4017, %v4108
        %v4110 = vpop.f32.mrf.mxu0
        %v4111 = vpop.f32.mrf.mxu0
        %v4112 = vadd.f32 %v4017, %v4111
        %v4113 = vpop.f32.mrf.mxu0
        %4114 = vmatprep.mubr.bf16.mxu0 0
        %4115 = vmatmul.mubr.bf16.gmra.mxu0 %v4012
        %v4116 = vpop.f32.mrf.mxu0
        %v4117 = vadd.f32 %v4017, %v4116
        %v4118 = vpop.f32.mrf.mxu0
        %v4119 = vpop.f32.mrf.mxu0
        %v4120 = vadd.f32 %v4017, %v4119
        %v4121 = vpop.f32.mrf.mxu0
        %4122 = vmatprep.mubr.bf16.mxu0 0
        %4123 = vmatmul.mubr.bf16.gmra.mxu0 %v4013
        %v4124 = vpop.f32.mrf.mxu0
        %v4125 = vadd.f32 %v4017, %v4124
        %v4126 = vpop.f32.mrf.mxu0
        %v4127 = vpop.f32.mrf.mxu0
        %v4128 = vadd.f32 %v4017, %v4127
        %v4129 = vpop.f32.mrf.mxu0
        %4130 = vdwg.mxu0
        %v4131 = vadd.f32 %v652, %v4085
        %v4132 = vadd.f32 %v653, %v4088
        %v4133 = vadd.f32 %v654, %v4093
        %v4134 = vadd.f32 %v655, %v4096
        %v4135 = vadd.f32 %v656, %v4101
        %v4136 = vadd.f32 %v657, %v4104
        %v4137 = vadd.f32 %v658, %v4109
        %v4138 = vadd.f32 %v659, %v4112
        %v4139 = vadd.f32 %v660, %v4117
        %v4140 = vadd.f32 %v661, %v4120
        %v4141 = vadd.f32 %v662, %v4125
        %v4142 = vadd.f32 %v663, %v4128
        %4143 = vadd.xlane.f32.xlu0 %v4131
        %v4144 = vpop.xlane.xlu0 %4143
        %4145 = vadd.xlane.f32.xlu0 %v4132
        %v4146 = vpop.xlane.xlu0 %4145
        %4147 = vadd.xlane.f32.xlu0 %v4133
        %v4148 = vpop.xlane.xlu0 %4147
        %4149 = vadd.xlane.f32.xlu0 %v4134
        %v4150 = vpop.xlane.xlu0 %4149
        %4151 = vadd.xlane.f32.xlu0 %v4135
        %v4152 = vpop.xlane.xlu0 %4151
        %4153 = vadd.xlane.f32.xlu0 %v4136
        %v4154 = vpop.xlane.xlu0 %4153
        %4155 = vadd.xlane.f32.xlu0 %v4137
        %v4156 = vpop.xlane.xlu0 %4155
        %4157 = vadd.xlane.f32.xlu0 %v4138
        %v4158 = vpop.xlane.xlu0 %4157
        %4159 = vadd.xlane.f32.xlu0 %v4139
        %v4160 = vpop.xlane.xlu0 %4159
        %4161 = vadd.xlane.f32.xlu0 %v4140
        %v4162 = vpop.xlane.xlu0 %4161
        %4163 = vadd.xlane.f32.xlu0 %v4141
        %v4164 = vpop.xlane.xlu0 %4163
        %4165 = vadd.xlane.f32.xlu0 %v4142
        %v4166 = vpop.xlane.xlu0 %4165
        %v4167 = vmul.f32 %v4144, %v727
        %v4168 = vmul.f32 %v4146, %v727
        %v4169 = vmul.f32 %v4148, %v727
        %v4170 = vmul.f32 %v4150, %v727
        %v4171 = vmul.f32 %v4152, %v727
        %v4172 = vmul.f32 %v4154, %v727
        %v4173 = vmul.f32 %v4156, %v727
        %v4174 = vmul.f32 %v4158, %v727
        %v4175 = vmul.f32 %v4160, %v727
        %v4176 = vmul.f32 %v4162, %v727
        %v4177 = vmul.f32 %v4164, %v727
        %v4178 = vmul.f32 %v4166, %v727
        %v4179 = vsub.f32 %v4131, %v4167
        %v4180 = vsub.f32 %v4132, %v4168
        %v4181 = vsub.f32 %v4133, %v4169
        %v4182 = vsub.f32 %v4134, %v4170
        %v4183 = vsub.f32 %v4135, %v4171
        %v4184 = vsub.f32 %v4136, %v4172
        %v4185 = vsub.f32 %v4137, %v4173
        %v4186 = vsub.f32 %v4138, %v4174
        %v4187 = vsub.f32 %v4139, %v4175
        %v4188 = vsub.f32 %v4140, %v4176
        %v4189 = vsub.f32 %v4141, %v4177
        %v4190 = vsub.f32 %v4142, %v4178
        %v4191 = vmul.f32 %v4179, %v4179
        %v4192 = vmul.f32 %v4180, %v4180
        %v4193 = vmul.f32 %v4181, %v4181
        %v4194 = vmul.f32 %v4182, %v4182
        %v4195 = vmul.f32 %v4183, %v4183
        %v4196 = vmul.f32 %v4184, %v4184
        %v4197 = vmul.f32 %v4185, %v4185
        %v4198 = vmul.f32 %v4186, %v4186
        %v4199 = vmul.f32 %v4187, %v4187
        %v4200 = vmul.f32 %v4188, %v4188
        %v4201 = vmul.f32 %v4189, %v4189
        %v4202 = vmul.f32 %v4190, %v4190
        %4203 = vadd.xlane.f32.xlu0 %v4191
        %v4204 = vpop.xlane.xlu0 %4203
        %4205 = vadd.xlane.f32.xlu0 %v4192
        %v4206 = vpop.xlane.xlu0 %4205
        %4207 = vadd.xlane.f32.xlu0 %v4193
        %v4208 = vpop.xlane.xlu0 %4207
        %4209 = vadd.xlane.f32.xlu0 %v4194
        %v4210 = vpop.xlane.xlu0 %4209
        %4211 = vadd.xlane.f32.xlu0 %v4195
        %v4212 = vpop.xlane.xlu0 %4211
        %4213 = vadd.xlane.f32.xlu0 %v4196
        %v4214 = vpop.xlane.xlu0 %4213
        %4215 = vadd.xlane.f32.xlu0 %v4197
        %v4216 = vpop.xlane.xlu0 %4215
        %4217 = vadd.xlane.f32.xlu0 %v4198
        %v4218 = vpop.xlane.xlu0 %4217
        %4219 = vadd.xlane.f32.xlu0 %v4199
        %v4220 = vpop.xlane.xlu0 %4219
        %4221 = vadd.xlane.f32.xlu0 %v4200
        %v4222 = vpop.xlane.xlu0 %4221
        %4223 = vadd.xlane.f32.xlu0 %v4201
        %v4224 = vpop.xlane.xlu0 %4223
        %4225 = vadd.xlane.f32.xlu0 %v4202
        %v4226 = vpop.xlane.xlu0 %4225
        %v4227 = vmul.f32 %v4204, %v727
        %v4228 = vmul.f32 %v4206, %v727
        %v4229 = vmul.f32 %v4208, %v727
        %v4230 = vmul.f32 %v4210, %v727
        %v4231 = vmul.f32 %v4212, %v727
        %v4232 = vmul.f32 %v4214, %v727
        %v4233 = vmul.f32 %v4216, %v727
        %v4234 = vmul.f32 %v4218, %v727
        %v4235 = vmul.f32 %v4220, %v727
        %v4236 = vmul.f32 %v4222, %v727
        %v4237 = vmul.f32 %v4224, %v727
        %v4238 = vmul.f32 %v4226, %v727
        %v4239 = vadd.f32 %v4227, 1e-05
        %v4240 = vadd.f32 %v4228, 1e-05
        %v4241 = vadd.f32 %v4229, 1e-05
        %v4242 = vadd.f32 %v4230, 1e-05
        %v4243 = vadd.f32 %v4231, 1e-05
        %v4244 = vadd.f32 %v4232, 1e-05
        %v4245 = vadd.f32 %v4233, 1e-05
        %v4246 = vadd.f32 %v4234, 1e-05
        %v4247 = vadd.f32 %v4235, 1e-05
        %v4248 = vadd.f32 %v4236, 1e-05
        %v4249 = vadd.f32 %v4237, 1e-05
        %v4250 = vadd.f32 %v4238, 1e-05
        %v4251 = vrsqrt.pop %v4239
        %v4252 = vrsqrt.pop %v4240
        %v4253 = vrsqrt.pop %v4241
        %v4254 = vrsqrt.pop %v4242
        %v4255 = vrsqrt.pop %v4243
        %v4256 = vrsqrt.pop %v4244
        %v4257 = vrsqrt.pop %v4245
        %v4258 = vrsqrt.pop %v4246
        %v4259 = vrsqrt.pop %v4247
        %v4260 = vrsqrt.pop %v4248
        %v4261 = vrsqrt.pop %v4249
        %v4262 = vrsqrt.pop %v4250
        %v4263 = vmul.f32 %v4179, %v4251
        %v4264 = vmul.f32 %v4180, %v4252
        %v4265 = vmul.f32 %v4181, %v4253
        %v4266 = vmul.f32 %v4182, %v4254
        %v4267 = vmul.f32 %v4183, %v4255
        %v4268 = vmul.f32 %v4184, %v4256
        %v4269 = vmul.f32 %v4185, %v4257
        %v4270 = vmul.f32 %v4186, %v4258
        %v4271 = vmul.f32 %v4187, %v4259
        %v4272 = vmul.f32 %v4188, %v4260
        %v4273 = vmul.f32 %v4189, %v4261
        %v4274 = vmul.f32 %v4190, %v4262
        %v4275 = vlaneseq
        %v4276 = vshrl.u32 %v4275, 7
        %v4277 = vsub.s32 2, %v4276
        %v4278 = vrot.slane %v700, %v4277
        %v4279 = vmul.f32 %v4263, %v4278
        %v4280 = vmul.f32 %v4264, %v4278
        %v4281 = vmul.f32 %v4265, %v4278
        %v4282 = vmul.f32 %v4266, %v4278
        %v4283 = vmul.f32 %v4267, %v4278
        %v4284 = vmul.f32 %v4268, %v4278
        %v4285 = vmul.f32 %v4269, %v4278
        %v4286 = vmul.f32 %v4270, %v4278
        %v4287 = vmul.f32 %v4271, %v4278
        %v4288 = vmul.f32 %v4272, %v4278
        %v4289 = vmul.f32 %v4273, %v4278
        %v4290 = vmul.f32 %v4274, %v4278
        %v4291 = vlaneseq
        %v4292 = vshrl.u32 %v4291, 7
        %v4293 = vsub.s32 3, %v4292
        %v4294 = vrot.slane %v700, %v4293
        %v4295 = vadd.f32 %v4279, %v4294
        %v4296 = vadd.f32 %v4280, %v4294
        %v4297 = vadd.f32 %v4281, %v4294
        %v4298 = vadd.f32 %v4282, %v4294
        %v4299 = vadd.f32 %v4283, %v4294
        %v4300 = vadd.f32 %v4284, %v4294
        %v4301 = vadd.f32 %v4285, %v4294
        %v4302 = vadd.f32 %v4286, %v4294
        %v4303 = vadd.f32 %v4287, %v4294
        %v4304 = vadd.f32 %v4288, %v4294
        %v4305 = vadd.f32 %v4289, %v4294
        %v4306 = vadd.f32 %v4290, %v4294
        %v4307 = vpack.c.bf16 %v4296, %v4295
        %v4308 = vpack.c.bf16 %v4298, %v4297
        %v4309 = vpack.c.bf16 %v4300, %v4299
        %v4310 = vpack.c.bf16 %v4302, %v4301
        %v4311 = vpack.c.bf16 %v4304, %v4303
        %v4312 = vpack.c.bf16 %v4306, %v4305
        %v4313 = vld [vmem:[%s5] sm:$0xff]
        %v4314 = vld [vmem:[%s5 + $0x8] sm:$0xff]
        %v4315 = vld [vmem:[%s5 + $0x10] sm:$0xff]
        %v4316 = vld [vmem:[%s5 + $0x18] sm:$0xff]
        %v4317 = vld [vmem:[%s5 + $0x20] sm:$0xff]
        %v4318 = vld [vmem:[%s5 + $0x28] sm:$0xff]
        %v4319 = vld [vmem:[%s5 + $0x30] sm:$0xff]
        %v4320 = vld [vmem:[%s5 + $0x38] sm:$0xff]
        %v4321 = vld [vmem:[%s5 + $0x40] sm:$0xff]
        %v4322 = vld [vmem:[%s5 + $0x48] sm:$0xff]
        %v4323 = vld [vmem:[%s5 + $0x50] sm:$0xff]
        %v4324 = vld [vmem:[%s5 + $0x58] sm:$0xff]
        %v4325 = vld [vmem:[%s5 + $0x60] sm:$0xff]
        %v4326 = vld [vmem:[%s5 + $0x68] sm:$0xff]
        %v4327 = vld [vmem:[%s5 + $0x70] sm:$0xff]
        %v4328 = vld [vmem:[%s5 + $0x78] sm:$0xff]
        %v4329 = vlaneseq
        %v4330 = vshrl.u32 %v4329, 7
        %v4331 = vsub.s32 6, %v4330
        %v4332 = vrot.slane %v700, %v4331
        %v4333 = vlaneseq
        %v4334 = vshrl.u32 %v4333, 7
        %v4335 = vsub.s32 6, %v4334
        %v4336 = vrot.slane %v701, %v4335
        %v4353 = vunpack.c.l.b16 %v4313
        %v4354 = vunpack.c.h.b16 %v4313
        %v4355 = vunpack.c.l.b16 %v4314
        %v4356 = vunpack.c.h.b16 %v4314
        %v4357 = vunpack.c.l.b16 %v4315
        %v4358 = vunpack.c.h.b16 %v4315
        %v4359 = vunpack.c.l.b16 %v4316
        %v4360 = vunpack.c.h.b16 %v4316
        %v4361 = vunpack.c.l.b16 %v4317
        %v4362 = vunpack.c.h.b16 %v4317
        %v4363 = vunpack.c.l.b16 %v4318
        %v4364 = vunpack.c.h.b16 %v4318
        %v4365 = vunpack.c.l.b16 %v4319
        %v4366 = vunpack.c.h.b16 %v4319
        %v4367 = vunpack.c.l.b16 %v4320
        %v4368 = vunpack.c.h.b16 %v4320
        %v4369 = vunpack.c.l.b16 %v4321
        %v4370 = vunpack.c.h.b16 %v4321
        %v4371 = vunpack.c.l.b16 %v4322
        %v4372 = vunpack.c.h.b16 %v4322
        %v4373 = vunpack.c.l.b16 %v4323
        %v4374 = vunpack.c.h.b16 %v4323
        %v4375 = vunpack.c.l.b16 %v4324
        %v4376 = vunpack.c.h.b16 %v4324
        %v4377 = vunpack.c.l.b16 %v4325
        %v4378 = vunpack.c.h.b16 %v4325
        %v4379 = vunpack.c.l.b16 %v4326
        %v4380 = vunpack.c.h.b16 %v4326
        %v4381 = vunpack.c.l.b16 %v4327
        %v4382 = vunpack.c.h.b16 %v4327
        %v4383 = vunpack.c.l.b16 %v4328
        %v4384 = vunpack.c.h.b16 %v4328
        %v4385 = vpack.c.b16 %v4355, %v4353
        %v4386 = vpack.c.b16 %v4356, %v4354
        %v4387 = vpack.c.b16 %v4359, %v4357
        %v4388 = vpack.c.b16 %v4360, %v4358
        %v4389 = vpack.c.b16 %v4363, %v4361
        %v4390 = vpack.c.b16 %v4364, %v4362
        %v4391 = vpack.c.b16 %v4367, %v4365
        %v4392 = vpack.c.b16 %v4368, %v4366
        %v4393 = vpack.c.b16 %v4371, %v4369
        %v4394 = vpack.c.b16 %v4372, %v4370
        %v4395 = vpack.c.b16 %v4375, %v4373
        %v4396 = vpack.c.b16 %v4376, %v4374
        %v4397 = vpack.c.b16 %v4379, %v4377
        %v4398 = vpack.c.b16 %v4380, %v4378
        %v4399 = vpack.c.b16 %v4383, %v4381
        %v4400 = vpack.c.b16 %v4384, %v4382
        %4417 = vmatprep.subr.bf16.mxu0 %v4400
        %4418 = vmatpush1.bf16.msra.mxu0 %v4399
        %4419 = vmatprep.subr.bf16.mxu0 %v4398
        %4420 = vmatpush1.bf16.msra.mxu0 %v4397
        %4421 = vmatprep.subr.bf16.mxu0 %v4396
        %4422 = vmatpush1.bf16.msra.mxu0 %v4395
        %4423 = vmatprep.subr.bf16.mxu0 %v4394
        %4424 = vmatpush1.bf16.msra.mxu0 %v4393
        %4425 = vmatprep.subr.bf16.mxu0 %v4392
        %4426 = vmatpush1.bf16.msra.mxu0 %v4391
        %4427 = vmatprep.subr.bf16.mxu0 %v4390
        %4428 = vmatpush1.bf16.msra.mxu0 %v4389
        %4429 = vmatprep.subr.bf16.mxu0 %v4388
        %4430 = vmatpush1.bf16.msra.mxu0 %v4387
        %4431 = vmatprep.subr.bf16.mxu0 %v4386
        %4432 = vmatpush1.bf16.msra.mxu0 %v4385
        %4433 = vmatprep.subr.bf16.mxu0 0
        %4434 = vmatpush2.bf16.msra.mxu0 0
        %4435 = vmatprep.subr.bf16.mxu0 0
        %4436 = vmatpush2.bf16.msra.mxu0 0
        %4437 = vmatprep.subr.bf16.mxu0 0
        %4438 = vmatpush2.bf16.msra.mxu0 0
        %4439 = vmatprep.subr.bf16.mxu0 0
        %4440 = vmatpush2.bf16.msra.mxu0 0
        %4441 = vmatprep.subr.bf16.mxu0 0
        %4442 = vmatpush2.bf16.msra.mxu0 0
        %4443 = vmatprep.subr.bf16.mxu0 0
        %4444 = vmatpush2.bf16.msra.mxu0 0
        %4445 = vmatprep.subr.bf16.mxu0 0
        %4446 = vmatpush2.bf16.msra.mxu0 0
        %4447 = vmatprep.subr.bf16.mxu0 0
        %4448 = vmatpush2.bf16.msra.mxu0 0
        %4449 = vmatprep.mubr.bf16.mxu0 0
        %4450 = vmatmul.mubr.bf16.gmra.mxu0 %v4307
        %v4451 = vpop.f32.mrf.mxu0
        %v4452 = vadd.f32 %v4332, %v4451
        %v4453 = vpop.f32.mrf.mxu0
        %v4454 = vadd.f32 %v4336, %v4453
        %v4455 = vpop.f32.mrf.mxu0
        %v4456 = vadd.f32 %v4332, %v4455
        %v4457 = vpop.f32.mrf.mxu0
        %v4458 = vadd.f32 %v4336, %v4457
        %4459 = vmatprep.mubr.bf16.mxu0 0
        %4460 = vmatmul.mubr.bf16.gmra.mxu0 %v4308
        %v4461 = vpop.f32.mrf.mxu0
        %v4462 = vadd.f32 %v4332, %v4461
        %v4463 = vpop.f32.mrf.mxu0
        %v4464 = vadd.f32 %v4336, %v4463
        %v4465 = vpop.f32.mrf.mxu0
        %v4466 = vadd.f32 %v4332, %v4465
        %v4467 = vpop.f32.mrf.mxu0
        %v4468 = vadd.f32 %v4336, %v4467
        %4469 = vmatprep.mubr.bf16.mxu0 0
        %4470 = vmatmul.mubr.bf16.gmra.mxu0 %v4309
        %v4471 = vpop.f32.mrf.mxu0
        %v4472 = vadd.f32 %v4332, %v4471
        %v4473 = vpop.f32.mrf.mxu0
        %v4474 = vadd.f32 %v4336, %v4473
        %v4475 = vpop.f32.mrf.mxu0
        %v4476 = vadd.f32 %v4332, %v4475
        %v4477 = vpop.f32.mrf.mxu0
        %v4478 = vadd.f32 %v4336, %v4477
        %4479 = vmatprep.mubr.bf16.mxu0 0
        %4480 = vmatmul.mubr.bf16.gmra.mxu0 %v4310
        %v4481 = vpop.f32.mrf.mxu0
        %v4482 = vadd.f32 %v4332, %v4481
        %v4483 = vpop.f32.mrf.mxu0
        %v4484 = vadd.f32 %v4336, %v4483
        %v4485 = vpop.f32.mrf.mxu0
        %v4486 = vadd.f32 %v4332, %v4485
        %v4487 = vpop.f32.mrf.mxu0
        %v4488 = vadd.f32 %v4336, %v4487
        %4489 = vmatprep.mubr.bf16.mxu0 0
        %4490 = vmatmul.mubr.bf16.gmra.mxu0 %v4311
        %v4491 = vpop.f32.mrf.mxu0
        %v4492 = vadd.f32 %v4332, %v4491
        %v4493 = vpop.f32.mrf.mxu0
        %v4494 = vadd.f32 %v4336, %v4493
        %v4495 = vpop.f32.mrf.mxu0
        %v4496 = vadd.f32 %v4332, %v4495
        %v4497 = vpop.f32.mrf.mxu0
        %v4498 = vadd.f32 %v4336, %v4497
        %4499 = vmatprep.mubr.bf16.mxu0 0
        %4500 = vmatmul.mubr.bf16.gmra.mxu0 %v4312
        %v4501 = vpop.f32.mrf.mxu0
        %v4502 = vadd.f32 %v4332, %v4501
        %v4503 = vpop.f32.mrf.mxu0
        %v4504 = vadd.f32 %v4336, %v4503
        %v4505 = vpop.f32.mrf.mxu0
        %v4506 = vadd.f32 %v4332, %v4505
        %v4507 = vpop.f32.mrf.mxu0
        %v4508 = vadd.f32 %v4336, %v4507
        %4509 = vdwg.mxu0
        %v4510 = vmul.f32 %v4452, 0.5
        %v4511 = vmul.f32 %v4454, 0.5
        %v4512 = vmul.f32 %v4456, 0.5
        %v4513 = vmul.f32 %v4458, 0.5
        %v4514 = vmul.f32 %v4462, 0.5
        %v4515 = vmul.f32 %v4464, 0.5
        %v4516 = vmul.f32 %v4466, 0.5
        %v4517 = vmul.f32 %v4468, 0.5
        %v4518 = vmul.f32 %v4472, 0.5
        %v4519 = vmul.f32 %v4474, 0.5
        %v4520 = vmul.f32 %v4476, 0.5
        %v4521 = vmul.f32 %v4478, 0.5
        %v4522 = vmul.f32 %v4482, 0.5
        %v4523 = vmul.f32 %v4484, 0.5
        %v4524 = vmul.f32 %v4486, 0.5
        %v4525 = vmul.f32 %v4488, 0.5
        %v4526 = vmul.f32 %v4492, 0.5
        %v4527 = vmul.f32 %v4494, 0.5
        %v4528 = vmul.f32 %v4496, 0.5
        %v4529 = vmul.f32 %v4498, 0.5
        %v4530 = vmul.f32 %v4502, 0.5
        %v4531 = vmul.f32 %v4504, 0.5
        %v4532 = vmul.f32 %v4506, 0.5
        %v4533 = vmul.f32 %v4508, 0.5
        %v4534 = vmul.f32 %v4452, 0.044715
        %v4535 = vmul.f32 %v4454, 0.044715
        %v4536 = vmul.f32 %v4456, 0.044715
        %v4537 = vmul.f32 %v4458, 0.044715
        %v4538 = vmul.f32 %v4462, 0.044715
        %v4539 = vmul.f32 %v4464, 0.044715
        %v4540 = vmul.f32 %v4466, 0.044715
        %v4541 = vmul.f32 %v4468, 0.044715
        %v4542 = vmul.f32 %v4472, 0.044715
        %v4543 = vmul.f32 %v4474, 0.044715
        %v4544 = vmul.f32 %v4476, 0.044715
        %v4545 = vmul.f32 %v4478, 0.044715
        %v4546 = vmul.f32 %v4482, 0.044715
        %v4547 = vmul.f32 %v4484, 0.044715
        %v4548 = vmul.f32 %v4486, 0.044715
        %v4549 = vmul.f32 %v4488, 0.044715
        %v4550 = vmul.f32 %v4492, 0.044715
        %v4551 = vmul.f32 %v4494, 0.044715
        %v4552 = vmul.f32 %v4496, 0.044715
        %v4553 = vmul.f32 %v4498, 0.044715
        %v4554 = vmul.f32 %v4502, 0.044715
        %v4555 = vmul.f32 %v4504, 0.044715
        %v4556 = vmul.f32 %v4506, 0.044715
        %v4557 = vmul.f32 %v4508, 0.044715
        %v4558 = vmul.f32 %v4534, %v4452
        %v4559 = vmul.f32 %v4535, %v4454
        %v4560 = vmul.f32 %v4536, %v4456
        %v4561 = vmul.f32 %v4537, %v4458
        %v4562 = vmul.f32 %v4538, %v4462
        %v4563 = vmul.f32 %v4539, %v4464
        %v4564 = vmul.f32 %v4540, %v4466
        %v4565 = vmul.f32 %v4541, %v4468
        %v4566 = vmul.f32 %v4542, %v4472
        %v4567 = vmul.f32 %v4543, %v4474
        %v4568 = vmul.f32 %v4544, %v4476
        %v4569 = vmul.f32 %v4545, %v4478
        %v4570 = vmul.f32 %v4546, %v4482
        %v4571 = vmul.f32 %v4547, %v4484
        %v4572 = vmul.f32 %v4548, %v4486
        %v4573 = vmul.f32 %v4549, %v4488
        %v4574 = vmul.f32 %v4550, %v4492
        %v4575 = vmul.f32 %v4551, %v4494
        %v4576 = vmul.f32 %v4552, %v4496
        %v4577 = vmul.f32 %v4553, %v4498
        %v4578 = vmul.f32 %v4554, %v4502
        %v4579 = vmul.f32 %v4555, %v4504
        %v4580 = vmul.f32 %v4556, %v4506
        %v4581 = vmul.f32 %v4557, %v4508
        %v4582 = vmul.f32 %v4558, %v4452
        %v4583 = vmul.f32 %v4559, %v4454
        %v4584 = vmul.f32 %v4560, %v4456
        %v4585 = vmul.f32 %v4561, %v4458
        %v4586 = vmul.f32 %v4562, %v4462
        %v4587 = vmul.f32 %v4563, %v4464
        %v4588 = vmul.f32 %v4564, %v4466
        %v4589 = vmul.f32 %v4565, %v4468
        %v4590 = vmul.f32 %v4566, %v4472
        %v4591 = vmul.f32 %v4567, %v4474
        %v4592 = vmul.f32 %v4568, %v4476
        %v4593 = vmul.f32 %v4569, %v4478
        %v4594 = vmul.f32 %v4570, %v4482
        %v4595 = vmul.f32 %v4571, %v4484
        %v4596 = vmul.f32 %v4572, %v4486
        %v4597 = vmul.f32 %v4573, %v4488
        %v4598 = vmul.f32 %v4574, %v4492
        %v4599 = vmul.f32 %v4575, %v4494
        %v4600 = vmul.f32 %v4576, %v4496
        %v4601 = vmul.f32 %v4577, %v4498
        %v4602 = vmul.f32 %v4578, %v4502
        %v4603 = vmul.f32 %v4579, %v4504
        %v4604 = vmul.f32 %v4580, %v4506
        %v4605 = vmul.f32 %v4581, %v4508
        %v4606 = vadd.f32 %v4452, %v4582
        %v4607 = vadd.f32 %v4454, %v4583
        %v4608 = vadd.f32 %v4456, %v4584
        %v4609 = vadd.f32 %v4458, %v4585
        %v4610 = vadd.f32 %v4462, %v4586
        %v4611 = vadd.f32 %v4464, %v4587
        %v4612 = vadd.f32 %v4466, %v4588
        %v4613 = vadd.f32 %v4468, %v4589
        %v4614 = vadd.f32 %v4472, %v4590
        %v4615 = vadd.f32 %v4474, %v4591
        %v4616 = vadd.f32 %v4476, %v4592
        %v4617 = vadd.f32 %v4478, %v4593
        %v4618 = vadd.f32 %v4482, %v4594
        %v4619 = vadd.f32 %v4484, %v4595
        %v4620 = vadd.f32 %v4486, %v4596
        %v4621 = vadd.f32 %v4488, %v4597
        %v4622 = vadd.f32 %v4492, %v4598
        %v4623 = vadd.f32 %v4494, %v4599
        %v4624 = vadd.f32 %v4496, %v4600
        %v4625 = vadd.f32 %v4498, %v4601
        %v4626 = vadd.f32 %v4502, %v4602
        %v4627 = vadd.f32 %v4504, %v4603
        %v4628 = vadd.f32 %v4506, %v4604
        %v4629 = vadd.f32 %v4508, %v4605
        %v4630 = vmul.f32 %v4606, 0.7978846
        %v4631 = vmul.f32 %v4607, 0.7978846
        %v4632 = vmul.f32 %v4608, 0.7978846
        %v4633 = vmul.f32 %v4609, 0.7978846
        %v4634 = vmul.f32 %v4610, 0.7978846
        %v4635 = vmul.f32 %v4611, 0.7978846
        %v4636 = vmul.f32 %v4612, 0.7978846
        %v4637 = vmul.f32 %v4613, 0.7978846
        %v4638 = vmul.f32 %v4614, 0.7978846
        %v4639 = vmul.f32 %v4615, 0.7978846
        %v4640 = vmul.f32 %v4616, 0.7978846
        %v4641 = vmul.f32 %v4617, 0.7978846
        %v4642 = vmul.f32 %v4618, 0.7978846
        %v4643 = vmul.f32 %v4619, 0.7978846
        %v4644 = vmul.f32 %v4620, 0.7978846
        %v4645 = vmul.f32 %v4621, 0.7978846
        %v4646 = vmul.f32 %v4622, 0.7978846
        %v4647 = vmul.f32 %v4623, 0.7978846
        %v4648 = vmul.f32 %v4624, 0.7978846
        %v4649 = vmul.f32 %v4625, 0.7978846
        %v4650 = vmul.f32 %v4626, 0.7978846
        %v4651 = vmul.f32 %v4627, 0.7978846
        %v4652 = vmul.f32 %v4628, 0.7978846
        %v4653 = vmul.f32 %v4629, 0.7978846
        %v4654 = vtanh.pop %v4630
        %v4655 = vtanh.pop %v4631
        %v4656 = vtanh.pop %v4632
        %v4657 = vtanh.pop %v4633
        %v4658 = vtanh.pop %v4634
        %v4659 = vtanh.pop %v4635
        %v4660 = vtanh.pop %v4636
        %v4661 = vtanh.pop %v4637
        %v4662 = vtanh.pop %v4638
        %v4663 = vtanh.pop %v4639
        %v4664 = vtanh.pop %v4640
        %v4665 = vtanh.pop %v4641
        %v4666 = vtanh.pop %v4642
        %v4667 = vtanh.pop %v4643
        %v4668 = vtanh.pop %v4644
        %v4669 = vtanh.pop %v4645
        %v4670 = vtanh.pop %v4646
        %v4671 = vtanh.pop %v4647
        %v4672 = vtanh.pop %v4648
        %v4673 = vtanh.pop %v4649
        %v4674 = vtanh.pop %v4650
        %v4675 = vtanh.pop %v4651
        %v4676 = vtanh.pop %v4652
        %v4677 = vtanh.pop %v4653
        %v4678 = vadd.f32 %v4654, 1.0
        %v4679 = vadd.f32 %v4655, 1.0
        %v4680 = vadd.f32 %v4656, 1.0
        %v4681 = vadd.f32 %v4657, 1.0
        %v4682 = vadd.f32 %v4658, 1.0
        %v4683 = vadd.f32 %v4659, 1.0
        %v4684 = vadd.f32 %v4660, 1.0
        %v4685 = vadd.f32 %v4661, 1.0
        %v4686 = vadd.f32 %v4662, 1.0
        %v4687 = vadd.f32 %v4663, 1.0
        %v4688 = vadd.f32 %v4664, 1.0
        %v4689 = vadd.f32 %v4665, 1.0
        %v4690 = vadd.f32 %v4666, 1.0
        %v4691 = vadd.f32 %v4667, 1.0
        %v4692 = vadd.f32 %v4668, 1.0
        %v4693 = vadd.f32 %v4669, 1.0
        %v4694 = vadd.f32 %v4670, 1.0
        %v4695 = vadd.f32 %v4671, 1.0
        %v4696 = vadd.f32 %v4672, 1.0
        %v4697 = vadd.f32 %v4673, 1.0
        %v4698 = vadd.f32 %v4674, 1.0
        %v4699 = vadd.f32 %v4675, 1.0
        %v4700 = vadd.f32 %v4676, 1.0
        %v4701 = vadd.f32 %v4677, 1.0
        %v4702 = vmul.f32 %v4510, %v4678
        %v4703 = vmul.f32 %v4511, %v4679
        %v4704 = vmul.f32 %v4512, %v4680
        %v4705 = vmul.f32 %v4513, %v4681
        %v4706 = vmul.f32 %v4514, %v4682
        %v4707 = vmul.f32 %v4515, %v4683
        %v4708 = vmul.f32 %v4516, %v4684
        %v4709 = vmul.f32 %v4517, %v4685
        %v4710 = vmul.f32 %v4518, %v4686
        %v4711 = vmul.f32 %v4519, %v4687
        %v4712 = vmul.f32 %v4520, %v4688
        %v4713 = vmul.f32 %v4521, %v4689
        %v4714 = vmul.f32 %v4522, %v4690
        %v4715 = vmul.f32 %v4523, %v4691
        %v4716 = vmul.f32 %v4524, %v4692
        %v4717 = vmul.f32 %v4525, %v4693
        %v4718 = vmul.f32 %v4526, %v4694
        %v4719 = vmul.f32 %v4527, %v4695
        %v4720 = vmul.f32 %v4528, %v4696
        %v4721 = vmul.f32 %v4529, %v4697
        %v4722 = vmul.f32 %v4530, %v4698
        %v4723 = vmul.f32 %v4531, %v4699
        %v4724 = vmul.f32 %v4532, %v4700
        %v4725 = vmul.f32 %v4533, %v4701
        %v4726 = vpack.c.bf16 %v4704, %v4702
        %v4727 = vpack.c.bf16 %v4705, %v4703
        %v4728 = vpack.c.bf16 %v4708, %v4706
        %v4729 = vpack.c.bf16 %v4709, %v4707
        %v4730 = vpack.c.bf16 %v4712, %v4710
        %v4731 = vpack.c.bf16 %v4713, %v4711
        %v4732 = vpack.c.bf16 %v4716, %v4714
        %v4733 = vpack.c.bf16 %v4717, %v4715
        %v4734 = vpack.c.bf16 %v4720, %v4718
        %v4735 = vpack.c.bf16 %v4721, %v4719
        %v4736 = vpack.c.bf16 %v4724, %v4722
        %v4737 = vpack.c.bf16 %v4725, %v4723
        %v4738 = vld [vmem:[#allocation9] sm:$0xf]
        %v4739 = vld [vmem:[#allocation9 + $0x4] sm:$0xf]
        %v4740 = vld [vmem:[#allocation9 + $0x8] sm:$0xf]
        %v4741 = vld [vmem:[#allocation9 + $0xc] sm:$0xf]
        %v4742 = vld [vmem:[#allocation9 + $0x10] sm:$0xf]
        %v4743 = vld [vmem:[#allocation9 + $0x14] sm:$0xf]
        %v4744 = vld [vmem:[#allocation9 + $0x18] sm:$0xf]
        %v4745 = vld [vmem:[#allocation9 + $0x1c] sm:$0xf]
        %v4746 = vld [vmem:[#allocation9 + $0x20] sm:$0xf]
        %v4747 = vld [vmem:[#allocation9 + $0x24] sm:$0xf]
        %v4748 = vld [vmem:[#allocation9 + $0x28] sm:$0xf]
        %v4749 = vld [vmem:[#allocation9 + $0x2c] sm:$0xf]
        %v4750 = vld [vmem:[#allocation9 + $0x30] sm:$0xf]
        %v4751 = vld [vmem:[#allocation9 + $0x34] sm:$0xf]
        %v4752 = vld [vmem:[#allocation9 + $0x38] sm:$0xf]
        %v4753 = vld [vmem:[#allocation9 + $0x3c] sm:$0xf]
        %v4754 = vld [vmem:[#allocation9 + $0x40] sm:$0xf]
        %v4755 = vld [vmem:[#allocation9 + $0x44] sm:$0xf]
        %v4756 = vld [vmem:[#allocation9 + $0x48] sm:$0xf]
        %v4757 = vld [vmem:[#allocation9 + $0x4c] sm:$0xf]
        %v4758 = vld [vmem:[#allocation9 + $0x50] sm:$0xf]
        %v4759 = vld [vmem:[#allocation9 + $0x54] sm:$0xf]
        %v4760 = vld [vmem:[#allocation9 + $0x58] sm:$0xf]
        %v4761 = vld [vmem:[#allocation9 + $0x5c] sm:$0xf]
        %v4762 = vld [vmem:[#allocation9 + $0x60] sm:$0xf]
        %v4763 = vld [vmem:[#allocation9 + $0x64] sm:$0xf]
        %v4764 = vld [vmem:[#allocation9 + $0x68] sm:$0xf]
        %v4765 = vld [vmem:[#allocation9 + $0x6c] sm:$0xf]
        %v4766 = vld [vmem:[#allocation9 + $0x70] sm:$0xf]
        %v4767 = vld [vmem:[#allocation9 + $0x74] sm:$0xf]
        %v4768 = vld [vmem:[#allocation9 + $0x78] sm:$0xf]
        %v4769 = vld [vmem:[#allocation9 + $0x7c] sm:$0xf]
        %v4770 = vlaneseq
        %v4771 = vshrl.u32 %v4770, 7
        %v4772 = vsub.s32 5, %v4771
        %v4773 = vrot.slane %v700, %v4772
        %v4806 = vunpack.c.l.b16 %v4738
        %v4807 = vunpack.c.l.b16 %v4739
        %v4808 = vunpack.c.l.b16 %v4740
        %v4809 = vunpack.c.l.b16 %v4741
        %v4810 = vunpack.c.l.b16 %v4742
        %v4811 = vunpack.c.l.b16 %v4743
        %v4812 = vunpack.c.l.b16 %v4744
        %v4813 = vunpack.c.l.b16 %v4745
        %v4814 = vunpack.c.l.b16 %v4746
        %v4815 = vunpack.c.l.b16 %v4747
        %v4816 = vunpack.c.l.b16 %v4748
        %v4817 = vunpack.c.l.b16 %v4749
        %v4818 = vunpack.c.l.b16 %v4750
        %v4819 = vunpack.c.l.b16 %v4751
        %v4820 = vunpack.c.l.b16 %v4752
        %v4821 = vunpack.c.l.b16 %v4753
        %v4822 = vunpack.c.l.b16 %v4754
        %v4823 = vunpack.c.l.b16 %v4755
        %v4824 = vunpack.c.l.b16 %v4756
        %v4825 = vunpack.c.l.b16 %v4757
        %v4826 = vunpack.c.l.b16 %v4758
        %v4827 = vunpack.c.l.b16 %v4759
        %v4828 = vunpack.c.l.b16 %v4760
        %v4829 = vunpack.c.l.b16 %v4761
        %v4830 = vunpack.c.l.b16 %v4762
        %v4831 = vunpack.c.l.b16 %v4763
        %v4832 = vunpack.c.l.b16 %v4764
        %v4833 = vunpack.c.l.b16 %v4765
        %v4834 = vunpack.c.l.b16 %v4766
        %v4835 = vunpack.c.l.b16 %v4767
        %v4836 = vunpack.c.l.b16 %v4768
        %v4837 = vunpack.c.l.b16 %v4769
        %v4838 = vpack.c.b16 %v4807, %v4806
        %v4839 = vpack.c.b16 %v4809, %v4808
        %v4840 = vpack.c.b16 %v4811, %v4810
        %v4841 = vpack.c.b16 %v4813, %v4812
        %v4842 = vpack.c.b16 %v4815, %v4814
        %v4843 = vpack.c.b16 %v4817, %v4816
        %v4844 = vpack.c.b16 %v4819, %v4818
        %v4845 = vpack.c.b16 %v4821, %v4820
        %v4846 = vpack.c.b16 %v4823, %v4822
        %v4847 = vpack.c.b16 %v4825, %v4824
        %v4848 = vpack.c.b16 %v4827, %v4826
        %v4849 = vpack.c.b16 %v4829, %v4828
        %v4850 = vpack.c.b16 %v4831, %v4830
        %v4851 = vpack.c.b16 %v4833, %v4832
        %v4852 = vpack.c.b16 %v4835, %v4834
        %v4853 = vpack.c.b16 %v4837, %v4836
        %4870 = vmatprep.subr.bf16.mxu0 0
        %4871 = vmatpush1.bf16.msra.mxu0 %v4845
        %4872 = vmatprep.subr.bf16.mxu0 0
        %4873 = vmatpush1.bf16.msra.mxu0 %v4844
        %4874 = vmatprep.subr.bf16.mxu0 0
        %4875 = vmatpush1.bf16.msra.mxu0 %v4843
        %4876 = vmatprep.subr.bf16.mxu0 0
        %4877 = vmatpush1.bf16.msra.mxu0 %v4842
        %4878 = vmatprep.subr.bf16.mxu0 0
        %4879 = vmatpush1.bf16.msra.mxu0 %v4841
        %4880 = vmatprep.subr.bf16.mxu0 0
        %4881 = vmatpush1.bf16.msra.mxu0 %v4840
        %4882 = vmatprep.subr.bf16.mxu0 0
        %4883 = vmatpush1.bf16.msra.mxu0 %v4839
        %4884 = vmatprep.subr.bf16.mxu0 0
        %4885 = vmatpush1.bf16.msra.mxu0 %v4838
        %4886 = vmatprep.subr.bf16.mxu0 0
        %4887 = vmatpush2.bf16.msra.mxu0 %v4853
        %4888 = vmatprep.subr.bf16.mxu0 0
        %4889 = vmatpush2.bf16.msra.mxu0 %v4852
        %4890 = vmatprep.subr.bf16.mxu0 0
        %4891 = vmatpush2.bf16.msra.mxu0 %v4851
        %4892 = vmatprep.subr.bf16.mxu0 0
        %4893 = vmatpush2.bf16.msra.mxu0 %v4850
        %4894 = vmatprep.subr.bf16.mxu0 0
        %4895 = vmatpush2.bf16.msra.mxu0 %v4849
        %4896 = vmatprep.subr.bf16.mxu0 0
        %4897 = vmatpush2.bf16.msra.mxu0 %v4848
        %4898 = vmatprep.subr.bf16.mxu0 0
        %4899 = vmatpush2.bf16.msra.mxu0 %v4847
        %4900 = vmatprep.subr.bf16.mxu0 0
        %4901 = vmatpush2.bf16.msra.mxu0 %v4846
        %4902 = vmatprep.mubr.bf16.mxu0 %v4727
        %4903 = vmatmul.mubr.bf16.gmra.mxu0 %v4726
        %v4904 = vpop.f32.mrf.mxu0
        %v4905 = vadd.f32 %v4773, %v4904
        %v4906 = vpop.f32.mrf.mxu0
        %v4907 = vpop.f32.mrf.mxu0
        %v4908 = vadd.f32 %v4773, %v4907
        %v4909 = vpop.f32.mrf.mxu0
        %4910 = vmatprep.mubr.bf16.mxu0 %v4729
        %4911 = vmatmul.mubr.bf16.gmra.mxu0 %v4728
        %v4912 = vpop.f32.mrf.mxu0
        %v4913 = vadd.f32 %v4773, %v4912
        %v4914 = vpop.f32.mrf.mxu0
        %v4915 = vpop.f32.mrf.mxu0
        %v4916 = vadd.f32 %v4773, %v4915
        %v4917 = vpop.f32.mrf.mxu0
        %4918 = vmatprep.mubr.bf16.mxu0 %v4731
        %4919 = vmatmul.mubr.bf16.gmra.mxu0 %v4730
        %v4920 = vpop.f32.mrf.mxu0
        %v4921 = vadd.f32 %v4773, %v4920
        %v4922 = vpop.f32.mrf.mxu0
        %v4923 = vpop.f32.mrf.mxu0
        %v4924 = vadd.f32 %v4773, %v4923
        %v4925 = vpop.f32.mrf.mxu0
        %4926 = vmatprep.mubr.bf16.mxu0 %v4733
        %4927 = vmatmul.mubr.bf16.gmra.mxu0 %v4732
        %v4928 = vpop.f32.mrf.mxu0
        %v4929 = vadd.f32 %v4773, %v4928
        %v4930 = vpop.f32.mrf.mxu0
        %v4931 = vpop.f32.mrf.mxu0
        %v4932 = vadd.f32 %v4773, %v4931
        %v4933 = vpop.f32.mrf.mxu0
        %4934 = vmatprep.mubr.bf16.mxu0 %v4735
        %4935 = vmatmul.mubr.bf16.gmra.mxu0 %v4734
        %v4936 = vpop.f32.mrf.mxu0
        %v4937 = vadd.f32 %v4773, %v4936
        %v4938 = vpop.f32.mrf.mxu0
        %v4939 = vpop.f32.mrf.mxu0
        %v4940 = vadd.f32 %v4773, %v4939
        %v4941 = vpop.f32.mrf.mxu0
        %4942 = vmatprep.mubr.bf16.mxu0 %v4737
        %4943 = vmatmul.mubr.bf16.gmra.mxu0 %v4736
        %v4944 = vpop.f32.mrf.mxu0
        %v4945 = vadd.f32 %v4773, %v4944
        %v4946 = vpop.f32.mrf.mxu0
        %v4947 = vpop.f32.mrf.mxu0
        %v4948 = vadd.f32 %v4773, %v4947
        %v4949 = vpop.f32.mrf.mxu0
        %4950 = vdwg.mxu0
        %v4951 = vadd.f32 %v4131, %v4905
        %v4952 = vadd.f32 %v4132, %v4908
        %v4953 = vadd.f32 %v4133, %v4913
        %v4954 = vadd.f32 %v4134, %v4916
        %v4955 = vadd.f32 %v4135, %v4921
        %v4956 = vadd.f32 %v4136, %v4924
        %v4957 = vadd.f32 %v4137, %v4929
        %v4958 = vadd.f32 %v4138, %v4932
        %v4959 = vadd.f32 %v4139, %v4937
        %v4960 = vadd.f32 %v4140, %v4940
        %v4961 = vadd.f32 %v4141, %v4945
        %v4962 = vadd.f32 %v4142, %v4948
        %s4963 = scalar_lea.vmem [#allocation8], 256
        %v4964 = vld [vmem:[%s4963] sm:$0xff]
        %v4965 = vld [vmem:[%s4963 + $0x8] sm:$0xff]
        %v4966 = vld [vmem:[%s4963 + $0x10] sm:$0xff]
        %v4967 = vld [vmem:[%s4963 + $0x18] sm:$0xff]
        %v4968 = vld [vmem:[%s4963 + $0x20] sm:$0xff]
        %v4969 = vld [vmem:[%s4963 + $0x28] sm:$0xff]
        %v4970 = vld [vmem:[%s4963 + $0x30] sm:$0xff]
        %v4971 = vld [vmem:[%s4963 + $0x38] sm:$0xff]
        %v4972 = vld [vmem:[%s4963 + $0x40] sm:$0xff]
        %v4973 = vld [vmem:[%s4963 + $0x48] sm:$0xff]
        %v4974 = vld [vmem:[%s4963 + $0x50] sm:$0xff]
        %v4975 = vld [vmem:[%s4963 + $0x58] sm:$0xff]
        %v4976 = vld [vmem:[%s4963 + $0x60] sm:$0xff]
        %v4977 = vld [vmem:[%s4963 + $0x68] sm:$0xff]
        %v4978 = vld [vmem:[%s4963 + $0x70] sm:$0xff]
        %v4979 = vld [vmem:[%s4963 + $0x78] sm:$0xff]
        %v4980 = vld [vmem:[%s4963 + $0x80] sm:$0xff]
        %v4981 = vld [vmem:[%s4963 + $0x88] sm:$0xff]
        %v4982 = vld [vmem:[%s4963 + $0x90] sm:$0xff]
        %v4983 = vld [vmem:[%s4963 + $0x98] sm:$0xff]
        %v4984 = vld [vmem:[%s4963 + $0xa0] sm:$0xff]
        %v4985 = vld [vmem:[%s4963 + $0xa8] sm:$0xff]
        %v4986 = vld [vmem:[%s4963 + $0xb0] sm:$0xff]
        %v4987 = vld [vmem:[%s4963 + $0xb8] sm:$0xff]
        %v4988 = vld [vmem:[%s4963 + $0xc0] sm:$0xff]
        %v4989 = vld [vmem:[%s4963 + $0xc8] sm:$0xff]
        %v4990 = vld [vmem:[%s4963 + $0xd0] sm:$0xff]
        %v4991 = vld [vmem:[%s4963 + $0xd8] sm:$0xff]
        %v4992 = vld [vmem:[%s4963 + $0xe0] sm:$0xff]
        %v4993 = vld [vmem:[%s4963 + $0xe8] sm:$0xff]
        %v4994 = vld [vmem:[%s4963 + $0xf0] sm:$0xff]
        %v4995 = vld [vmem:[%s4963 + $0xf8] sm:$0xff]
        %s4996 = scalar_lea.vmem %s4, 24
        %v4997 = vld [vmem:[%s4996] sm:$0xff]
        %v4998 = vld [vmem:[%s4996 + $0x8] sm:$0xff]
        %v4999 = vld [vmem:[%s4996 + $0x10] sm:$0xff]
        %5000 = vadd.xlane.f32.xlu0 %v4951
        %v5001 = vpop.xlane.xlu0 %5000
        %5002 = vadd.xlane.f32.xlu0 %v4952
        %v5003 = vpop.xlane.xlu0 %5002
        %5004 = vadd.xlane.f32.xlu0 %v4953
        %v5005 = vpop.xlane.xlu0 %5004
        %5006 = vadd.xlane.f32.xlu0 %v4954
        %v5007 = vpop.xlane.xlu0 %5006
        %5008 = vadd.xlane.f32.xlu0 %v4955
        %v5009 = vpop.xlane.xlu0 %5008
        %5010 = vadd.xlane.f32.xlu0 %v4956
        %v5011 = vpop.xlane.xlu0 %5010
        %5012 = vadd.xlane.f32.xlu0 %v4957
        %v5013 = vpop.xlane.xlu0 %5012
        %5014 = vadd.xlane.f32.xlu0 %v4958
        %v5015 = vpop.xlane.xlu0 %5014
        %5016 = vadd.xlane.f32.xlu0 %v4959
        %v5017 = vpop.xlane.xlu0 %5016
        %5018 = vadd.xlane.f32.xlu0 %v4960
        %v5019 = vpop.xlane.xlu0 %5018
        %5020 = vadd.xlane.f32.xlu0 %v4961
        %v5021 = vpop.xlane.xlu0 %5020
        %5022 = vadd.xlane.f32.xlu0 %v4962
        %v5023 = vpop.xlane.xlu0 %5022
        %v5024 = vmul.f32 %v5001, %v727
        %v5025 = vmul.f32 %v5003, %v727
        %v5026 = vmul.f32 %v5005, %v727
        %v5027 = vmul.f32 %v5007, %v727
        %v5028 = vmul.f32 %v5009, %v727
        %v5029 = vmul.f32 %v5011, %v727
        %v5030 = vmul.f32 %v5013, %v727
        %v5031 = vmul.f32 %v5015, %v727
        %v5032 = vmul.f32 %v5017, %v727
        %v5033 = vmul.f32 %v5019, %v727
        %v5034 = vmul.f32 %v5021, %v727
        %v5035 = vmul.f32 %v5023, %v727
        %v5036 = vsub.f32 %v4951, %v5024
        %v5037 = vsub.f32 %v4952, %v5025
        %v5038 = vsub.f32 %v4953, %v5026
        %v5039 = vsub.f32 %v4954, %v5027
        %v5040 = vsub.f32 %v4955, %v5028
        %v5041 = vsub.f32 %v4956, %v5029
        %v5042 = vsub.f32 %v4957, %v5030
        %v5043 = vsub.f32 %v4958, %v5031
        %v5044 = vsub.f32 %v4959, %v5032
        %v5045 = vsub.f32 %v4960, %v5033
        %v5046 = vsub.f32 %v4961, %v5034
        %v5047 = vsub.f32 %v4962, %v5035
        %v5048 = vmul.f32 %v5036, %v5036
        %v5049 = vmul.f32 %v5037, %v5037
        %v5050 = vmul.f32 %v5038, %v5038
        %v5051 = vmul.f32 %v5039, %v5039
        %v5052 = vmul.f32 %v5040, %v5040
        %v5053 = vmul.f32 %v5041, %v5041
        %v5054 = vmul.f32 %v5042, %v5042
        %v5055 = vmul.f32 %v5043, %v5043
        %v5056 = vmul.f32 %v5044, %v5044
        %v5057 = vmul.f32 %v5045, %v5045
        %v5058 = vmul.f32 %v5046, %v5046
        %v5059 = vmul.f32 %v5047, %v5047
        %5060 = vadd.xlane.f32.xlu0 %v5048
        %v5061 = vpop.xlane.xlu0 %5060
        %5062 = vadd.xlane.f32.xlu0 %v5049
        %v5063 = vpop.xlane.xlu0 %5062
        %5064 = vadd.xlane.f32.xlu0 %v5050
        %v5065 = vpop.xlane.xlu0 %5064
        %5066 = vadd.xlane.f32.xlu0 %v5051
        %v5067 = vpop.xlane.xlu0 %5066
        %5068 = vadd.xlane.f32.xlu0 %v5052
        %v5069 = vpop.xlane.xlu0 %5068
        %5070 = vadd.xlane.f32.xlu0 %v5053
        %v5071 = vpop.xlane.xlu0 %5070
        %5072 = vadd.xlane.f32.xlu0 %v5054
        %v5073 = vpop.xlane.xlu0 %5072
        %5074 = vadd.xlane.f32.xlu0 %v5055
        %v5075 = vpop.xlane.xlu0 %5074
        %5076 = vadd.xlane.f32.xlu0 %v5056
        %v5077 = vpop.xlane.xlu0 %5076
        %5078 = vadd.xlane.f32.xlu0 %v5057
        %v5079 = vpop.xlane.xlu0 %5078
        %5080 = vadd.xlane.f32.xlu0 %v5058
        %v5081 = vpop.xlane.xlu0 %5080
        %5082 = vadd.xlane.f32.xlu0 %v5059
        %v5083 = vpop.xlane.xlu0 %5082
        %v5084 = vmul.f32 %v5061, %v727
        %v5085 = vmul.f32 %v5063, %v727
        %v5086 = vmul.f32 %v5065, %v727
        %v5087 = vmul.f32 %v5067, %v727
        %v5088 = vmul.f32 %v5069, %v727
        %v5089 = vmul.f32 %v5071, %v727
        %v5090 = vmul.f32 %v5073, %v727
        %v5091 = vmul.f32 %v5075, %v727
        %v5092 = vmul.f32 %v5077, %v727
        %v5093 = vmul.f32 %v5079, %v727
        %v5094 = vmul.f32 %v5081, %v727
        %v5095 = vmul.f32 %v5083, %v727
        %v5096 = vadd.f32 %v5084, 1e-05
        %v5097 = vadd.f32 %v5085, 1e-05
        %v5098 = vadd.f32 %v5086, 1e-05
        %v5099 = vadd.f32 %v5087, 1e-05
        %v5100 = vadd.f32 %v5088, 1e-05
        %v5101 = vadd.f32 %v5089, 1e-05
        %v5102 = vadd.f32 %v5090, 1e-05
        %v5103 = vadd.f32 %v5091, 1e-05
        %v5104 = vadd.f32 %v5092, 1e-05
        %v5105 = vadd.f32 %v5093, 1e-05
        %v5106 = vadd.f32 %v5094, 1e-05
        %v5107 = vadd.f32 %v5095, 1e-05
        %v5108 = vrsqrt.pop %v5096
        %v5109 = vrsqrt.pop %v5097
        %v5110 = vrsqrt.pop %v5098
        %v5111 = vrsqrt.pop %v5099
        %v5112 = vrsqrt.pop %v5100
        %v5113 = vrsqrt.pop %v5101
        %v5114 = vrsqrt.pop %v5102
        %v5115 = vrsqrt.pop %v5103
        %v5116 = vrsqrt.pop %v5104
        %v5117 = vrsqrt.pop %v5105
        %v5118 = vrsqrt.pop %v5106
        %v5119 = vrsqrt.pop %v5107
        %v5120 = vmul.f32 %v5036, %v5108
        %v5121 = vmul.f32 %v5037, %v5109
        %v5122 = vmul.f32 %v5038, %v5110
        %v5123 = vmul.f32 %v5039, %v5111
        %v5124 = vmul.f32 %v5040, %v5112
        %v5125 = vmul.f32 %v5041, %v5113
        %v5126 = vmul.f32 %v5042, %v5114
        %v5127 = vmul.f32 %v5043, %v5115
        %v5128 = vmul.f32 %v5044, %v5116
        %v5129 = vmul.f32 %v5045, %v5117
        %v5130 = vmul.f32 %v5046, %v5118
        %v5131 = vmul.f32 %v5047, %v5119
        %v5132 = vlaneseq
        %v5133 = vshrl.u32 %v5132, 7
        %v5134 = vsub.s32 0, %v5133
        %v5135 = vrot.slane %v4997, %v5134
        %v5136 = vmul.f32 %v5120, %v5135
        %v5137 = vmul.f32 %v5121, %v5135
        %v5138 = vmul.f32 %v5122, %v5135
        %v5139 = vmul.f32 %v5123, %v5135
        %v5140 = vmul.f32 %v5124, %v5135
        %v5141 = vmul.f32 %v5125, %v5135
        %v5142 = vmul.f32 %v5126, %v5135
        %v5143 = vmul.f32 %v5127, %v5135
        %v5144 = vmul.f32 %v5128, %v5135
        %v5145 = vmul.f32 %v5129, %v5135
        %v5146 = vmul.f32 %v5130, %v5135
        %v5147 = vmul.f32 %v5131, %v5135
        %v5148 = vlaneseq
        %v5149 = vshrl.u32 %v5148, 7
        %v5150 = vsub.s32 1, %v5149
        %v5151 = vrot.slane %v4997, %v5150
        %v5152 = vadd.f32 %v5136, %v5151
        %v5153 = vadd.f32 %v5137, %v5151
        %v5154 = vadd.f32 %v5138, %v5151
        %v5155 = vadd.f32 %v5139, %v5151
        %v5156 = vadd.f32 %v5140, %v5151
        %v5157 = vadd.f32 %v5141, %v5151
        %v5158 = vadd.f32 %v5142, %v5151
        %v5159 = vadd.f32 %v5143, %v5151
        %v5160 = vadd.f32 %v5144, %v5151
        %v5161 = vadd.f32 %v5145, %v5151
        %v5162 = vadd.f32 %v5146, %v5151
        %v5163 = vadd.f32 %v5147, %v5151
        %v5164 = vpack.c.bf16 %v5153, %v5152
        %v5165 = vpack.c.bf16 %v5155, %v5154
        %v5166 = vpack.c.bf16 %v5157, %v5156
        %v5167 = vpack.c.bf16 %v5159, %v5158
        %v5168 = vpack.c.bf16 %v5161, %v5160
        %v5169 = vpack.c.bf16 %v5163, %v5162
        %v5170 = vlaneseq
        %v5171 = vshrl.u32 %v5170, 7
        %v5172 = vsub.s32 7, %v5171
        %v5173 = vrot.slane %v4997, %v5172
        %v5174 = vlaneseq
        %v5175 = vshrl.u32 %v5174, 7
        %v5176 = vsub.s32 7, %v5175
        %v5177 = vrot.slane %v4998, %v5176
        %v5178 = vlaneseq
        %v5179 = vshrl.u32 %v5178, 7
        %v5180 = vsub.s32 7, %v5179
        %v5181 = vrot.slane %v4999, %v5180
        %v5214 = vunpack.c.l.b16 %v4964
        %v5215 = vunpack.c.h.b16 %v4964
        %v5216 = vunpack.c.l.b16 %v4965
        %v5217 = vunpack.c.l.b16 %v4966
        %v5218 = vunpack.c.h.b16 %v4966
        %v5219 = vunpack.c.l.b16 %v4967
        %v5220 = vunpack.c.l.b16 %v4968
        %v5221 = vunpack.c.h.b16 %v4968
        %v5222 = vunpack.c.l.b16 %v4969
        %v5223 = vunpack.c.l.b16 %v4970
        %v5224 = vunpack.c.h.b16 %v4970
        %v5225 = vunpack.c.l.b16 %v4971
        %v5226 = vunpack.c.l.b16 %v4972
        %v5227 = vunpack.c.h.b16 %v4972
        %v5228 = vunpack.c.l.b16 %v4973
        %v5229 = vunpack.c.l.b16 %v4974
        %v5230 = vunpack.c.h.b16 %v4974
        %v5231 = vunpack.c.l.b16 %v4975
        %v5232 = vunpack.c.l.b16 %v4976
        %v5233 = vunpack.c.h.b16 %v4976
        %v5234 = vunpack.c.l.b16 %v4977
        %v5235 = vunpack.c.l.b16 %v4978
        %v5236 = vunpack.c.h.b16 %v4978
        %v5237 = vunpack.c.l.b16 %v4979
        %v5238 = vunpack.c.l.b16 %v4980
        %v5239 = vunpack.c.h.b16 %v4980
        %v5240 = vunpack.c.l.b16 %v4981
        %v5241 = vunpack.c.l.b16 %v4982
        %v5242 = vunpack.c.h.b16 %v4982
        %v5243 = vunpack.c.l.b16 %v4983
        %v5244 = vunpack.c.l.b16 %v4984
        %v5245 = vunpack.c.h.b16 %v4984
        %v5246 = vunpack.c.l.b16 %v4985
        %v5247 = vunpack.c.l.b16 %v4986
        %v5248 = vunpack.c.h.b16 %v4986
        %v5249 = vunpack.c.l.b16 %v4987
        %v5250 = vunpack.c.l.b16 %v4988
        %v5251 = vunpack.c.h.b16 %v4988
        %v5252 = vunpack.c.l.b16 %v4989
        %v5253 = vunpack.c.l.b16 %v4990
        %v5254 = vunpack.c.h.b16 %v4990
        %v5255 = vunpack.c.l.b16 %v4991
        %v5256 = vunpack.c.l.b16 %v4992
        %v5257 = vunpack.c.h.b16 %v4992
        %v5258 = vunpack.c.l.b16 %v4993
        %v5259 = vunpack.c.l.b16 %v4994
        %v5260 = vunpack.c.h.b16 %v4994
        %v5261 = vunpack.c.l.b16 %v4995
        %v5262 = vpack.c.b16 %v5217, %v5214
        %v5263 = vpack.c.b16 %v5218, %v5215
        %v5264 = vpack.c.b16 %v5219, %v5216
        %v5265 = vpack.c.b16 %v5223, %v5220
        %v5266 = vpack.c.b16 %v5224, %v5221
        %v5267 = vpack.c.b16 %v5225, %v5222
        %v5268 = vpack.c.b16 %v5229, %v5226
        %v5269 = vpack.c.b16 %v5230, %v5227
        %v5270 = vpack.c.b16 %v5231, %v5228
        %v5271 = vpack.c.b16 %v5235, %v5232
        %v5272 = vpack.c.b16 %v5236, %v5233
        %v5273 = vpack.c.b16 %v5237, %v5234
        %v5274 = vpack.c.b16 %v5241, %v5238
        %v5275 = vpack.c.b16 %v5242, %v5239
        %v5276 = vpack.c.b16 %v5243, %v5240
        %v5277 = vpack.c.b16 %v5247, %v5244
        %v5278 = vpack.c.b16 %v5248, %v5245
        %v5279 = vpack.c.b16 %v5249, %v5246
        %v5280 = vpack.c.b16 %v5253, %v5250
        %v5281 = vpack.c.b16 %v5254, %v5251
        %v5282 = vpack.c.b16 %v5255, %v5252
        %v5283 = vpack.c.b16 %v5259, %v5256
        %v5284 = vpack.c.b16 %v5260, %v5257
        %v5285 = vpack.c.b16 %v5261, %v5258
        %5310 = vmatprep.subr.bf16.mxu0 %v5284
        %5311 = vmatpush1.bf16.msra.mxu0 %v5283
        %5312 = vmatprep.subr.bf16.mxu0 %v5281
        %5313 = vmatpush1.bf16.msra.mxu0 %v5280
        %5314 = vmatprep.subr.bf16.mxu0 %v5278
        %5315 = vmatpush1.bf16.msra.mxu0 %v5277
        %5316 = vmatprep.subr.bf16.mxu0 %v5275
        %5317 = vmatpush1.bf16.msra.mxu0 %v5274
        %5318 = vmatprep.subr.bf16.mxu0 %v5272
        %5319 = vmatpush1.bf16.msra.mxu0 %v5271
        %5320 = vmatprep.subr.bf16.mxu0 %v5269
        %5321 = vmatpush1.bf16.msra.mxu0 %v5268
        %5322 = vmatprep.subr.bf16.mxu0 %v5266
        %5323 = vmatpush1.bf16.msra.mxu0 %v5265
        %5324 = vmatprep.subr.bf16.mxu0 %v5263
        %5325 = vmatpush1.bf16.msra.mxu0 %v5262
        %5326 = vmatprep.subr.bf16.mxu0 0
        %5327 = vmatpush2.bf16.msra.mxu0 0
        %5328 = vmatprep.subr.bf16.mxu0 0
        %5329 = vmatpush2.bf16.msra.mxu0 0
        %5330 = vmatprep.subr.bf16.mxu0 0
        %5331 = vmatpush2.bf16.msra.mxu0 0
        %5332 = vmatprep.subr.bf16.mxu0 0
        %5333 = vmatpush2.bf16.msra.mxu0 0
        %5334 = vmatprep.subr.bf16.mxu0 0
        %5335 = vmatpush2.bf16.msra.mxu0 0
        %5336 = vmatprep.subr.bf16.mxu0 0
        %5337 = vmatpush2.bf16.msra.mxu0 0
        %5338 = vmatprep.subr.bf16.mxu0 0
        %5339 = vmatpush2.bf16.msra.mxu0 0
        %5340 = vmatprep.subr.bf16.mxu0 0
        %5341 = vmatpush2.bf16.msra.mxu0 0
        %5342 = vmatprep.mubr.bf16.mxu0 0
        %5343 = vmatmul.mubr.bf16.gmra.mxu0 %v5164
        %v5344 = vpop.f32.mrf.mxu0
        %v5345 = vadd.f32 %v5173, %v5344
        %v5346 = vpop.f32.mrf.mxu0
        %v5347 = vadd.f32 %v5177, %v5346
        %v5348 = vpop.f32.mrf.mxu0
        %v5349 = vadd.f32 %v5173, %v5348
        %v5350 = vpop.f32.mrf.mxu0
        %v5351 = vadd.f32 %v5177, %v5350
        %5352 = vmatprep.mubr.bf16.mxu0 0
        %5353 = vmatmul.mubr.bf16.gmra.mxu0 %v5165
        %v5354 = vpop.f32.mrf.mxu0
        %v5355 = vadd.f32 %v5173, %v5354
        %v5356 = vpop.f32.mrf.mxu0
        %v5357 = vadd.f32 %v5177, %v5356
        %v5358 = vpop.f32.mrf.mxu0
        %v5359 = vadd.f32 %v5173, %v5358
        %v5360 = vpop.f32.mrf.mxu0
        %v5361 = vadd.f32 %v5177, %v5360
        %5362 = vmatprep.mubr.bf16.mxu0 0
        %5363 = vmatmul.mubr.bf16.gmra.mxu0 %v5166
        %v5364 = vpop.f32.mrf.mxu0
        %v5365 = vadd.f32 %v5173, %v5364
        %v5366 = vpop.f32.mrf.mxu0
        %v5367 = vadd.f32 %v5177, %v5366
        %v5368 = vpop.f32.mrf.mxu0
        %v5369 = vadd.f32 %v5173, %v5368
        %v5370 = vpop.f32.mrf.mxu0
        %v5371 = vadd.f32 %v5177, %v5370
        %5372 = vmatprep.mubr.bf16.mxu0 0
        %5373 = vmatmul.mubr.bf16.gmra.mxu0 %v5167
        %v5374 = vpop.f32.mrf.mxu0
        %v5375 = vadd.f32 %v5173, %v5374
        %v5376 = vpop.f32.mrf.mxu0
        %v5377 = vadd.f32 %v5177, %v5376
        %v5378 = vpop.f32.mrf.mxu0
        %v5379 = vadd.f32 %v5173, %v5378
        %v5380 = vpop.f32.mrf.mxu0
        %v5381 = vadd.f32 %v5177, %v5380
        %5382 = vmatprep.mubr.bf16.mxu0 0
        %5383 = vmatmul.mubr.bf16.gmra.mxu0 %v5168
        %v5384 = vpop.f32.mrf.mxu0
        %v5385 = vadd.f32 %v5173, %v5384
        %v5386 = vpop.f32.mrf.mxu0
        %v5387 = vadd.f32 %v5177, %v5386
        %v5388 = vpop.f32.mrf.mxu0
        %v5389 = vadd.f32 %v5173, %v5388
        %v5390 = vpop.f32.mrf.mxu0
        %v5391 = vadd.f32 %v5177, %v5390
        %5392 = vmatprep.mubr.bf16.mxu0 0
        %5393 = vmatmul.mubr.bf16.gmra.mxu0 %v5169
        %v5394 = vpop.f32.mrf.mxu0
        %v5395 = vadd.f32 %v5173, %v5394
        %v5396 = vpop.f32.mrf.mxu0
        %v5397 = vadd.f32 %v5177, %v5396
        %v5398 = vpop.f32.mrf.mxu0
        %v5399 = vadd.f32 %v5173, %v5398
        %v5400 = vpop.f32.mrf.mxu0
        %v5401 = vadd.f32 %v5177, %v5400
        %5402 = vdwg.mxu0
        %5403 = vmatprep.subr.bf16.mxu0 0
        %5404 = vmatpush1.bf16.msra.mxu0 %v5285
        %5405 = vmatprep.subr.bf16.mxu0 0
        %5406 = vmatpush1.bf16.msra.mxu0 %v5282
        %5407 = vmatprep.subr.bf16.mxu0 0
        %5408 = vmatpush1.bf16.msra.mxu0 %v5279
        %5409 = vmatprep.subr.bf16.mxu0 0
        %5410 = vmatpush1.bf16.msra.mxu0 %v5276
        %5411 = vmatprep.subr.bf16.mxu0 0
        %5412 = vmatpush1.bf16.msra.mxu0 %v5273
        %5413 = vmatprep.subr.bf16.mxu0 0
        %5414 = vmatpush1.bf16.msra.mxu0 %v5270
        %5415 = vmatprep.subr.bf16.mxu0 0
        %5416 = vmatpush1.bf16.msra.mxu0 %v5267
        %5417 = vmatprep.subr.bf16.mxu0 0
        %5418 = vmatpush1.bf16.msra.mxu0 %v5264
        %5419 = vmatprep.subr.bf16.mxu0 0
        %5420 = vmatpush2.bf16.msra.mxu0 0
        %5421 = vmatprep.subr.bf16.mxu0 0
        %5422 = vmatpush2.bf16.msra.mxu0 0
        %5423 = vmatprep.subr.bf16.mxu0 0
        %5424 = vmatpush2.bf16.msra.mxu0 0
        %5425 = vmatprep.subr.bf16.mxu0 0
        %5426 = vmatpush2.bf16.msra.mxu0 0
        %5427 = vmatprep.subr.bf16.mxu0 0
        %5428 = vmatpush2.bf16.msra.mxu0 0
        %5429 = vmatprep.subr.bf16.mxu0 0
        %5430 = vmatpush2.bf16.msra.mxu0 0
        %5431 = vmatprep.subr.bf16.mxu0 0
        %5432 = vmatpush2.bf16.msra.mxu0 0
        %5433 = vmatprep.subr.bf16.mxu0 0
        %5434 = vmatpush2.bf16.msra.mxu0 0
        %5435 = vmatprep.mubr.bf16.mxu0 0
        %5436 = vmatmul.mubr.bf16.gmra.mxu0 %v5164
        %v5437 = vpop.f32.mrf.mxu0
        %v5438 = vadd.f32 %v5181, %v5437
        %v5439 = vpop.f32.mrf.mxu0
        %v5440 = vpop.f32.mrf.mxu0
        %v5441 = vadd.f32 %v5181, %v5440
        %v5442 = vpop.f32.mrf.mxu0
        %5443 = vmatprep.mubr.bf16.mxu0 0
        %5444 = vmatmul.mubr.bf16.gmra.mxu0 %v5165
        %v5445 = vpop.f32.mrf.mxu0
        %v5446 = vadd.f32 %v5181, %v5445
        %v5447 = vpop.f32.mrf.mxu0
        %v5448 = vpop.f32.mrf.mxu0
        %v5449 = vadd.f32 %v5181, %v5448
        %v5450 = vpop.f32.mrf.mxu0
        %5451 = vmatprep.mubr.bf16.mxu0 0
        %5452 = vmatmul.mubr.bf16.gmra.mxu0 %v5166
        %v5453 = vpop.f32.mrf.mxu0
        %v5454 = vadd.f32 %v5181, %v5453
        %v5455 = vpop.f32.mrf.mxu0
        %v5456 = vpop.f32.mrf.mxu0
        %v5457 = vadd.f32 %v5181, %v5456
        %v5458 = vpop.f32.mrf.mxu0
        %5459 = vmatprep.mubr.bf16.mxu0 0
        %5460 = vmatmul.mubr.bf16.gmra.mxu0 %v5167
        %v5461 = vpop.f32.mrf.mxu0
        %v5462 = vadd.f32 %v5181, %v5461
        %v5463 = vpop.f32.mrf.mxu0
        %v5464 = vpop.f32.mrf.mxu0
        %v5465 = vadd.f32 %v5181, %v5464
        %v5466 = vpop.f32.mrf.mxu0
        %5467 = vmatprep.mubr.bf16.mxu0 0
        %5468 = vmatmul.mubr.bf16.gmra.mxu0 %v5168
        %v5469 = vpop.f32.mrf.mxu0
        %v5470 = vadd.f32 %v5181, %v5469
        %v5471 = vpop.f32.mrf.mxu0
        %v5472 = vpop.f32.mrf.mxu0
        %v5473 = vadd.f32 %v5181, %v5472
        %v5474 = vpop.f32.mrf.mxu0
        %5475 = vmatprep.mubr.bf16.mxu0 0
        %5476 = vmatmul.mubr.bf16.gmra.mxu0 %v5169
        %v5477 = vpop.f32.mrf.mxu0
        %v5478 = vadd.f32 %v5181, %v5477
        %v5479 = vpop.f32.mrf.mxu0
        %v5480 = vpop.f32.mrf.mxu0
        %v5481 = vadd.f32 %v5181, %v5480
        %v5482 = vpop.f32.mrf.mxu0
        %5483 = vdwg.mxu0
        %v5484 = vpack.c.bf16 %v5349, %v5345
        %v5485 = vpack.c.bf16 %v5355, %v5355
        %v5486 = vpack.c.bf16 %v5365, %v5359
        %v5487 = vpack.c.bf16 %v5369, %v5369
        %v5488 = vpack.c.bf16 %v5379, %v5375
        %v5489 = vpack.c.bf16 %v5385, %v5385
        %v5490 = vpack.c.bf16 %v5395, %v5389
        %v5491 = vpack.c.bf16 %v5399, %v5399
        %v5492 = vpack.c.bf16 %v5351, %v5347
        %v5493 = vpack.c.bf16 %v5357, %v5357
        %v5494 = vpack.c.bf16 %v5367, %v5361
        %v5495 = vpack.c.bf16 %v5371, %v5371
        %v5496 = vpack.c.bf16 %v5381, %v5377
        %v5497 = vpack.c.bf16 %v5387, %v5387
        %v5498 = vpack.c.bf16 %v5397, %v5391
        %v5499 = vpack.c.bf16 %v5401, %v5401
        %v5500 = vpack.c.bf16 %v5441, %v5438
        %v5501 = vpack.c.bf16 %v5446, %v5446
        %v5502 = vpack.c.bf16 %v5454, %v5449
        %v5503 = vpack.c.bf16 %v5457, %v5457
        %v5504 = vpack.c.bf16 %v5465, %v5462
        %v5505 = vpack.c.bf16 %v5470, %v5470
        %v5506 = vpack.c.bf16 %v5478, %v5473
        %v5507 = vpack.c.bf16 %v5481, %v5481
        %v5509 = vsel %vm1212, %v5484, 0
        %v5512 = vsel %vm1212, %v5485, 0
        %v5515 = vsel %vm1212, %v5492, 0
        %v5518 = vsel %vm1212, %v5493, 0
        %5520 = vmatprep.subr.bf16.mxu0 0
        %5521 = vmatpush1.bf16.xpose.msra.mxu0 0
        %5522 = vmatprep.subr.bf16.mxu0 0
        %5523 = vmatpush1.bf16.xpose.msra.mxu0 0
        %5524 = vmatprep.subr.bf16.mxu0 0
        %5525 = vmatpush1.bf16.xpose.msra.mxu0 0
        %5526 = vmatprep.subr.bf16.mxu0 0
        %5527 = vmatpush1.bf16.xpose.msra.mxu0 0
        %5528 = vmatprep.subr.bf16.mxu0 0
        %5529 = vmatpush1.bf16.xpose.msra.mxu0 0
        %5530 = vmatprep.subr.bf16.mxu0 0
        %5531 = vmatpush1.bf16.xpose.msra.mxu0 0
        %5532 = vmatprep.subr.bf16.mxu0 0
        %5533 = vmatpush1.bf16.xpose.msra.mxu0 %v5518
        %5534 = vmatprep.subr.bf16.mxu0 0
        %5535 = vmatpush1.bf16.xpose.msra.mxu0 %v5515
        %5536 = vmatprep.subr.bf16.mxu0 0
        %5537 = vmatpush2.bf16.xpose.msra.mxu0 0
        %5538 = vmatprep.subr.bf16.mxu0 0
        %5539 = vmatpush2.bf16.xpose.msra.mxu0 0
        %5540 = vmatprep.subr.bf16.mxu0 0
        %5541 = vmatpush2.bf16.xpose.msra.mxu0 0
        %5542 = vmatprep.subr.bf16.mxu0 0
        %5543 = vmatpush2.bf16.xpose.msra.mxu0 0
        %5544 = vmatprep.subr.bf16.mxu0 0
        %5545 = vmatpush2.bf16.xpose.msra.mxu0 0
        %5546 = vmatprep.subr.bf16.mxu0 0
        %5547 = vmatpush2.bf16.xpose.msra.mxu0 0
        %5548 = vmatprep.subr.bf16.mxu0 0
        %5549 = vmatpush2.bf16.xpose.msra.mxu0 0
        %5550 = vmatprep.subr.bf16.mxu0 0
        %5551 = vmatpush2.bf16.xpose.msra.mxu0 0
        %5552 = vmatprep.mubr.bf16.mxu0 0
        %5553 = vmatmul.mubr.bf16.gmra.mxu0 %v5509
        %v5554 = vpop.f32.mrf.mxu0
        %v5555 = vadd.f32 %v667, %v5554
        %v5556 = vpop.f32.mrf.mxu0
        %v5557 = vpop.f32.mrf.mxu0
        %v5558 = vadd.f32 %v667, %v5557
        %v5559 = vpop.f32.mrf.mxu0
        %5560 = vmatprep.mubr.bf16.mxu0 0
        %5561 = vmatmul.mubr.bf16.gmra.mxu0 %v5512
        %v5562 = vpop.f32.mrf.mxu0
        %v5563 = vadd.f32 %v667, %v5562
        %v5564 = vpop.f32.mrf.mxu0
        %v5565 = vpop.f32.mrf.mxu0
        %v5566 = vpop.f32.mrf.mxu0
        %5567 = vdwg.mxu0
        %v5569 = vsel %vm1212, %v5486, 0
        %v5572 = vsel %vm1212, %v5487, 0
        %v5575 = vsel %vm1212, %v5494, 0
        %v5578 = vsel %vm1212, %v5495, 0
        %5580 = vmatprep.subr.bf16.mxu0 0
        %5581 = vmatpush1.bf16.xpose.msra.mxu0 0
        %5582 = vmatprep.subr.bf16.mxu0 0
        %5583 = vmatpush1.bf16.xpose.msra.mxu0 0
        %5584 = vmatprep.subr.bf16.mxu0 0
        %5585 = vmatpush1.bf16.xpose.msra.mxu0 0
        %5586 = vmatprep.subr.bf16.mxu0 0
        %5587 = vmatpush1.bf16.xpose.msra.mxu0 0
        %5588 = vmatprep.subr.bf16.mxu0 0
        %5589 = vmatpush1.bf16.xpose.msra.mxu0 0
        %5590 = vmatprep.subr.bf16.mxu0 0
        %5591 = vmatpush1.bf16.xpose.msra.mxu0 0
        %5592 = vmatprep.subr.bf16.mxu0 0
        %5593 = vmatpush1.bf16.xpose.msra.mxu0 %v5578
        %5594 = vmatprep.subr.bf16.mxu0 0
        %5595 = vmatpush1.bf16.xpose.msra.mxu0 %v5575
        %5596 = vmatprep.subr.bf16.mxu0 0
        %5597 = vmatpush2.bf16.xpose.msra.mxu0 0
        %5598 = vmatprep.subr.bf16.mxu0 0
        %5599 = vmatpush2.bf16.xpose.msra.mxu0 0
        %5600 = vmatprep.subr.bf16.mxu0 0
        %5601 = vmatpush2.bf16.xpose.msra.mxu0 0
        %5602 = vmatprep.subr.bf16.mxu0 0
        %5603 = vmatpush2.bf16.xpose.msra.mxu0 0
        %5604 = vmatprep.subr.bf16.mxu0 0
        %5605 = vmatpush2.bf16.xpose.msra.mxu0 0
        %5606 = vmatprep.subr.bf16.mxu0 0
        %5607 = vmatpush2.bf16.xpose.msra.mxu0 0
        %5608 = vmatprep.subr.bf16.mxu0 0
        %5609 = vmatpush2.bf16.xpose.msra.mxu0 0
        %5610 = vmatprep.subr.bf16.mxu0 0
        %5611 = vmatpush2.bf16.xpose.msra.mxu0 0
        %5612 = vmatprep.mubr.bf16.mxu0 0
        %5613 = vmatmul.mubr.bf16.gmra.mxu0 %v5569
        %v5614 = vpop.f32.mrf.mxu0
        %v5615 = vadd.f32 %v667, %v5614
        %v5616 = vpop.f32.mrf.mxu0
        %v5617 = vpop.f32.mrf.mxu0
        %v5618 = vadd.f32 %v667, %v5617
        %v5619 = vpop.f32.mrf.mxu0
        %5620 = vmatprep.mubr.bf16.mxu0 0
        %5621 = vmatmul.mubr.bf16.gmra.mxu0 %v5572
        %v5622 = vpop.f32.mrf.mxu0
        %v5623 = vadd.f32 %v667, %v5622
        %v5624 = vpop.f32.mrf.mxu0
        %v5625 = vpop.f32.mrf.mxu0
        %v5626 = vpop.f32.mrf.mxu0
        %5627 = vdwg.mxu0
        %v5629 = vsel %vm1212, %v5488, 0
        %v5632 = vsel %vm1212, %v5489, 0
        %v5635 = vsel %vm1212, %v5496, 0
        %v5638 = vsel %vm1212, %v5497, 0
        %5640 = vmatprep.subr.bf16.mxu0 0
        %5641 = vmatpush1.bf16.xpose.msra.mxu0 0
        %5642 = vmatprep.subr.bf16.mxu0 0
        %5643 = vmatpush1.bf16.xpose.msra.mxu0 0
        %5644 = vmatprep.subr.bf16.mxu0 0
        %5645 = vmatpush1.bf16.xpose.msra.mxu0 0
        %5646 = vmatprep.subr.bf16.mxu0 0
        %5647 = vmatpush1.bf16.xpose.msra.mxu0 0
        %5648 = vmatprep.subr.bf16.mxu0 0
        %5649 = vmatpush1.bf16.xpose.msra.mxu0 0
        %5650 = vmatprep.subr.bf16.mxu0 0
        %5651 = vmatpush1.bf16.xpose.msra.mxu0 0
        %5652 = vmatprep.subr.bf16.mxu0 0
        %5653 = vmatpush1.bf16.xpose.msra.mxu0 %v5638
        %5654 = vmatprep.subr.bf16.mxu0 0
        %5655 = vmatpush1.bf16.xpose.msra.mxu0 %v5635
        %5656 = vmatprep.subr.bf16.mxu0 0
        %5657 = vmatpush2.bf16.xpose.msra.mxu0 0
        %5658 = vmatprep.subr.bf16.mxu0 0
        %5659 = vmatpush2.bf16.xpose.msra.mxu0 0
        %5660 = vmatprep.subr.bf16.mxu0 0
        %5661 = vmatpush2.bf16.xpose.msra.mxu0 0
        %5662 = vmatprep.subr.bf16.mxu0 0
        %5663 = vmatpush2.bf16.xpose.msra.mxu0 0
        %5664 = vmatprep.subr.bf16.mxu0 0
        %5665 = vmatpush2.bf16.xpose.msra.mxu0 0
        %5666 = vmatprep.subr.bf16.mxu0 0
        %5667 = vmatpush2.bf16.xpose.msra.mxu0 0
        %5668 = vmatprep.subr.bf16.mxu0 0
        %5669 = vmatpush2.bf16.xpose.msra.mxu0 0
        %5670 = vmatprep.subr.bf16.mxu0 0
        %5671 = vmatpush2.bf16.xpose.msra.mxu0 0
        %5672 = vmatprep.mubr.bf16.mxu0 0
        %5673 = vmatmul.mubr.bf16.gmra.mxu0 %v5629
        %v5674 = vpop.f32.mrf.mxu0
        %v5675 = vadd.f32 %v667, %v5674
        %v5676 = vpop.f32.mrf.mxu0
        %v5677 = vpop.f32.mrf.mxu0
        %v5678 = vadd.f32 %v667, %v5677
        %v5679 = vpop.f32.mrf.mxu0
        %5680 = vmatprep.mubr.bf16.mxu0 0
        %5681 = vmatmul.mubr.bf16.gmra.mxu0 %v5632
        %v5682 = vpop.f32.mrf.mxu0
        %v5683 = vadd.f32 %v667, %v5682
        %v5684 = vpop.f32.mrf.mxu0
        %v5685 = vpop.f32.mrf.mxu0
        %v5686 = vpop.f32.mrf.mxu0
        %5687 = vdwg.mxu0
        %v5689 = vsel %vm1212, %v5490, 0
        %v5692 = vsel %vm1212, %v5491, 0
        %v5695 = vsel %vm1212, %v5498, 0
        %v5698 = vsel %vm1212, %v5499, 0
        %5700 = vmatprep.subr.bf16.mxu0 0
        %5701 = vmatpush1.bf16.xpose.msra.mxu0 0
        %5702 = vmatprep.subr.bf16.mxu0 0
        %5703 = vmatpush1.bf16.xpose.msra.mxu0 0
        %5704 = vmatprep.subr.bf16.mxu0 0
        %5705 = vmatpush1.bf16.xpose.msra.mxu0 0
        %5706 = vmatprep.subr.bf16.mxu0 0
        %5707 = vmatpush1.bf16.xpose.msra.mxu0 0
        %5708 = vmatprep.subr.bf16.mxu0 0
        %5709 = vmatpush1.bf16.xpose.msra.mxu0 0
        %5710 = vmatprep.subr.bf16.mxu0 0
        %5711 = vmatpush1.bf16.xpose.msra.mxu0 0
        %5712 = vmatprep.subr.bf16.mxu0 0
        %5713 = vmatpush1.bf16.xpose.msra.mxu0 %v5698
        %5714 = vmatprep.subr.bf16.mxu0 0
        %5715 = vmatpush1.bf16.xpose.msra.mxu0 %v5695
        %5716 = vmatprep.subr.bf16.mxu0 0
        %5717 = vmatpush2.bf16.xpose.msra.mxu0 0
        %5718 = vmatprep.subr.bf16.mxu0 0
        %5719 = vmatpush2.bf16.xpose.msra.mxu0 0
        %5720 = vmatprep.subr.bf16.mxu0 0
        %5721 = vmatpush2.bf16.xpose.msra.mxu0 0
        %5722 = vmatprep.subr.bf16.mxu0 0
        %5723 = vmatpush2.bf16.xpose.msra.mxu0 0
        %5724 = vmatprep.subr.bf16.mxu0 0
        %5725 = vmatpush2.bf16.xpose.msra.mxu0 0
        %5726 = vmatprep.subr.bf16.mxu0 0
        %5727 = vmatpush2.bf16.xpose.msra.mxu0 0
        %5728 = vmatprep.subr.bf16.mxu0 0
        %5729 = vmatpush2.bf16.xpose.msra.mxu0 0
        %5730 = vmatprep.subr.bf16.mxu0 0
        %5731 = vmatpush2.bf16.xpose.msra.mxu0 0
        %5732 = vmatprep.mubr.bf16.mxu0 0
        %5733 = vmatmul.mubr.bf16.gmra.mxu0 %v5689
        %v5734 = vpop.f32.mrf.mxu0
        %v5735 = vadd.f32 %v667, %v5734
        %v5736 = vpop.f32.mrf.mxu0
        %v5737 = vpop.f32.mrf.mxu0
        %v5738 = vadd.f32 %v667, %v5737
        %v5739 = vpop.f32.mrf.mxu0
        %5740 = vmatprep.mubr.bf16.mxu0 0
        %5741 = vmatmul.mubr.bf16.gmra.mxu0 %v5692
        %v5742 = vpop.f32.mrf.mxu0
        %v5743 = vadd.f32 %v667, %v5742
        %v5744 = vpop.f32.mrf.mxu0
        %v5745 = vpop.f32.mrf.mxu0
        %v5746 = vpop.f32.mrf.mxu0
        %5747 = vdwg.mxu0
        %v5748 = vsel %vm1453, %v5555, -inf
        %5749 = vmax.xlane.f32.xlu0 %v5748
        %v5750 = vpop.xlane.xlu0 %5749
        %v5751 = vsel %vm1453, %v5558, -inf
        %5752 = vmax.xlane.f32.xlu0 %v5751
        %v5753 = vpop.xlane.xlu0 %5752
        %v5754 = vsel %vm1453, %v5563, -inf
        %5755 = vmax.xlane.f32.xlu0 %v5754
        %v5756 = vpop.xlane.xlu0 %5755
        %v5757 = vsel %vm1453, %v5615, -inf
        %5758 = vmax.xlane.f32.xlu0 %v5757
        %v5759 = vpop.xlane.xlu0 %5758
        %v5760 = vsel %vm1453, %v5618, -inf
        %5761 = vmax.xlane.f32.xlu0 %v5760
        %v5762 = vpop.xlane.xlu0 %5761
        %v5763 = vsel %vm1453, %v5623, -inf
        %5764 = vmax.xlane.f32.xlu0 %v5763
        %v5765 = vpop.xlane.xlu0 %5764
        %v5766 = vsel %vm1453, %v5675, -inf
        %5767 = vmax.xlane.f32.xlu0 %v5766
        %v5768 = vpop.xlane.xlu0 %5767
        %v5769 = vsel %vm1453, %v5678, -inf
        %5770 = vmax.xlane.f32.xlu0 %v5769
        %v5771 = vpop.xlane.xlu0 %5770
        %v5772 = vsel %vm1453, %v5683, -inf
        %5773 = vmax.xlane.f32.xlu0 %v5772
        %v5774 = vpop.xlane.xlu0 %5773
        %v5775 = vsel %vm1453, %v5735, -inf
        %5776 = vmax.xlane.f32.xlu0 %v5775
        %v5777 = vpop.xlane.xlu0 %5776
        %v5778 = vsel %vm1453, %v5738, -inf
        %5779 = vmax.xlane.f32.xlu0 %v5778
        %v5780 = vpop.xlane.xlu0 %5779
        %v5781 = vsel %vm1453, %v5743, -inf
        %5782 = vmax.xlane.f32.xlu0 %v5781
        %v5783 = vpop.xlane.xlu0 %5782
        %v5784 = vsub.f32 %v5555, %v5750
        %v5785 = vsub.f32 %v5558, %v5753
        %v5786 = vsub.f32 %v5563, %v5756
        %v5787 = vsub.f32 %v5615, %v5759
        %v5788 = vsub.f32 %v5618, %v5762
        %v5789 = vsub.f32 %v5623, %v5765
        %v5790 = vsub.f32 %v5675, %v5768
        %v5791 = vsub.f32 %v5678, %v5771
        %v5792 = vsub.f32 %v5683, %v5774
        %v5793 = vsub.f32 %v5735, %v5777
        %v5794 = vsub.f32 %v5738, %v5780
        %v5795 = vsub.f32 %v5743, %v5783
        %v5796 = vmul.f32 %v5784, 1.442695
        %v5797 = vpow.pop %v5796
        %v5798 = vmul.f32 %v5785, 1.442695
        %v5799 = vpow.pop %v5798
        %v5800 = vmul.f32 %v5786, 1.442695
        %v5801 = vpow.pop %v5800
        %v5802 = vmul.f32 %v5787, 1.442695
        %v5803 = vpow.pop %v5802
        %v5804 = vmul.f32 %v5788, 1.442695
        %v5805 = vpow.pop %v5804
        %v5806 = vmul.f32 %v5789, 1.442695
        %v5807 = vpow.pop %v5806
        %v5808 = vmul.f32 %v5790, 1.442695
        %v5809 = vpow.pop %v5808
        %v5810 = vmul.f32 %v5791, 1.442695
        %v5811 = vpow.pop %v5810
        %v5812 = vmul.f32 %v5792, 1.442695
        %v5813 = vpow.pop %v5812
        %v5814 = vmul.f32 %v5793, 1.442695
        %v5815 = vpow.pop %v5814
        %v5816 = vmul.f32 %v5794, 1.442695
        %v5817 = vpow.pop %v5816
        %v5818 = vmul.f32 %v5795, 1.442695
        %v5819 = vpow.pop %v5818
        %v5820 = vsel %vm1453, %v5797, 0.0
        %5821 = vadd.xlane.f32.xlu0 %v5820
        %v5822 = vpop.xlane.xlu0 %5821
        %v5823 = vsel %vm1453, %v5799, 0.0
        %5824 = vadd.xlane.f32.xlu0 %v5823
        %v5825 = vpop.xlane.xlu0 %5824
        %v5826 = vsel %vm1453, %v5801, 0.0
        %5827 = vadd.xlane.f32.xlu0 %v5826
        %v5828 = vpop.xlane.xlu0 %5827
        %v5829 = vsel %vm1453, %v5803, 0.0
        %5830 = vadd.xlane.f32.xlu0 %v5829
        %v5831 = vpop.xlane.xlu0 %5830
        %v5832 = vsel %vm1453, %v5805, 0.0
        %5833 = vadd.xlane.f32.xlu0 %v5832
        %v5834 = vpop.xlane.xlu0 %5833
        %v5835 = vsel %vm1453, %v5807, 0.0
        %5836 = vadd.xlane.f32.xlu0 %v5835
        %v5837 = vpop.xlane.xlu0 %5836
        %v5838 = vsel %vm1453, %v5809, 0.0
        %5839 = vadd.xlane.f32.xlu0 %v5838
        %v5840 = vpop.xlane.xlu0 %5839
        %v5841 = vsel %vm1453, %v5811, 0.0
        %5842 = vadd.xlane.f32.xlu0 %v5841
        %v5843 = vpop.xlane.xlu0 %5842
        %v5844 = vsel %vm1453, %v5813, 0.0
        %5845 = vadd.xlane.f32.xlu0 %v5844
        %v5846 = vpop.xlane.xlu0 %5845
        %v5847 = vsel %vm1453, %v5815, 0.0
        %5848 = vadd.xlane.f32.xlu0 %v5847
        %v5849 = vpop.xlane.xlu0 %5848
        %v5850 = vsel %vm1453, %v5817, 0.0
        %5851 = vadd.xlane.f32.xlu0 %v5850
        %v5852 = vpop.xlane.xlu0 %5851
        %v5853 = vsel %vm1453, %v5819, 0.0
        %5854 = vadd.xlane.f32.xlu0 %v5853
        %v5855 = vpop.xlane.xlu0 %5854
        %v5856 = vrcp.pop %v5822
        %v5857 = vrcp.pop %v5825
        %v5858 = vrcp.pop %v5828
        %v5859 = vrcp.pop %v5831
        %v5860 = vrcp.pop %v5834
        %v5861 = vrcp.pop %v5837
        %v5862 = vrcp.pop %v5840
        %v5863 = vrcp.pop %v5843
        %v5864 = vrcp.pop %v5846
        %v5865 = vrcp.pop %v5849
        %v5866 = vrcp.pop %v5852
        %v5867 = vrcp.pop %v5855
        %v5868 = vmul.f32 %v5797, %v5856
        %v5869 = vmul.f32 %v5799, %v5857
        %v5870 = vmul.f32 %v5801, %v5858
        %v5871 = vmul.f32 %v5803, %v5859
        %v5872 = vmul.f32 %v5805, %v5860
        %v5873 = vmul.f32 %v5807, %v5861
        %v5874 = vmul.f32 %v5809, %v5862
        %v5875 = vmul.f32 %v5811, %v5863
        %v5876 = vmul.f32 %v5813, %v5864
        %v5877 = vmul.f32 %v5815, %v5865
        %v5878 = vmul.f32 %v5817, %v5866
        %v5879 = vmul.f32 %v5819, %v5867
        %v5880 = vpack.c.bf16 %v5869, %v5868
        %v5881 = vpack.c.bf16 %v5870, %v5870
        %v5882 = vpack.c.bf16 %v5872, %v5871
        %v5883 = vpack.c.bf16 %v5873, %v5873
        %v5884 = vpack.c.bf16 %v5875, %v5874
        %v5885 = vpack.c.bf16 %v5876, %v5876
        %v5886 = vpack.c.bf16 %v5878, %v5877
        %v5887 = vpack.c.bf16 %v5879, %v5879
        %v5889 = vsel %vm1453, %v5880, 0
        %v5892 = vsel %vm1453, %v5881, 0
        %v5895 = vsel %vm1600, %v5501, 0
        %5897 = vmatprep.subr.bf16.mxu0 0
        %5898 = vmatpush1.bf16.msra.mxu0 0
        %5899 = vmatprep.subr.bf16.mxu0 0
        %5900 = vmatpush1.bf16.msra.mxu0 0
        %5901 = vmatprep.subr.bf16.mxu0 0
        %5902 = vmatpush1.bf16.msra.mxu0 0
        %5903 = vmatprep.subr.bf16.mxu0 0
        %5904 = vmatpush1.bf16.msra.mxu0 0
        %5905 = vmatprep.subr.bf16.mxu0 0
        %5906 = vmatpush1.bf16.msra.mxu0 0
        %5907 = vmatprep.subr.bf16.mxu0 0
        %5908 = vmatpush1.bf16.msra.mxu0 0
        %5909 = vmatprep.subr.bf16.mxu0 0
        %5910 = vmatpush1.bf16.msra.mxu0 %v5895
        %5911 = vmatprep.subr.bf16.mxu0 0
        %5912 = vmatpush1.bf16.msra.mxu0 %v5500
        %5913 = vmatprep.subr.bf16.mxu0 0
        %5914 = vmatpush2.bf16.msra.mxu0 0
        %5915 = vmatprep.subr.bf16.mxu0 0
        %5916 = vmatpush2.bf16.msra.mxu0 0
        %5917 = vmatprep.subr.bf16.mxu0 0
        %5918 = vmatpush2.bf16.msra.mxu0 0
        %5919 = vmatprep.subr.bf16.mxu0 0
        %5920 = vmatpush2.bf16.msra.mxu0 0
        %5921 = vmatprep.subr.bf16.mxu0 0
        %5922 = vmatpush2.bf16.msra.mxu0 0
        %5923 = vmatprep.subr.bf16.mxu0 0
        %5924 = vmatpush2.bf16.msra.mxu0 0
        %5925 = vmatprep.subr.bf16.mxu0 0
        %5926 = vmatpush2.bf16.msra.mxu0 0
        %5927 = vmatprep.subr.bf16.mxu0 0
        %5928 = vmatpush2.bf16.msra.mxu0 0
        %5929 = vmatprep.mubr.bf16.mxu0 0
        %5930 = vmatmul.mubr.bf16.gmra.mxu0 %v5889
        %v5931 = vpop.f32.mrf.mxu0
        %v5932 = vadd.f32 0.0, %v5931
        %v5933 = vpop.f32.mrf.mxu0
        %v5934 = vpop.f32.mrf.mxu0
        %v5935 = vadd.f32 0.0, %v5934
        %v5936 = vpop.f32.mrf.mxu0
        %5937 = vmatprep.mubr.bf16.mxu0 0
        %5938 = vmatmul.mubr.bf16.gmra.mxu0 %v5892
        %v5939 = vpop.f32.mrf.mxu0
        %v5940 = vadd.f32 0.0, %v5939
        %v5941 = vpop.f32.mrf.mxu0
        %v5942 = vpop.f32.mrf.mxu0
        %v5943 = vpop.f32.mrf.mxu0
        %5944 = vdwg.mxu0
        %v5946 = vsel %vm1453, %v5882, 0
        %v5949 = vsel %vm1453, %v5883, 0
        %v5952 = vsel %vm1600, %v5503, 0
        %5954 = vmatprep.subr.bf16.mxu0 0
        %5955 = vmatpush1.bf16.msra.mxu0 0
        %5956 = vmatprep.subr.bf16.mxu0 0
        %5957 = vmatpush1.bf16.msra.mxu0 0
        %5958 = vmatprep.subr.bf16.mxu0 0
        %5959 = vmatpush1.bf16.msra.mxu0 0
        %5960 = vmatprep.subr.bf16.mxu0 0
        %5961 = vmatpush1.bf16.msra.mxu0 0
        %5962 = vmatprep.subr.bf16.mxu0 0
        %5963 = vmatpush1.bf16.msra.mxu0 0
        %5964 = vmatprep.subr.bf16.mxu0 0
        %5965 = vmatpush1.bf16.msra.mxu0 0
        %5966 = vmatprep.subr.bf16.mxu0 0
        %5967 = vmatpush1.bf16.msra.mxu0 %v5952
        %5968 = vmatprep.subr.bf16.mxu0 0
        %5969 = vmatpush1.bf16.msra.mxu0 %v5502
        %5970 = vmatprep.subr.bf16.mxu0 0
        %5971 = vmatpush2.bf16.msra.mxu0 0
        %5972 = vmatprep.subr.bf16.mxu0 0
        %5973 = vmatpush2.bf16.msra.mxu0 0
        %5974 = vmatprep.subr.bf16.mxu0 0
        %5975 = vmatpush2.bf16.msra.mxu0 0
        %5976 = vmatprep.subr.bf16.mxu0 0
        %5977 = vmatpush2.bf16.msra.mxu0 0
        %5978 = vmatprep.subr.bf16.mxu0 0
        %5979 = vmatpush2.bf16.msra.mxu0 0
        %5980 = vmatprep.subr.bf16.mxu0 0
        %5981 = vmatpush2.bf16.msra.mxu0 0
        %5982 = vmatprep.subr.bf16.mxu0 0
        %5983 = vmatpush2.bf16.msra.mxu0 0
        %5984 = vmatprep.subr.bf16.mxu0 0
        %5985 = vmatpush2.bf16.msra.mxu0 0
        %5986 = vmatprep.mubr.bf16.mxu0 0
        %5987 = vmatmul.mubr.bf16.gmra.mxu0 %v5946
        %v5988 = vpop.f32.mrf.mxu0
        %v5989 = vadd.f32 0.0, %v5988
        %v5990 = vpop.f32.mrf.mxu0
        %v5991 = vpop.f32.mrf.mxu0
        %v5992 = vadd.f32 0.0, %v5991
        %v5993 = vpop.f32.mrf.mxu0
        %5994 = vmatprep.mubr.bf16.mxu0 0
        %5995 = vmatmul.mubr.bf16.gmra.mxu0 %v5949
        %v5996 = vpop.f32.mrf.mxu0
        %v5997 = vadd.f32 0.0, %v5996
        %v5998 = vpop.f32.mrf.mxu0
        %v5999 = vpop.f32.mrf.mxu0
        %v6000 = vpop.f32.mrf.mxu0
        %6001 = vdwg.mxu0
        %v6003 = vsel %vm1453, %v5884, 0
        %v6006 = vsel %vm1453, %v5885, 0
        %v6009 = vsel %vm1600, %v5505, 0
        %6011 = vmatprep.subr.bf16.mxu0 0
        %6012 = vmatpush1.bf16.msra.mxu0 0
        %6013 = vmatprep.subr.bf16.mxu0 0
        %6014 = vmatpush1.bf16.msra.mxu0 0
        %6015 = vmatprep.subr.bf16.mxu0 0
        %6016 = vmatpush1.bf16.msra.mxu0 0
        %6017 = vmatprep.subr.bf16.mxu0 0
        %6018 = vmatpush1.bf16.msra.mxu0 0
        %6019 = vmatprep.subr.bf16.mxu0 0
        %6020 = vmatpush1.bf16.msra.mxu0 0
        %6021 = vmatprep.subr.bf16.mxu0 0
        %6022 = vmatpush1.bf16.msra.mxu0 0
        %6023 = vmatprep.subr.bf16.mxu0 0
        %6024 = vmatpush1.bf16.msra.mxu0 %v6009
        %6025 = vmatprep.subr.bf16.mxu0 0
        %6026 = vmatpush1.bf16.msra.mxu0 %v5504
        %6027 = vmatprep.subr.bf16.mxu0 0
        %6028 = vmatpush2.bf16.msra.mxu0 0
        %6029 = vmatprep.subr.bf16.mxu0 0
        %6030 = vmatpush2.bf16.msra.mxu0 0
        %6031 = vmatprep.subr.bf16.mxu0 0
        %6032 = vmatpush2.bf16.msra.mxu0 0
        %6033 = vmatprep.subr.bf16.mxu0 0
        %6034 = vmatpush2.bf16.msra.mxu0 0
        %6035 = vmatprep.subr.bf16.mxu0 0
        %6036 = vmatpush2.bf16.msra.mxu0 0
        %6037 = vmatprep.subr.bf16.mxu0 0
        %6038 = vmatpush2.bf16.msra.mxu0 0
        %6039 = vmatprep.subr.bf16.mxu0 0
        %6040 = vmatpush2.bf16.msra.mxu0 0
        %6041 = vmatprep.subr.bf16.mxu0 0
        %6042 = vmatpush2.bf16.msra.mxu0 0
        %6043 = vmatprep.mubr.bf16.mxu0 0
        %6044 = vmatmul.mubr.bf16.gmra.mxu0 %v6003
        %v6045 = vpop.f32.mrf.mxu0
        %v6046 = vadd.f32 0.0, %v6045
        %v6047 = vpop.f32.mrf.mxu0
        %v6048 = vpop.f32.mrf.mxu0
        %v6049 = vadd.f32 0.0, %v6048
        %v6050 = vpop.f32.mrf.mxu0
        %6051 = vmatprep.mubr.bf16.mxu0 0
        %6052 = vmatmul.mubr.bf16.gmra.mxu0 %v6006
        %v6053 = vpop.f32.mrf.mxu0
        %v6054 = vadd.f32 0.0, %v6053
        %v6055 = vpop.f32.mrf.mxu0
        %v6056 = vpop.f32.mrf.mxu0
        %v6057 = vpop.f32.mrf.mxu0
        %6058 = vdwg.mxu0
        %v6060 = vsel %vm1453, %v5886, 0
        %v6063 = vsel %vm1453, %v5887, 0
        %v6066 = vsel %vm1600, %v5507, 0
        %6068 = vmatprep.subr.bf16.mxu0 0
        %6069 = vmatpush1.bf16.msra.mxu0 0
        %6070 = vmatprep.subr.bf16.mxu0 0
        %6071 = vmatpush1.bf16.msra.mxu0 0
        %6072 = vmatprep.subr.bf16.mxu0 0
        %6073 = vmatpush1.bf16.msra.mxu0 0
        %6074 = vmatprep.subr.bf16.mxu0 0
        %6075 = vmatpush1.bf16.msra.mxu0 0
        %6076 = vmatprep.subr.bf16.mxu0 0
        %6077 = vmatpush1.bf16.msra.mxu0 0
        %6078 = vmatprep.subr.bf16.mxu0 0
        %6079 = vmatpush1.bf16.msra.mxu0 0
        %6080 = vmatprep.subr.bf16.mxu0 0
        %6081 = vmatpush1.bf16.msra.mxu0 %v6066
        %6082 = vmatprep.subr.bf16.mxu0 0
        %6083 = vmatpush1.bf16.msra.mxu0 %v5506
        %6084 = vmatprep.subr.bf16.mxu0 0
        %6085 = vmatpush2.bf16.msra.mxu0 0
        %6086 = vmatprep.subr.bf16.mxu0 0
        %6087 = vmatpush2.bf16.msra.mxu0 0
        %6088 = vmatprep.subr.bf16.mxu0 0
        %6089 = vmatpush2.bf16.msra.mxu0 0
        %6090 = vmatprep.subr.bf16.mxu0 0
        %6091 = vmatpush2.bf16.msra.mxu0 0
        %6092 = vmatprep.subr.bf16.mxu0 0
        %6093 = vmatpush2.bf16.msra.mxu0 0
        %6094 = vmatprep.subr.bf16.mxu0 0
        %6095 = vmatpush2.bf16.msra.mxu0 0
        %6096 = vmatprep.subr.bf16.mxu0 0
        %6097 = vmatpush2.bf16.msra.mxu0 0
        %6098 = vmatprep.subr.bf16.mxu0 0
        %6099 = vmatpush2.bf16.msra.mxu0 0
        %6100 = vmatprep.mubr.bf16.mxu0 0
        %6101 = vmatmul.mubr.bf16.gmra.mxu0 %v6060
        %v6102 = vpop.f32.mrf.mxu0
        %v6103 = vadd.f32 0.0, %v6102
        %v6104 = vpop.f32.mrf.mxu0
        %v6105 = vpop.f32.mrf.mxu0
        %v6106 = vadd.f32 0.0, %v6105
        %v6107 = vpop.f32.mrf.mxu0
        %6108 = vmatprep.mubr.bf16.mxu0 0
        %6109 = vmatmul.mubr.bf16.gmra.mxu0 %v6063
        %v6110 = vpop.f32.mrf.mxu0
        %v6111 = vadd.f32 0.0, %v6110
        %v6112 = vpop.f32.mrf.mxu0
        %v6113 = vpop.f32.mrf.mxu0
        %v6114 = vpop.f32.mrf.mxu0
        %6115 = vdwg.mxu0
        %6118 = vrot.lane.b32.xlu0 %v5484, 96
        %v6119 = vpop.permute.xlu0 %6118
        %6120 = vrot.lane.b32.xlu0 %v5485, 96
        %v6121 = vpop.permute.xlu0 %6120
        %6124 = vrot.lane.b32.xlu0 %v5492, 96
        %v6125 = vpop.permute.xlu0 %6124
        %6126 = vrot.lane.b32.xlu0 %v5493, 96
        %v6127 = vpop.permute.xlu0 %6126
        %v6129 = vsel %vm1212, %v6119, 0
        %v6132 = vsel %vm1212, %v6121, 0
        %v6135 = vsel %vm1212, %v6125, 0
        %v6138 = vsel %vm1212, %v6127, 0
        %6140 = vmatprep.subr.bf16.mxu0 0
        %6141 = vmatpush1.bf16.xpose.msra.mxu0 0
        %6142 = vmatprep.subr.bf16.mxu0 0
        %6143 = vmatpush1.bf16.xpose.msra.mxu0 0
        %6144 = vmatprep.subr.bf16.mxu0 0
        %6145 = vmatpush1.bf16.xpose.msra.mxu0 0
        %6146 = vmatprep.subr.bf16.mxu0 0
        %6147 = vmatpush1.bf16.xpose.msra.mxu0 0
        %6148 = vmatprep.subr.bf16.mxu0 0
        %6149 = vmatpush1.bf16.xpose.msra.mxu0 0
        %6150 = vmatprep.subr.bf16.mxu0 0
        %6151 = vmatpush1.bf16.xpose.msra.mxu0 0
        %6152 = vmatprep.subr.bf16.mxu0 0
        %6153 = vmatpush1.bf16.xpose.msra.mxu0 %v6138
        %6154 = vmatprep.subr.bf16.mxu0 0
        %6155 = vmatpush1.bf16.xpose.msra.mxu0 %v6135
        %6156 = vmatprep.subr.bf16.mxu0 0
        %6157 = vmatpush2.bf16.xpose.msra.mxu0 0
        %6158 = vmatprep.subr.bf16.mxu0 0
        %6159 = vmatpush2.bf16.xpose.msra.mxu0 0
        %6160 = vmatprep.subr.bf16.mxu0 0
        %6161 = vmatpush2.bf16.xpose.msra.mxu0 0
        %6162 = vmatprep.subr.bf16.mxu0 0
        %6163 = vmatpush2.bf16.xpose.msra.mxu0 0
        %6164 = vmatprep.subr.bf16.mxu0 0
        %6165 = vmatpush2.bf16.xpose.msra.mxu0 0
        %6166 = vmatprep.subr.bf16.mxu0 0
        %6167 = vmatpush2.bf16.xpose.msra.mxu0 0
        %6168 = vmatprep.subr.bf16.mxu0 0
        %6169 = vmatpush2.bf16.xpose.msra.mxu0 0
        %6170 = vmatprep.subr.bf16.mxu0 0
        %6171 = vmatpush2.bf16.xpose.msra.mxu0 0
        %6172 = vmatprep.mubr.bf16.mxu0 0
        %6173 = vmatmul.mubr.bf16.gmra.mxu0 %v6129
        %v6174 = vpop.f32.mrf.mxu0
        %v6175 = vadd.f32 %v667, %v6174
        %v6176 = vpop.f32.mrf.mxu0
        %v6177 = vpop.f32.mrf.mxu0
        %v6178 = vadd.f32 %v667, %v6177
        %v6179 = vpop.f32.mrf.mxu0
        %6180 = vmatprep.mubr.bf16.mxu0 0
        %6181 = vmatmul.mubr.bf16.gmra.mxu0 %v6132
        %v6182 = vpop.f32.mrf.mxu0
        %v6183 = vadd.f32 %v667, %v6182
        %v6184 = vpop.f32.mrf.mxu0
        %v6185 = vpop.f32.mrf.mxu0
        %v6186 = vpop.f32.mrf.mxu0
        %6187 = vdwg.mxu0
        %6190 = vrot.lane.b32.xlu0 %v5486, 96
        %v6191 = vpop.permute.xlu0 %6190
        %6192 = vrot.lane.b32.xlu0 %v5487, 96
        %v6193 = vpop.permute.xlu0 %6192
        %6196 = vrot.lane.b32.xlu0 %v5494, 96
        %v6197 = vpop.permute.xlu0 %6196
        %6198 = vrot.lane.b32.xlu0 %v5495, 96
        %v6199 = vpop.permute.xlu0 %6198
        %v6201 = vsel %vm1212, %v6191, 0
        %v6204 = vsel %vm1212, %v6193, 0
        %v6207 = vsel %vm1212, %v6197, 0
        %v6210 = vsel %vm1212, %v6199, 0
        %6212 = vmatprep.subr.bf16.mxu0 0
        %6213 = vmatpush1.bf16.xpose.msra.mxu0 0
        %6214 = vmatprep.subr.bf16.mxu0 0
        %6215 = vmatpush1.bf16.xpose.msra.mxu0 0
        %6216 = vmatprep.subr.bf16.mxu0 0
        %6217 = vmatpush1.bf16.xpose.msra.mxu0 0
        %6218 = vmatprep.subr.bf16.mxu0 0
        %6219 = vmatpush1.bf16.xpose.msra.mxu0 0
        %6220 = vmatprep.subr.bf16.mxu0 0
        %6221 = vmatpush1.bf16.xpose.msra.mxu0 0
        %6222 = vmatprep.subr.bf16.mxu0 0
        %6223 = vmatpush1.bf16.xpose.msra.mxu0 0
        %6224 = vmatprep.subr.bf16.mxu0 0
        %6225 = vmatpush1.bf16.xpose.msra.mxu0 %v6210
        %6226 = vmatprep.subr.bf16.mxu0 0
        %6227 = vmatpush1.bf16.xpose.msra.mxu0 %v6207
        %6228 = vmatprep.subr.bf16.mxu0 0
        %6229 = vmatpush2.bf16.xpose.msra.mxu0 0
        %6230 = vmatprep.subr.bf16.mxu0 0
        %6231 = vmatpush2.bf16.xpose.msra.mxu0 0
        %6232 = vmatprep.subr.bf16.mxu0 0
        %6233 = vmatpush2.bf16.xpose.msra.mxu0 0
        %6234 = vmatprep.subr.bf16.mxu0 0
        %6235 = vmatpush2.bf16.xpose.msra.mxu0 0
        %6236 = vmatprep.subr.bf16.mxu0 0
        %6237 = vmatpush2.bf16.xpose.msra.mxu0 0
        %6238 = vmatprep.subr.bf16.mxu0 0
        %6239 = vmatpush2.bf16.xpose.msra.mxu0 0
        %6240 = vmatprep.subr.bf16.mxu0 0
        %6241 = vmatpush2.bf16.xpose.msra.mxu0 0
        %6242 = vmatprep.subr.bf16.mxu0 0
        %6243 = vmatpush2.bf16.xpose.msra.mxu0 0
        %6244 = vmatprep.mubr.bf16.mxu0 0
        %6245 = vmatmul.mubr.bf16.gmra.mxu0 %v6201
        %v6246 = vpop.f32.mrf.mxu0
        %v6247 = vadd.f32 %v667, %v6246
        %v6248 = vpop.f32.mrf.mxu0
        %v6249 = vpop.f32.mrf.mxu0
        %v6250 = vadd.f32 %v667, %v6249
        %v6251 = vpop.f32.mrf.mxu0
        %6252 = vmatprep.mubr.bf16.mxu0 0
        %6253 = vmatmul.mubr.bf16.gmra.mxu0 %v6204
        %v6254 = vpop.f32.mrf.mxu0
        %v6255 = vadd.f32 %v667, %v6254
        %v6256 = vpop.f32.mrf.mxu0
        %v6257 = vpop.f32.mrf.mxu0
        %v6258 = vpop.f32.mrf.mxu0
        %6259 = vdwg.mxu0
        %6262 = vrot.lane.b32.xlu0 %v5488, 96
        %v6263 = vpop.permute.xlu0 %6262
        %6264 = vrot.lane.b32.xlu0 %v5489, 96
        %v6265 = vpop.permute.xlu0 %6264
        %6268 = vrot.lane.b32.xlu0 %v5496, 96
        %v6269 = vpop.permute.xlu0 %6268
        %6270 = vrot.lane.b32.xlu0 %v5497, 96
        %v6271 = vpop.permute.xlu0 %6270
        %v6273 = vsel %vm1212, %v6263, 0
        %v6276 = vsel %vm1212, %v6265, 0
        %v6279 = vsel %vm1212, %v6269, 0
        %v6282 = vsel %vm1212, %v6271, 0
        %6284 = vmatprep.subr.bf16.mxu0 0
        %6285 = vmatpush1.bf16.xpose.msra.mxu0 0
        %6286 = vmatprep.subr.bf16.mxu0 0
        %6287 = vmatpush1.bf16.xpose.msra.mxu0 0
        %6288 = vmatprep.subr.bf16.mxu0 0
        %6289 = vmatpush1.bf16.xpose.msra.mxu0 0
        %6290 = vmatprep.subr.bf16.mxu0 0
        %6291 = vmatpush1.bf16.xpose.msra.mxu0 0
        %6292 = vmatprep.subr.bf16.mxu0 0
        %6293 = vmatpush1.bf16.xpose.msra.mxu0 0
        %6294 = vmatprep.subr.bf16.mxu0 0
        %6295 = vmatpush1.bf16.xpose.msra.mxu0 0
        %6296 = vmatprep.subr.bf16.mxu0 0
        %6297 = vmatpush1.bf16.xpose.msra.mxu0 %v6282
        %6298 = vmatprep.subr.bf16.mxu0 0
        %6299 = vmatpush1.bf16.xpose.msra.mxu0 %v6279
        %6300 = vmatprep.subr.bf16.mxu0 0
        %6301 = vmatpush2.bf16.xpose.msra.mxu0 0
        %6302 = vmatprep.subr.bf16.mxu0 0
        %6303 = vmatpush2.bf16.xpose.msra.mxu0 0
        %6304 = vmatprep.subr.bf16.mxu0 0
        %6305 = vmatpush2.bf16.xpose.msra.mxu0 0
        %6306 = vmatprep.subr.bf16.mxu0 0
        %6307 = vmatpush2.bf16.xpose.msra.mxu0 0
        %6308 = vmatprep.subr.bf16.mxu0 0
        %6309 = vmatpush2.bf16.xpose.msra.mxu0 0
        %6310 = vmatprep.subr.bf16.mxu0 0
        %6311 = vmatpush2.bf16.xpose.msra.mxu0 0
        %6312 = vmatprep.subr.bf16.mxu0 0
        %6313 = vmatpush2.bf16.xpose.msra.mxu0 0
        %6314 = vmatprep.subr.bf16.mxu0 0
        %6315 = vmatpush2.bf16.xpose.msra.mxu0 0
        %6316 = vmatprep.mubr.bf16.mxu0 0
        %6317 = vmatmul.mubr.bf16.gmra.mxu0 %v6273
        %v6318 = vpop.f32.mrf.mxu0
        %v6319 = vadd.f32 %v667, %v6318
        %v6320 = vpop.f32.mrf.mxu0
        %v6321 = vpop.f32.mrf.mxu0
        %v6322 = vadd.f32 %v667, %v6321
        %v6323 = vpop.f32.mrf.mxu0
        %6324 = vmatprep.mubr.bf16.mxu0 0
        %6325 = vmatmul.mubr.bf16.gmra.mxu0 %v6276
        %v6326 = vpop.f32.mrf.mxu0
        %v6327 = vadd.f32 %v667, %v6326
        %v6328 = vpop.f32.mrf.mxu0
        %v6329 = vpop.f32.mrf.mxu0
        %v6330 = vpop.f32.mrf.mxu0
        %6331 = vdwg.mxu0
        %6334 = vrot.lane.b32.xlu0 %v5490, 96
        %v6335 = vpop.permute.xlu0 %6334
        %6336 = vrot.lane.b32.xlu0 %v5491, 96
        %v6337 = vpop.permute.xlu0 %6336
        %6340 = vrot.lane.b32.xlu0 %v5498, 96
        %v6341 = vpop.permute.xlu0 %6340
        %6342 = vrot.lane.b32.xlu0 %v5499, 96
        %v6343 = vpop.permute.xlu0 %6342
        %v6345 = vsel %vm1212, %v6335, 0
        %v6348 = vsel %vm1212, %v6337, 0
        %v6351 = vsel %vm1212, %v6341, 0
        %v6354 = vsel %vm1212, %v6343, 0
        %6356 = vmatprep.subr.bf16.mxu0 0
        %6357 = vmatpush1.bf16.xpose.msra.mxu0 0
        %6358 = vmatprep.subr.bf16.mxu0 0
        %6359 = vmatpush1.bf16.xpose.msra.mxu0 0
        %6360 = vmatprep.subr.bf16.mxu0 0
        %6361 = vmatpush1.bf16.xpose.msra.mxu0 0
        %6362 = vmatprep.subr.bf16.mxu0 0
        %6363 = vmatpush1.bf16.xpose.msra.mxu0 0
        %6364 = vmatprep.subr.bf16.mxu0 0
        %6365 = vmatpush1.bf16.xpose.msra.mxu0 0
        %6366 = vmatprep.subr.bf16.mxu0 0
        %6367 = vmatpush1.bf16.xpose.msra.mxu0 0
        %6368 = vmatprep.subr.bf16.mxu0 0
        %6369 = vmatpush1.bf16.xpose.msra.mxu0 %v6354
        %6370 = vmatprep.subr.bf16.mxu0 0
        %6371 = vmatpush1.bf16.xpose.msra.mxu0 %v6351
        %6372 = vmatprep.subr.bf16.mxu0 0
        %6373 = vmatpush2.bf16.xpose.msra.mxu0 0
        %6374 = vmatprep.subr.bf16.mxu0 0
        %6375 = vmatpush2.bf16.xpose.msra.mxu0 0
        %6376 = vmatprep.subr.bf16.mxu0 0
        %6377 = vmatpush2.bf16.xpose.msra.mxu0 0
        %6378 = vmatprep.subr.bf16.mxu0 0
        %6379 = vmatpush2.bf16.xpose.msra.mxu0 0
        %6380 = vmatprep.subr.bf16.mxu0 0
        %6381 = vmatpush2.bf16.xpose.msra.mxu0 0
        %6382 = vmatprep.subr.bf16.mxu0 0
        %6383 = vmatpush2.bf16.xpose.msra.mxu0 0
        %6384 = vmatprep.subr.bf16.mxu0 0
        %6385 = vmatpush2.bf16.xpose.msra.mxu0 0
        %6386 = vmatprep.subr.bf16.mxu0 0
        %6387 = vmatpush2.bf16.xpose.msra.mxu0 0
        %6388 = vmatprep.mubr.bf16.mxu0 0
        %6389 = vmatmul.mubr.bf16.gmra.mxu0 %v6345
        %v6390 = vpop.f32.mrf.mxu0
        %v6391 = vadd.f32 %v667, %v6390
        %v6392 = vpop.f32.mrf.mxu0
        %v6393 = vpop.f32.mrf.mxu0
        %v6394 = vadd.f32 %v667, %v6393
        %v6395 = vpop.f32.mrf.mxu0
        %6396 = vmatprep.mubr.bf16.mxu0 0
        %6397 = vmatmul.mubr.bf16.gmra.mxu0 %v6348
        %v6398 = vpop.f32.mrf.mxu0
        %v6399 = vadd.f32 %v667, %v6398
        %v6400 = vpop.f32.mrf.mxu0
        %v6401 = vpop.f32.mrf.mxu0
        %v6402 = vpop.f32.mrf.mxu0
        %6403 = vdwg.mxu0
        %v6404 = vsel %vm1453, %v6175, -inf
        %6405 = vmax.xlane.f32.xlu0 %v6404
        %v6406 = vpop.xlane.xlu0 %6405
        %v6407 = vsel %vm1453, %v6178, -inf
        %6408 = vmax.xlane.f32.xlu0 %v6407
        %v6409 = vpop.xlane.xlu0 %6408
        %v6410 = vsel %vm1453, %v6183, -inf
        %6411 = vmax.xlane.f32.xlu0 %v6410
        %v6412 = vpop.xlane.xlu0 %6411
        %v6413 = vsel %vm1453, %v6247, -inf
        %6414 = vmax.xlane.f32.xlu0 %v6413
        %v6415 = vpop.xlane.xlu0 %6414
        %v6416 = vsel %vm1453, %v6250, -inf
        %6417 = vmax.xlane.f32.xlu0 %v6416
        %v6418 = vpop.xlane.xlu0 %6417
        %v6419 = vsel %vm1453, %v6255, -inf
        %6420 = vmax.xlane.f32.xlu0 %v6419
        %v6421 = vpop.xlane.xlu0 %6420
        %v6422 = vsel %vm1453, %v6319, -inf
        %6423 = vmax.xlane.f32.xlu0 %v6422
        %v6424 = vpop.xlane.xlu0 %6423
        %v6425 = vsel %vm1453, %v6322, -inf
        %6426 = vmax.xlane.f32.xlu0 %v6425
        %v6427 = vpop.xlane.xlu0 %6426
        %v6428 = vsel %vm1453, %v6327, -inf
        %6429 = vmax.xlane.f32.xlu0 %v6428
        %v6430 = vpop.xlane.xlu0 %6429
        %v6431 = vsel %vm1453, %v6391, -inf
        %6432 = vmax.xlane.f32.xlu0 %v6431
        %v6433 = vpop.xlane.xlu0 %6432
        %v6434 = vsel %vm1453, %v6394, -inf
        %6435 = vmax.xlane.f32.xlu0 %v6434
        %v6436 = vpop.xlane.xlu0 %6435
        %v6437 = vsel %vm1453, %v6399, -inf
        %6438 = vmax.xlane.f32.xlu0 %v6437
        %v6439 = vpop.xlane.xlu0 %6438
        %v6440 = vsub.f32 %v6175, %v6406
        %v6441 = vsub.f32 %v6178, %v6409
        %v6442 = vsub.f32 %v6183, %v6412
        %v6443 = vsub.f32 %v6247, %v6415
        %v6444 = vsub.f32 %v6250, %v6418
        %v6445 = vsub.f32 %v6255, %v6421
        %v6446 = vsub.f32 %v6319, %v6424
        %v6447 = vsub.f32 %v6322, %v6427
        %v6448 = vsub.f32 %v6327, %v6430
        %v6449 = vsub.f32 %v6391, %v6433
        %v6450 = vsub.f32 %v6394, %v6436
        %v6451 = vsub.f32 %v6399, %v6439
        %v6452 = vmul.f32 %v6440, 1.442695
        %v6453 = vpow.pop %v6452
        %v6454 = vmul.f32 %v6441, 1.442695
        %v6455 = vpow.pop %v6454
        %v6456 = vmul.f32 %v6442, 1.442695
        %v6457 = vpow.pop %v6456
        %v6458 = vmul.f32 %v6443, 1.442695
        %v6459 = vpow.pop %v6458
        %v6460 = vmul.f32 %v6444, 1.442695
        %v6461 = vpow.pop %v6460
        %v6462 = vmul.f32 %v6445, 1.442695
        %v6463 = vpow.pop %v6462
        %v6464 = vmul.f32 %v6446, 1.442695
        %v6465 = vpow.pop %v6464
        %v6466 = vmul.f32 %v6447, 1.442695
        %v6467 = vpow.pop %v6466
        %v6468 = vmul.f32 %v6448, 1.442695
        %v6469 = vpow.pop %v6468
        %v6470 = vmul.f32 %v6449, 1.442695
        %v6471 = vpow.pop %v6470
        %v6472 = vmul.f32 %v6450, 1.442695
        %v6473 = vpow.pop %v6472
        %v6474 = vmul.f32 %v6451, 1.442695
        %v6475 = vpow.pop %v6474
        %v6476 = vsel %vm1453, %v6453, 0.0
        %6477 = vadd.xlane.f32.xlu0 %v6476
        %v6478 = vpop.xlane.xlu0 %6477
        %v6479 = vsel %vm1453, %v6455, 0.0
        %6480 = vadd.xlane.f32.xlu0 %v6479
        %v6481 = vpop.xlane.xlu0 %6480
        %v6482 = vsel %vm1453, %v6457, 0.0
        %6483 = vadd.xlane.f32.xlu0 %v6482
        %v6484 = vpop.xlane.xlu0 %6483
        %v6485 = vsel %vm1453, %v6459, 0.0
        %6486 = vadd.xlane.f32.xlu0 %v6485
        %v6487 = vpop.xlane.xlu0 %6486
        %v6488 = vsel %vm1453, %v6461, 0.0
        %6489 = vadd.xlane.f32.xlu0 %v6488
        %v6490 = vpop.xlane.xlu0 %6489
        %v6491 = vsel %vm1453, %v6463, 0.0
        %6492 = vadd.xlane.f32.xlu0 %v6491
        %v6493 = vpop.xlane.xlu0 %6492
        %v6494 = vsel %vm1453, %v6465, 0.0
        %6495 = vadd.xlane.f32.xlu0 %v6494
        %v6496 = vpop.xlane.xlu0 %6495
        %v6497 = vsel %vm1453, %v6467, 0.0
        %6498 = vadd.xlane.f32.xlu0 %v6497
        %v6499 = vpop.xlane.xlu0 %6498
        %v6500 = vsel %vm1453, %v6469, 0.0
        %6501 = vadd.xlane.f32.xlu0 %v6500
        %v6502 = vpop.xlane.xlu0 %6501
        %v6503 = vsel %vm1453, %v6471, 0.0
        %6504 = vadd.xlane.f32.xlu0 %v6503
        %v6505 = vpop.xlane.xlu0 %6504
        %v6506 = vsel %vm1453, %v6473, 0.0
        %6507 = vadd.xlane.f32.xlu0 %v6506
        %v6508 = vpop.xlane.xlu0 %6507
        %v6509 = vsel %vm1453, %v6475, 0.0
        %6510 = vadd.xlane.f32.xlu0 %v6509
        %v6511 = vpop.xlane.xlu0 %6510
        %v6512 = vrcp.pop %v6478
        %v6513 = vrcp.pop %v6481
        %v6514 = vrcp.pop %v6484
        %v6515 = vrcp.pop %v6487
        %v6516 = vrcp.pop %v6490
        %v6517 = vrcp.pop %v6493
        %v6518 = vrcp.pop %v6496
        %v6519 = vrcp.pop %v6499
        %v6520 = vrcp.pop %v6502
        %v6521 = vrcp.pop %v6505
        %v6522 = vrcp.pop %v6508
        %v6523 = vrcp.pop %v6511
        %v6524 = vmul.f32 %v6453, %v6512
        %v6525 = vmul.f32 %v6455, %v6513
        %v6526 = vmul.f32 %v6457, %v6514
        %v6527 = vmul.f32 %v6459, %v6515
        %v6528 = vmul.f32 %v6461, %v6516
        %v6529 = vmul.f32 %v6463, %v6517
        %v6530 = vmul.f32 %v6465, %v6518
        %v6531 = vmul.f32 %v6467, %v6519
        %v6532 = vmul.f32 %v6469, %v6520
        %v6533 = vmul.f32 %v6471, %v6521
        %v6534 = vmul.f32 %v6473, %v6522
        %v6535 = vmul.f32 %v6475, %v6523
        %v6536 = vpack.c.bf16 %v6525, %v6524
        %v6537 = vpack.c.bf16 %v6526, %v6526
        %v6538 = vpack.c.bf16 %v6528, %v6527
        %v6539 = vpack.c.bf16 %v6529, %v6529
        %v6540 = vpack.c.bf16 %v6531, %v6530
        %v6541 = vpack.c.bf16 %v6532, %v6532
        %v6542 = vpack.c.bf16 %v6534, %v6533
        %v6543 = vpack.c.bf16 %v6535, %v6535
        %6546 = vrot.lane.b32.xlu0 %v5500, 96
        %v6547 = vpop.permute.xlu0 %6546
        %6548 = vrot.lane.b32.xlu0 %v5501, 96
        %v6549 = vpop.permute.xlu0 %6548
        %v6552 = vsel %vm1453, %v6536, 0
        %v6555 = vsel %vm1453, %v6537, 0
        %v6558 = vsel %vm1600, %v6549, 0
        %6560 = vmatprep.subr.bf16.mxu0 0
        %6561 = vmatpush1.bf16.msra.mxu0 0
        %6562 = vmatprep.subr.bf16.mxu0 0
        %6563 = vmatpush1.bf16.msra.mxu0 0
        %6564 = vmatprep.subr.bf16.mxu0 0
        %6565 = vmatpush1.bf16.msra.mxu0 0
        %6566 = vmatprep.subr.bf16.mxu0 0
        %6567 = vmatpush1.bf16.msra.mxu0 0
        %6568 = vmatprep.subr.bf16.mxu0 0
        %6569 = vmatpush1.bf16.msra.mxu0 0
        %6570 = vmatprep.subr.bf16.mxu0 0
        %6571 = vmatpush1.bf16.msra.mxu0 0
        %6572 = vmatprep.subr.bf16.mxu0 0
        %6573 = vmatpush1.bf16.msra.mxu0 %v6558
        %6574 = vmatprep.subr.bf16.mxu0 0
        %6575 = vmatpush1.bf16.msra.mxu0 %v6547
        %6576 = vmatprep.subr.bf16.mxu0 0
        %6577 = vmatpush2.bf16.msra.mxu0 0
        %6578 = vmatprep.subr.bf16.mxu0 0
        %6579 = vmatpush2.bf16.msra.mxu0 0
        %6580 = vmatprep.subr.bf16.mxu0 0
        %6581 = vmatpush2.bf16.msra.mxu0 0
        %6582 = vmatprep.subr.bf16.mxu0 0
        %6583 = vmatpush2.bf16.msra.mxu0 0
        %6584 = vmatprep.subr.bf16.mxu0 0
        %6585 = vmatpush2.bf16.msra.mxu0 0
        %6586 = vmatprep.subr.bf16.mxu0 0
        %6587 = vmatpush2.bf16.msra.mxu0 0
        %6588 = vmatprep.subr.bf16.mxu0 0
        %6589 = vmatpush2.bf16.msra.mxu0 0
        %6590 = vmatprep.subr.bf16.mxu0 0
        %6591 = vmatpush2.bf16.msra.mxu0 0
        %6592 = vmatprep.mubr.bf16.mxu0 0
        %6593 = vmatmul.mubr.bf16.gmra.mxu0 %v6552
        %v6594 = vpop.f32.mrf.mxu0
        %v6595 = vadd.f32 0.0, %v6594
        %v6596 = vpop.f32.mrf.mxu0
        %v6597 = vpop.f32.mrf.mxu0
        %v6598 = vadd.f32 0.0, %v6597
        %v6599 = vpop.f32.mrf.mxu0
        %6600 = vmatprep.mubr.bf16.mxu0 0
        %6601 = vmatmul.mubr.bf16.gmra.mxu0 %v6555
        %v6602 = vpop.f32.mrf.mxu0
        %v6603 = vadd.f32 0.0, %v6602
        %v6604 = vpop.f32.mrf.mxu0
        %v6605 = vpop.f32.mrf.mxu0
        %v6606 = vpop.f32.mrf.mxu0
        %6607 = vdwg.mxu0
        %6610 = vrot.lane.b32.xlu0 %v5502, 96
        %v6611 = vpop.permute.xlu0 %6610
        %6612 = vrot.lane.b32.xlu0 %v5503, 96
        %v6613 = vpop.permute.xlu0 %6612
        %v6616 = vsel %vm1453, %v6538, 0
        %v6619 = vsel %vm1453, %v6539, 0
        %v6622 = vsel %vm1600, %v6613, 0
        %6624 = vmatprep.subr.bf16.mxu0 0
        %6625 = vmatpush1.bf16.msra.mxu0 0
        %6626 = vmatprep.subr.bf16.mxu0 0
        %6627 = vmatpush1.bf16.msra.mxu0 0
        %6628 = vmatprep.subr.bf16.mxu0 0
        %6629 = vmatpush1.bf16.msra.mxu0 0
        %6630 = vmatprep.subr.bf16.mxu0 0
        %6631 = vmatpush1.bf16.msra.mxu0 0
        %6632 = vmatprep.subr.bf16.mxu0 0
        %6633 = vmatpush1.bf16.msra.mxu0 0
        %6634 = vmatprep.subr.bf16.mxu0 0
        %6635 = vmatpush1.bf16.msra.mxu0 0
        %6636 = vmatprep.subr.bf16.mxu0 0
        %6637 = vmatpush1.bf16.msra.mxu0 %v6622
        %6638 = vmatprep.subr.bf16.mxu0 0
        %6639 = vmatpush1.bf16.msra.mxu0 %v6611
        %6640 = vmatprep.subr.bf16.mxu0 0
        %6641 = vmatpush2.bf16.msra.mxu0 0
        %6642 = vmatprep.subr.bf16.mxu0 0
        %6643 = vmatpush2.bf16.msra.mxu0 0
        %6644 = vmatprep.subr.bf16.mxu0 0
        %6645 = vmatpush2.bf16.msra.mxu0 0
        %6646 = vmatprep.subr.bf16.mxu0 0
        %6647 = vmatpush2.bf16.msra.mxu0 0
        %6648 = vmatprep.subr.bf16.mxu0 0
        %6649 = vmatpush2.bf16.msra.mxu0 0
        %6650 = vmatprep.subr.bf16.mxu0 0
        %6651 = vmatpush2.bf16.msra.mxu0 0
        %6652 = vmatprep.subr.bf16.mxu0 0
        %6653 = vmatpush2.bf16.msra.mxu0 0
        %6654 = vmatprep.subr.bf16.mxu0 0
        %6655 = vmatpush2.bf16.msra.mxu0 0
        %6656 = vmatprep.mubr.bf16.mxu0 0
        %6657 = vmatmul.mubr.bf16.gmra.mxu0 %v6616
        %v6658 = vpop.f32.mrf.mxu0
        %v6659 = vadd.f32 0.0, %v6658
        %v6660 = vpop.f32.mrf.mxu0
        %v6661 = vpop.f32.mrf.mxu0
        %v6662 = vadd.f32 0.0, %v6661
        %v6663 = vpop.f32.mrf.mxu0
        %6664 = vmatprep.mubr.bf16.mxu0 0
        %6665 = vmatmul.mubr.bf16.gmra.mxu0 %v6619
        %v6666 = vpop.f32.mrf.mxu0
        %v6667 = vadd.f32 0.0, %v6666
        %v6668 = vpop.f32.mrf.mxu0
        %v6669 = vpop.f32.mrf.mxu0
        %v6670 = vpop.f32.mrf.mxu0
        %6671 = vdwg.mxu0
        %6674 = vrot.lane.b32.xlu0 %v5504, 96
        %v6675 = vpop.permute.xlu0 %6674
        %6676 = vrot.lane.b32.xlu0 %v5505, 96
        %v6677 = vpop.permute.xlu0 %6676
        %v6680 = vsel %vm1453, %v6540, 0
        %v6683 = vsel %vm1453, %v6541, 0
        %v6686 = vsel %vm1600, %v6677, 0
        %6688 = vmatprep.subr.bf16.mxu0 0
        %6689 = vmatpush1.bf16.msra.mxu0 0
        %6690 = vmatprep.subr.bf16.mxu0 0
        %6691 = vmatpush1.bf16.msra.mxu0 0
        %6692 = vmatprep.subr.bf16.mxu0 0
        %6693 = vmatpush1.bf16.msra.mxu0 0
        %6694 = vmatprep.subr.bf16.mxu0 0
        %6695 = vmatpush1.bf16.msra.mxu0 0
        %6696 = vmatprep.subr.bf16.mxu0 0
        %6697 = vmatpush1.bf16.msra.mxu0 0
        %6698 = vmatprep.subr.bf16.mxu0 0
        %6699 = vmatpush1.bf16.msra.mxu0 0
        %6700 = vmatprep.subr.bf16.mxu0 0
        %6701 = vmatpush1.bf16.msra.mxu0 %v6686
        %6702 = vmatprep.subr.bf16.mxu0 0
        %6703 = vmatpush1.bf16.msra.mxu0 %v6675
        %6704 = vmatprep.subr.bf16.mxu0 0
        %6705 = vmatpush2.bf16.msra.mxu0 0
        %6706 = vmatprep.subr.bf16.mxu0 0
        %6707 = vmatpush2.bf16.msra.mxu0 0
        %6708 = vmatprep.subr.bf16.mxu0 0
        %6709 = vmatpush2.bf16.msra.mxu0 0
        %6710 = vmatprep.subr.bf16.mxu0 0
        %6711 = vmatpush2.bf16.msra.mxu0 0
        %6712 = vmatprep.subr.bf16.mxu0 0
        %6713 = vmatpush2.bf16.msra.mxu0 0
        %6714 = vmatprep.subr.bf16.mxu0 0
        %6715 = vmatpush2.bf16.msra.mxu0 0
        %6716 = vmatprep.subr.bf16.mxu0 0
        %6717 = vmatpush2.bf16.msra.mxu0 0
        %6718 = vmatprep.subr.bf16.mxu0 0
        %6719 = vmatpush2.bf16.msra.mxu0 0
        %6720 = vmatprep.mubr.bf16.mxu0 0
        %6721 = vmatmul.mubr.bf16.gmra.mxu0 %v6680
        %v6722 = vpop.f32.mrf.mxu0
        %v6723 = vadd.f32 0.0, %v6722
        %v6724 = vpop.f32.mrf.mxu0
        %v6725 = vpop.f32.mrf.mxu0
        %v6726 = vadd.f32 0.0, %v6725
        %v6727 = vpop.f32.mrf.mxu0
        %6728 = vmatprep.mubr.bf16.mxu0 0
        %6729 = vmatmul.mubr.bf16.gmra.mxu0 %v6683
        %v6730 = vpop.f32.mrf.mxu0
        %v6731 = vadd.f32 0.0, %v6730
        %v6732 = vpop.f32.mrf.mxu0
        %v6733 = vpop.f32.mrf.mxu0
        %v6734 = vpop.f32.mrf.mxu0
        %6735 = vdwg.mxu0
        %6738 = vrot.lane.b32.xlu0 %v5506, 96
        %v6739 = vpop.permute.xlu0 %6738
        %6740 = vrot.lane.b32.xlu0 %v5507, 96
        %v6741 = vpop.permute.xlu0 %6740
        %v6744 = vsel %vm1453, %v6542, 0
        %v6747 = vsel %vm1453, %v6543, 0
        %v6750 = vsel %vm1600, %v6741, 0
        %6752 = vmatprep.subr.bf16.mxu0 0
        %6753 = vmatpush1.bf16.msra.mxu0 0
        %6754 = vmatprep.subr.bf16.mxu0 0
        %6755 = vmatpush1.bf16.msra.mxu0 0
        %6756 = vmatprep.subr.bf16.mxu0 0
        %6757 = vmatpush1.bf16.msra.mxu0 0
        %6758 = vmatprep.subr.bf16.mxu0 0
        %6759 = vmatpush1.bf16.msra.mxu0 0
        %6760 = vmatprep.subr.bf16.mxu0 0
        %6761 = vmatpush1.bf16.msra.mxu0 0
        %6762 = vmatprep.subr.bf16.mxu0 0
        %6763 = vmatpush1.bf16.msra.mxu0 0
        %6764 = vmatprep.subr.bf16.mxu0 0
        %6765 = vmatpush1.bf16.msra.mxu0 %v6750
        %6766 = vmatprep.subr.bf16.mxu0 0
        %6767 = vmatpush1.bf16.msra.mxu0 %v6739
        %6768 = vmatprep.subr.bf16.mxu0 0
        %6769 = vmatpush2.bf16.msra.mxu0 0
        %6770 = vmatprep.subr.bf16.mxu0 0
        %6771 = vmatpush2.bf16.msra.mxu0 0
        %6772 = vmatprep.subr.bf16.mxu0 0
        %6773 = vmatpush2.bf16.msra.mxu0 0
        %6774 = vmatprep.subr.bf16.mxu0 0
        %6775 = vmatpush2.bf16.msra.mxu0 0
        %6776 = vmatprep.subr.bf16.mxu0 0
        %6777 = vmatpush2.bf16.msra.mxu0 0
        %6778 = vmatprep.subr.bf16.mxu0 0
        %6779 = vmatpush2.bf16.msra.mxu0 0
        %6780 = vmatprep.subr.bf16.mxu0 0
        %6781 = vmatpush2.bf16.msra.mxu0 0
        %6782 = vmatprep.subr.bf16.mxu0 0
        %6783 = vmatpush2.bf16.msra.mxu0 0
        %6784 = vmatprep.mubr.bf16.mxu0 0
        %6785 = vmatmul.mubr.bf16.gmra.mxu0 %v6744
        %v6786 = vpop.f32.mrf.mxu0
        %v6787 = vadd.f32 0.0, %v6786
        %v6788 = vpop.f32.mrf.mxu0
        %v6789 = vpop.f32.mrf.mxu0
        %v6790 = vadd.f32 0.0, %v6789
        %v6791 = vpop.f32.mrf.mxu0
        %6792 = vmatprep.mubr.bf16.mxu0 0
        %6793 = vmatmul.mubr.bf16.gmra.mxu0 %v6747
        %v6794 = vpop.f32.mrf.mxu0
        %v6795 = vadd.f32 0.0, %v6794
        %v6796 = vpop.f32.mrf.mxu0
        %v6797 = vpop.f32.mrf.mxu0
        %v6798 = vpop.f32.mrf.mxu0
        %6799 = vdwg.mxu0
        %6800 = vrot.lane.b32.xlu0 %v5484, 64
        %v6801 = vpop.permute.xlu0 %6800
        %6802 = vrot.lane.b32.xlu0 %v5485, 64
        %v6803 = vpop.permute.xlu0 %6802
        %6804 = vrot.lane.b32.xlu0 %v5492, 64
        %v6805 = vpop.permute.xlu0 %6804
        %6806 = vrot.lane.b32.xlu0 %v5493, 64
        %v6807 = vpop.permute.xlu0 %6806
        %v6809 = vsel %vm1212, %v6801, 0
        %v6812 = vsel %vm1212, %v6803, 0
        %v6815 = vsel %vm1212, %v6805, 0
        %v6818 = vsel %vm1212, %v6807, 0
        %6820 = vmatprep.subr.bf16.mxu0 0
        %6821 = vmatpush1.bf16.xpose.msra.mxu0 0
        %6822 = vmatprep.subr.bf16.mxu0 0
        %6823 = vmatpush1.bf16.xpose.msra.mxu0 0
        %6824 = vmatprep.subr.bf16.mxu0 0
        %6825 = vmatpush1.bf16.xpose.msra.mxu0 0
        %6826 = vmatprep.subr.bf16.mxu0 0
        %6827 = vmatpush1.bf16.xpose.msra.mxu0 0
        %6828 = vmatprep.subr.bf16.mxu0 0
        %6829 = vmatpush1.bf16.xpose.msra.mxu0 0
        %6830 = vmatprep.subr.bf16.mxu0 0
        %6831 = vmatpush1.bf16.xpose.msra.mxu0 0
        %6832 = vmatprep.subr.bf16.mxu0 0
        %6833 = vmatpush1.bf16.xpose.msra.mxu0 %v6818
        %6834 = vmatprep.subr.bf16.mxu0 0
        %6835 = vmatpush1.bf16.xpose.msra.mxu0 %v6815
        %6836 = vmatprep.subr.bf16.mxu0 0
        %6837 = vmatpush2.bf16.xpose.msra.mxu0 0
        %6838 = vmatprep.subr.bf16.mxu0 0
        %6839 = vmatpush2.bf16.xpose.msra.mxu0 0
        %6840 = vmatprep.subr.bf16.mxu0 0
        %6841 = vmatpush2.bf16.xpose.msra.mxu0 0
        %6842 = vmatprep.subr.bf16.mxu0 0
        %6843 = vmatpush2.bf16.xpose.msra.mxu0 0
        %6844 = vmatprep.subr.bf16.mxu0 0
        %6845 = vmatpush2.bf16.xpose.msra.mxu0 0
        %6846 = vmatprep.subr.bf16.mxu0 0
        %6847 = vmatpush2.bf16.xpose.msra.mxu0 0
        %6848 = vmatprep.subr.bf16.mxu0 0
        %6849 = vmatpush2.bf16.xpose.msra.mxu0 0
        %6850 = vmatprep.subr.bf16.mxu0 0
        %6851 = vmatpush2.bf16.xpose.msra.mxu0 0
        %6852 = vmatprep.mubr.bf16.mxu0 0
        %6853 = vmatmul.mubr.bf16.gmra.mxu0 %v6809
        %v6854 = vpop.f32.mrf.mxu0
        %v6855 = vadd.f32 %v667, %v6854
        %v6856 = vpop.f32.mrf.mxu0
        %v6857 = vpop.f32.mrf.mxu0
        %v6858 = vadd.f32 %v667, %v6857
        %v6859 = vpop.f32.mrf.mxu0
        %6860 = vmatprep.mubr.bf16.mxu0 0
        %6861 = vmatmul.mubr.bf16.gmra.mxu0 %v6812
        %v6862 = vpop.f32.mrf.mxu0
        %v6863 = vadd.f32 %v667, %v6862
        %v6864 = vpop.f32.mrf.mxu0
        %v6865 = vpop.f32.mrf.mxu0
        %v6866 = vpop.f32.mrf.mxu0
        %6867 = vdwg.mxu0
        %6868 = vrot.lane.b32.xlu0 %v5486, 64
        %v6869 = vpop.permute.xlu0 %6868
        %6870 = vrot.lane.b32.xlu0 %v5487, 64
        %v6871 = vpop.permute.xlu0 %6870
        %6872 = vrot.lane.b32.xlu0 %v5494, 64
        %v6873 = vpop.permute.xlu0 %6872
        %6874 = vrot.lane.b32.xlu0 %v5495, 64
        %v6875 = vpop.permute.xlu0 %6874
        %v6877 = vsel %vm1212, %v6869, 0
        %v6880 = vsel %vm1212, %v6871, 0
        %v6883 = vsel %vm1212, %v6873, 0
        %v6886 = vsel %vm1212, %v6875, 0
        %6888 = vmatprep.subr.bf16.mxu0 0
        %6889 = vmatpush1.bf16.xpose.msra.mxu0 0
        %6890 = vmatprep.subr.bf16.mxu0 0
        %6891 = vmatpush1.bf16.xpose.msra.mxu0 0
        %6892 = vmatprep.subr.bf16.mxu0 0
        %6893 = vmatpush1.bf16.xpose.msra.mxu0 0
        %6894 = vmatprep.subr.bf16.mxu0 0
        %6895 = vmatpush1.bf16.xpose.msra.mxu0 0
        %6896 = vmatprep.subr.bf16.mxu0 0
        %6897 = vmatpush1.bf16.xpose.msra.mxu0 0
        %6898 = vmatprep.subr.bf16.mxu0 0
        %6899 = vmatpush1.bf16.xpose.msra.mxu0 0
        %6900 = vmatprep.subr.bf16.mxu0 0
        %6901 = vmatpush1.bf16.xpose.msra.mxu0 %v6886
        %6902 = vmatprep.subr.bf16.mxu0 0
        %6903 = vmatpush1.bf16.xpose.msra.mxu0 %v6883
        %6904 = vmatprep.subr.bf16.mxu0 0
        %6905 = vmatpush2.bf16.xpose.msra.mxu0 0
        %6906 = vmatprep.subr.bf16.mxu0 0
        %6907 = vmatpush2.bf16.xpose.msra.mxu0 0
        %6908 = vmatprep.subr.bf16.mxu0 0
        %6909 = vmatpush2.bf16.xpose.msra.mxu0 0
        %6910 = vmatprep.subr.bf16.mxu0 0
        %6911 = vmatpush2.bf16.xpose.msra.mxu0 0
        %6912 = vmatprep.subr.bf16.mxu0 0
        %6913 = vmatpush2.bf16.xpose.msra.mxu0 0
        %6914 = vmatprep.subr.bf16.mxu0 0
        %6915 = vmatpush2.bf16.xpose.msra.mxu0 0
        %6916 = vmatprep.subr.bf16.mxu0 0
        %6917 = vmatpush2.bf16.xpose.msra.mxu0 0
        %6918 = vmatprep.subr.bf16.mxu0 0
        %6919 = vmatpush2.bf16.xpose.msra.mxu0 0
        %6920 = vmatprep.mubr.bf16.mxu0 0
        %6921 = vmatmul.mubr.bf16.gmra.mxu0 %v6877
        %v6922 = vpop.f32.mrf.mxu0
        %v6923 = vadd.f32 %v667, %v6922
        %v6924 = vpop.f32.mrf.mxu0
        %v6925 = vpop.f32.mrf.mxu0
        %v6926 = vadd.f32 %v667, %v6925
        %v6927 = vpop.f32.mrf.mxu0
        %6928 = vmatprep.mubr.bf16.mxu0 0
        %6929 = vmatmul.mubr.bf16.gmra.mxu0 %v6880
        %v6930 = vpop.f32.mrf.mxu0
        %v6931 = vadd.f32 %v667, %v6930
        %v6932 = vpop.f32.mrf.mxu0
        %v6933 = vpop.f32.mrf.mxu0
        %v6934 = vpop.f32.mrf.mxu0
        %6935 = vdwg.mxu0
        %6936 = vrot.lane.b32.xlu0 %v5488, 64
        %v6937 = vpop.permute.xlu0 %6936
        %6938 = vrot.lane.b32.xlu0 %v5489, 64
        %v6939 = vpop.permute.xlu0 %6938
        %6940 = vrot.lane.b32.xlu0 %v5496, 64
        %v6941 = vpop.permute.xlu0 %6940
        %6942 = vrot.lane.b32.xlu0 %v5497, 64
        %v6943 = vpop.permute.xlu0 %6942
        %v6945 = vsel %vm1212, %v6937, 0
        %v6948 = vsel %vm1212, %v6939, 0
        %v6951 = vsel %vm1212, %v6941, 0
        %v6954 = vsel %vm1212, %v6943, 0
        %6956 = vmatprep.subr.bf16.mxu0 0
        %6957 = vmatpush1.bf16.xpose.msra.mxu0 0
        %6958 = vmatprep.subr.bf16.mxu0 0
        %6959 = vmatpush1.bf16.xpose.msra.mxu0 0
        %6960 = vmatprep.subr.bf16.mxu0 0
        %6961 = vmatpush1.bf16.xpose.msra.mxu0 0
        %6962 = vmatprep.subr.bf16.mxu0 0
        %6963 = vmatpush1.bf16.xpose.msra.mxu0 0
        %6964 = vmatprep.subr.bf16.mxu0 0
        %6965 = vmatpush1.bf16.xpose.msra.mxu0 0
        %6966 = vmatprep.subr.bf16.mxu0 0
        %6967 = vmatpush1.bf16.xpose.msra.mxu0 0
        %6968 = vmatprep.subr.bf16.mxu0 0
        %6969 = vmatpush1.bf16.xpose.msra.mxu0 %v6954
        %6970 = vmatprep.subr.bf16.mxu0 0
        %6971 = vmatpush1.bf16.xpose.msra.mxu0 %v6951
        %6972 = vmatprep.subr.bf16.mxu0 0
        %6973 = vmatpush2.bf16.xpose.msra.mxu0 0
        %6974 = vmatprep.subr.bf16.mxu0 0
        %6975 = vmatpush2.bf16.xpose.msra.mxu0 0
        %6976 = vmatprep.subr.bf16.mxu0 0
        %6977 = vmatpush2.bf16.xpose.msra.mxu0 0
        %6978 = vmatprep.subr.bf16.mxu0 0
        %6979 = vmatpush2.bf16.xpose.msra.mxu0 0
        %6980 = vmatprep.subr.bf16.mxu0 0
        %6981 = vmatpush2.bf16.xpose.msra.mxu0 0
        %6982 = vmatprep.subr.bf16.mxu0 0
        %6983 = vmatpush2.bf16.xpose.msra.mxu0 0
        %6984 = vmatprep.subr.bf16.mxu0 0
        %6985 = vmatpush2.bf16.xpose.msra.mxu0 0
        %6986 = vmatprep.subr.bf16.mxu0 0
        %6987 = vmatpush2.bf16.xpose.msra.mxu0 0
        %6988 = vmatprep.mubr.bf16.mxu0 0
        %6989 = vmatmul.mubr.bf16.gmra.mxu0 %v6945
        %v6990 = vpop.f32.mrf.mxu0
        %v6991 = vadd.f32 %v667, %v6990
        %v6992 = vpop.f32.mrf.mxu0
        %v6993 = vpop.f32.mrf.mxu0
        %v6994 = vadd.f32 %v667, %v6993
        %v6995 = vpop.f32.mrf.mxu0
        %6996 = vmatprep.mubr.bf16.mxu0 0
        %6997 = vmatmul.mubr.bf16.gmra.mxu0 %v6948
        %v6998 = vpop.f32.mrf.mxu0
        %v6999 = vadd.f32 %v667, %v6998
        %v7000 = vpop.f32.mrf.mxu0
        %v7001 = vpop.f32.mrf.mxu0
        %v7002 = vpop.f32.mrf.mxu0
        %7003 = vdwg.mxu0
        %7004 = vrot.lane.b32.xlu0 %v5490, 64
        %v7005 = vpop.permute.xlu0 %7004
        %7006 = vrot.lane.b32.xlu0 %v5491, 64
        %v7007 = vpop.permute.xlu0 %7006
        %7008 = vrot.lane.b32.xlu0 %v5498, 64
        %v7009 = vpop.permute.xlu0 %7008
        %7010 = vrot.lane.b32.xlu0 %v5499, 64
        %v7011 = vpop.permute.xlu0 %7010
        %v7013 = vsel %vm1212, %v7005, 0
        %v7016 = vsel %vm1212, %v7007, 0
        %v7019 = vsel %vm1212, %v7009, 0
        %v7022 = vsel %vm1212, %v7011, 0
        %7024 = vmatprep.subr.bf16.mxu0 0
        %7025 = vmatpush1.bf16.xpose.msra.mxu0 0
        %7026 = vmatprep.subr.bf16.mxu0 0
        %7027 = vmatpush1.bf16.xpose.msra.mxu0 0
        %7028 = vmatprep.subr.bf16.mxu0 0
        %7029 = vmatpush1.bf16.xpose.msra.mxu0 0
        %7030 = vmatprep.subr.bf16.mxu0 0
        %7031 = vmatpush1.bf16.xpose.msra.mxu0 0
        %7032 = vmatprep.subr.bf16.mxu0 0
        %7033 = vmatpush1.bf16.xpose.msra.mxu0 0
        %7034 = vmatprep.subr.bf16.mxu0 0
        %7035 = vmatpush1.bf16.xpose.msra.mxu0 0
        %7036 = vmatprep.subr.bf16.mxu0 0
        %7037 = vmatpush1.bf16.xpose.msra.mxu0 %v7022
        %7038 = vmatprep.subr.bf16.mxu0 0
        %7039 = vmatpush1.bf16.xpose.msra.mxu0 %v7019
        %7040 = vmatprep.subr.bf16.mxu0 0
        %7041 = vmatpush2.bf16.xpose.msra.mxu0 0
        %7042 = vmatprep.subr.bf16.mxu0 0
        %7043 = vmatpush2.bf16.xpose.msra.mxu0 0
        %7044 = vmatprep.subr.bf16.mxu0 0
        %7045 = vmatpush2.bf16.xpose.msra.mxu0 0
        %7046 = vmatprep.subr.bf16.mxu0 0
        %7047 = vmatpush2.bf16.xpose.msra.mxu0 0
        %7048 = vmatprep.subr.bf16.mxu0 0
        %7049 = vmatpush2.bf16.xpose.msra.mxu0 0
        %7050 = vmatprep.subr.bf16.mxu0 0
        %7051 = vmatpush2.bf16.xpose.msra.mxu0 0
        %7052 = vmatprep.subr.bf16.mxu0 0
        %7053 = vmatpush2.bf16.xpose.msra.mxu0 0
        %7054 = vmatprep.subr.bf16.mxu0 0
        %7055 = vmatpush2.bf16.xpose.msra.mxu0 0
        %7056 = vmatprep.mubr.bf16.mxu0 0
        %7057 = vmatmul.mubr.bf16.gmra.mxu0 %v7013
        %v7058 = vpop.f32.mrf.mxu0
        %v7059 = vadd.f32 %v667, %v7058
        %v7060 = vpop.f32.mrf.mxu0
        %v7061 = vpop.f32.mrf.mxu0
        %v7062 = vadd.f32 %v667, %v7061
        %v7063 = vpop.f32.mrf.mxu0
        %7064 = vmatprep.mubr.bf16.mxu0 0
        %7065 = vmatmul.mubr.bf16.gmra.mxu0 %v7016
        %v7066 = vpop.f32.mrf.mxu0
        %v7067 = vadd.f32 %v667, %v7066
        %v7068 = vpop.f32.mrf.mxu0
        %v7069 = vpop.f32.mrf.mxu0
        %v7070 = vpop.f32.mrf.mxu0
        %7071 = vdwg.mxu0
        %v7072 = vsel %vm1453, %v6855, -inf
        %7073 = vmax.xlane.f32.xlu0 %v7072
        %v7074 = vpop.xlane.xlu0 %7073
        %v7075 = vsel %vm1453, %v6858, -inf
        %7076 = vmax.xlane.f32.xlu0 %v7075
        %v7077 = vpop.xlane.xlu0 %7076
        %v7078 = vsel %vm1453, %v6863, -inf
        %7079 = vmax.xlane.f32.xlu0 %v7078
        %v7080 = vpop.xlane.xlu0 %7079
        %v7081 = vsel %vm1453, %v6923, -inf
        %7082 = vmax.xlane.f32.xlu0 %v7081
        %v7083 = vpop.xlane.xlu0 %7082
        %v7084 = vsel %vm1453, %v6926, -inf
        %7085 = vmax.xlane.f32.xlu0 %v7084
        %v7086 = vpop.xlane.xlu0 %7085
        %v7087 = vsel %vm1453, %v6931, -inf
        %7088 = vmax.xlane.f32.xlu0 %v7087
        %v7089 = vpop.xlane.xlu0 %7088
        %v7090 = vsel %vm1453, %v6991, -inf
        %7091 = vmax.xlane.f32.xlu0 %v7090
        %v7092 = vpop.xlane.xlu0 %7091
        %v7093 = vsel %vm1453, %v6994, -inf
        %7094 = vmax.xlane.f32.xlu0 %v7093
        %v7095 = vpop.xlane.xlu0 %7094
        %v7096 = vsel %vm1453, %v6999, -inf
        %7097 = vmax.xlane.f32.xlu0 %v7096
        %v7098 = vpop.xlane.xlu0 %7097
        %v7099 = vsel %vm1453, %v7059, -inf
        %7100 = vmax.xlane.f32.xlu0 %v7099
        %v7101 = vpop.xlane.xlu0 %7100
        %v7102 = vsel %vm1453, %v7062, -inf
        %7103 = vmax.xlane.f32.xlu0 %v7102
        %v7104 = vpop.xlane.xlu0 %7103
        %v7105 = vsel %vm1453, %v7067, -inf
        %7106 = vmax.xlane.f32.xlu0 %v7105
        %v7107 = vpop.xlane.xlu0 %7106
        %v7108 = vsub.f32 %v6855, %v7074
        %v7109 = vsub.f32 %v6858, %v7077
        %v7110 = vsub.f32 %v6863, %v7080
        %v7111 = vsub.f32 %v6923, %v7083
        %v7112 = vsub.f32 %v6926, %v7086
        %v7113 = vsub.f32 %v6931, %v7089
        %v7114 = vsub.f32 %v6991, %v7092
        %v7115 = vsub.f32 %v6994, %v7095
        %v7116 = vsub.f32 %v6999, %v7098
        %v7117 = vsub.f32 %v7059, %v7101
        %v7118 = vsub.f32 %v7062, %v7104
        %v7119 = vsub.f32 %v7067, %v7107
        %v7120 = vmul.f32 %v7108, 1.442695
        %v7121 = vpow.pop %v7120
        %v7122 = vmul.f32 %v7109, 1.442695
        %v7123 = vpow.pop %v7122
        %v7124 = vmul.f32 %v7110, 1.442695
        %v7125 = vpow.pop %v7124
        %v7126 = vmul.f32 %v7111, 1.442695
        %v7127 = vpow.pop %v7126
        %v7128 = vmul.f32 %v7112, 1.442695
        %v7129 = vpow.pop %v7128
        %v7130 = vmul.f32 %v7113, 1.442695
        %v7131 = vpow.pop %v7130
        %v7132 = vmul.f32 %v7114, 1.442695
        %v7133 = vpow.pop %v7132
        %v7134 = vmul.f32 %v7115, 1.442695
        %v7135 = vpow.pop %v7134
        %v7136 = vmul.f32 %v7116, 1.442695
        %v7137 = vpow.pop %v7136
        %v7138 = vmul.f32 %v7117, 1.442695
        %v7139 = vpow.pop %v7138
        %v7140 = vmul.f32 %v7118, 1.442695
        %v7141 = vpow.pop %v7140
        %v7142 = vmul.f32 %v7119, 1.442695
        %v7143 = vpow.pop %v7142
        %v7144 = vsel %vm1453, %v7121, 0.0
        %7145 = vadd.xlane.f32.xlu0 %v7144
        %v7146 = vpop.xlane.xlu0 %7145
        %v7147 = vsel %vm1453, %v7123, 0.0
        %7148 = vadd.xlane.f32.xlu0 %v7147
        %v7149 = vpop.xlane.xlu0 %7148
        %v7150 = vsel %vm1453, %v7125, 0.0
        %7151 = vadd.xlane.f32.xlu0 %v7150
        %v7152 = vpop.xlane.xlu0 %7151
        %v7153 = vsel %vm1453, %v7127, 0.0
        %7154 = vadd.xlane.f32.xlu0 %v7153
        %v7155 = vpop.xlane.xlu0 %7154
        %v7156 = vsel %vm1453, %v7129, 0.0
        %7157 = vadd.xlane.f32.xlu0 %v7156
        %v7158 = vpop.xlane.xlu0 %7157
        %v7159 = vsel %vm1453, %v7131, 0.0
        %7160 = vadd.xlane.f32.xlu0 %v7159
        %v7161 = vpop.xlane.xlu0 %7160
        %v7162 = vsel %vm1453, %v7133, 0.0
        %7163 = vadd.xlane.f32.xlu0 %v7162
        %v7164 = vpop.xlane.xlu0 %7163
        %v7165 = vsel %vm1453, %v7135, 0.0
        %7166 = vadd.xlane.f32.xlu0 %v7165
        %v7167 = vpop.xlane.xlu0 %7166
        %v7168 = vsel %vm1453, %v7137, 0.0
        %7169 = vadd.xlane.f32.xlu0 %v7168
        %v7170 = vpop.xlane.xlu0 %7169
        %v7171 = vsel %vm1453, %v7139, 0.0
        %7172 = vadd.xlane.f32.xlu0 %v7171
        %v7173 = vpop.xlane.xlu0 %7172
        %v7174 = vsel %vm1453, %v7141, 0.0
        %7175 = vadd.xlane.f32.xlu0 %v7174
        %v7176 = vpop.xlane.xlu0 %7175
        %v7177 = vsel %vm1453, %v7143, 0.0
        %7178 = vadd.xlane.f32.xlu0 %v7177
        %v7179 = vpop.xlane.xlu0 %7178
        %v7180 = vrcp.pop %v7146
        %v7181 = vrcp.pop %v7149
        %v7182 = vrcp.pop %v7152
        %v7183 = vrcp.pop %v7155
        %v7184 = vrcp.pop %v7158
        %v7185 = vrcp.pop %v7161
        %v7186 = vrcp.pop %v7164
        %v7187 = vrcp.pop %v7167
        %v7188 = vrcp.pop %v7170
        %v7189 = vrcp.pop %v7173
        %v7190 = vrcp.pop %v7176
        %v7191 = vrcp.pop %v7179
        %v7192 = vmul.f32 %v7121, %v7180
        %v7193 = vmul.f32 %v7123, %v7181
        %v7194 = vmul.f32 %v7125, %v7182
        %v7195 = vmul.f32 %v7127, %v7183
        %v7196 = vmul.f32 %v7129, %v7184
        %v7197 = vmul.f32 %v7131, %v7185
        %v7198 = vmul.f32 %v7133, %v7186
        %v7199 = vmul.f32 %v7135, %v7187
        %v7200 = vmul.f32 %v7137, %v7188
        %v7201 = vmul.f32 %v7139, %v7189
        %v7202 = vmul.f32 %v7141, %v7190
        %v7203 = vmul.f32 %v7143, %v7191
        %v7204 = vpack.c.bf16 %v7193, %v7192
        %v7205 = vpack.c.bf16 %v7194, %v7194
        %v7206 = vpack.c.bf16 %v7196, %v7195
        %v7207 = vpack.c.bf16 %v7197, %v7197
        %v7208 = vpack.c.bf16 %v7199, %v7198
        %v7209 = vpack.c.bf16 %v7200, %v7200
        %v7210 = vpack.c.bf16 %v7202, %v7201
        %v7211 = vpack.c.bf16 %v7203, %v7203
        %7212 = vrot.lane.b32.xlu0 %v5500, 64
        %v7213 = vpop.permute.xlu0 %7212
        %7214 = vrot.lane.b32.xlu0 %v5501, 64
        %v7215 = vpop.permute.xlu0 %7214
        %v7218 = vsel %vm1453, %v7204, 0
        %v7221 = vsel %vm1453, %v7205, 0
        %v7224 = vsel %vm1600, %v7215, 0
        %7226 = vmatprep.subr.bf16.mxu0 0
        %7227 = vmatpush1.bf16.msra.mxu0 0
        %7228 = vmatprep.subr.bf16.mxu0 0
        %7229 = vmatpush1.bf16.msra.mxu0 0
        %7230 = vmatprep.subr.bf16.mxu0 0
        %7231 = vmatpush1.bf16.msra.mxu0 0
        %7232 = vmatprep.subr.bf16.mxu0 0
        %7233 = vmatpush1.bf16.msra.mxu0 0
        %7234 = vmatprep.subr.bf16.mxu0 0
        %7235 = vmatpush1.bf16.msra.mxu0 0
        %7236 = vmatprep.subr.bf16.mxu0 0
        %7237 = vmatpush1.bf16.msra.mxu0 0
        %7238 = vmatprep.subr.bf16.mxu0 0
        %7239 = vmatpush1.bf16.msra.mxu0 %v7224
        %7240 = vmatprep.subr.bf16.mxu0 0
        %7241 = vmatpush1.bf16.msra.mxu0 %v7213
        %7242 = vmatprep.subr.bf16.mxu0 0
        %7243 = vmatpush2.bf16.msra.mxu0 0
        %7244 = vmatprep.subr.bf16.mxu0 0
        %7245 = vmatpush2.bf16.msra.mxu0 0
        %7246 = vmatprep.subr.bf16.mxu0 0
        %7247 = vmatpush2.bf16.msra.mxu0 0
        %7248 = vmatprep.subr.bf16.mxu0 0
        %7249 = vmatpush2.bf16.msra.mxu0 0
        %7250 = vmatprep.subr.bf16.mxu0 0
        %7251 = vmatpush2.bf16.msra.mxu0 0
        %7252 = vmatprep.subr.bf16.mxu0 0
        %7253 = vmatpush2.bf16.msra.mxu0 0
        %7254 = vmatprep.subr.bf16.mxu0 0
        %7255 = vmatpush2.bf16.msra.mxu0 0
        %7256 = vmatprep.subr.bf16.mxu0 0
        %7257 = vmatpush2.bf16.msra.mxu0 0
        %7258 = vmatprep.mubr.bf16.mxu0 0
        %7259 = vmatmul.mubr.bf16.gmra.mxu0 %v7218
        %v7260 = vpop.f32.mrf.mxu0
        %v7261 = vadd.f32 0.0, %v7260
        %v7262 = vpop.f32.mrf.mxu0
        %v7263 = vpop.f32.mrf.mxu0
        %v7264 = vadd.f32 0.0, %v7263
        %v7265 = vpop.f32.mrf.mxu0
        %7266 = vmatprep.mubr.bf16.mxu0 0
        %7267 = vmatmul.mubr.bf16.gmra.mxu0 %v7221
        %v7268 = vpop.f32.mrf.mxu0
        %v7269 = vadd.f32 0.0, %v7268
        %v7270 = vpop.f32.mrf.mxu0
        %v7271 = vpop.f32.mrf.mxu0
        %v7272 = vpop.f32.mrf.mxu0
        %7273 = vdwg.mxu0
        %7274 = vrot.lane.b32.xlu0 %v5502, 64
        %v7275 = vpop.permute.xlu0 %7274
        %7276 = vrot.lane.b32.xlu0 %v5503, 64
        %v7277 = vpop.permute.xlu0 %7276
        %v7280 = vsel %vm1453, %v7206, 0
        %v7283 = vsel %vm1453, %v7207, 0
        %v7286 = vsel %vm1600, %v7277, 0
        %7288 = vmatprep.subr.bf16.mxu0 0
        %7289 = vmatpush1.bf16.msra.mxu0 0
        %7290 = vmatprep.subr.bf16.mxu0 0
        %7291 = vmatpush1.bf16.msra.mxu0 0
        %7292 = vmatprep.subr.bf16.mxu0 0
        %7293 = vmatpush1.bf16.msra.mxu0 0
        %7294 = vmatprep.subr.bf16.mxu0 0
        %7295 = vmatpush1.bf16.msra.mxu0 0
        %7296 = vmatprep.subr.bf16.mxu0 0
        %7297 = vmatpush1.bf16.msra.mxu0 0
        %7298 = vmatprep.subr.bf16.mxu0 0
        %7299 = vmatpush1.bf16.msra.mxu0 0
        %7300 = vmatprep.subr.bf16.mxu0 0
        %7301 = vmatpush1.bf16.msra.mxu0 %v7286
        %7302 = vmatprep.subr.bf16.mxu0 0
        %7303 = vmatpush1.bf16.msra.mxu0 %v7275
        %7304 = vmatprep.subr.bf16.mxu0 0
        %7305 = vmatpush2.bf16.msra.mxu0 0
        %7306 = vmatprep.subr.bf16.mxu0 0
        %7307 = vmatpush2.bf16.msra.mxu0 0
        %7308 = vmatprep.subr.bf16.mxu0 0
        %7309 = vmatpush2.bf16.msra.mxu0 0
        %7310 = vmatprep.subr.bf16.mxu0 0
        %7311 = vmatpush2.bf16.msra.mxu0 0
        %7312 = vmatprep.subr.bf16.mxu0 0
        %7313 = vmatpush2.bf16.msra.mxu0 0
        %7314 = vmatprep.subr.bf16.mxu0 0
        %7315 = vmatpush2.bf16.msra.mxu0 0
        %7316 = vmatprep.subr.bf16.mxu0 0
        %7317 = vmatpush2.bf16.msra.mxu0 0
        %7318 = vmatprep.subr.bf16.mxu0 0
        %7319 = vmatpush2.bf16.msra.mxu0 0
        %7320 = vmatprep.mubr.bf16.mxu0 0
        %7321 = vmatmul.mubr.bf16.gmra.mxu0 %v7280
        %v7322 = vpop.f32.mrf.mxu0
        %v7323 = vadd.f32 0.0, %v7322
        %v7324 = vpop.f32.mrf.mxu0
        %v7325 = vpop.f32.mrf.mxu0
        %v7326 = vadd.f32 0.0, %v7325
        %v7327 = vpop.f32.mrf.mxu0
        %7328 = vmatprep.mubr.bf16.mxu0 0
        %7329 = vmatmul.mubr.bf16.gmra.mxu0 %v7283
        %v7330 = vpop.f32.mrf.mxu0
        %v7331 = vadd.f32 0.0, %v7330
        %v7332 = vpop.f32.mrf.mxu0
        %v7333 = vpop.f32.mrf.mxu0
        %v7334 = vpop.f32.mrf.mxu0
        %7335 = vdwg.mxu0
        %7336 = vrot.lane.b32.xlu0 %v5504, 64
        %v7337 = vpop.permute.xlu0 %7336
        %7338 = vrot.lane.b32.xlu0 %v5505, 64
        %v7339 = vpop.permute.xlu0 %7338
        %v7342 = vsel %vm1453, %v7208, 0
        %v7345 = vsel %vm1453, %v7209, 0
        %v7348 = vsel %vm1600, %v7339, 0
        %7350 = vmatprep.subr.bf16.mxu0 0
        %7351 = vmatpush1.bf16.msra.mxu0 0
        %7352 = vmatprep.subr.bf16.mxu0 0
        %7353 = vmatpush1.bf16.msra.mxu0 0
        %7354 = vmatprep.subr.bf16.mxu0 0
        %7355 = vmatpush1.bf16.msra.mxu0 0
        %7356 = vmatprep.subr.bf16.mxu0 0
        %7357 = vmatpush1.bf16.msra.mxu0 0
        %7358 = vmatprep.subr.bf16.mxu0 0
        %7359 = vmatpush1.bf16.msra.mxu0 0
        %7360 = vmatprep.subr.bf16.mxu0 0
        %7361 = vmatpush1.bf16.msra.mxu0 0
        %7362 = vmatprep.subr.bf16.mxu0 0
        %7363 = vmatpush1.bf16.msra.mxu0 %v7348
        %7364 = vmatprep.subr.bf16.mxu0 0
        %7365 = vmatpush1.bf16.msra.mxu0 %v7337
        %7366 = vmatprep.subr.bf16.mxu0 0
        %7367 = vmatpush2.bf16.msra.mxu0 0
        %7368 = vmatprep.subr.bf16.mxu0 0
        %7369 = vmatpush2.bf16.msra.mxu0 0
        %7370 = vmatprep.subr.bf16.mxu0 0
        %7371 = vmatpush2.bf16.msra.mxu0 0
        %7372 = vmatprep.subr.bf16.mxu0 0
        %7373 = vmatpush2.bf16.msra.mxu0 0
        %7374 = vmatprep.subr.bf16.mxu0 0
        %7375 = vmatpush2.bf16.msra.mxu0 0
        %7376 = vmatprep.subr.bf16.mxu0 0
        %7377 = vmatpush2.bf16.msra.mxu0 0
        %7378 = vmatprep.subr.bf16.mxu0 0
        %7379 = vmatpush2.bf16.msra.mxu0 0
        %7380 = vmatprep.subr.bf16.mxu0 0
        %7381 = vmatpush2.bf16.msra.mxu0 0
        %7382 = vmatprep.mubr.bf16.mxu0 0
        %7383 = vmatmul.mubr.bf16.gmra.mxu0 %v7342
        %v7384 = vpop.f32.mrf.mxu0
        %v7385 = vadd.f32 0.0, %v7384
        %v7386 = vpop.f32.mrf.mxu0
        %v7387 = vpop.f32.mrf.mxu0
        %v7388 = vadd.f32 0.0, %v7387
        %v7389 = vpop.f32.mrf.mxu0
        %7390 = vmatprep.mubr.bf16.mxu0 0
        %7391 = vmatmul.mubr.bf16.gmra.mxu0 %v7345
        %v7392 = vpop.f32.mrf.mxu0
        %v7393 = vadd.f32 0.0, %v7392
        %v7394 = vpop.f32.mrf.mxu0
        %v7395 = vpop.f32.mrf.mxu0
        %v7396 = vpop.f32.mrf.mxu0
        %7397 = vdwg.mxu0
        %7398 = vrot.lane.b32.xlu0 %v5506, 64
        %v7399 = vpop.permute.xlu0 %7398
        %7400 = vrot.lane.b32.xlu0 %v5507, 64
        %v7401 = vpop.permute.xlu0 %7400
        %v7404 = vsel %vm1453, %v7210, 0
        %v7407 = vsel %vm1453, %v7211, 0
        %v7410 = vsel %vm1600, %v7401, 0
        %7412 = vmatprep.subr.bf16.mxu0 0
        %7413 = vmatpush1.bf16.msra.mxu0 0
        %7414 = vmatprep.subr.bf16.mxu0 0
        %7415 = vmatpush1.bf16.msra.mxu0 0
        %7416 = vmatprep.subr.bf16.mxu0 0
        %7417 = vmatpush1.bf16.msra.mxu0 0
        %7418 = vmatprep.subr.bf16.mxu0 0
        %7419 = vmatpush1.bf16.msra.mxu0 0
        %7420 = vmatprep.subr.bf16.mxu0 0
        %7421 = vmatpush1.bf16.msra.mxu0 0
        %7422 = vmatprep.subr.bf16.mxu0 0
        %7423 = vmatpush1.bf16.msra.mxu0 0
        %7424 = vmatprep.subr.bf16.mxu0 0
        %7425 = vmatpush1.bf16.msra.mxu0 %v7410
        %7426 = vmatprep.subr.bf16.mxu0 0
        %7427 = vmatpush1.bf16.msra.mxu0 %v7399
        %7428 = vmatprep.subr.bf16.mxu0 0
        %7429 = vmatpush2.bf16.msra.mxu0 0
        %7430 = vmatprep.subr.bf16.mxu0 0
        %7431 = vmatpush2.bf16.msra.mxu0 0
        %7432 = vmatprep.subr.bf16.mxu0 0
        %7433 = vmatpush2.bf16.msra.mxu0 0
        %7434 = vmatprep.subr.bf16.mxu0 0
        %7435 = vmatpush2.bf16.msra.mxu0 0
        %7436 = vmatprep.subr.bf16.mxu0 0
        %7437 = vmatpush2.bf16.msra.mxu0 0
        %7438 = vmatprep.subr.bf16.mxu0 0
        %7439 = vmatpush2.bf16.msra.mxu0 0
        %7440 = vmatprep.subr.bf16.mxu0 0
        %7441 = vmatpush2.bf16.msra.mxu0 0
        %7442 = vmatprep.subr.bf16.mxu0 0
        %7443 = vmatpush2.bf16.msra.mxu0 0
        %7444 = vmatprep.mubr.bf16.mxu0 0
        %7445 = vmatmul.mubr.bf16.gmra.mxu0 %v7404
        %v7446 = vpop.f32.mrf.mxu0
        %v7447 = vadd.f32 0.0, %v7446
        %v7448 = vpop.f32.mrf.mxu0
        %v7449 = vpop.f32.mrf.mxu0
        %v7450 = vadd.f32 0.0, %v7449
        %v7451 = vpop.f32.mrf.mxu0
        %7452 = vmatprep.mubr.bf16.mxu0 0
        %7453 = vmatmul.mubr.bf16.gmra.mxu0 %v7407
        %v7454 = vpop.f32.mrf.mxu0
        %v7455 = vadd.f32 0.0, %v7454
        %v7456 = vpop.f32.mrf.mxu0
        %v7457 = vpop.f32.mrf.mxu0
        %v7458 = vpop.f32.mrf.mxu0
        %7459 = vdwg.mxu0
        %7460 = vrot.lane.b32.xlu0 %v5484, 32
        %v7461 = vpop.permute.xlu0 %7460
        %7462 = vrot.lane.b32.xlu0 %v5485, 32
        %v7463 = vpop.permute.xlu0 %7462
        %7464 = vrot.lane.b32.xlu0 %v5492, 32
        %v7465 = vpop.permute.xlu0 %7464
        %7466 = vrot.lane.b32.xlu0 %v5493, 32
        %v7467 = vpop.permute.xlu0 %7466
        %v7469 = vsel %vm1212, %v7461, 0
        %v7472 = vsel %vm1212, %v7463, 0
        %v7475 = vsel %vm1212, %v7465, 0
        %v7478 = vsel %vm1212, %v7467, 0
        %7480 = vmatprep.subr.bf16.mxu0 0
        %7481 = vmatpush1.bf16.xpose.msra.mxu0 0
        %7482 = vmatprep.subr.bf16.mxu0 0
        %7483 = vmatpush1.bf16.xpose.msra.mxu0 0
        %7484 = vmatprep.subr.bf16.mxu0 0
        %7485 = vmatpush1.bf16.xpose.msra.mxu0 0
        %7486 = vmatprep.subr.bf16.mxu0 0
        %7487 = vmatpush1.bf16.xpose.msra.mxu0 0
        %7488 = vmatprep.subr.bf16.mxu0 0
        %7489 = vmatpush1.bf16.xpose.msra.mxu0 0
        %7490 = vmatprep.subr.bf16.mxu0 0
        %7491 = vmatpush1.bf16.xpose.msra.mxu0 0
        %7492 = vmatprep.subr.bf16.mxu0 0
        %7493 = vmatpush1.bf16.xpose.msra.mxu0 %v7478
        %7494 = vmatprep.subr.bf16.mxu0 0
        %7495 = vmatpush1.bf16.xpose.msra.mxu0 %v7475
        %7496 = vmatprep.subr.bf16.mxu0 0
        %7497 = vmatpush2.bf16.xpose.msra.mxu0 0
        %7498 = vmatprep.subr.bf16.mxu0 0
        %7499 = vmatpush2.bf16.xpose.msra.mxu0 0
        %7500 = vmatprep.subr.bf16.mxu0 0
        %7501 = vmatpush2.bf16.xpose.msra.mxu0 0
        %7502 = vmatprep.subr.bf16.mxu0 0
        %7503 = vmatpush2.bf16.xpose.msra.mxu0 0
        %7504 = vmatprep.subr.bf16.mxu0 0
        %7505 = vmatpush2.bf16.xpose.msra.mxu0 0
        %7506 = vmatprep.subr.bf16.mxu0 0
        %7507 = vmatpush2.bf16.xpose.msra.mxu0 0
        %7508 = vmatprep.subr.bf16.mxu0 0
        %7509 = vmatpush2.bf16.xpose.msra.mxu0 0
        %7510 = vmatprep.subr.bf16.mxu0 0
        %7511 = vmatpush2.bf16.xpose.msra.mxu0 0
        %7512 = vmatprep.mubr.bf16.mxu0 0
        %7513 = vmatmul.mubr.bf16.gmra.mxu0 %v7469
        %v7514 = vpop.f32.mrf.mxu0
        %v7515 = vadd.f32 %v667, %v7514
        %v7516 = vpop.f32.mrf.mxu0
        %v7517 = vpop.f32.mrf.mxu0
        %v7518 = vadd.f32 %v667, %v7517
        %v7519 = vpop.f32.mrf.mxu0
        %7520 = vmatprep.mubr.bf16.mxu0 0
        %7521 = vmatmul.mubr.bf16.gmra.mxu0 %v7472
        %v7522 = vpop.f32.mrf.mxu0
        %v7523 = vadd.f32 %v667, %v7522
        %v7524 = vpop.f32.mrf.mxu0
        %v7525 = vpop.f32.mrf.mxu0
        %v7526 = vpop.f32.mrf.mxu0
        %7527 = vdwg.mxu0
        %7528 = vrot.lane.b32.xlu0 %v5486, 32
        %v7529 = vpop.permute.xlu0 %7528
        %7530 = vrot.lane.b32.xlu0 %v5487, 32
        %v7531 = vpop.permute.xlu0 %7530
        %7532 = vrot.lane.b32.xlu0 %v5494, 32
        %v7533 = vpop.permute.xlu0 %7532
        %7534 = vrot.lane.b32.xlu0 %v5495, 32
        %v7535 = vpop.permute.xlu0 %7534
        %v7537 = vsel %vm1212, %v7529, 0
        %v7540 = vsel %vm1212, %v7531, 0
        %v7543 = vsel %vm1212, %v7533, 0
        %v7546 = vsel %vm1212, %v7535, 0
        %7548 = vmatprep.subr.bf16.mxu0 0
        %7549 = vmatpush1.bf16.xpose.msra.mxu0 0
        %7550 = vmatprep.subr.bf16.mxu0 0
        %7551 = vmatpush1.bf16.xpose.msra.mxu0 0
        %7552 = vmatprep.subr.bf16.mxu0 0
        %7553 = vmatpush1.bf16.xpose.msra.mxu0 0
        %7554 = vmatprep.subr.bf16.mxu0 0
        %7555 = vmatpush1.bf16.xpose.msra.mxu0 0
        %7556 = vmatprep.subr.bf16.mxu0 0
        %7557 = vmatpush1.bf16.xpose.msra.mxu0 0
        %7558 = vmatprep.subr.bf16.mxu0 0
        %7559 = vmatpush1.bf16.xpose.msra.mxu0 0
        %7560 = vmatprep.subr.bf16.mxu0 0
        %7561 = vmatpush1.bf16.xpose.msra.mxu0 %v7546
        %7562 = vmatprep.subr.bf16.mxu0 0
        %7563 = vmatpush1.bf16.xpose.msra.mxu0 %v7543
        %7564 = vmatprep.subr.bf16.mxu0 0
        %7565 = vmatpush2.bf16.xpose.msra.mxu0 0
        %7566 = vmatprep.subr.bf16.mxu0 0
        %7567 = vmatpush2.bf16.xpose.msra.mxu0 0
        %7568 = vmatprep.subr.bf16.mxu0 0
        %7569 = vmatpush2.bf16.xpose.msra.mxu0 0
        %7570 = vmatprep.subr.bf16.mxu0 0
        %7571 = vmatpush2.bf16.xpose.msra.mxu0 0
        %7572 = vmatprep.subr.bf16.mxu0 0
        %7573 = vmatpush2.bf16.xpose.msra.mxu0 0
        %7574 = vmatprep.subr.bf16.mxu0 0
        %7575 = vmatpush2.bf16.xpose.msra.mxu0 0
        %7576 = vmatprep.subr.bf16.mxu0 0
        %7577 = vmatpush2.bf16.xpose.msra.mxu0 0
        %7578 = vmatprep.subr.bf16.mxu0 0
        %7579 = vmatpush2.bf16.xpose.msra.mxu0 0
        %7580 = vmatprep.mubr.bf16.mxu0 0
        %7581 = vmatmul.mubr.bf16.gmra.mxu0 %v7537
        %v7582 = vpop.f32.mrf.mxu0
        %v7583 = vadd.f32 %v667, %v7582
        %v7584 = vpop.f32.mrf.mxu0
        %v7585 = vpop.f32.mrf.mxu0
        %v7586 = vadd.f32 %v667, %v7585
        %v7587 = vpop.f32.mrf.mxu0
        %7588 = vmatprep.mubr.bf16.mxu0 0
        %7589 = vmatmul.mubr.bf16.gmra.mxu0 %v7540
        %v7590 = vpop.f32.mrf.mxu0
        %v7591 = vadd.f32 %v667, %v7590
        %v7592 = vpop.f32.mrf.mxu0
        %v7593 = vpop.f32.mrf.mxu0
        %v7594 = vpop.f32.mrf.mxu0
        %7595 = vdwg.mxu0
        %7596 = vrot.lane.b32.xlu0 %v5488, 32
        %v7597 = vpop.permute.xlu0 %7596
        %7598 = vrot.lane.b32.xlu0 %v5489, 32
        %v7599 = vpop.permute.xlu0 %7598
        %7600 = vrot.lane.b32.xlu0 %v5496, 32
        %v7601 = vpop.permute.xlu0 %7600
        %7602 = vrot.lane.b32.xlu0 %v5497, 32
        %v7603 = vpop.permute.xlu0 %7602
        %v7605 = vsel %vm1212, %v7597, 0
        %v7608 = vsel %vm1212, %v7599, 0
        %v7611 = vsel %vm1212, %v7601, 0
        %v7614 = vsel %vm1212, %v7603, 0
        %7616 = vmatprep.subr.bf16.mxu0 0
        %7617 = vmatpush1.bf16.xpose.msra.mxu0 0
        %7618 = vmatprep.subr.bf16.mxu0 0
        %7619 = vmatpush1.bf16.xpose.msra.mxu0 0
        %7620 = vmatprep.subr.bf16.mxu0 0
        %7621 = vmatpush1.bf16.xpose.msra.mxu0 0
        %7622 = vmatprep.subr.bf16.mxu0 0
        %7623 = vmatpush1.bf16.xpose.msra.mxu0 0
        %7624 = vmatprep.subr.bf16.mxu0 0
        %7625 = vmatpush1.bf16.xpose.msra.mxu0 0
        %7626 = vmatprep.subr.bf16.mxu0 0
        %7627 = vmatpush1.bf16.xpose.msra.mxu0 0
        %7628 = vmatprep.subr.bf16.mxu0 0
        %7629 = vmatpush1.bf16.xpose.msra.mxu0 %v7614
        %7630 = vmatprep.subr.bf16.mxu0 0
        %7631 = vmatpush1.bf16.xpose.msra.mxu0 %v7611
        %7632 = vmatprep.subr.bf16.mxu0 0
        %7633 = vmatpush2.bf16.xpose.msra.mxu0 0
        %7634 = vmatprep.subr.bf16.mxu0 0
        %7635 = vmatpush2.bf16.xpose.msra.mxu0 0
        %7636 = vmatprep.subr.bf16.mxu0 0
        %7637 = vmatpush2.bf16.xpose.msra.mxu0 0
        %7638 = vmatprep.subr.bf16.mxu0 0
        %7639 = vmatpush2.bf16.xpose.msra.mxu0 0
        %7640 = vmatprep.subr.bf16.mxu0 0
        %7641 = vmatpush2.bf16.xpose.msra.mxu0 0
        %7642 = vmatprep.subr.bf16.mxu0 0
        %7643 = vmatpush2.bf16.xpose.msra.mxu0 0
        %7644 = vmatprep.subr.bf16.mxu0 0
        %7645 = vmatpush2.bf16.xpose.msra.mxu0 0
        %7646 = vmatprep.subr.bf16.mxu0 0
        %7647 = vmatpush2.bf16.xpose.msra.mxu0 0
        %7648 = vmatprep.mubr.bf16.mxu0 0
        %7649 = vmatmul.mubr.bf16.gmra.mxu0 %v7605
        %v7650 = vpop.f32.mrf.mxu0
        %v7651 = vadd.f32 %v667, %v7650
        %v7652 = vpop.f32.mrf.mxu0
        %v7653 = vpop.f32.mrf.mxu0
        %v7654 = vadd.f32 %v667, %v7653
        %v7655 = vpop.f32.mrf.mxu0
        %7656 = vmatprep.mubr.bf16.mxu0 0
        %7657 = vmatmul.mubr.bf16.gmra.mxu0 %v7608
        %v7658 = vpop.f32.mrf.mxu0
        %v7659 = vadd.f32 %v667, %v7658
        %v7660 = vpop.f32.mrf.mxu0
        %v7661 = vpop.f32.mrf.mxu0
        %v7662 = vpop.f32.mrf.mxu0
        %7663 = vdwg.mxu0
        %7664 = vrot.lane.b32.xlu0 %v5490, 32
        %v7665 = vpop.permute.xlu0 %7664
        %7666 = vrot.lane.b32.xlu0 %v5491, 32
        %v7667 = vpop.permute.xlu0 %7666
        %7668 = vrot.lane.b32.xlu0 %v5498, 32
        %v7669 = vpop.permute.xlu0 %7668
        %7670 = vrot.lane.b32.xlu0 %v5499, 32
        %v7671 = vpop.permute.xlu0 %7670
        %v7673 = vsel %vm1212, %v7665, 0
        %v7676 = vsel %vm1212, %v7667, 0
        %v7679 = vsel %vm1212, %v7669, 0
        %v7682 = vsel %vm1212, %v7671, 0
        %7684 = vmatprep.subr.bf16.mxu0 0
        %7685 = vmatpush1.bf16.xpose.msra.mxu0 0
        %7686 = vmatprep.subr.bf16.mxu0 0
        %7687 = vmatpush1.bf16.xpose.msra.mxu0 0
        %7688 = vmatprep.subr.bf16.mxu0 0
        %7689 = vmatpush1.bf16.xpose.msra.mxu0 0
        %7690 = vmatprep.subr.bf16.mxu0 0
        %7691 = vmatpush1.bf16.xpose.msra.mxu0 0
        %7692 = vmatprep.subr.bf16.mxu0 0
        %7693 = vmatpush1.bf16.xpose.msra.mxu0 0
        %7694 = vmatprep.subr.bf16.mxu0 0
        %7695 = vmatpush1.bf16.xpose.msra.mxu0 0
        %7696 = vmatprep.subr.bf16.mxu0 0
        %7697 = vmatpush1.bf16.xpose.msra.mxu0 %v7682
        %7698 = vmatprep.subr.bf16.mxu0 0
        %7699 = vmatpush1.bf16.xpose.msra.mxu0 %v7679
        %7700 = vmatprep.subr.bf16.mxu0 0
        %7701 = vmatpush2.bf16.xpose.msra.mxu0 0
        %7702 = vmatprep.subr.bf16.mxu0 0
        %7703 = vmatpush2.bf16.xpose.msra.mxu0 0
        %7704 = vmatprep.subr.bf16.mxu0 0
        %7705 = vmatpush2.bf16.xpose.msra.mxu0 0
        %7706 = vmatprep.subr.bf16.mxu0 0
        %7707 = vmatpush2.bf16.xpose.msra.mxu0 0
        %7708 = vmatprep.subr.bf16.mxu0 0
        %7709 = vmatpush2.bf16.xpose.msra.mxu0 0
        %7710 = vmatprep.subr.bf16.mxu0 0
        %7711 = vmatpush2.bf16.xpose.msra.mxu0 0
        %7712 = vmatprep.subr.bf16.mxu0 0
        %7713 = vmatpush2.bf16.xpose.msra.mxu0 0
        %7714 = vmatprep.subr.bf16.mxu0 0
        %7715 = vmatpush2.bf16.xpose.msra.mxu0 0
        %7716 = vmatprep.mubr.bf16.mxu0 0
        %7717 = vmatmul.mubr.bf16.gmra.mxu0 %v7673
        %v7718 = vpop.f32.mrf.mxu0
        %v7719 = vadd.f32 %v667, %v7718
        %v7720 = vpop.f32.mrf.mxu0
        %v7721 = vpop.f32.mrf.mxu0
        %v7722 = vadd.f32 %v667, %v7721
        %v7723 = vpop.f32.mrf.mxu0
        %7724 = vmatprep.mubr.bf16.mxu0 0
        %7725 = vmatmul.mubr.bf16.gmra.mxu0 %v7676
        %v7726 = vpop.f32.mrf.mxu0
        %v7727 = vadd.f32 %v667, %v7726
        %v7728 = vpop.f32.mrf.mxu0
        %v7729 = vpop.f32.mrf.mxu0
        %v7730 = vpop.f32.mrf.mxu0
        %7731 = vdwg.mxu0
        %v7732 = vsel %vm1453, %v7515, -inf
        %7733 = vmax.xlane.f32.xlu0 %v7732
        %v7734 = vpop.xlane.xlu0 %7733
        %v7735 = vsel %vm1453, %v7518, -inf
        %7736 = vmax.xlane.f32.xlu0 %v7735
        %v7737 = vpop.xlane.xlu0 %7736
        %v7738 = vsel %vm1453, %v7523, -inf
        %7739 = vmax.xlane.f32.xlu0 %v7738
        %v7740 = vpop.xlane.xlu0 %7739
        %v7741 = vsel %vm1453, %v7583, -inf
        %7742 = vmax.xlane.f32.xlu0 %v7741
        %v7743 = vpop.xlane.xlu0 %7742
        %v7744 = vsel %vm1453, %v7586, -inf
        %7745 = vmax.xlane.f32.xlu0 %v7744
        %v7746 = vpop.xlane.xlu0 %7745
        %v7747 = vsel %vm1453, %v7591, -inf
        %7748 = vmax.xlane.f32.xlu0 %v7747
        %v7749 = vpop.xlane.xlu0 %7748
        %v7750 = vsel %vm1453, %v7651, -inf
        %7751 = vmax.xlane.f32.xlu0 %v7750
        %v7752 = vpop.xlane.xlu0 %7751
        %v7753 = vsel %vm1453, %v7654, -inf
        %7754 = vmax.xlane.f32.xlu0 %v7753
        %v7755 = vpop.xlane.xlu0 %7754
        %v7756 = vsel %vm1453, %v7659, -inf
        %7757 = vmax.xlane.f32.xlu0 %v7756
        %v7758 = vpop.xlane.xlu0 %7757
        %v7759 = vsel %vm1453, %v7719, -inf
        %7760 = vmax.xlane.f32.xlu0 %v7759
        %v7761 = vpop.xlane.xlu0 %7760
        %v7762 = vsel %vm1453, %v7722, -inf
        %7763 = vmax.xlane.f32.xlu0 %v7762
        %v7764 = vpop.xlane.xlu0 %7763
        %v7765 = vsel %vm1453, %v7727, -inf
        %7766 = vmax.xlane.f32.xlu0 %v7765
        %v7767 = vpop.xlane.xlu0 %7766
        %v7768 = vsub.f32 %v7515, %v7734
        %v7769 = vsub.f32 %v7518, %v7737
        %v7770 = vsub.f32 %v7523, %v7740
        %v7771 = vsub.f32 %v7583, %v7743
        %v7772 = vsub.f32 %v7586, %v7746
        %v7773 = vsub.f32 %v7591, %v7749
        %v7774 = vsub.f32 %v7651, %v7752
        %v7775 = vsub.f32 %v7654, %v7755
        %v7776 = vsub.f32 %v7659, %v7758
        %v7777 = vsub.f32 %v7719, %v7761
        %v7778 = vsub.f32 %v7722, %v7764
        %v7779 = vsub.f32 %v7727, %v7767
        %v7780 = vmul.f32 %v7768, 1.442695
        %v7781 = vpow.pop %v7780
        %v7782 = vmul.f32 %v7769, 1.442695
        %v7783 = vpow.pop %v7782
        %v7784 = vmul.f32 %v7770, 1.442695
        %v7785 = vpow.pop %v7784
        %v7786 = vmul.f32 %v7771, 1.442695
        %v7787 = vpow.pop %v7786
        %v7788 = vmul.f32 %v7772, 1.442695
        %v7789 = vpow.pop %v7788
        %v7790 = vmul.f32 %v7773, 1.442695
        %v7791 = vpow.pop %v7790
        %v7792 = vmul.f32 %v7774, 1.442695
        %v7793 = vpow.pop %v7792
        %v7794 = vmul.f32 %v7775, 1.442695
        %v7795 = vpow.pop %v7794
        %v7796 = vmul.f32 %v7776, 1.442695
        %v7797 = vpow.pop %v7796
        %v7798 = vmul.f32 %v7777, 1.442695
        %v7799 = vpow.pop %v7798
        %v7800 = vmul.f32 %v7778, 1.442695
        %v7801 = vpow.pop %v7800
        %v7802 = vmul.f32 %v7779, 1.442695
        %v7803 = vpow.pop %v7802
        %v7804 = vsel %vm1453, %v7781, 0.0
        %7805 = vadd.xlane.f32.xlu0 %v7804
        %v7806 = vpop.xlane.xlu0 %7805
        %v7807 = vsel %vm1453, %v7783, 0.0
        %7808 = vadd.xlane.f32.xlu0 %v7807
        %v7809 = vpop.xlane.xlu0 %7808
        %v7810 = vsel %vm1453, %v7785, 0.0
        %7811 = vadd.xlane.f32.xlu0 %v7810
        %v7812 = vpop.xlane.xlu0 %7811
        %v7813 = vsel %vm1453, %v7787, 0.0
        %7814 = vadd.xlane.f32.xlu0 %v7813
        %v7815 = vpop.xlane.xlu0 %7814
        %v7816 = vsel %vm1453, %v7789, 0.0
        %7817 = vadd.xlane.f32.xlu0 %v7816
        %v7818 = vpop.xlane.xlu0 %7817
        %v7819 = vsel %vm1453, %v7791, 0.0
        %7820 = vadd.xlane.f32.xlu0 %v7819
        %v7821 = vpop.xlane.xlu0 %7820
        %v7822 = vsel %vm1453, %v7793, 0.0
        %7823 = vadd.xlane.f32.xlu0 %v7822
        %v7824 = vpop.xlane.xlu0 %7823
        %v7825 = vsel %vm1453, %v7795, 0.0
        %7826 = vadd.xlane.f32.xlu0 %v7825
        %v7827 = vpop.xlane.xlu0 %7826
        %v7828 = vsel %vm1453, %v7797, 0.0
        %7829 = vadd.xlane.f32.xlu0 %v7828
        %v7830 = vpop.xlane.xlu0 %7829
        %v7831 = vsel %vm1453, %v7799, 0.0
        %7832 = vadd.xlane.f32.xlu0 %v7831
        %v7833 = vpop.xlane.xlu0 %7832
        %v7834 = vsel %vm1453, %v7801, 0.0
        %7835 = vadd.xlane.f32.xlu0 %v7834
        %v7836 = vpop.xlane.xlu0 %7835
        %v7837 = vsel %vm1453, %v7803, 0.0
        %7838 = vadd.xlane.f32.xlu0 %v7837
        %v7839 = vpop.xlane.xlu0 %7838
        %v7840 = vrcp.pop %v7806
        %v7841 = vrcp.pop %v7809
        %v7842 = vrcp.pop %v7812
        %v7843 = vrcp.pop %v7815
        %v7844 = vrcp.pop %v7818
        %v7845 = vrcp.pop %v7821
        %v7846 = vrcp.pop %v7824
        %v7847 = vrcp.pop %v7827
        %v7848 = vrcp.pop %v7830
        %v7849 = vrcp.pop %v7833
        %v7850 = vrcp.pop %v7836
        %v7851 = vrcp.pop %v7839
        %v7852 = vmul.f32 %v7781, %v7840
        %v7853 = vmul.f32 %v7783, %v7841
        %v7854 = vmul.f32 %v7785, %v7842
        %v7855 = vmul.f32 %v7787, %v7843
        %v7856 = vmul.f32 %v7789, %v7844
        %v7857 = vmul.f32 %v7791, %v7845
        %v7858 = vmul.f32 %v7793, %v7846
        %v7859 = vmul.f32 %v7795, %v7847
        %v7860 = vmul.f32 %v7797, %v7848
        %v7861 = vmul.f32 %v7799, %v7849
        %v7862 = vmul.f32 %v7801, %v7850
        %v7863 = vmul.f32 %v7803, %v7851
        %v7864 = vpack.c.bf16 %v7853, %v7852
        %v7865 = vpack.c.bf16 %v7854, %v7854
        %v7866 = vpack.c.bf16 %v7856, %v7855
        %v7867 = vpack.c.bf16 %v7857, %v7857
        %v7868 = vpack.c.bf16 %v7859, %v7858
        %v7869 = vpack.c.bf16 %v7860, %v7860
        %v7870 = vpack.c.bf16 %v7862, %v7861
        %v7871 = vpack.c.bf16 %v7863, %v7863
        %7872 = vrot.lane.b32.xlu0 %v5500, 32
        %v7873 = vpop.permute.xlu0 %7872
        %7874 = vrot.lane.b32.xlu0 %v5501, 32
        %v7875 = vpop.permute.xlu0 %7874
        %v7878 = vsel %vm1453, %v7864, 0
        %v7881 = vsel %vm1453, %v7865, 0
        %v7884 = vsel %vm1600, %v7875, 0
        %7886 = vmatprep.subr.bf16.mxu0 0
        %7887 = vmatpush1.bf16.msra.mxu0 0
        %7888 = vmatprep.subr.bf16.mxu0 0
        %7889 = vmatpush1.bf16.msra.mxu0 0
        %7890 = vmatprep.subr.bf16.mxu0 0
        %7891 = vmatpush1.bf16.msra.mxu0 0
        %7892 = vmatprep.subr.bf16.mxu0 0
        %7893 = vmatpush1.bf16.msra.mxu0 0
        %7894 = vmatprep.subr.bf16.mxu0 0
        %7895 = vmatpush1.bf16.msra.mxu0 0
        %7896 = vmatprep.subr.bf16.mxu0 0
        %7897 = vmatpush1.bf16.msra.mxu0 0
        %7898 = vmatprep.subr.bf16.mxu0 0
        %7899 = vmatpush1.bf16.msra.mxu0 %v7884
        %7900 = vmatprep.subr.bf16.mxu0 0
        %7901 = vmatpush1.bf16.msra.mxu0 %v7873
        %7902 = vmatprep.subr.bf16.mxu0 0
        %7903 = vmatpush2.bf16.msra.mxu0 0
        %7904 = vmatprep.subr.bf16.mxu0 0
        %7905 = vmatpush2.bf16.msra.mxu0 0
        %7906 = vmatprep.subr.bf16.mxu0 0
        %7907 = vmatpush2.bf16.msra.mxu0 0
        %7908 = vmatprep.subr.bf16.mxu0 0
        %7909 = vmatpush2.bf16.msra.mxu0 0
        %7910 = vmatprep.subr.bf16.mxu0 0
        %7911 = vmatpush2.bf16.msra.mxu0 0
        %7912 = vmatprep.subr.bf16.mxu0 0
        %7913 = vmatpush2.bf16.msra.mxu0 0
        %7914 = vmatprep.subr.bf16.mxu0 0
        %7915 = vmatpush2.bf16.msra.mxu0 0
        %7916 = vmatprep.subr.bf16.mxu0 0
        %7917 = vmatpush2.bf16.msra.mxu0 0
        %7918 = vmatprep.mubr.bf16.mxu0 0
        %7919 = vmatmul.mubr.bf16.gmra.mxu0 %v7878
        %v7920 = vpop.f32.mrf.mxu0
        %v7921 = vadd.f32 0.0, %v7920
        %v7922 = vpop.f32.mrf.mxu0
        %v7923 = vpop.f32.mrf.mxu0
        %v7924 = vadd.f32 0.0, %v7923
        %v7925 = vpop.f32.mrf.mxu0
        %7926 = vmatprep.mubr.bf16.mxu0 0
        %7927 = vmatmul.mubr.bf16.gmra.mxu0 %v7881
        %v7928 = vpop.f32.mrf.mxu0
        %v7929 = vadd.f32 0.0, %v7928
        %v7930 = vpop.f32.mrf.mxu0
        %v7931 = vpop.f32.mrf.mxu0
        %v7932 = vpop.f32.mrf.mxu0
        %7933 = vdwg.mxu0
        %7934 = vrot.lane.b32.xlu0 %v5502, 32
        %v7935 = vpop.permute.xlu0 %7934
        %7936 = vrot.lane.b32.xlu0 %v5503, 32
        %v7937 = vpop.permute.xlu0 %7936
        %v7940 = vsel %vm1453, %v7866, 0
        %v7943 = vsel %vm1453, %v7867, 0
        %v7946 = vsel %vm1600, %v7937, 0
        %7948 = vmatprep.subr.bf16.mxu0 0
        %7949 = vmatpush1.bf16.msra.mxu0 0
        %7950 = vmatprep.subr.bf16.mxu0 0
        %7951 = vmatpush1.bf16.msra.mxu0 0
        %7952 = vmatprep.subr.bf16.mxu0 0
        %7953 = vmatpush1.bf16.msra.mxu0 0
        %7954 = vmatprep.subr.bf16.mxu0 0
        %7955 = vmatpush1.bf16.msra.mxu0 0
        %7956 = vmatprep.subr.bf16.mxu0 0
        %7957 = vmatpush1.bf16.msra.mxu0 0
        %7958 = vmatprep.subr.bf16.mxu0 0
        %7959 = vmatpush1.bf16.msra.mxu0 0
        %7960 = vmatprep.subr.bf16.mxu0 0
        %7961 = vmatpush1.bf16.msra.mxu0 %v7946
        %7962 = vmatprep.subr.bf16.mxu0 0
        %7963 = vmatpush1.bf16.msra.mxu0 %v7935
        %7964 = vmatprep.subr.bf16.mxu0 0
        %7965 = vmatpush2.bf16.msra.mxu0 0
        %7966 = vmatprep.subr.bf16.mxu0 0
        %7967 = vmatpush2.bf16.msra.mxu0 0
        %7968 = vmatprep.subr.bf16.mxu0 0
        %7969 = vmatpush2.bf16.msra.mxu0 0
        %7970 = vmatprep.subr.bf16.mxu0 0
        %7971 = vmatpush2.bf16.msra.mxu0 0
        %7972 = vmatprep.subr.bf16.mxu0 0
        %7973 = vmatpush2.bf16.msra.mxu0 0
        %7974 = vmatprep.subr.bf16.mxu0 0
        %7975 = vmatpush2.bf16.msra.mxu0 0
        %7976 = vmatprep.subr.bf16.mxu0 0
        %7977 = vmatpush2.bf16.msra.mxu0 0
        %7978 = vmatprep.subr.bf16.mxu0 0
        %7979 = vmatpush2.bf16.msra.mxu0 0
        %7980 = vmatprep.mubr.bf16.mxu0 0
        %7981 = vmatmul.mubr.bf16.gmra.mxu0 %v7940
        %v7982 = vpop.f32.mrf.mxu0
        %v7983 = vadd.f32 0.0, %v7982
        %v7984 = vpop.f32.mrf.mxu0
        %v7985 = vpop.f32.mrf.mxu0
        %v7986 = vadd.f32 0.0, %v7985
        %v7987 = vpop.f32.mrf.mxu0
        %7988 = vmatprep.mubr.bf16.mxu0 0
        %7989 = vmatmul.mubr.bf16.gmra.mxu0 %v7943
        %v7990 = vpop.f32.mrf.mxu0
        %v7991 = vadd.f32 0.0, %v7990
        %v7992 = vpop.f32.mrf.mxu0
        %v7993 = vpop.f32.mrf.mxu0
        %v7994 = vpop.f32.mrf.mxu0
        %7995 = vdwg.mxu0
        %7996 = vrot.lane.b32.xlu0 %v5504, 32
        %v7997 = vpop.permute.xlu0 %7996
        %7998 = vrot.lane.b32.xlu0 %v5505, 32
        %v7999 = vpop.permute.xlu0 %7998
        %v8002 = vsel %vm1453, %v7868, 0
        %v8005 = vsel %vm1453, %v7869, 0
        %v8008 = vsel %vm1600, %v7999, 0
        %8010 = vmatprep.subr.bf16.mxu0 0
        %8011 = vmatpush1.bf16.msra.mxu0 0
        %8012 = vmatprep.subr.bf16.mxu0 0
        %8013 = vmatpush1.bf16.msra.mxu0 0
        %8014 = vmatprep.subr.bf16.mxu0 0
        %8015 = vmatpush1.bf16.msra.mxu0 0
        %8016 = vmatprep.subr.bf16.mxu0 0
        %8017 = vmatpush1.bf16.msra.mxu0 0
        %8018 = vmatprep.subr.bf16.mxu0 0
        %8019 = vmatpush1.bf16.msra.mxu0 0
        %8020 = vmatprep.subr.bf16.mxu0 0
        %8021 = vmatpush1.bf16.msra.mxu0 0
        %8022 = vmatprep.subr.bf16.mxu0 0
        %8023 = vmatpush1.bf16.msra.mxu0 %v8008
        %8024 = vmatprep.subr.bf16.mxu0 0
        %8025 = vmatpush1.bf16.msra.mxu0 %v7997
        %8026 = vmatprep.subr.bf16.mxu0 0
        %8027 = vmatpush2.bf16.msra.mxu0 0
        %8028 = vmatprep.subr.bf16.mxu0 0
        %8029 = vmatpush2.bf16.msra.mxu0 0
        %8030 = vmatprep.subr.bf16.mxu0 0
        %8031 = vmatpush2.bf16.msra.mxu0 0
        %8032 = vmatprep.subr.bf16.mxu0 0
        %8033 = vmatpush2.bf16.msra.mxu0 0
        %8034 = vmatprep.subr.bf16.mxu0 0
        %8035 = vmatpush2.bf16.msra.mxu0 0
        %8036 = vmatprep.subr.bf16.mxu0 0
        %8037 = vmatpush2.bf16.msra.mxu0 0
        %8038 = vmatprep.subr.bf16.mxu0 0
        %8039 = vmatpush2.bf16.msra.mxu0 0
        %8040 = vmatprep.subr.bf16.mxu0 0
        %8041 = vmatpush2.bf16.msra.mxu0 0
        %8042 = vmatprep.mubr.bf16.mxu0 0
        %8043 = vmatmul.mubr.bf16.gmra.mxu0 %v8002
        %v8044 = vpop.f32.mrf.mxu0
        %v8045 = vadd.f32 0.0, %v8044
        %v8046 = vpop.f32.mrf.mxu0
        %v8047 = vpop.f32.mrf.mxu0
        %v8048 = vadd.f32 0.0, %v8047
        %v8049 = vpop.f32.mrf.mxu0
        %8050 = vmatprep.mubr.bf16.mxu0 0
        %8051 = vmatmul.mubr.bf16.gmra.mxu0 %v8005
        %v8052 = vpop.f32.mrf.mxu0
        %v8053 = vadd.f32 0.0, %v8052
        %v8054 = vpop.f32.mrf.mxu0
        %v8055 = vpop.f32.mrf.mxu0
        %v8056 = vpop.f32.mrf.mxu0
        %8057 = vdwg.mxu0
        %8058 = vrot.lane.b32.xlu0 %v5506, 32
        %v8059 = vpop.permute.xlu0 %8058
        %8060 = vrot.lane.b32.xlu0 %v5507, 32
        %v8061 = vpop.permute.xlu0 %8060
        %v8064 = vsel %vm1453, %v7870, 0
        %v8067 = vsel %vm1453, %v7871, 0
        %v8070 = vsel %vm1600, %v8061, 0
        %8072 = vmatprep.subr.bf16.mxu0 0
        %8073 = vmatpush1.bf16.msra.mxu0 0
        %8074 = vmatprep.subr.bf16.mxu0 0
        %8075 = vmatpush1.bf16.msra.mxu0 0
        %8076 = vmatprep.subr.bf16.mxu0 0
        %8077 = vmatpush1.bf16.msra.mxu0 0
        %8078 = vmatprep.subr.bf16.mxu0 0
        %8079 = vmatpush1.bf16.msra.mxu0 0
        %8080 = vmatprep.subr.bf16.mxu0 0
        %8081 = vmatpush1.bf16.msra.mxu0 0
        %8082 = vmatprep.subr.bf16.mxu0 0
        %8083 = vmatpush1.bf16.msra.mxu0 0
        %8084 = vmatprep.subr.bf16.mxu0 0
        %8085 = vmatpush1.bf16.msra.mxu0 %v8070
        %8086 = vmatprep.subr.bf16.mxu0 0
        %8087 = vmatpush1.bf16.msra.mxu0 %v8059
        %8088 = vmatprep.subr.bf16.mxu0 0
        %8089 = vmatpush2.bf16.msra.mxu0 0
        %8090 = vmatprep.subr.bf16.mxu0 0
        %8091 = vmatpush2.bf16.msra.mxu0 0
        %8092 = vmatprep.subr.bf16.mxu0 0
        %8093 = vmatpush2.bf16.msra.mxu0 0
        %8094 = vmatprep.subr.bf16.mxu0 0
        %8095 = vmatpush2.bf16.msra.mxu0 0
        %8096 = vmatprep.subr.bf16.mxu0 0
        %8097 = vmatpush2.bf16.msra.mxu0 0
        %8098 = vmatprep.subr.bf16.mxu0 0
        %8099 = vmatpush2.bf16.msra.mxu0 0
        %8100 = vmatprep.subr.bf16.mxu0 0
        %8101 = vmatpush2.bf16.msra.mxu0 0
        %8102 = vmatprep.subr.bf16.mxu0 0
        %8103 = vmatpush2.bf16.msra.mxu0 0
        %8104 = vmatprep.mubr.bf16.mxu0 0
        %8105 = vmatmul.mubr.bf16.gmra.mxu0 %v8064
        %v8106 = vpop.f32.mrf.mxu0
        %v8107 = vadd.f32 0.0, %v8106
        %v8108 = vpop.f32.mrf.mxu0
        %v8109 = vpop.f32.mrf.mxu0
        %v8110 = vadd.f32 0.0, %v8109
        %v8111 = vpop.f32.mrf.mxu0
        %8112 = vmatprep.mubr.bf16.mxu0 0
        %8113 = vmatmul.mubr.bf16.gmra.mxu0 %v8067
        %v8114 = vpop.f32.mrf.mxu0
        %v8115 = vadd.f32 0.0, %v8114
        %v8116 = vpop.f32.mrf.mxu0
        %v8117 = vpop.f32.mrf.mxu0
        %v8118 = vpop.f32.mrf.mxu0
        %8119 = vdwg.mxu0
        %8132 = vrot.lane.b32.xlu0 %v6595, 32
        %v8133 = vpop.permute.xlu0 %8132
        %8134 = vrot.lane.b32.xlu0 %v6598, 32
        %v8135 = vpop.permute.xlu0 %8134
        %8136 = vrot.lane.b32.xlu0 %v6603, 32
        %v8137 = vpop.permute.xlu0 %8136
        %8138 = vrot.lane.b32.xlu0 %v6659, 32
        %v8139 = vpop.permute.xlu0 %8138
        %8140 = vrot.lane.b32.xlu0 %v6662, 32
        %v8141 = vpop.permute.xlu0 %8140
        %8142 = vrot.lane.b32.xlu0 %v6667, 32
        %v8143 = vpop.permute.xlu0 %8142
        %8144 = vrot.lane.b32.xlu0 %v6723, 32
        %v8145 = vpop.permute.xlu0 %8144
        %8146 = vrot.lane.b32.xlu0 %v6726, 32
        %v8147 = vpop.permute.xlu0 %8146
        %8148 = vrot.lane.b32.xlu0 %v6731, 32
        %v8149 = vpop.permute.xlu0 %8148
        %8150 = vrot.lane.b32.xlu0 %v6787, 32
        %v8151 = vpop.permute.xlu0 %8150
        %8152 = vrot.lane.b32.xlu0 %v6790, 32
        %v8153 = vpop.permute.xlu0 %8152
        %8154 = vrot.lane.b32.xlu0 %v6795, 32
        %v8155 = vpop.permute.xlu0 %8154
        %8180 = vrot.lane.b32.xlu0 %v7261, 64
        %v8181 = vpop.permute.xlu0 %8180
        %8182 = vrot.lane.b32.xlu0 %v7264, 64
        %v8183 = vpop.permute.xlu0 %8182
        %8184 = vrot.lane.b32.xlu0 %v7269, 64
        %v8185 = vpop.permute.xlu0 %8184
        %8186 = vrot.lane.b32.xlu0 %v7323, 64
        %v8187 = vpop.permute.xlu0 %8186
        %8188 = vrot.lane.b32.xlu0 %v7326, 64
        %v8189 = vpop.permute.xlu0 %8188
        %8190 = vrot.lane.b32.xlu0 %v7331, 64
        %v8191 = vpop.permute.xlu0 %8190
        %8192 = vrot.lane.b32.xlu0 %v7385, 64
        %v8193 = vpop.permute.xlu0 %8192
        %8194 = vrot.lane.b32.xlu0 %v7388, 64
        %v8195 = vpop.permute.xlu0 %8194
        %8196 = vrot.lane.b32.xlu0 %v7393, 64
        %v8197 = vpop.permute.xlu0 %8196
        %8198 = vrot.lane.b32.xlu0 %v7447, 64
        %v8199 = vpop.permute.xlu0 %8198
        %8200 = vrot.lane.b32.xlu0 %v7450, 64
        %v8201 = vpop.permute.xlu0 %8200
        %8202 = vrot.lane.b32.xlu0 %v7455, 64
        %v8203 = vpop.permute.xlu0 %8202
        %8228 = vrot.lane.b32.xlu0 %v7921, 96
        %v8229 = vpop.permute.xlu0 %8228
        %8230 = vrot.lane.b32.xlu0 %v7924, 96
        %v8231 = vpop.permute.xlu0 %8230
        %8232 = vrot.lane.b32.xlu0 %v7929, 96
        %v8233 = vpop.permute.xlu0 %8232
        %8234 = vrot.lane.b32.xlu0 %v7983, 96
        %v8235 = vpop.permute.xlu0 %8234
        %8236 = vrot.lane.b32.xlu0 %v7986, 96
        %v8237 = vpop.permute.xlu0 %8236
        %8238 = vrot.lane.b32.xlu0 %v7991, 96
        %v8239 = vpop.permute.xlu0 %8238
        %8240 = vrot.lane.b32.xlu0 %v8045, 96
        %v8241 = vpop.permute.xlu0 %8240
        %8242 = vrot.lane.b32.xlu0 %v8048, 96
        %v8243 = vpop.permute.xlu0 %8242
        %8244 = vrot.lane.b32.xlu0 %v8053, 96
        %v8245 = vpop.permute.xlu0 %8244
        %8246 = vrot.lane.b32.xlu0 %v8107, 96
        %v8247 = vpop.permute.xlu0 %8246
        %8248 = vrot.lane.b32.xlu0 %v8110, 96
        %v8249 = vpop.permute.xlu0 %8248
        %8250 = vrot.lane.b32.xlu0 %v8115, 96
        %v8251 = vpop.permute.xlu0 %8250
        %v8264 = vsel %vm1212, %v5932, %v8133
        %v8265 = vsel %vm1212, %v5935, %v8135
        %v8266 = vsel %vm1212, %v5940, %v8137
        %v8267 = vsel %vm1212, %v5989, %v8139
        %v8268 = vsel %vm1212, %v5992, %v8141
        %v8269 = vsel %vm1212, %v5997, %v8143
        %v8270 = vsel %vm1212, %v6046, %v8145
        %v8271 = vsel %vm1212, %v6049, %v8147
        %v8272 = vsel %vm1212, %v6054, %v8149
        %v8273 = vsel %vm1212, %v6103, %v8151
        %v8274 = vsel %vm1212, %v6106, %v8153
        %v8275 = vsel %vm1212, %v6111, %v8155
        %v8276 = vsel %vm536, %v8264, %v8181
        %v8277 = vsel %vm536, %v8265, %v8183
        %v8278 = vsel %vm536, %v8266, %v8185
        %v8279 = vsel %vm536, %v8267, %v8187
        %v8280 = vsel %vm536, %v8268, %v8189
        %v8281 = vsel %vm536, %v8269, %v8191
        %v8282 = vsel %vm536, %v8270, %v8193
        %v8283 = vsel %vm536, %v8271, %v8195
        %v8284 = vsel %vm536, %v8272, %v8197
        %v8285 = vsel %vm536, %v8273, %v8199
        %v8286 = vsel %vm536, %v8274, %v8201
        %v8287 = vsel %vm536, %v8275, %v8203
        %v8288 = vsel %vm3995, %v8276, %v8229
        %v8289 = vsel %vm3995, %v8277, %v8231
        %v8290 = vsel %vm3995, %v8278, %v8233
        %v8291 = vsel %vm3995, %v8279, %v8235
        %v8292 = vsel %vm3995, %v8280, %v8237
        %v8293 = vsel %vm3995, %v8281, %v8239
        %v8294 = vsel %vm3995, %v8282, %v8241
        %v8295 = vsel %vm3995, %v8283, %v8243
        %v8296 = vsel %vm3995, %v8284, %v8245
        %v8297 = vsel %vm3995, %v8285, %v8247
        %v8298 = vsel %vm3995, %v8286, %v8249
        %v8299 = vsel %vm3995, %v8287, %v8251
        %v8300 = vpack.c.bf16 %v8289, %v8288
        %v8301 = vpack.c.bf16 %v8291, %v8290
        %v8302 = vpack.c.bf16 %v8293, %v8292
        %v8303 = vpack.c.bf16 %v8295, %v8294
        %v8304 = vpack.c.bf16 %v8297, %v8296
        %v8305 = vpack.c.bf16 %v8299, %v8298
        %v8306 = vlaneseq
        %v8307 = vshrl.u32 %v8306, 7
        %v8308 = vsub.s32 4, %v8307
        %v8309 = vrot.slane %v4997, %v8308
        %v8310 = vunpack.c.h.b16 %v4965
        %v8311 = vunpack.c.h.b16 %v4967
        %v8312 = vunpack.c.h.b16 %v4969
        %v8313 = vunpack.c.h.b16 %v4971
        %v8314 = vunpack.c.h.b16 %v4973
        %v8315 = vunpack.c.h.b16 %v4975
        %v8316 = vunpack.c.h.b16 %v4977
        %v8317 = vunpack.c.h.b16 %v4979
        %v8318 = vunpack.c.h.b16 %v4981
        %v8319 = vunpack.c.h.b16 %v4983
        %v8320 = vunpack.c.h.b16 %v4985
        %v8321 = vunpack.c.h.b16 %v4987
        %v8322 = vunpack.c.h.b16 %v4989
        %v8323 = vunpack.c.h.b16 %v4991
        %v8324 = vunpack.c.h.b16 %v4993
        %v8325 = vunpack.c.h.b16 %v4995
        %v8326 = vpack.c.b16 %v8311, %v8310
        %v8327 = vpack.c.b16 %v8313, %v8312
        %v8328 = vpack.c.b16 %v8315, %v8314
        %v8329 = vpack.c.b16 %v8317, %v8316
        %v8330 = vpack.c.b16 %v8319, %v8318
        %v8331 = vpack.c.b16 %v8321, %v8320
        %v8332 = vpack.c.b16 %v8323, %v8322
        %v8333 = vpack.c.b16 %v8325, %v8324
        %8342 = vmatprep.subr.bf16.mxu0 0
        %8343 = vmatpush1.bf16.msra.mxu0 %v8333
        %8344 = vmatprep.subr.bf16.mxu0 0
        %8345 = vmatpush1.bf16.msra.mxu0 %v8332
        %8346 = vmatprep.subr.bf16.mxu0 0
        %8347 = vmatpush1.bf16.msra.mxu0 %v8331
        %8348 = vmatprep.subr.bf16.mxu0 0
        %8349 = vmatpush1.bf16.msra.mxu0 %v8330
        %8350 = vmatprep.subr.bf16.mxu0 0
        %8351 = vmatpush1.bf16.msra.mxu0 %v8329
        %8352 = vmatprep.subr.bf16.mxu0 0
        %8353 = vmatpush1.bf16.msra.mxu0 %v8328
        %8354 = vmatprep.subr.bf16.mxu0 0
        %8355 = vmatpush1.bf16.msra.mxu0 %v8327
        %8356 = vmatprep.subr.bf16.mxu0 0
        %8357 = vmatpush1.bf16.msra.mxu0 %v8326
        %8358 = vmatprep.subr.bf16.mxu0 0
        %8359 = vmatpush2.bf16.msra.mxu0 0
        %8360 = vmatprep.subr.bf16.mxu0 0
        %8361 = vmatpush2.bf16.msra.mxu0 0
        %8362 = vmatprep.subr.bf16.mxu0 0
        %8363 = vmatpush2.bf16.msra.mxu0 0
        %8364 = vmatprep.subr.bf16.mxu0 0
        %8365 = vmatpush2.bf16.msra.mxu0 0
        %8366 = vmatprep.subr.bf16.mxu0 0
        %8367 = vmatpush2.bf16.msra.mxu0 0
        %8368 = vmatprep.subr.bf16.mxu0 0
        %8369 = vmatpush2.bf16.msra.mxu0 0
        %8370 = vmatprep.subr.bf16.mxu0 0
        %8371 = vmatpush2.bf16.msra.mxu0 0
        %8372 = vmatprep.subr.bf16.mxu0 0
        %8373 = vmatpush2.bf16.msra.mxu0 0
        %8374 = vmatprep.mubr.bf16.mxu0 0
        %8375 = vmatmul.mubr.bf16.gmra.mxu0 %v8300
        %v8376 = vpop.f32.mrf.mxu0
        %v8377 = vadd.f32 %v8309, %v8376
        %v8378 = vpop.f32.mrf.mxu0
        %v8379 = vpop.f32.mrf.mxu0
        %v8380 = vadd.f32 %v8309, %v8379
        %v8381 = vpop.f32.mrf.mxu0
        %8382 = vmatprep.mubr.bf16.mxu0 0
        %8383 = vmatmul.mubr.bf16.gmra.mxu0 %v8301
        %v8384 = vpop.f32.mrf.mxu0
        %v8385 = vadd.f32 %v8309, %v8384
        %v8386 = vpop.f32.mrf.mxu0
        %v8387 = vpop.f32.mrf.mxu0
        %v8388 = vadd.f32 %v8309, %v8387
        %v8389 = vpop.f32.mrf.mxu0
        %8390 = vmatprep.mubr.bf16.mxu0 0
        %8391 = vmatmul.mubr.bf16.gmra.mxu0 %v8302
        %v8392 = vpop.f32.mrf.mxu0
        %v8393 = vadd.f32 %v8309, %v8392
        %v8394 = vpop.f32.mrf.mxu0
        %v8395 = vpop.f32.mrf.mxu0
        %v8396 = vadd.f32 %v8309, %v8395
        %v8397 = vpop.f32.mrf.mxu0
        %8398 = vmatprep.mubr.bf16.mxu0 0
        %8399 = vmatmul.mubr.bf16.gmra.mxu0 %v8303
        %v8400 = vpop.f32.mrf.mxu0
        %v8401 = vadd.f32 %v8309, %v8400
        %v8402 = vpop.f32.mrf.mxu0
        %v8403 = vpop.f32.mrf.mxu0
        %v8404 = vadd.f32 %v8309, %v8403
        %v8405 = vpop.f32.mrf.mxu0
        %8406 = vmatprep.mubr.bf16.mxu0 0
        %8407 = vmatmul.mubr.bf16.gmra.mxu0 %v8304
        %v8408 = vpop.f32.mrf.mxu0
        %v8409 = vadd.f32 %v8309, %v8408
        %v8410 = vpop.f32.mrf.mxu0
        %v8411 = vpop.f32.mrf.mxu0
        %v8412 = vadd.f32 %v8309, %v8411
        %v8413 = vpop.f32.mrf.mxu0
        %8414 = vmatprep.mubr.bf16.mxu0 0
        %8415 = vmatmul.mubr.bf16.gmra.mxu0 %v8305
        %v8416 = vpop.f32.mrf.mxu0
        %v8417 = vadd.f32 %v8309, %v8416
        %v8418 = vpop.f32.mrf.mxu0
        %v8419 = vpop.f32.mrf.mxu0
        %v8420 = vadd.f32 %v8309, %v8419
        %v8421 = vpop.f32.mrf.mxu0
        %8422 = vdwg.mxu0
        %v8423 = vadd.f32 %v4951, %v8377
        %v8424 = vadd.f32 %v4952, %v8380
        %v8425 = vadd.f32 %v4953, %v8385
        %v8426 = vadd.f32 %v4954, %v8388
        %v8427 = vadd.f32 %v4955, %v8393
        %v8428 = vadd.f32 %v4956, %v8396
        %v8429 = vadd.f32 %v4957, %v8401
        %v8430 = vadd.f32 %v4958, %v8404
        %v8431 = vadd.f32 %v4959, %v8409
        %v8432 = vadd.f32 %v4960, %v8412
        %v8433 = vadd.f32 %v4961, %v8417
        %v8434 = vadd.f32 %v4962, %v8420
        %8435 = vadd.xlane.f32.xlu0 %v8423
        %v8436 = vpop.xlane.xlu0 %8435
        %8437 = vadd.xlane.f32.xlu0 %v8424
        %v8438 = vpop.xlane.xlu0 %8437
        %8439 = vadd.xlane.f32.xlu0 %v8425
        %v8440 = vpop.xlane.xlu0 %8439
        %8441 = vadd.xlane.f32.xlu0 %v8426
        %v8442 = vpop.xlane.xlu0 %8441
        %8443 = vadd.xlane.f32.xlu0 %v8427
        %v8444 = vpop.xlane.xlu0 %8443
        %8445 = vadd.xlane.f32.xlu0 %v8428
        %v8446 = vpop.xlane.xlu0 %8445
        %8447 = vadd.xlane.f32.xlu0 %v8429
        %v8448 = vpop.xlane.xlu0 %8447
        %8449 = vadd.xlane.f32.xlu0 %v8430
        %v8450 = vpop.xlane.xlu0 %8449
        %8451 = vadd.xlane.f32.xlu0 %v8431
        %v8452 = vpop.xlane.xlu0 %8451
        %8453 = vadd.xlane.f32.xlu0 %v8432
        %v8454 = vpop.xlane.xlu0 %8453
        %8455 = vadd.xlane.f32.xlu0 %v8433
        %v8456 = vpop.xlane.xlu0 %8455
        %8457 = vadd.xlane.f32.xlu0 %v8434
        %v8458 = vpop.xlane.xlu0 %8457
        %v8459 = vmul.f32 %v8436, %v727
        %v8460 = vmul.f32 %v8438, %v727
        %v8461 = vmul.f32 %v8440, %v727
        %v8462 = vmul.f32 %v8442, %v727
        %v8463 = vmul.f32 %v8444, %v727
        %v8464 = vmul.f32 %v8446, %v727
        %v8465 = vmul.f32 %v8448, %v727
        %v8466 = vmul.f32 %v8450, %v727
        %v8467 = vmul.f32 %v8452, %v727
        %v8468 = vmul.f32 %v8454, %v727
        %v8469 = vmul.f32 %v8456, %v727
        %v8470 = vmul.f32 %v8458, %v727
        %v8471 = vsub.f32 %v8423, %v8459
        %v8472 = vsub.f32 %v8424, %v8460
        %v8473 = vsub.f32 %v8425, %v8461
        %v8474 = vsub.f32 %v8426, %v8462
        %v8475 = vsub.f32 %v8427, %v8463
        %v8476 = vsub.f32 %v8428, %v8464
        %v8477 = vsub.f32 %v8429, %v8465
        %v8478 = vsub.f32 %v8430, %v8466
        %v8479 = vsub.f32 %v8431, %v8467
        %v8480 = vsub.f32 %v8432, %v8468
        %v8481 = vsub.f32 %v8433, %v8469
        %v8482 = vsub.f32 %v8434, %v8470
        %v8483 = vmul.f32 %v8471, %v8471
        %v8484 = vmul.f32 %v8472, %v8472
        %v8485 = vmul.f32 %v8473, %v8473
        %v8486 = vmul.f32 %v8474, %v8474
        %v8487 = vmul.f32 %v8475, %v8475
        %v8488 = vmul.f32 %v8476, %v8476
        %v8489 = vmul.f32 %v8477, %v8477
        %v8490 = vmul.f32 %v8478, %v8478
        %v8491 = vmul.f32 %v8479, %v8479
        %v8492 = vmul.f32 %v8480, %v8480
        %v8493 = vmul.f32 %v8481, %v8481
        %v8494 = vmul.f32 %v8482, %v8482
        %8495 = vadd.xlane.f32.xlu0 %v8483
        %v8496 = vpop.xlane.xlu0 %8495
        %8497 = vadd.xlane.f32.xlu0 %v8484
        %v8498 = vpop.xlane.xlu0 %8497
        %8499 = vadd.xlane.f32.xlu0 %v8485
        %v8500 = vpop.xlane.xlu0 %8499
        %8501 = vadd.xlane.f32.xlu0 %v8486
        %v8502 = vpop.xlane.xlu0 %8501
        %8503 = vadd.xlane.f32.xlu0 %v8487
        %v8504 = vpop.xlane.xlu0 %8503
        %8505 = vadd.xlane.f32.xlu0 %v8488
        %v8506 = vpop.xlane.xlu0 %8505
        %8507 = vadd.xlane.f32.xlu0 %v8489
        %v8508 = vpop.xlane.xlu0 %8507
        %8509 = vadd.xlane.f32.xlu0 %v8490
        %v8510 = vpop.xlane.xlu0 %8509
        %8511 = vadd.xlane.f32.xlu0 %v8491
        %v8512 = vpop.xlane.xlu0 %8511
        %8513 = vadd.xlane.f32.xlu0 %v8492
        %v8514 = vpop.xlane.xlu0 %8513
        %8515 = vadd.xlane.f32.xlu0 %v8493
        %v8516 = vpop.xlane.xlu0 %8515
        %8517 = vadd.xlane.f32.xlu0 %v8494
        %v8518 = vpop.xlane.xlu0 %8517
        %v8519 = vmul.f32 %v8496, %v727
        %v8520 = vmul.f32 %v8498, %v727
        %v8521 = vmul.f32 %v8500, %v727
        %v8522 = vmul.f32 %v8502, %v727
        %v8523 = vmul.f32 %v8504, %v727
        %v8524 = vmul.f32 %v8506, %v727
        %v8525 = vmul.f32 %v8508, %v727
        %v8526 = vmul.f32 %v8510, %v727
        %v8527 = vmul.f32 %v8512, %v727
        %v8528 = vmul.f32 %v8514, %v727
        %v8529 = vmul.f32 %v8516, %v727
        %v8530 = vmul.f32 %v8518, %v727
        %v8531 = vadd.f32 %v8519, 1e-05
        %v8532 = vadd.f32 %v8520, 1e-05
        %v8533 = vadd.f32 %v8521, 1e-05
        %v8534 = vadd.f32 %v8522, 1e-05
        %v8535 = vadd.f32 %v8523, 1e-05
        %v8536 = vadd.f32 %v8524, 1e-05
        %v8537 = vadd.f32 %v8525, 1e-05
        %v8538 = vadd.f32 %v8526, 1e-05
        %v8539 = vadd.f32 %v8527, 1e-05
        %v8540 = vadd.f32 %v8528, 1e-05
        %v8541 = vadd.f32 %v8529, 1e-05
        %v8542 = vadd.f32 %v8530, 1e-05
        %v8543 = vrsqrt.pop %v8531
        %v8544 = vrsqrt.pop %v8532
        %v8545 = vrsqrt.pop %v8533
        %v8546 = vrsqrt.pop %v8534
        %v8547 = vrsqrt.pop %v8535
        %v8548 = vrsqrt.pop %v8536
        %v8549 = vrsqrt.pop %v8537
        %v8550 = vrsqrt.pop %v8538
        %v8551 = vrsqrt.pop %v8539
        %v8552 = vrsqrt.pop %v8540
        %v8553 = vrsqrt.pop %v8541
        %v8554 = vrsqrt.pop %v8542
        %v8555 = vmul.f32 %v8471, %v8543
        %v8556 = vmul.f32 %v8472, %v8544
        %v8557 = vmul.f32 %v8473, %v8545
        %v8558 = vmul.f32 %v8474, %v8546
        %v8559 = vmul.f32 %v8475, %v8547
        %v8560 = vmul.f32 %v8476, %v8548
        %v8561 = vmul.f32 %v8477, %v8549
        %v8562 = vmul.f32 %v8478, %v8550
        %v8563 = vmul.f32 %v8479, %v8551
        %v8564 = vmul.f32 %v8480, %v8552
        %v8565 = vmul.f32 %v8481, %v8553
        %v8566 = vmul.f32 %v8482, %v8554
        %v8567 = vlaneseq
        %v8568 = vshrl.u32 %v8567, 7
        %v8569 = vsub.s32 2, %v8568
        %v8570 = vrot.slane %v4997, %v8569
        %v8571 = vmul.f32 %v8555, %v8570
        %v8572 = vmul.f32 %v8556, %v8570
        %v8573 = vmul.f32 %v8557, %v8570
        %v8574 = vmul.f32 %v8558, %v8570
        %v8575 = vmul.f32 %v8559, %v8570
        %v8576 = vmul.f32 %v8560, %v8570
        %v8577 = vmul.f32 %v8561, %v8570
        %v8578 = vmul.f32 %v8562, %v8570
        %v8579 = vmul.f32 %v8563, %v8570
        %v8580 = vmul.f32 %v8564, %v8570
        %v8581 = vmul.f32 %v8565, %v8570
        %v8582 = vmul.f32 %v8566, %v8570
        %v8583 = vlaneseq
        %v8584 = vshrl.u32 %v8583, 7
        %v8585 = vsub.s32 3, %v8584
        %v8586 = vrot.slane %v4997, %v8585
        %v8587 = vadd.f32 %v8571, %v8586
        %v8588 = vadd.f32 %v8572, %v8586
        %v8589 = vadd.f32 %v8573, %v8586
        %v8590 = vadd.f32 %v8574, %v8586
        %v8591 = vadd.f32 %v8575, %v8586
        %v8592 = vadd.f32 %v8576, %v8586
        %v8593 = vadd.f32 %v8577, %v8586
        %v8594 = vadd.f32 %v8578, %v8586
        %v8595 = vadd.f32 %v8579, %v8586
        %v8596 = vadd.f32 %v8580, %v8586
        %v8597 = vadd.f32 %v8581, %v8586
        %v8598 = vadd.f32 %v8582, %v8586
        %v8599 = vpack.c.bf16 %v8588, %v8587
        %v8600 = vpack.c.bf16 %v8590, %v8589
        %v8601 = vpack.c.bf16 %v8592, %v8591
        %v8602 = vpack.c.bf16 %v8594, %v8593
        %v8603 = vpack.c.bf16 %v8596, %v8595
        %v8604 = vpack.c.bf16 %v8598, %v8597
        %s8605 = scalar_lea.vmem %s5, 128
        %v8606 = vld [vmem:[%s8605] sm:$0xff]
        %v8607 = vld [vmem:[%s8605 + $0x8] sm:$0xff]
        %v8608 = vld [vmem:[%s8605 + $0x10] sm:$0xff]
        %v8609 = vld [vmem:[%s8605 + $0x18] sm:$0xff]
        %v8610 = vld [vmem:[%s8605 + $0x20] sm:$0xff]
        %v8611 = vld [vmem:[%s8605 + $0x28] sm:$0xff]
        %v8612 = vld [vmem:[%s8605 + $0x30] sm:$0xff]
        %v8613 = vld [vmem:[%s8605 + $0x38] sm:$0xff]
        %v8614 = vld [vmem:[%s8605 + $0x40] sm:$0xff]
        %v8615 = vld [vmem:[%s8605 + $0x48] sm:$0xff]
        %v8616 = vld [vmem:[%s8605 + $0x50] sm:$0xff]
        %v8617 = vld [vmem:[%s8605 + $0x58] sm:$0xff]
        %v8618 = vld [vmem:[%s8605 + $0x60] sm:$0xff]
        %v8619 = vld [vmem:[%s8605 + $0x68] sm:$0xff]
        %v8620 = vld [vmem:[%s8605 + $0x70] sm:$0xff]
        %v8621 = vld [vmem:[%s8605 + $0x78] sm:$0xff]
        %v8622 = vlaneseq
        %v8623 = vshrl.u32 %v8622, 7
        %v8624 = vsub.s32 6, %v8623
        %v8625 = vrot.slane %v4997, %v8624
        %v8626 = vlaneseq
        %v8627 = vshrl.u32 %v8626, 7
        %v8628 = vsub.s32 6, %v8627
        %v8629 = vrot.slane %v4998, %v8628
        %v8646 = vunpack.c.l.b16 %v8606
        %v8647 = vunpack.c.h.b16 %v8606
        %v8648 = vunpack.c.l.b16 %v8607
        %v8649 = vunpack.c.h.b16 %v8607
        %v8650 = vunpack.c.l.b16 %v8608
        %v8651 = vunpack.c.h.b16 %v8608
        %v8652 = vunpack.c.l.b16 %v8609
        %v8653 = vunpack.c.h.b16 %v8609
        %v8654 = vunpack.c.l.b16 %v8610
        %v8655 = vunpack.c.h.b16 %v8610
        %v8656 = vunpack.c.l.b16 %v8611
        %v8657 = vunpack.c.h.b16 %v8611
        %v8658 = vunpack.c.l.b16 %v8612
        %v8659 = vunpack.c.h.b16 %v8612
        %v8660 = vunpack.c.l.b16 %v8613
        %v8661 = vunpack.c.h.b16 %v8613
        %v8662 = vunpack.c.l.b16 %v8614
        %v8663 = vunpack.c.h.b16 %v8614
        %v8664 = vunpack.c.l.b16 %v8615
        %v8665 = vunpack.c.h.b16 %v8615
        %v8666 = vunpack.c.l.b16 %v8616
        %v8667 = vunpack.c.h.b16 %v8616
        %v8668 = vunpack.c.l.b16 %v8617
        %v8669 = vunpack.c.h.b16 %v8617
        %v8670 = vunpack.c.l.b16 %v8618
        %v8671 = vunpack.c.h.b16 %v8618
        %v8672 = vunpack.c.l.b16 %v8619
        %v8673 = vunpack.c.h.b16 %v8619
        %v8674 = vunpack.c.l.b16 %v8620
        %v8675 = vunpack.c.h.b16 %v8620
        %v8676 = vunpack.c.l.b16 %v8621
        %v8677 = vunpack.c.h.b16 %v8621
        %v8678 = vpack.c.b16 %v8648, %v8646
        %v8679 = vpack.c.b16 %v8649, %v8647
        %v8680 = vpack.c.b16 %v8652, %v8650
        %v8681 = vpack.c.b16 %v8653, %v8651
        %v8682 = vpack.c.b16 %v8656, %v8654
        %v8683 = vpack.c.b16 %v8657, %v8655
        %v8684 = vpack.c.b16 %v8660, %v8658
        %v8685 = vpack.c.b16 %v8661, %v8659
        %v8686 = vpack.c.b16 %v8664, %v8662
        %v8687 = vpack.c.b16 %v8665, %v8663
        %v8688 = vpack.c.b16 %v8668, %v8666
        %v8689 = vpack.c.b16 %v8669, %v8667
        %v8690 = vpack.c.b16 %v8672, %v8670
        %v8691 = vpack.c.b16 %v8673, %v8671
        %v8692 = vpack.c.b16 %v8676, %v8674
        %v8693 = vpack.c.b16 %v8677, %v8675
        %8710 = vmatprep.subr.bf16.mxu0 %v8693
        %8711 = vmatpush1.bf16.msra.mxu0 %v8692
        %8712 = vmatprep.subr.bf16.mxu0 %v8691
        %8713 = vmatpush1.bf16.msra.mxu0 %v8690
        %8714 = vmatprep.subr.bf16.mxu0 %v8689
        %8715 = vmatpush1.bf16.msra.mxu0 %v8688
        %8716 = vmatprep.subr.bf16.mxu0 %v8687
        %8717 = vmatpush1.bf16.msra.mxu0 %v8686
        %8718 = vmatprep.subr.bf16.mxu0 %v8685
        %8719 = vmatpush1.bf16.msra.mxu0 %v8684
        %8720 = vmatprep.subr.bf16.mxu0 %v8683
        %8721 = vmatpush1.bf16.msra.mxu0 %v8682
        %8722 = vmatprep.subr.bf16.mxu0 %v8681
        %8723 = vmatpush1.bf16.msra.mxu0 %v8680
        %8724 = vmatprep.subr.bf16.mxu0 %v8679
        %8725 = vmatpush1.bf16.msra.mxu0 %v8678
        %8726 = vmatprep.subr.bf16.mxu0 0
        %8727 = vmatpush2.bf16.msra.mxu0 0
        %8728 = vmatprep.subr.bf16.mxu0 0
        %8729 = vmatpush2.bf16.msra.mxu0 0
        %8730 = vmatprep.subr.bf16.mxu0 0
        %8731 = vmatpush2.bf16.msra.mxu0 0
        %8732 = vmatprep.subr.bf16.mxu0 0
        %8733 = vmatpush2.bf16.msra.mxu0 0
        %8734 = vmatprep.subr.bf16.mxu0 0
        %8735 = vmatpush2.bf16.msra.mxu0 0
        %8736 = vmatprep.subr.bf16.mxu0 0
        %8737 = vmatpush2.bf16.msra.mxu0 0
        %8738 = vmatprep.subr.bf16.mxu0 0
        %8739 = vmatpush2.bf16.msra.mxu0 0
        %8740 = vmatprep.subr.bf16.mxu0 0
        %8741 = vmatpush2.bf16.msra.mxu0 0
        %8742 = vmatprep.mubr.bf16.mxu0 0
        %8743 = vmatmul.mubr.bf16.gmra.mxu0 %v8599
        %v8744 = vpop.f32.mrf.mxu0
        %v8745 = vadd.f32 %v8625, %v8744
        %v8746 = vpop.f32.mrf.mxu0
        %v8747 = vadd.f32 %v8629, %v8746
        %v8748 = vpop.f32.mrf.mxu0
        %v8749 = vadd.f32 %v8625, %v8748
        %v8750 = vpop.f32.mrf.mxu0
        %v8751 = vadd.f32 %v8629, %v8750
        %8752 = vmatprep.mubr.bf16.mxu0 0
        %8753 = vmatmul.mubr.bf16.gmra.mxu0 %v8600
        %v8754 = vpop.f32.mrf.mxu0
        %v8755 = vadd.f32 %v8625, %v8754
        %v8756 = vpop.f32.mrf.mxu0
        %v8757 = vadd.f32 %v8629, %v8756
        %v8758 = vpop.f32.mrf.mxu0
        %v8759 = vadd.f32 %v8625, %v8758
        %v8760 = vpop.f32.mrf.mxu0
        %v8761 = vadd.f32 %v8629, %v8760
        %8762 = vmatprep.mubr.bf16.mxu0 0
        %8763 = vmatmul.mubr.bf16.gmra.mxu0 %v8601
        %v8764 = vpop.f32.mrf.mxu0
        %v8765 = vadd.f32 %v8625, %v8764
        %v8766 = vpop.f32.mrf.mxu0
        %v8767 = vadd.f32 %v8629, %v8766
        %v8768 = vpop.f32.mrf.mxu0
        %v8769 = vadd.f32 %v8625, %v8768
        %v8770 = vpop.f32.mrf.mxu0
        %v8771 = vadd.f32 %v8629, %v8770
        %8772 = vmatprep.mubr.bf16.mxu0 0
        %8773 = vmatmul.mubr.bf16.gmra.mxu0 %v8602
        %v8774 = vpop.f32.mrf.mxu0
        %v8775 = vadd.f32 %v8625, %v8774
        %v8776 = vpop.f32.mrf.mxu0
        %v8777 = vadd.f32 %v8629, %v8776
        %v8778 = vpop.f32.mrf.mxu0
        %v8779 = vadd.f32 %v8625, %v8778
        %v8780 = vpop.f32.mrf.mxu0
        %v8781 = vadd.f32 %v8629, %v8780
        %8782 = vmatprep.mubr.bf16.mxu0 0
        %8783 = vmatmul.mubr.bf16.gmra.mxu0 %v8603
        %v8784 = vpop.f32.mrf.mxu0
        %v8785 = vadd.f32 %v8625, %v8784
        %v8786 = vpop.f32.mrf.mxu0
        %v8787 = vadd.f32 %v8629, %v8786
        %v8788 = vpop.f32.mrf.mxu0
        %v8789 = vadd.f32 %v8625, %v8788
        %v8790 = vpop.f32.mrf.mxu0
        %v8791 = vadd.f32 %v8629, %v8790
        %8792 = vmatprep.mubr.bf16.mxu0 0
        %8793 = vmatmul.mubr.bf16.gmra.mxu0 %v8604
        %v8794 = vpop.f32.mrf.mxu0
        %v8795 = vadd.f32 %v8625, %v8794
        %v8796 = vpop.f32.mrf.mxu0
        %v8797 = vadd.f32 %v8629, %v8796
        %v8798 = vpop.f32.mrf.mxu0
        %v8799 = vadd.f32 %v8625, %v8798
        %v8800 = vpop.f32.mrf.mxu0
        %v8801 = vadd.f32 %v8629, %v8800
        %8802 = vdwg.mxu0
        %v8803 = vmul.f32 %v8745, 0.5
        %v8804 = vmul.f32 %v8747, 0.5
        %v8805 = vmul.f32 %v8749, 0.5
        %v8806 = vmul.f32 %v8751, 0.5
        %v8807 = vmul.f32 %v8755, 0.5
        %v8808 = vmul.f32 %v8757, 0.5
        %v8809 = vmul.f32 %v8759, 0.5
        %v8810 = vmul.f32 %v8761, 0.5
        %v8811 = vmul.f32 %v8765, 0.5
        %v8812 = vmul.f32 %v8767, 0.5
        %v8813 = vmul.f32 %v8769, 0.5
        %v8814 = vmul.f32 %v8771, 0.5
        %v8815 = vmul.f32 %v8775, 0.5
        %v8816 = vmul.f32 %v8777, 0.5
        %v8817 = vmul.f32 %v8779, 0.5
        %v8818 = vmul.f32 %v8781, 0.5
        %v8819 = vmul.f32 %v8785, 0.5
        %v8820 = vmul.f32 %v8787, 0.5
        %v8821 = vmul.f32 %v8789, 0.5
        %v8822 = vmul.f32 %v8791, 0.5
        %v8823 = vmul.f32 %v8795, 0.5
        %v8824 = vmul.f32 %v8797, 0.5
        %v8825 = vmul.f32 %v8799, 0.5
        %v8826 = vmul.f32 %v8801, 0.5
        %v8827 = vmul.f32 %v8745, 0.044715
        %v8828 = vmul.f32 %v8747, 0.044715
        %v8829 = vmul.f32 %v8749, 0.044715
        %v8830 = vmul.f32 %v8751, 0.044715
        %v8831 = vmul.f32 %v8755, 0.044715
        %v8832 = vmul.f32 %v8757, 0.044715
        %v8833 = vmul.f32 %v8759, 0.044715
        %v8834 = vmul.f32 %v8761, 0.044715
        %v8835 = vmul.f32 %v8765, 0.044715
        %v8836 = vmul.f32 %v8767, 0.044715
        %v8837 = vmul.f32 %v8769, 0.044715
        %v8838 = vmul.f32 %v8771, 0.044715
        %v8839 = vmul.f32 %v8775, 0.044715
        %v8840 = vmul.f32 %v8777, 0.044715
        %v8841 = vmul.f32 %v8779, 0.044715
        %v8842 = vmul.f32 %v8781, 0.044715
        %v8843 = vmul.f32 %v8785, 0.044715
        %v8844 = vmul.f32 %v8787, 0.044715
        %v8845 = vmul.f32 %v8789, 0.044715
        %v8846 = vmul.f32 %v8791, 0.044715
        %v8847 = vmul.f32 %v8795, 0.044715
        %v8848 = vmul.f32 %v8797, 0.044715
        %v8849 = vmul.f32 %v8799, 0.044715
        %v8850 = vmul.f32 %v8801, 0.044715
        %v8851 = vmul.f32 %v8827, %v8745
        %v8852 = vmul.f32 %v8828, %v8747
        %v8853 = vmul.f32 %v8829, %v8749
        %v8854 = vmul.f32 %v8830, %v8751
        %v8855 = vmul.f32 %v8831, %v8755
        %v8856 = vmul.f32 %v8832, %v8757
        %v8857 = vmul.f32 %v8833, %v8759
        %v8858 = vmul.f32 %v8834, %v8761
        %v8859 = vmul.f32 %v8835, %v8765
        %v8860 = vmul.f32 %v8836, %v8767
        %v8861 = vmul.f32 %v8837, %v8769
        %v8862 = vmul.f32 %v8838, %v8771
        %v8863 = vmul.f32 %v8839, %v8775
        %v8864 = vmul.f32 %v8840, %v8777
        %v8865 = vmul.f32 %v8841, %v8779
        %v8866 = vmul.f32 %v8842, %v8781
        %v8867 = vmul.f32 %v8843, %v8785
        %v8868 = vmul.f32 %v8844, %v8787
        %v8869 = vmul.f32 %v8845, %v8789
        %v8870 = vmul.f32 %v8846, %v8791
        %v8871 = vmul.f32 %v8847, %v8795
        %v8872 = vmul.f32 %v8848, %v8797
        %v8873 = vmul.f32 %v8849, %v8799
        %v8874 = vmul.f32 %v8850, %v8801
        %v8875 = vmul.f32 %v8851, %v8745
        %v8876 = vmul.f32 %v8852, %v8747
        %v8877 = vmul.f32 %v8853, %v8749
        %v8878 = vmul.f32 %v8854, %v8751
        %v8879 = vmul.f32 %v8855, %v8755
        %v8880 = vmul.f32 %v8856, %v8757
        %v8881 = vmul.f32 %v8857, %v8759
        %v8882 = vmul.f32 %v8858, %v8761
        %v8883 = vmul.f32 %v8859, %v8765
        %v8884 = vmul.f32 %v8860, %v8767
        %v8885 = vmul.f32 %v8861, %v8769
        %v8886 = vmul.f32 %v8862, %v8771
        %v8887 = vmul.f32 %v8863, %v8775
        %v8888 = vmul.f32 %v8864, %v8777
        %v8889 = vmul.f32 %v8865, %v8779
        %v8890 = vmul.f32 %v8866, %v8781
        %v8891 = vmul.f32 %v8867, %v8785
        %v8892 = vmul.f32 %v8868, %v8787
        %v8893 = vmul.f32 %v8869, %v8789
        %v8894 = vmul.f32 %v8870, %v8791
        %v8895 = vmul.f32 %v8871, %v8795
        %v8896 = vmul.f32 %v8872, %v8797
        %v8897 = vmul.f32 %v8873, %v8799
        %v8898 = vmul.f32 %v8874, %v8801
        %v8899 = vadd.f32 %v8745, %v8875
        %v8900 = vadd.f32 %v8747, %v8876
        %v8901 = vadd.f32 %v8749, %v8877
        %v8902 = vadd.f32 %v8751, %v8878
        %v8903 = vadd.f32 %v8755, %v8879
        %v8904 = vadd.f32 %v8757, %v8880
        %v8905 = vadd.f32 %v8759, %v8881
        %v8906 = vadd.f32 %v8761, %v8882
        %v8907 = vadd.f32 %v8765, %v8883
        %v8908 = vadd.f32 %v8767, %v8884
        %v8909 = vadd.f32 %v8769, %v8885
        %v8910 = vadd.f32 %v8771, %v8886
        %v8911 = vadd.f32 %v8775, %v8887
        %v8912 = vadd.f32 %v8777, %v8888
        %v8913 = vadd.f32 %v8779, %v8889
        %v8914 = vadd.f32 %v8781, %v8890
        %v8915 = vadd.f32 %v8785, %v8891
        %v8916 = vadd.f32 %v8787, %v8892
        %v8917 = vadd.f32 %v8789, %v8893
        %v8918 = vadd.f32 %v8791, %v8894
        %v8919 = vadd.f32 %v8795, %v8895
        %v8920 = vadd.f32 %v8797, %v8896
        %v8921 = vadd.f32 %v8799, %v8897
        %v8922 = vadd.f32 %v8801, %v8898
        %v8923 = vmul.f32 %v8899, 0.7978846
        %v8924 = vmul.f32 %v8900, 0.7978846
        %v8925 = vmul.f32 %v8901, 0.7978846
        %v8926 = vmul.f32 %v8902, 0.7978846
        %v8927 = vmul.f32 %v8903, 0.7978846
        %v8928 = vmul.f32 %v8904, 0.7978846
        %v8929 = vmul.f32 %v8905, 0.7978846
        %v8930 = vmul.f32 %v8906, 0.7978846
        %v8931 = vmul.f32 %v8907, 0.7978846
        %v8932 = vmul.f32 %v8908, 0.7978846
        %v8933 = vmul.f32 %v8909, 0.7978846
        %v8934 = vmul.f32 %v8910, 0.7978846
        %v8935 = vmul.f32 %v8911, 0.7978846
        %v8936 = vmul.f32 %v8912, 0.7978846
        %v8937 = vmul.f32 %v8913, 0.7978846
        %v8938 = vmul.f32 %v8914, 0.7978846
        %v8939 = vmul.f32 %v8915, 0.7978846
        %v8940 = vmul.f32 %v8916, 0.7978846
        %v8941 = vmul.f32 %v8917, 0.7978846
        %v8942 = vmul.f32 %v8918, 0.7978846
        %v8943 = vmul.f32 %v8919, 0.7978846
        %v8944 = vmul.f32 %v8920, 0.7978846
        %v8945 = vmul.f32 %v8921, 0.7978846
        %v8946 = vmul.f32 %v8922, 0.7978846
        %v8947 = vtanh.pop %v8923
        %v8948 = vtanh.pop %v8924
        %v8949 = vtanh.pop %v8925
        %v8950 = vtanh.pop %v8926
        %v8951 = vtanh.pop %v8927
        %v8952 = vtanh.pop %v8928
        %v8953 = vtanh.pop %v8929
        %v8954 = vtanh.pop %v8930
        %v8955 = vtanh.pop %v8931
        %v8956 = vtanh.pop %v8932
        %v8957 = vtanh.pop %v8933
        %v8958 = vtanh.pop %v8934
        %v8959 = vtanh.pop %v8935
        %v8960 = vtanh.pop %v8936
        %v8961 = vtanh.pop %v8937
        %v8962 = vtanh.pop %v8938
        %v8963 = vtanh.pop %v8939
        %v8964 = vtanh.pop %v8940
        %v8965 = vtanh.pop %v8941
        %v8966 = vtanh.pop %v8942
        %v8967 = vtanh.pop %v8943
        %v8968 = vtanh.pop %v8944
        %v8969 = vtanh.pop %v8945
        %v8970 = vtanh.pop %v8946
        %v8971 = vadd.f32 %v8947, 1.0
        %v8972 = vadd.f32 %v8948, 1.0
        %v8973 = vadd.f32 %v8949, 1.0
        %v8974 = vadd.f32 %v8950, 1.0
        %v8975 = vadd.f32 %v8951, 1.0
        %v8976 = vadd.f32 %v8952, 1.0
        %v8977 = vadd.f32 %v8953, 1.0
        %v8978 = vadd.f32 %v8954, 1.0
        %v8979 = vadd.f32 %v8955, 1.0
        %v8980 = vadd.f32 %v8956, 1.0
        %v8981 = vadd.f32 %v8957, 1.0
        %v8982 = vadd.f32 %v8958, 1.0
        %v8983 = vadd.f32 %v8959, 1.0
        %v8984 = vadd.f32 %v8960, 1.0
        %v8985 = vadd.f32 %v8961, 1.0
        %v8986 = vadd.f32 %v8962, 1.0
        %v8987 = vadd.f32 %v8963, 1.0
        %v8988 = vadd.f32 %v8964, 1.0
        %v8989 = vadd.f32 %v8965, 1.0
        %v8990 = vadd.f32 %v8966, 1.0
        %v8991 = vadd.f32 %v8967, 1.0
        %v8992 = vadd.f32 %v8968, 1.0
        %v8993 = vadd.f32 %v8969, 1.0
        %v8994 = vadd.f32 %v8970, 1.0
        %v8995 = vmul.f32 %v8803, %v8971
        %v8996 = vmul.f32 %v8804, %v8972
        %v8997 = vmul.f32 %v8805, %v8973
        %v8998 = vmul.f32 %v8806, %v8974
        %v8999 = vmul.f32 %v8807, %v8975
        %v9000 = vmul.f32 %v8808, %v8976
        %v9001 = vmul.f32 %v8809, %v8977
        %v9002 = vmul.f32 %v8810, %v8978
        %v9003 = vmul.f32 %v8811, %v8979
        %v9004 = vmul.f32 %v8812, %v8980
        %v9005 = vmul.f32 %v8813, %v8981
        %v9006 = vmul.f32 %v8814, %v8982
        %v9007 = vmul.f32 %v8815, %v8983
        %v9008 = vmul.f32 %v8816, %v8984
        %v9009 = vmul.f32 %v8817, %v8985
        %v9010 = vmul.f32 %v8818, %v8986
        %v9011 = vmul.f32 %v8819, %v8987
        %v9012 = vmul.f32 %v8820, %v8988
        %v9013 = vmul.f32 %v8821, %v8989
        %v9014 = vmul.f32 %v8822, %v8990
        %v9015 = vmul.f32 %v8823, %v8991
        %v9016 = vmul.f32 %v8824, %v8992
        %v9017 = vmul.f32 %v8825, %v8993
        %v9018 = vmul.f32 %v8826, %v8994
        %v9019 = vpack.c.bf16 %v8997, %v8995
        %v9020 = vpack.c.bf16 %v8998, %v8996
        %v9021 = vpack.c.bf16 %v9001, %v8999
        %v9022 = vpack.c.bf16 %v9002, %v9000
        %v9023 = vpack.c.bf16 %v9005, %v9003
        %v9024 = vpack.c.bf16 %v9006, %v9004
        %v9025 = vpack.c.bf16 %v9009, %v9007
        %v9026 = vpack.c.bf16 %v9010, %v9008
        %v9027 = vpack.c.bf16 %v9013, %v9011
        %v9028 = vpack.c.bf16 %v9014, %v9012
        %v9029 = vpack.c.bf16 %v9017, %v9015
        %v9030 = vpack.c.bf16 %v9018, %v9016
        %s9031 = scalar_lea.vmem [#allocation9], 128
        %v9032 = vld [vmem:[%s9031] sm:$0xf]
        %v9033 = vld [vmem:[%s9031 + $0x4] sm:$0xf]
        %v9034 = vld [vmem:[%s9031 + $0x8] sm:$0xf]
        %v9035 = vld [vmem:[%s9031 + $0xc] sm:$0xf]
        %v9036 = vld [vmem:[%s9031 + $0x10] sm:$0xf]
        %v9037 = vld [vmem:[%s9031 + $0x14] sm:$0xf]
        %v9038 = vld [vmem:[%s9031 + $0x18] sm:$0xf]
        %v9039 = vld [vmem:[%s9031 + $0x1c] sm:$0xf]
        %v9040 = vld [vmem:[%s9031 + $0x20] sm:$0xf]
        %v9041 = vld [vmem:[%s9031 + $0x24] sm:$0xf]
        %v9042 = vld [vmem:[%s9031 + $0x28] sm:$0xf]
        %v9043 = vld [vmem:[%s9031 + $0x2c] sm:$0xf]
        %v9044 = vld [vmem:[%s9031 + $0x30] sm:$0xf]
        %v9045 = vld [vmem:[%s9031 + $0x34] sm:$0xf]
        %v9046 = vld [vmem:[%s9031 + $0x38] sm:$0xf]
        %v9047 = vld [vmem:[%s9031 + $0x3c] sm:$0xf]
        %v9048 = vld [vmem:[%s9031 + $0x40] sm:$0xf]
        %v9049 = vld [vmem:[%s9031 + $0x44] sm:$0xf]
        %v9050 = vld [vmem:[%s9031 + $0x48] sm:$0xf]
        %v9051 = vld [vmem:[%s9031 + $0x4c] sm:$0xf]
        %v9052 = vld [vmem:[%s9031 + $0x50] sm:$0xf]
        %v9053 = vld [vmem:[%s9031 + $0x54] sm:$0xf]
        %v9054 = vld [vmem:[%s9031 + $0x58] sm:$0xf]
        %v9055 = vld [vmem:[%s9031 + $0x5c] sm:$0xf]
        %v9056 = vld [vmem:[%s9031 + $0x60] sm:$0xf]
        %v9057 = vld [vmem:[%s9031 + $0x64] sm:$0xf]
        %v9058 = vld [vmem:[%s9031 + $0x68] sm:$0xf]
        %v9059 = vld [vmem:[%s9031 + $0x6c] sm:$0xf]
        %v9060 = vld [vmem:[%s9031 + $0x70] sm:$0xf]
        %v9061 = vld [vmem:[%s9031 + $0x74] sm:$0xf]
        %v9062 = vld [vmem:[%s9031 + $0x78] sm:$0xf]
        %v9063 = vld [vmem:[%s9031 + $0x7c] sm:$0xf]
        %v9064 = vlaneseq
        %v9065 = vshrl.u32 %v9064, 7
        %v9066 = vsub.s32 5, %v9065
        %v9067 = vrot.slane %v4997, %v9066
        %v9100 = vunpack.c.l.b16 %v9032
        %v9101 = vunpack.c.l.b16 %v9033
        %v9102 = vunpack.c.l.b16 %v9034
        %v9103 = vunpack.c.l.b16 %v9035
        %v9104 = vunpack.c.l.b16 %v9036
        %v9105 = vunpack.c.l.b16 %v9037
        %v9106 = vunpack.c.l.b16 %v9038
        %v9107 = vunpack.c.l.b16 %v9039
        %v9108 = vunpack.c.l.b16 %v9040
        %v9109 = vunpack.c.l.b16 %v9041
        %v9110 = vunpack.c.l.b16 %v9042
        %v9111 = vunpack.c.l.b16 %v9043
        %v9112 = vunpack.c.l.b16 %v9044
        %v9113 = vunpack.c.l.b16 %v9045
        %v9114 = vunpack.c.l.b16 %v9046
        %v9115 = vunpack.c.l.b16 %v9047
        %v9116 = vunpack.c.l.b16 %v9048
        %v9117 = vunpack.c.l.b16 %v9049
        %v9118 = vunpack.c.l.b16 %v9050
        %v9119 = vunpack.c.l.b16 %v9051
        %v9120 = vunpack.c.l.b16 %v9052
        %v9121 = vunpack.c.l.b16 %v9053
        %v9122 = vunpack.c.l.b16 %v9054
        %v9123 = vunpack.c.l.b16 %v9055
        %v9124 = vunpack.c.l.b16 %v9056
        %v9125 = vunpack.c.l.b16 %v9057
        %v9126 = vunpack.c.l.b16 %v9058
        %v9127 = vunpack.c.l.b16 %v9059
        %v9128 = vunpack.c.l.b16 %v9060
        %v9129 = vunpack.c.l.b16 %v9061
        %v9130 = vunpack.c.l.b16 %v9062
        %v9131 = vunpack.c.l.b16 %v9063
        %v9132 = vpack.c.b16 %v9101, %v9100
        %v9133 = vpack.c.b16 %v9103, %v9102
        %v9134 = vpack.c.b16 %v9105, %v9104
        %v9135 = vpack.c.b16 %v9107, %v9106
        %v9136 = vpack.c.b16 %v9109, %v9108
        %v9137 = vpack.c.b16 %v9111, %v9110
        %v9138 = vpack.c.b16 %v9113, %v9112
        %v9139 = vpack.c.b16 %v9115, %v9114
        %v9140 = vpack.c.b16 %v9117, %v9116
        %v9141 = vpack.c.b16 %v9119, %v9118
        %v9142 = vpack.c.b16 %v9121, %v9120
        %v9143 = vpack.c.b16 %v9123, %v9122
        %v9144 = vpack.c.b16 %v9125, %v9124
        %v9145 = vpack.c.b16 %v9127, %v9126
        %v9146 = vpack.c.b16 %v9129, %v9128
        %v9147 = vpack.c.b16 %v9131, %v9130
        %9164 = vmatprep.subr.bf16.mxu0 0
        %9165 = vmatpush1.bf16.msra.mxu0 %v9139
        %9166 = vmatprep.subr.bf16.mxu0 0
        %9167 = vmatpush1.bf16.msra.mxu0 %v9138
        %9168 = vmatprep.subr.bf16.mxu0 0
        %9169 = vmatpush1.bf16.msra.mxu0 %v9137
        %9170 = vmatprep.subr.bf16.mxu0 0
        %9171 = vmatpush1.bf16.msra.mxu0 %v9136
        %9172 = vmatprep.subr.bf16.mxu0 0
        %9173 = vmatpush1.bf16.msra.mxu0 %v9135
        %9174 = vmatprep.subr.bf16.mxu0 0
        %9175 = vmatpush1.bf16.msra.mxu0 %v9134
        %9176 = vmatprep.subr.bf16.mxu0 0
        %9177 = vmatpush1.bf16.msra.mxu0 %v9133
        %9178 = vmatprep.subr.bf16.mxu0 0
        %9179 = vmatpush1.bf16.msra.mxu0 %v9132
        %9180 = vmatprep.subr.bf16.mxu0 0
        %9181 = vmatpush2.bf16.msra.mxu0 %v9147
        %9182 = vmatprep.subr.bf16.mxu0 0
        %9183 = vmatpush2.bf16.msra.mxu0 %v9146
        %9184 = vmatprep.subr.bf16.mxu0 0
        %9185 = vmatpush2.bf16.msra.mxu0 %v9145
        %9186 = vmatprep.subr.bf16.mxu0 0
        %9187 = vmatpush2.bf16.msra.mxu0 %v9144
        %9188 = vmatprep.subr.bf16.mxu0 0
        %9189 = vmatpush2.bf16.msra.mxu0 %v9143
        %9190 = vmatprep.subr.bf16.mxu0 0
        %9191 = vmatpush2.bf16.msra.mxu0 %v9142
        %9192 = vmatprep.subr.bf16.mxu0 0
        %9193 = vmatpush2.bf16.msra.mxu0 %v9141
        %9194 = vmatprep.subr.bf16.mxu0 0
        %9195 = vmatpush2.bf16.msra.mxu0 %v9140
        %9196 = vmatprep.mubr.bf16.mxu0 %v9020
        %9197 = vmatmul.mubr.bf16.gmra.mxu0 %v9019
        %v9198 = vpop.f32.mrf.mxu0
        %v9199 = vadd.f32 %v9067, %v9198
        %v9200 = vpop.f32.mrf.mxu0
        %v9201 = vpop.f32.mrf.mxu0
        %v9202 = vpop.f32.mrf.mxu0
        %9203 = vmatprep.mubr.bf16.mxu0 %v9022
        %9204 = vmatmul.mubr.bf16.gmra.mxu0 %v9021
        %v9205 = vpop.f32.mrf.mxu0
        %v9206 = vpop.f32.mrf.mxu0
        %v9207 = vpop.f32.mrf.mxu0
        %v9208 = vadd.f32 %v9067, %v9207
        %v9209 = vpop.f32.mrf.mxu0
        %9210 = vmatprep.mubr.bf16.mxu0 %v9024
        %9211 = vmatmul.mubr.bf16.gmra.mxu0 %v9023
        %v9212 = vpop.f32.mrf.mxu0
        %v9213 = vpop.f32.mrf.mxu0
        %v9214 = vpop.f32.mrf.mxu0
        %v9215 = vpop.f32.mrf.mxu0
        %9216 = vmatprep.mubr.bf16.mxu0 %v9026
        %9217 = vmatmul.mubr.bf16.gmra.mxu0 %v9025
        %v9218 = vpop.f32.mrf.mxu0
        %v9219 = vadd.f32 %v9067, %v9218
        %v9220 = vpop.f32.mrf.mxu0
        %v9221 = vpop.f32.mrf.mxu0
        %v9222 = vpop.f32.mrf.mxu0
        %9223 = vmatprep.mubr.bf16.mxu0 %v9028
        %9224 = vmatmul.mubr.bf16.gmra.mxu0 %v9027
        %v9225 = vpop.f32.mrf.mxu0
        %v9226 = vpop.f32.mrf.mxu0
        %v9227 = vpop.f32.mrf.mxu0
        %v9228 = vadd.f32 %v9067, %v9227
        %v9229 = vpop.f32.mrf.mxu0
        %9230 = vmatprep.mubr.bf16.mxu0 %v9030
        %9231 = vmatmul.mubr.bf16.gmra.mxu0 %v9029
        %v9232 = vpop.f32.mrf.mxu0
        %v9233 = vpop.f32.mrf.mxu0
        %v9234 = vpop.f32.mrf.mxu0
        %v9235 = vpop.f32.mrf.mxu0
        %9236 = vdwg.mxu0
        %v9237 = vadd.f32 %v8423, %v9199
        %v9238 = vadd.f32 %v8426, %v9208
        %v9239 = vadd.f32 %v8429, %v9219
        %v9240 = vadd.f32 %v8432, %v9228
        %v9242 = vrot.slane %v9238, 7
        %v9245 = vrot.slane %v9239, 6
        %v9248 = vrot.slane %v9240, 5
        %vm9250 = vcmask 1040384
        %v9251 = vsel %vm9250, %v9237, %v9242
        %vm9252 = vcmask 1041408
        %v9253 = vsel %vm9252, %v9251, %v9245
        %vm9254 = vcmask 1042432
        %v9255 = vsel %vm9254, %v9253, %v9248
        %v9256 = vld [vmem:[%s8] sm:$0x7]
        %v9257 = vsel %vm1600, %v9255, 0.0
        %9258 = vadd.xlane.f32.xlu0 %v9257
        %v9259 = vpop.xlane.xlu0 %9258
        %v9260 = vmul.f32 %v9259, %v727
        %v9261 = vsub.f32 %v9255, %v9260
        %v9262 = vmul.f32 %v9261, %v9261
        %v9263 = vsel %vm1600, %v9262, 0.0
        %9264 = vadd.xlane.f32.xlu0 %v9263
        %v9265 = vpop.xlane.xlu0 %9264
        %v9266 = vmul.f32 %v9265, %v727
        %v9267 = vadd.f32 %v9266, 1e-05
        %v9268 = vrsqrt.pop %v9267
        %v9269 = vmul.f32 %v9261, %v9268
        %v9270 = vlaneseq
        %v9271 = vshrl.u32 %v9270, 7
        %v9272 = vsub.s32 0, %v9271
        %v9273 = vrot.slane %v9256, %v9272
        %v9274 = vmul.f32 %v9269, %v9273
        %v9275 = vlaneseq
        %v9276 = vshrl.u32 %v9275, 7
        %v9277 = vsub.s32 1, %v9276
        %v9278 = vrot.slane %v9256, %v9277
        %v9279 = vadd.f32 %v9274, %v9278
        %v9280 = vpack.c.bf16 %v9279, %v9279
        %v9281 = vld [vmem:[%s7] sm:$0xf]
        %v9282 = vld [vmem:[%s7 + $0x4] sm:$0xf]
        %v9283 = vld [vmem:[%s7 + $0x8] sm:$0xf]
        %v9284 = vld [vmem:[%s7 + $0xc] sm:$0xf]
        %v9285 = vld [vmem:[%s7 + $0x10] sm:$0xf]
        %v9286 = vld [vmem:[%s7 + $0x14] sm:$0xf]
        %v9287 = vld [vmem:[%s7 + $0x18] sm:$0xf]
        %v9288 = vld [vmem:[%s7 + $0x1c] sm:$0xf]
        %v9289 = vld [vmem:[%s7 + $0x20] sm:$0xf]
        %v9290 = vld [vmem:[%s7 + $0x24] sm:$0xf]
        %v9291 = vld [vmem:[%s7 + $0x28] sm:$0xf]
        %v9292 = vld [vmem:[%s7 + $0x2c] sm:$0xf]
        %v9293 = vld [vmem:[%s7 + $0x30] sm:$0xf]
        %v9294 = vld [vmem:[%s7 + $0x34] sm:$0xf]
        %v9295 = vld [vmem:[%s7 + $0x38] sm:$0xf]
        %v9296 = vld [vmem:[%s7 + $0x3c] sm:$0xf]
        %v9297 = vlaneseq
        %v9298 = vshrl.u32 %v9297, 7
        %v9299 = vsub.s32 2, %v9298
        %v9300 = vrot.slane %v9256, %v9299
        %v9317 = vunpack.c.l.b16 %v9281
        %v9318 = vunpack.c.l.b16 %v9282
        %v9319 = vunpack.c.l.b16 %v9283
        %v9320 = vunpack.c.l.b16 %v9284
        %v9321 = vunpack.c.l.b16 %v9285
        %v9322 = vunpack.c.l.b16 %v9286
        %v9323 = vunpack.c.l.b16 %v9287
        %v9324 = vunpack.c.l.b16 %v9288
        %v9325 = vunpack.c.l.b16 %v9289
        %v9326 = vunpack.c.l.b16 %v9290
        %v9327 = vunpack.c.l.b16 %v9291
        %v9328 = vunpack.c.l.b16 %v9292
        %v9329 = vunpack.c.l.b16 %v9293
        %v9330 = vunpack.c.l.b16 %v9294
        %v9331 = vunpack.c.l.b16 %v9295
        %v9332 = vunpack.c.l.b16 %v9296
        %v9333 = vpack.c.b16 %v9318, %v9317
        %v9334 = vpack.c.b16 %v9320, %v9319
        %v9335 = vpack.c.b16 %v9322, %v9321
        %v9336 = vpack.c.b16 %v9324, %v9323
        %v9337 = vpack.c.b16 %v9326, %v9325
        %v9338 = vpack.c.b16 %v9328, %v9327
        %v9339 = vpack.c.b16 %v9330, %v9329
        %v9340 = vpack.c.b16 %v9332, %v9331
        %9349 = vmatprep.subr.bf16.mxu0 0
        %9350 = vmatpush1.bf16.msra.mxu0 %v9340
        %9351 = vmatprep.subr.bf16.mxu0 0
        %9352 = vmatpush1.bf16.msra.mxu0 %v9339
        %9353 = vmatprep.subr.bf16.mxu0 0
        %9354 = vmatpush1.bf16.msra.mxu0 %v9338
        %9355 = vmatprep.subr.bf16.mxu0 0
        %9356 = vmatpush1.bf16.msra.mxu0 %v9337
        %9357 = vmatprep.subr.bf16.mxu0 0
        %9358 = vmatpush1.bf16.msra.mxu0 %v9336
        %9359 = vmatprep.subr.bf16.mxu0 0
        %9360 = vmatpush1.bf16.msra.mxu0 %v9335
        %9361 = vmatprep.subr.bf16.mxu0 0
        %9362 = vmatpush1.bf16.msra.mxu0 %v9334
        %9363 = vmatprep.subr.bf16.mxu0 0
        %9364 = vmatpush1.bf16.msra.mxu0 %v9333
        %9365 = vmatprep.subr.bf16.mxu0 0
        %9366 = vmatpush2.bf16.msra.mxu0 0
        %9367 = vmatprep.subr.bf16.mxu0 0
        %9368 = vmatpush2.bf16.msra.mxu0 0
        %9369 = vmatprep.subr.bf16.mxu0 0
        %9370 = vmatpush2.bf16.msra.mxu0 0
        %9371 = vmatprep.subr.bf16.mxu0 0
        %9372 = vmatpush2.bf16.msra.mxu0 0
        %9373 = vmatprep.subr.bf16.mxu0 0
        %9374 = vmatpush2.bf16.msra.mxu0 0
        %9375 = vmatprep.subr.bf16.mxu0 0
        %9376 = vmatpush2.bf16.msra.mxu0 0
        %9377 = vmatprep.subr.bf16.mxu0 0
        %9378 = vmatpush2.bf16.msra.mxu0 0
        %9379 = vmatprep.subr.bf16.mxu0 0
        %9380 = vmatpush2.bf16.msra.mxu0 0
        %9381 = vmatprep.mubr.bf16.mxu0 0
        %9382 = vmatmul.mubr.bf16.gmra.mxu0 %v9280
        %v9383 = vpop.f32.mrf.mxu0
        %v9384 = vadd.f32 %v9300, %v9383
        %v9385 = vpop.f32.mrf.mxu0
        %v9386 = vpop.f32.mrf.mxu0
        %v9387 = vpop.f32.mrf.mxu0
        %9388 = vdwg.mxu0
        %vm9389 = vcmask 125952
        %9390 = vst.msk [vmem:[%s387] sm:$0xf] %vm9389, %v9384
        %s9391 = sand.u32 %s228, 1
        %s9392 = scalar_lea.sflag [#allocation5], %s9391
        %s9393 = sand.u32 %s228, 1
        %s9394 = smul.addr %s9393, 4
        %s9395 = scalar_lea.vmem [#allocation11], %s9394
        // Predicated region
        $region73: #{tpu_custom_call.1} parent=55 // pred_check
          %p9396 = pneg %p238
        $region74: #{tpu_custom_call.1} parent=55 // pred_check_branch
          %9398 = sbr.rel (%p9396) target = $region76
        $region75: #{tpu_custom_call.1} parent=55 // pred_region
          %s9400 = ssub.s32 64, 64
          %9401 = vsyncadd %s9392, %s9400
          %s9402 = smul.addr %s26, 64
          %s9403 = scalar_lea.hbm %s9, %s9402
          %s9405 = sshll.u32 %s9395, 4
          %s9406 = int_to_ptr.vmem [resolvable:$true] %s9405
          %9408 = dma.vmem_to_hbm [thread:$0]  %s9406, 64, %s9403, %s9392
        $region76: #{tpu_custom_call.1} parent=55 // pred_fallthru
          _
      $region56: #{tpu_custom_call.1} parent=5 // pred_fallthru
        _
      %p9409 = scmp.le.s32.totalorder 2, %s21
      // Predicated region
      $region77: #{tpu_custom_call.1} parent=5 // pred_check
        %p9410 = pneg %p9409
      $region78: #{tpu_custom_call.1} parent=5 // pred_check_branch
        %9412 = sbr.rel (%p9410) target = $region80
      $region79: #{tpu_custom_call.1} parent=5 // pred_region
        %s9413 = ssub.s32 %s21, 2
        // Predicated region
        $region81: #{tpu_custom_call.1} parent=79 // pred_check
          %p9414 = pneg %p244
        $region82: #{tpu_custom_call.1} parent=79 // pred_check_branch
          %9416 = sbr.rel (%p9414) target = $region84
        $region83: #{tpu_custom_call.1} parent=79 // pred_region
          %s9417 = sand.u32 %s229, 1
          %s9418 = scalar_lea.sflag [#allocation5], %s9417
          %s9419 = sand.u32 %s229, 1
          %s9420 = smul.addr %s9419, 4
          %s9421 = scalar_lea.vmem [#allocation11], %s9420
          %9422 = dma.done %s9418, 64
        $region84: #{tpu_custom_call.1} parent=79 // pred_fallthru
          _
      $region80: #{tpu_custom_call.1} parent=5 // pred_fallthru
        _
    $region6: #{tpu_custom_call.1} parent=1 // loop_footer
      %s25 = sadd.s32 1, %s21
    $region7: #{tpu_custom_call.1} parent=1 // loop_footer_branch
      %20 = sbr.rel target = $region3
    $region8: #{tpu_custom_call.1} parent=1 // loop_exit
      _
    %9423 = vsyncpa [#allocation4], 1
    %s9424 = scalar_lea.sflag [#allocation4], 1
    %9425 = vsyncpa %s9424, 1
    %9426 = vsyncpa [#allocation7], 1
    %9427 = vsyncpa [#allocation10], 1
    %9428 = vsyncpa [#allocation5], 1
    %s9429 = scalar_lea.sflag [#allocation5], 1
    %9430 = vsyncpa %s9429, 1

</llo_original>
